<compile_context>
chip_gen: v6e
topology: v6e:2x2x1
jax: 0.10.0
libtpu: 0.0.40
codegen_flags: <defaults>
</compile_context>

<pallas_src>
import functools

import jax
import jax.numpy as jnp
from jax.experimental import pallas as pl
from jax.experimental.pallas import tpu as pltpu

BETA = 0.25          # commitment-cost beta of the inner VectorQuantizer
_BIG = 1e30          # "distance" of padded (non-existent) codebook rows


def _round_up(x, m):
    return (x + m - 1) // m * m


def _rvq_kernel(z_ref, cb_ref, cbt_ref, esq_ref,
                zq_ref, zstack_ref, idx_ref, sse_ref, *, n_valid_tokens):
    """One grid step pushes a tile of tokens through ALL quantizer stages.

    z_ref      : (TN, Dp)      input tokens (tile), feature dim zero-padded
    cb_ref     : (Q, Kp, Dp)   all codebooks, f32 (resident)       -- one-hot gather
    cbt_ref    : (Q, Dp, Kp)   pre-transposed codebooks (resident) -- distance matmul
                               stored in the matmul dtype (bf16 by default)
    esq_ref    : (Q, Kp)       precomputed ||e||^2 (padded rows = +_BIG), f32 (resident)
    zq_ref     : (TN, Dp)      sum of quantized residuals
    zstack_ref : (TN, Q*Dp)    per-stage quantized residuals, lane-dense layout
    idx_ref    : (TN, Q)       per-stage code indices (int32)
    sse_ref    : (1, 1, Q)     per-tile partial sum of squared errors per stage
    n_valid_tokens : real token count N, or None if the token axis needed no padding
    """
    Q, Kp, Dp = cb_ref.shape
    tn = z_ref.shape[0]
    mm_dtype = cbt_ref.dtype

    r = z_ref[...].astype(jnp.float32)                      # running residual (TN, Dp)
    zq = jnp.zeros_like(r)
    # ||r||^2 per row, telescoped across stages: ||r_{q+1}||^2 = ||r_q||^2 + dmin_q.
    r_sq = jnp.sum(r * r, axis=1, keepdims=True)            # (TN, 1)

    # Hoisted: JAX does not CSE iota/broadcast, so build the lane-id plane once.
    lane_ids = jax.lax.broadcasted_iota(jnp.int32, (tn, Kp), 1)

    if n_valid_tokens is None:
        valid = None
    else:
        row = (jax.lax.broadcasted_iota(jnp.int32, (tn, 1), 0)
               + pl.program_id(0) * tn)
        valid = row < n_valid_tokens                         # (TN, 1) bool

    idx_cols, sse_cols = [], []
    for q in range(Q):                          # static unroll over quantizer stages
        cb = cb_ref[q]                          # (Kp, Dp) f32
        cbt = cbt_ref[q]                        # (Dp, Kp) mm_dtype (no in-kernel transpose)
        e_sq = esq_ref[q:q + 1, :]              # (1, Kp)  f32     (no in-kernel norm)

        # ||r||^2 is constant per row -> dropped (argmin-invariant).  bf16 operands keep
        # the MXU on its native path on all generations; accumulation stays f32.
        scores = jnp.dot(r.astype(mm_dtype), cbt,
                         preferred_element_type=jnp.float32)            # (TN, Kp)
        d = e_sq - 2.0 * scores

        dmin = jnp.min(d, axis=1, keepdims=True)                        # (TN, 1)
        idx2 = jnp.min(jnp.where(d == dmin, lane_ids, Kp), axis=1,
                       keepdims=True)                                   # first match

        onehot = (lane_ids == idx2).astype(jnp.float32)                 # (TN, Kp)
        # Gather stays f32 so the emitted vectors are the f32 codebook rows.
        z_res = jnp.dot(onehot, cb, preferred_element_type=jnp.float32)  # (TN, Dp)

        # Telescoped SSE: ||e_idx - r||^2 = dmin + ||r||^2 (exact in real arithmetic).
        err = dmin + r_sq
        if valid is not None:
            err = jnp.where(valid, err, 0.0)
        sse_cols.append(jnp.sum(err).reshape(1, 1))
        idx_cols.append(idx2)

        # Lane-dense, contiguous placement of this stage's slab (unmasked stores).
        zstack_ref[:, q * Dp:(q + 1) * Dp] = z_res.astype(zstack_ref.dtype)

        r_sq = r_sq + dmin
        zq = zq + z_res
        r = r - z_res

    zq_ref[...] = zq.astype(zq_ref.dtype)
    idx_ref[...] = jnp.concatenate(idx_cols, axis=1)
    sse_ref[...] = jnp.concatenate(sse_cols, axis=1).reshape(1, 1, Q)


@functools.partial(jax.jit, static_argnames=("token_tile", "dist_dtype"))
def residual_vector_quantize(z, codebooks, *, token_tile=256, dist_dtype=jnp.bfloat16):
    """Forward pass of ResidualVectorQuantizer.

    z         : (B, T, e_dim) float32
    codebooks : (num_quantizers, n_e, e_dim) float32
    returns   : (z_q (B,T,D), z_stack (B,Q,T,D), mean_loss scalar, indices (B*T, Q))
    """
    B, T, D = z.shape
    Q, K, _ = codebooks.shape
    N = B * T

    # MXU / vreg friendly padding: lanes (codes K and features D) to multiples of 128.
    Dp = _round_up(D, 128)
    Kp = _round_up(K, 128)

    # Token tile: MXU-M aligned; pad the token axis to whole tiles (no huge-tile fallback).
    tt = token_tile if N >= token_tile else _round_up(N, 8)
    Np = _round_up(N, tt)
    n_tiles = Np // tt

    z_flat = jnp.pad(z.reshape(N, D).astype(jnp.float32),
                     ((0, Np - N), (0, Dp - D)))
    cb = jnp.pad(codebooks.astype(jnp.float32),
                 ((0, 0), (0, Kp - K), (0, Dp - D)))                  # (Q, Kp, Dp)
    e_sq = jnp.sum(cb * cb, axis=2)                                   # (Q, Kp)
    e_sq = jnp.where(jnp.arange(Kp)[None, :] < K, e_sq, _BIG)         # padded rows never win
    cb_t = jnp.swapaxes(cb, 1, 2).astype(dist_dtype)                  # (Q, Dp, Kp)

    kernel = functools.partial(_rvq_kernel,
                               n_valid_tokens=None if Np == N else N)

    out_shapes = (
        jax.ShapeDtypeStruct((Np, Dp), jnp.float32),           # z_q
        jax.ShapeDtypeStruct((Np, Q * Dp), jnp.float32),       # z_stack, lane-dense
        jax.ShapeDtypeStruct((Np, Q), jnp.int32),              # indices
        jax.ShapeDtypeStruct((n_tiles, 1, Q), jnp.float32),    # per-tile SSE partials
    )

    grid_spec = pltpu.PrefetchScalarGridSpec(
        num_scalar_prefetch=0,
        grid=(n_tiles,),
        in_specs=[
            pl.BlockSpec((tt, Dp), lambda i: (i, 0)),
            # Grid-invariant residents.
            # TODO(synk): pipeline_mode=pl.Buffered(1) on these three once single-buffered
            # residents are supported in the target JAX (halves their VMEM at prod sizes).
            pl.BlockSpec((Q, Kp, Dp), lambda i: (0, 0, 0)),
            pl.BlockSpec((Q, Dp, Kp), lambda i: (0, 0, 0)),
            pl.BlockSpec((Q, Kp), lambda i: (0, 0)),
        ],
        out_specs=[
            pl.BlockSpec((tt, Dp), lambda i: (i, 0)),
            pl.BlockSpec((tt, Q * Dp), lambda i: (i, 0)),
            pl.BlockSpec((tt, Q), lambda i: (i, 0)),
            pl.BlockSpec((1, 1, Q), lambda i: (i, 0, 0)),
        ],
    )

    # Explicit scoped-VMEM budget: 2x residents (default double-buffering) +
    # double-buffered I/O tiles + live (TN,Kp) temps + headroom.
    mm_bytes = jnp.dtype(dist_dtype).itemsize
    resident = Q * Kp * Dp * 4 + Q * Dp * Kp * mm_bytes + Q * Kp * 4
    io_tile = tt * Dp * 4 * 2 + tt * Q * Dp * 4 + tt * Q * 4 + Q * 4
    temps = 4 * tt * Kp * 4
    est = 2 * resident + 2 * io_tile + temps + (4 << 20)
    # TODO(synk): derive the cap per generation (64 MiB physical on v7x, 128 on v5e/v6e).
    vmem_limit = int(min(max(est, 32 << 20), 56 << 20))

    cost = pl.CostEstimate(
        flops=4 * Np * Kp * Dp * Q,                         # distance + gather matmuls
        transcendentals=0,
        bytes_accessed=4 * (Np * Dp * (2 + Q) + Np * Q) + resident,
    )

    z_q_flat, z_stack_flat, indices, sse = pl.pallas_call(
        kernel,
        out_shape=out_shapes,
        grid_spec=grid_spec,
        compiler_params=pltpu.CompilerParams(
            dimension_semantics=("parallel",),   # no cross-tile state -> megacore-friendly
            vmem_limit_bytes=vmem_limit,
        ),
        cost_estimate=cost,
    )(z_flat, cb, cb_t, e_sq)

    # Loss: per-quantizer mean over the N*D *real* elements, mean over quantizers,
    # times (1 + beta) (codebook + commitment terms of the inner VQ).
    mean_loss = (1.0 + BETA) * jnp.sum(sse) / (Q * N * D)

    z_q = z_q_flat[:N, :D].reshape(B, T, D)
    # (Np, Q*Dp) -> (N, Q, Dp) -> (B, T, Q, D) -> (B, Q, T, D) == torch.stack(z_stack, 1)
    z_stack = (z_stack_flat[:N].reshape(N, Q, Dp)[:, :, :D]
               .reshape(B, T, Q, D).transpose(0, 2, 1, 3))
    return z_q, z_stack, mean_loss, indices[:N]


def _check_outputs(z, codebooks, z_q, z_stack, mean_loss, indices, dist_atol, loss_tol):
    """Follow the kernel's code choices with a plain-JAX f32 recomputation and check:
    (a) every chosen code is within dist_atol of the true minimum distance,
    (b) z_stack / z_q / loss are consistent with those choices."""
    B, T, D = z.shape
    Q, K, _ = codebooks.shape
    N = B * T
    r = z.reshape(N, D).astype(jnp.float32)
    zq = jnp.zeros_like(r)
    sse = jnp.float32(0.0)
    for q in range(Q):
        cb = codebooks[q].astype(jnp.float32)
        idx = indices[:, q]
        assert bool(jnp.all((idx >= 0) & (idx < K)))
        d = (jnp.sum(r * r, axis=1, keepdims=True)
             + jnp.sum(cb * cb, axis=1)[None, :]
             - 2.0 * jnp.dot(r, cb.T, precision=jax.lax.Precision.HIGHEST))
        chosen = jnp.take_along_axis(d, idx[:, None], axis=1)[:, 0]
        gap = float(jnp.max(chosen - jnp.min(d, axis=1)))
        assert gap <= dist_atol, f"stage {q}: argmin gap {gap} > {dist_atol}"
        z_res = cb[idx]
        assert jnp.allclose(z_stack[:, q].reshape(N, D), z_res, atol=1e-4)
        sse = sse + jnp.sum((z_res - r) ** 2)
        zq = zq + z_res
        r = r - z_res
    assert jnp.allclose(z_q, zq.reshape(B, T, D), atol=5e-4)
    loss_ref = (1.0 + BETA) * sse / (Q * N * D)
    assert jnp.allclose(mean_loss, loss_ref, atol=loss_tol, rtol=loss_tol), \
        (float(mean_loss), float(loss_ref))


if __name__ == "__main__":
    # Module hyper-parameters (small, consistent with __init__(n_e, e_dim, num_quantizers)).
    n_e, e_dim, num_quantizers = 64, 32, 4
    B, T = 2, 200      # 400 tokens -> 2 token tiles of 256 with masked padding rows

    key = jax.random.PRNGKey(0)
    kz, kc = jax.random.split(key)
    z = jax.random.normal(kz, (B, T, e_dim), dtype=jnp.float32)
    # Deterministic codebook init, like nn.Embedding.weight.uniform_(-1/n_e, 1/n_e).
    codebooks = jax.random.uniform(
        kc, (num_quantizers, n_e, e_dim), dtype=jnp.float32,
        minval=-1.0 / n_e, maxval=1.0 / n_e)

    # Default (perf) path: bf16 distance matmul, f32 gather.
    out = residual_vector_quantize(z, codebooks)
    jax.block_until_ready(out)
    z_q, z_stack, mean_loss, indices = out
    assert z_q.shape == (B, T, e_dim)
    assert z_stack.shape == (B, num_quantizers, T, e_dim)
    assert indices.shape == (B * T, num_quantizers)
    _check_outputs(z, codebooks, z_q, z_stack, mean_loss, indices,
                   dist_atol=5e-3, loss_tol=1e-3)

    # Full-f32 distance path (closest to the PyTorch f32 argmin behaviour).
    out32 = residual_vector_quantize(z, codebooks, dist_dtype=jnp.float32)
    jax.block_until_ready(out32)
    _check_outputs(z, codebooks, *out32, dist_atol=1e-3, loss_tol=1e-4)

    print("KERNEL_OK")
</pallas_src>

<mosaic_0001>
module attributes {stable_mosaic.version = 11 : i64} {
  func.func @_rvq_kernel(%arg0: i32, %arg1: memref<256x128xf32, #tpu.memory_space<vmem>>, %arg2: memref<4x128x128xf32, #tpu.memory_space<vmem>>, %arg3: memref<4x128x128xbf16, #tpu.memory_space<vmem>>, %arg4: memref<4x128xf32, #tpu.memory_space<vmem>>, %arg5: memref<256x128xf32, #tpu.memory_space<vmem>>, %arg6: memref<256x512xf32, #tpu.memory_space<vmem>>, %arg7: memref<256x4xi32, #tpu.memory_space<vmem>>, %arg8: memref<1x1x4xf32, #tpu.memory_space<vmem>>) attributes {dimension_semantics = [#tpu.dimension_semantics<parallel>], iteration_bounds = array<i64: 2>, scalar_prefetch = 0 : i64, scratch_operands = 0 : i64, tpu.core_type = #tpu.core_type<tc>, window_params = [{transform_indices = @transform_0, window_bounds = array<i64: 256, 128>}, {pipeline_mode = #tpu.pipeline_mode<synchronous>, transform_indices = @transform_1, window_bounds = array<i64: 4, 128, 128>}, {pipeline_mode = #tpu.pipeline_mode<synchronous>, transform_indices = @transform_2, window_bounds = array<i64: 4, 128, 128>}, {pipeline_mode = #tpu.pipeline_mode<synchronous>, transform_indices = @transform_3, window_bounds = array<i64: 4, 128>}, {transform_indices = @transform_4, window_bounds = array<i64: 256, 128>}, {transform_indices = @transform_5, window_bounds = array<i64: 256, 512>}, {transform_indices = @transform_6, window_bounds = array<i64: 256, 4>}, {transform_indices = @transform_7, window_bounds = array<i64: 1, 1, 4>}]} {
    %c0 = arith.constant 0 : index
    %c0_0 = arith.constant 0 : index
    %0 = vector.load %arg1[%c0, %c0_0] : memref<256x128xf32, #tpu.memory_space<vmem>>, vector<256x128xf32>
    %cst = arith.constant 0.000000e+00 : f32
    %1 = vector.broadcast %cst : f32 to vector<256x128xf32>
    %2 = arith.mulf %0, %0 : vector<256x128xf32>
    %cst_1 = arith.constant dense<0.000000e+00> : vector<256xf32>
    %3 = vector.multi_reduction <add>, %2, %cst_1 [1] : vector<256x128xf32> to vector<256xf32>
    %4 = vector.shape_cast %3 : vector<256xf32> to vector<256x1xf32>
    %5 = tpu.iota {dimensions = array<i32: 1>} : vector<256x128xi32>
    %6 = tpu.iota {dimensions = array<i32: 0>} : vector<256x1xi32>
    %c256_i32 = arith.constant 256 : i32
    %7 = arith.muli %arg0, %c256_i32 : i32
    %8 = vector.broadcast %7 : i32 to vector<256x1xi32>
    %9 = arith.addi %6, %8 : vector<256x1xi32>
    %c400_i32 = arith.constant 400 : i32
    %10 = vector.broadcast %c400_i32 : i32 to vector<256x1xi32>
    %11 = arith.cmpi slt, %9, %10 : vector<256x1xi32>
    %c0_2 = arith.constant 0 : index
    %c0_3 = arith.constant 0 : index
    %c0_4 = arith.constant 0 : index
    %12 = vector.load %arg2[%c0_2, %c0_3, %c0_4] : memref<4x128x128xf32, #tpu.memory_space<vmem>>, vector<1x128x128xf32>
    %13 = vector.shape_cast %12 : vector<1x128x128xf32> to vector<128x128xf32>
    %c0_5 = arith.constant 0 : index
    %c0_6 = arith.constant 0 : index
    %c0_7 = arith.constant 0 : index
    %14 = vector.load %arg3[%c0_5, %c0_6, %c0_7] : memref<4x128x128xbf16, #tpu.memory_space<vmem>>, vector<1x128x128xbf16>
    %15 = vector.shape_cast %14 : vector<1x128x128xbf16> to vector<128x128xbf16>
    %c0_8 = arith.constant 0 : index
    %c0_9 = arith.constant 0 : index
    %16 = vector.load %arg4[%c0_8, %c0_9] : memref<4x128xf32, #tpu.memory_space<vmem>>, vector<1x128xf32>
    %17 = arith.truncf %0 : vector<256x128xf32> to vector<256x128xbf16>
    %cst_10 = arith.constant dense<0.000000e+00> : vector<256x128xf32>
    %18 = tpu.matmul %17, %15, %cst_10 {dimension_numbers = #tpu.dot_dimension_numbers<[1], [0], [0], [1], [0, 0, 1, 1], [], []>} : vector<256x128xbf16>, vector<128x128xbf16>, vector<256x128xf32> -> vector<256x128xf32>
    %cst_11 = arith.constant 2.000000e+00 : f32
    %19 = vector.broadcast %cst_11 : f32 to vector<256x128xf32>
    %20 = arith.mulf %19, %18 : vector<256x128xf32>
    %21 = vector.broadcast %16 : vector<1x128xf32> to vector<256x128xf32>
    %22 = arith.subf %21, %20 : vector<256x128xf32>
    %cst_12 = arith.constant dense<0x7F800000> : vector<256xf32>
    %23 = vector.multi_reduction <minimumf>, %22, %cst_12 [1] : vector<256x128xf32> to vector<256xf32>
    %24 = vector.shape_cast %23 : vector<256xf32> to vector<256x1xf32>
    %25 = vector.broadcast %24 : vector<256x1xf32> to vector<256x128xf32>
    %26 = arith.cmpf oeq, %22, %25 : vector<256x128xf32>
    %c128_i32 = arith.constant 128 : i32
    %27 = vector.broadcast %c128_i32 : i32 to vector<256x128xi32>
    %28 = arith.select %26, %5, %27 : vector<256x128xi1>, vector<256x128xi32>
    %cst_13 = arith.constant dense<2147483647> : vector<256xi32>
    %29 = vector.multi_reduction <minsi>, %28, %cst_13 [1] : vector<256x128xi32> to vector<256xi32>
    %30 = vector.shape_cast %29 : vector<256xi32> to vector<256x1xi32>
    %31 = vector.broadcast %30 : vector<256x1xi32> to vector<256x128xi32>
    %32 = arith.cmpi eq, %5, %31 : vector<256x128xi32>
    %33 = arith.extui %32 : vector<256x128xi1> to vector<256x128xi32>
    %34 = arith.sitofp %33 : vector<256x128xi32> to vector<256x128xf32>
    %cst_14 = arith.constant dense<0.000000e+00> : vector<256x128xf32>
    %35 = tpu.matmul %34, %13, %cst_14 {dimension_numbers = #tpu.dot_dimension_numbers<[1], [0], [0], [1], [0, 0, 1, 1], [], []>} : vector<256x128xf32>, vector<128x128xf32>, vector<256x128xf32> -> vector<256x128xf32>
    %36 = arith.addf %24, %4 : vector<256x1xf32>
    %cst_15 = arith.constant 0.000000e+00 : f32
    %37 = vector.broadcast %cst_15 : f32 to vector<256x1xf32>
    %38 = arith.select %11, %36, %37 : vector<256x1xi1>, vector<256x1xf32>
    %39 = vector.shape_cast %38 : vector<256x1xf32> to vector<1x256x1xf32>
    %cst_16 = arith.constant dense<0.000000e+00> : vector<1xf32>
    %40 = vector.multi_reduction <add>, %39, %cst_16 [1, 2] : vector<1x256x1xf32> to vector<1xf32>
    %41 = vector.shape_cast %40 : vector<1xf32> to vector<1x1x1xf32>
    %42 = vector.extract %41[0, 0, 0] : f32 from vector<1x1x1xf32>
    %43 = vector.broadcast %42 : f32 to vector<1x1xf32>
    %c0_17 = arith.constant 0 : index
    %c0_18 = arith.constant 0 : index
    %44 = vector.load %arg6[%c0_17, %c0_18] : memref<256x512xf32, #tpu.memory_space<vmem>>, vector<256x128xf32>
    tpu.vector_store %arg6[%c0_17, %c0_18], %35 {strides = array<i32>} : memref<256x512xf32, #tpu.memory_space<vmem>>, vector<256x128xf32>,
    %45 = arith.addf %4, %24 : vector<256x1xf32>
    %46 = arith.addf %1, %35 : vector<256x128xf32>
    %47 = arith.subf %0, %35 : vector<256x128xf32>
    %c1 = arith.constant 1 : index
    %c0_19 = arith.constant 0 : index
    %c0_20 = arith.constant 0 : index
    %48 = vector.load %arg2[%c1, %c0_19, %c0_20] : memref<4x128x128xf32, #tpu.memory_space<vmem>>, vector<1x128x128xf32>
    %49 = vector.shape_cast %48 : vector<1x128x128xf32> to vector<128x128xf32>
    %c1_21 = arith.constant 1 : index
    %c0_22 = arith.constant 0 : index
    %c0_23 = arith.constant 0 : index
    %50 = vector.load %arg3[%c1_21, %c0_22, %c0_23] : memref<4x128x128xbf16, #tpu.memory_space<vmem>>, vector<1x128x128xbf16>
    %51 = vector.shape_cast %50 : vector<1x128x128xbf16> to vector<128x128xbf16>
    %c1_24 = arith.constant 1 : index
    %c0_25 = arith.constant 0 : index
    %52 = vector.load %arg4[%c1_24, %c0_25] : memref<4x128xf32, #tpu.memory_space<vmem>>, vector<1x128xf32>
    %53 = arith.truncf %47 : vector<256x128xf32> to vector<256x128xbf16>
    %cst_26 = arith.constant dense<0.000000e+00> : vector<256x128xf32>
    %54 = tpu.matmul %53, %51, %cst_26 {dimension_numbers = #tpu.dot_dimension_numbers<[1], [0], [0], [1], [0, 0, 1, 1], [], []>} : vector<256x128xbf16>, vector<128x128xbf16>, vector<256x128xf32> -> vector<256x128xf32>
    %cst_27 = arith.constant 2.000000e+00 : f32
    %55 = vector.broadcast %cst_27 : f32 to vector<256x128xf32>
    %56 = arith.mulf %55, %54 : vector<256x128xf32>
    %57 = vector.broadcast %52 : vector<1x128xf32> to vector<256x128xf32>
    %58 = arith.subf %57, %56 : vector<256x128xf32>
    %cst_28 = arith.constant dense<0x7F800000> : vector<256xf32>
    %59 = vector.multi_reduction <minimumf>, %58, %cst_28 [1] : vector<256x128xf32> to vector<256xf32>
    %60 = vector.shape_cast %59 : vector<256xf32> to vector<256x1xf32>
    %61 = vector.broadcast %60 : vector<256x1xf32> to vector<256x128xf32>
    %62 = arith.cmpf oeq, %58, %61 : vector<256x128xf32>
    %c128_i32_29 = arith.constant 128 : i32
    %63 = vector.broadcast %c128_i32_29 : i32 to vector<256x128xi32>
    %64 = arith.select %62, %5, %63 : vector<256x128xi1>, vector<256x128xi32>
    %cst_30 = arith.constant dense<2147483647> : vector<256xi32>
    %65 = vector.multi_reduction <minsi>, %64, %cst_30 [1] : vector<256x128xi32> to vector<256xi32>
    %66 = vector.shape_cast %65 : vector<256xi32> to vector<256x1xi32>
    %67 = vector.broadcast %66 : vector<256x1xi32> to vector<256x128xi32>
    %68 = arith.cmpi eq, %5, %67 : vector<256x128xi32>
    %69 = arith.extui %68 : vector<256x128xi1> to vector<256x128xi32>
    %70 = arith.sitofp %69 : vector<256x128xi32> to vector<256x128xf32>
    %cst_31 = arith.constant dense<0.000000e+00> : vector<256x128xf32>
    %71 = tpu.matmul %70, %49, %cst_31 {dimension_numbers = #tpu.dot_dimension_numbers<[1], [0], [0], [1], [0, 0, 1, 1], [], []>} : vector<256x128xf32>, vector<128x128xf32>, vector<256x128xf32> -> vector<256x128xf32>
    %72 = arith.addf %60, %45 : vector<256x1xf32>
    %cst_32 = arith.constant 0.000000e+00 : f32
    %73 = vector.broadcast %cst_32 : f32 to vector<256x1xf32>
    %74 = arith.select %11, %72, %73 : vector<256x1xi1>, vector<256x1xf32>
    %75 = vector.shape_cast %74 : vector<256x1xf32> to vector<1x256x1xf32>
    %cst_33 = arith.constant dense<0.000000e+00> : vector<1xf32>
    %76 = vector.multi_reduction <add>, %75, %cst_33 [1, 2] : vector<1x256x1xf32> to vector<1xf32>
    %77 = vector.shape_cast %76 : vector<1xf32> to vector<1x1x1xf32>
    %78 = vector.extract %77[0, 0, 0] : f32 from vector<1x1x1xf32>
    %79 = vector.broadcast %78 : f32 to vector<1x1xf32>
    %c0_34 = arith.constant 0 : index
    %c128 = arith.constant 128 : index
    %80 = vector.load %arg6[%c0_34, %c128] : memref<256x512xf32, #tpu.memory_space<vmem>>, vector<256x128xf32>
    tpu.vector_store %arg6[%c0_34, %c128], %71 {strides = array<i32>} : memref<256x512xf32, #tpu.memory_space<vmem>>, vector<256x128xf32>,
    %81 = arith.addf %45, %60 : vector<256x1xf32>
    %82 = arith.addf %46, %71 : vector<256x128xf32>
    %83 = arith.subf %47, %71 : vector<256x128xf32>
    %c2 = arith.constant 2 : index
    %c0_35 = arith.constant 0 : index
    %c0_36 = arith.constant 0 : index
    %84 = vector.load %arg2[%c2, %c0_35, %c0_36] : memref<4x128x128xf32, #tpu.memory_space<vmem>>, vector<1x128x128xf32>
    %85 = vector.shape_cast %84 : vector<1x128x128xf32> to vector<128x128xf32>
    %c2_37 = arith.constant 2 : index
    %c0_38 = arith.constant 0 : index
    %c0_39 = arith.constant 0 : index
    %86 = vector.load %arg3[%c2_37, %c0_38, %c0_39] : memref<4x128x128xbf16, #tpu.memory_space<vmem>>, vector<1x128x128xbf16>
    %87 = vector.shape_cast %86 : vector<1x128x128xbf16> to vector<128x128xbf16>
    %c2_40 = arith.constant 2 : index
    %c0_41 = arith.constant 0 : index
    %88 = vector.load %arg4[%c2_40, %c0_41] : memref<4x128xf32, #tpu.memory_space<vmem>>, vector<1x128xf32>
    %89 = arith.truncf %83 : vector<256x128xf32> to vector<256x128xbf16>
    %cst_42 = arith.constant dense<0.000000e+00> : vector<256x128xf32>
    %90 = tpu.matmul %89, %87, %cst_42 {dimension_numbers = #tpu.dot_dimension_numbers<[1], [0], [0], [1], [0, 0, 1, 1], [], []>} : vector<256x128xbf16>, vector<128x128xbf16>, vector<256x128xf32> -> vector<256x128xf32>
    %cst_43 = arith.constant 2.000000e+00 : f32
    %91 = vector.broadcast %cst_43 : f32 to vector<256x128xf32>
    %92 = arith.mulf %91, %90 : vector<256x128xf32>
    %93 = vector.broadcast %88 : vector<1x128xf32> to vector<256x128xf32>
    %94 = arith.subf %93, %92 : vector<256x128xf32>
    %cst_44 = arith.constant dense<0x7F800000> : vector<256xf32>
    %95 = vector.multi_reduction <minimumf>, %94, %cst_44 [1] : vector<256x128xf32> to vector<256xf32>
    %96 = vector.shape_cast %95 : vector<256xf32> to vector<256x1xf32>
    %97 = vector.broadcast %96 : vector<256x1xf32> to vector<256x128xf32>
    %98 = arith.cmpf oeq, %94, %97 : vector<256x128xf32>
    %c128_i32_45 = arith.constant 128 : i32
    %99 = vector.broadcast %c128_i32_45 : i32 to vector<256x128xi32>
    %100 = arith.select %98, %5, %99 : vector<256x128xi1>, vector<256x128xi32>
    %cst_46 = arith.constant dense<2147483647> : vector<256xi32>
    %101 = vector.multi_reduction <minsi>, %100, %cst_46 [1] : vector<256x128xi32> to vector<256xi32>
    %102 = vector.shape_cast %101 : vector<256xi32> to vector<256x1xi32>
    %103 = vector.broadcast %102 : vector<256x1xi32> to vector<256x128xi32>
    %104 = arith.cmpi eq, %5, %103 : vector<256x128xi32>
    %105 = arith.extui %104 : vector<256x128xi1> to vector<256x128xi32>
    %106 = arith.sitofp %105 : vector<256x128xi32> to vector<256x128xf32>
    %cst_47 = arith.constant dense<0.000000e+00> : vector<256x128xf32>
    %107 = tpu.matmul %106, %85, %cst_47 {dimension_numbers = #tpu.dot_dimension_numbers<[1], [0], [0], [1], [0, 0, 1, 1], [], []>} : vector<256x128xf32>, vector<128x128xf32>, vector<256x128xf32> -> vector<256x128xf32>
    %108 = arith.addf %96, %81 : vector<256x1xf32>
    %cst_48 = arith.constant 0.000000e+00 : f32
    %109 = vector.broadcast %cst_48 : f32 to vector<256x1xf32>
    %110 = arith.select %11, %108, %109 : vector<256x1xi1>, vector<256x1xf32>
    %111 = vector.shape_cast %110 : vector<256x1xf32> to vector<1x256x1xf32>
    %cst_49 = arith.constant dense<0.000000e+00> : vector<1xf32>
    %112 = vector.multi_reduction <add>, %111, %cst_49 [1, 2] : vector<1x256x1xf32> to vector<1xf32>
    %113 = vector.shape_cast %112 : vector<1xf32> to vector<1x1x1xf32>
    %114 = vector.extract %113[0, 0, 0] : f32 from vector<1x1x1xf32>
    %115 = vector.broadcast %114 : f32 to vector<1x1xf32>
    %c0_50 = arith.constant 0 : index
    %c256 = arith.constant 256 : index
    %116 = vector.load %arg6[%c0_50, %c256] : memref<256x512xf32, #tpu.memory_space<vmem>>, vector<256x128xf32>
    tpu.vector_store %arg6[%c0_50, %c256], %107 {strides = array<i32>} : memref<256x512xf32, #tpu.memory_space<vmem>>, vector<256x128xf32>,
    %117 = arith.addf %81, %96 : vector<256x1xf32>
    %118 = arith.addf %82, %107 : vector<256x128xf32>
    %119 = arith.subf %83, %107 : vector<256x128xf32>
    %c3 = arith.constant 3 : index
    %c0_51 = arith.constant 0 : index
    %c0_52 = arith.constant 0 : index
    %120 = vector.load %arg2[%c3, %c0_51, %c0_52] : memref<4x128x128xf32, #tpu.memory_space<vmem>>, vector<1x128x128xf32>
    %121 = vector.shape_cast %120 : vector<1x128x128xf32> to vector<128x128xf32>
    %c3_53 = arith.constant 3 : index
    %c0_54 = arith.constant 0 : index
    %c0_55 = arith.constant 0 : index
    %122 = vector.load %arg3[%c3_53, %c0_54, %c0_55] : memref<4x128x128xbf16, #tpu.memory_space<vmem>>, vector<1x128x128xbf16>
    %123 = vector.shape_cast %122 : vector<1x128x128xbf16> to vector<128x128xbf16>
    %c3_56 = arith.constant 3 : index
    %c0_57 = arith.constant 0 : index
    %124 = vector.load %arg4[%c3_56, %c0_57] : memref<4x128xf32, #tpu.memory_space<vmem>>, vector<1x128xf32>
    %125 = arith.truncf %119 : vector<256x128xf32> to vector<256x128xbf16>
    %cst_58 = arith.constant dense<0.000000e+00> : vector<256x128xf32>
    %126 = tpu.matmul %125, %123, %cst_58 {dimension_numbers = #tpu.dot_dimension_numbers<[1], [0], [0], [1], [0, 0, 1, 1], [], []>} : vector<256x128xbf16>, vector<128x128xbf16>, vector<256x128xf32> -> vector<256x128xf32>
    %cst_59 = arith.constant 2.000000e+00 : f32
    %127 = vector.broadcast %cst_59 : f32 to vector<256x128xf32>
    %128 = arith.mulf %127, %126 : vector<256x128xf32>
    %129 = vector.broadcast %124 : vector<1x128xf32> to vector<256x128xf32>
    %130 = arith.subf %129, %128 : vector<256x128xf32>
    %cst_60 = arith.constant dense<0x7F800000> : vector<256xf32>
    %131 = vector.multi_reduction <minimumf>, %130, %cst_60 [1] : vector<256x128xf32> to vector<256xf32>
    %132 = vector.shape_cast %131 : vector<256xf32> to vector<256x1xf32>
    %133 = vector.broadcast %132 : vector<256x1xf32> to vector<256x128xf32>
    %134 = arith.cmpf oeq, %130, %133 : vector<256x128xf32>
    %c128_i32_61 = arith.constant 128 : i32
    %135 = vector.broadcast %c128_i32_61 : i32 to vector<256x128xi32>
    %136 = arith.select %134, %5, %135 : vector<256x128xi1>, vector<256x128xi32>
    %cst_62 = arith.constant dense<2147483647> : vector<256xi32>
    %137 = vector.multi_reduction <minsi>, %136, %cst_62 [1] : vector<256x128xi32> to vector<256xi32>
    %138 = vector.shape_cast %137 : vector<256xi32> to vector<256x1xi32>
    %139 = vector.broadcast %138 : vector<256x1xi32> to vector<256x128xi32>
    %140 = arith.cmpi eq, %5, %139 : vector<256x128xi32>
    %141 = arith.extui %140 : vector<256x128xi1> to vector<256x128xi32>
    %142 = arith.sitofp %141 : vector<256x128xi32> to vector<256x128xf32>
    %cst_63 = arith.constant dense<0.000000e+00> : vector<256x128xf32>
    %143 = tpu.matmul %142, %121, %cst_63 {dimension_numbers = #tpu.dot_dimension_numbers<[1], [0], [0], [1], [0, 0, 1, 1], [], []>} : vector<256x128xf32>, vector<128x128xf32>, vector<256x128xf32> -> vector<256x128xf32>
    %144 = arith.addf %132, %117 : vector<256x1xf32>
    %cst_64 = arith.constant 0.000000e+00 : f32
    %145 = vector.broadcast %cst_64 : f32 to vector<256x1xf32>
    %146 = arith.select %11, %144, %145 : vector<256x1xi1>, vector<256x1xf32>
    %147 = vector.shape_cast %146 : vector<256x1xf32> to vector<1x256x1xf32>
    %cst_65 = arith.constant dense<0.000000e+00> : vector<1xf32>
    %148 = vector.multi_reduction <add>, %147, %cst_65 [1, 2] : vector<1x256x1xf32> to vector<1xf32>
    %149 = vector.shape_cast %148 : vector<1xf32> to vector<1x1x1xf32>
    %150 = vector.extract %149[0, 0, 0] : f32 from vector<1x1x1xf32>
    %151 = vector.broadcast %150 : f32 to vector<1x1xf32>
    %c0_66 = arith.constant 0 : index
    %c384 = arith.constant 384 : index
    %152 = vector.load %arg6[%c0_66, %c384] : memref<256x512xf32, #tpu.memory_space<vmem>>, vector<256x128xf32>
    tpu.vector_store %arg6[%c0_66, %c384], %143 {strides = array<i32>} : memref<256x512xf32, #tpu.memory_space<vmem>>, vector<256x128xf32>,
    %153 = arith.addf %118, %143 : vector<256x128xf32>
    %c0_67 = arith.constant 0 : index
    %c0_68 = arith.constant 0 : index
    %154 = vector.load %arg5[%c0_67, %c0_68] : memref<256x128xf32, #tpu.memory_space<vmem>>, vector<256x128xf32>
    tpu.vector_store %arg5[%c0_67, %c0_68], %153 {strides = array<i32>} : memref<256x128xf32, #tpu.memory_space<vmem>>, vector<256x128xf32>,
    %155 = tpu.concatenate %30, %66, %102, %138 in 1 : vector<256x1xi32>, vector<256x1xi32>, vector<256x1xi32>, vector<256x1xi32> -> vector<256x4xi32>
    %c0_69 = arith.constant 0 : index
    %c0_70 = arith.constant 0 : index
    %156 = vector.load %arg7[%c0_69, %c0_70] : memref<256x4xi32, #tpu.memory_space<vmem>>, vector<256x4xi32>
    tpu.vector_store %arg7[%c0_69, %c0_70], %155 {strides = array<i32>} : memref<256x4xi32, #tpu.memory_space<vmem>>, vector<256x4xi32>,
    %157 = tpu.concatenate %43, %79, %115, %151 in 1 : vector<1x1xf32>, vector<1x1xf32>, vector<1x1xf32>, vector<1x1xf32> -> vector<1x4xf32>
    %158 = vector.shape_cast %157 : vector<1x4xf32> to vector<1x1x4xf32>
    %c0_71 = arith.constant 0 : index
    %c0_72 = arith.constant 0 : index
    %c0_73 = arith.constant 0 : index
    %159 = vector.load %arg8[%c0_71, %c0_72, %c0_73] : memref<1x1x4xf32, #tpu.memory_space<vmem>>, vector<1x1x4xf32>
    tpu.vector_store %arg8[%c0_71, %c0_72, %c0_73], %158 {strides = array<i32>} : memref<1x1x4xf32, #tpu.memory_space<vmem>>, vector<1x1x4xf32>,
    return
  }
  func.func @transform_0(%arg0: i32) -> (i32, i32) {
    %c0_i32 = arith.constant 0 : i32
    %c0_i32_0 = arith.constant 0 : i32
    return %arg0, %c0_i32 : i32, i32
  }
  func.func @transform_1(%arg0: i32) -> (i32, i32, i32) {
    %c0_i32 = arith.constant 0 : i32
    %c0_i32_0 = arith.constant 0 : i32
    %c0_i32_1 = arith.constant 0 : i32
    %c0_i32_2 = arith.constant 0 : i32
    return %c0_i32, %c0_i32_0, %c0_i32_1 : i32, i32, i32
  }
  func.func @transform_2(%arg0: i32) -> (i32, i32, i32) {
    %c0_i32 = arith.constant 0 : i32
    %c0_i32_0 = arith.constant 0 : i32
    %c0_i32_1 = arith.constant 0 : i32
    %c0_i32_2 = arith.constant 0 : i32
    return %c0_i32, %c0_i32_0, %c0_i32_1 : i32, i32, i32
  }
  func.func @transform_3(%arg0: i32) -> (i32, i32) {
    %c0_i32 = arith.constant 0 : i32
    %c0_i32_0 = arith.constant 0 : i32
    %c0_i32_1 = arith.constant 0 : i32
    return %c0_i32, %c0_i32_0 : i32, i32
  }
  func.func @transform_4(%arg0: i32) -> (i32, i32) {
    %c0_i32 = arith.constant 0 : i32
    %c0_i32_0 = arith.constant 0 : i32
    return %arg0, %c0_i32 : i32, i32
  }
  func.func @transform_5(%arg0: i32) -> (i32, i32) {
    %c0_i32 = arith.constant 0 : i32
    %c0_i32_0 = arith.constant 0 : i32
    return %arg0, %c0_i32 : i32, i32
  }
  func.func @transform_6(%arg0: i32) -> (i32, i32) {
    %c0_i32 = arith.constant 0 : i32
    %c0_i32_0 = arith.constant 0 : i32
    return %arg0, %c0_i32 : i32, i32
  }
  func.func @transform_7(%arg0: i32) -> (i32, i32, i32) {
    %c0_i32 = arith.constant 0 : i32
    %c0_i32_0 = arith.constant 0 : i32
    %c0_i32_1 = arith.constant 0 : i32
    return %arg0, %c0_i32, %c0_i32_0 : i32, i32, i32
  }
}

</mosaic_0001>

<llo_original>
// kernel: residual_vector_quantize.1
$region0: #{residual_vector_quantize.1}
  #allocation0 [shape = 'u32[]', space=smem, size = 0x4, offset = 0x4, fixed_abs, tag = 'smem constant byte address 0x4 - core index']
  #allocation1 [shape = 'u32[144,128]{1,0:T(1,128)}', space=vmem, size = 0x12000, scoped, tag = 'internal scratch']
  %s0 = inlined_call_operand.vmem [shape: f32[512,128], index: 0, kind: input, shape index: {}]
  %s1 = inlined_call_operand.vmem [shape: f32[4,128,128], index: 1, kind: input, shape index: {}]
  %s2 = inlined_call_operand.vmem [shape: bf16[4,128,128], index: 2, kind: input, shape index: {}]
  %s3 = inlined_call_operand.vmem [shape: f32[4,128], index: 3, kind: input, shape index: {}]
  %s4 = inlined_call_operand.vmem [shape: f32[512,128], index: 4, kind: output, shape index: {0}]
  %s5 = inlined_call_operand.vmem [shape: f32[512,512], index: 5, kind: output, shape index: {1}]
  %s6 = inlined_call_operand.vmem [shape: s32[512,4], index: 6, kind: output, shape index: {2}]
  %s7 = inlined_call_operand.vmem [shape: f32[2,1,4], index: 7, kind: output, shape index: {3}]
  %8 = xla_tuple %s4, %s5, %s6, %s7
  %s9 = sld [smem:[#allocation0]]
  $region73: #{residual_vector_quantize.1} parent=0
    _
  %s11 = ssub.s32 1, %s9
  %s12 = scalar_select 0, %s11, %s9
  loop: start=0, step=1, limit=4
  $region2: #{residual_vector_quantize.1} parent=0 // loop_pre_header
    _
  $region3: #{residual_vector_quantize.1} parent=0 // loop_header
    %s14 = sphi 0, %s18
    %p15 = scmp.ge.s32.totalorder %s14, 4
    %s24 = sphi 0, %s26
    %s27 = sphi 0, %s24
    %s28 = sphi 0, %s27
    %s44 = sphi 0, %s28
    %s48 = sphi 0, %s48
    %s50 = sphi 0, %s48
    %s51 = sphi 0, %s50
    %s65 = sphi 0, %s51
    %s69 = sphi 0, %s69
    %s71 = sphi 0, %s69
    %s72 = sphi 0, %s71
    %s86 = sphi 0, %s72
    %s90 = sphi 0, %s90
    %s92 = sphi 0, %s90
    %s93 = sphi 0, %s92
    %s107 = sphi 0, %s93
    %s113 = sphi 0, %s115
    %s116 = sphi 0, %s113
    %s117 = sphi 0, %s116
    %s133 = sphi 0, %s117
    %s139 = sphi 0, %s141
    %s142 = sphi 0, %s139
    %s143 = sphi 0, %s142
    %s159 = sphi 0, %s143
    %s165 = sphi 0, %s167
    %s168 = sphi 0, %s165
    %s169 = sphi 0, %s168
    %s185 = sphi 0, %s169
    %s191 = sphi 0, %s193
    %s194 = sphi 0, %s191
    %s195 = sphi 0, %s194
    %s211 = sphi 0, %s195
  $region4: #{residual_vector_quantize.1} parent=0 // loop_header_branch
    %17 = sbr.rel (%p15) target = $region8
  $region5: #{residual_vector_quantize.1} parent=0 // loop_body
    %s19 = ssub.s32 %s14, 1
    %s20 = ssub.s32 %s14, 2
    %s21 = sadd.s32 %s14, 1
    %s22 = ssub.s32 %s14, %s21
    %p23 = scmp.eq.s32.totalorder %s22, 0
    %s25 = sadd.s32 %s24, 1
    %s26 = scalar_select %p23, %s24, %s25
    %p29 = pneg %p23
    %p30 = scmp.eq.s32.totalorder %s14, 1
    %p31 = por %p29, %p30
    %p32 = scmp.ne.s32.totalorder %s24, %s27
    %p33 = scmp.eq.s32.totalorder %s14, 0
    %p34 = por %p32, %p33
    %p35 = scmp.ne.s32.totalorder %s24, %s27
    %p36 = scmp.eq.s32.totalorder %s19, 1
    %p37 = por %p35, %p36
    %p38 = scmp.ne.s32.totalorder %s27, %s28
    %p39 = scmp.eq.s32.totalorder %s19, 0
    %p40 = por %p38, %p39
    %p41 = scmp.ne.s32.totalorder %s27, %s28
    %p42 = scmp.eq.s32.totalorder %s20, 1
    %p43 = por %p41, %p42
    %p45 = scmp.ne.s32.totalorder %s28, %s44
    %p46 = scmp.eq.s32.totalorder %s20, 0
    %p47 = por %p45, %p46
    %s49 = sadd.s32 %s48, 1
    %p52 = scmp.eq.s32.totalorder %s14, 1
    %p53 = scmp.ne.s32.totalorder %s48, %s50
    %p54 = scmp.eq.s32.totalorder %s14, 0
    %p55 = por %p53, %p54
    %p56 = scmp.ne.s32.totalorder %s48, %s50
    %p57 = scmp.eq.s32.totalorder %s19, 1
    %p58 = por %p56, %p57
    %p59 = scmp.ne.s32.totalorder %s50, %s51
    %p60 = scmp.eq.s32.totalorder %s19, 0
    %p61 = por %p59, %p60
    %p62 = scmp.ne.s32.totalorder %s50, %s51
    %p63 = scmp.eq.s32.totalorder %s20, 1
    %p64 = por %p62, %p63
    %p66 = scmp.ne.s32.totalorder %s51, %s65
    %p67 = scmp.eq.s32.totalorder %s20, 0
    %p68 = por %p66, %p67
    %s70 = sadd.s32 %s69, 1
    %p73 = scmp.eq.s32.totalorder %s14, 1
    %p74 = scmp.ne.s32.totalorder %s69, %s71
    %p75 = scmp.eq.s32.totalorder %s14, 0
    %p76 = por %p74, %p75
    %p77 = scmp.ne.s32.totalorder %s69, %s71
    %p78 = scmp.eq.s32.totalorder %s19, 1
    %p79 = por %p77, %p78
    %p80 = scmp.ne.s32.totalorder %s71, %s72
    %p81 = scmp.eq.s32.totalorder %s19, 0
    %p82 = por %p80, %p81
    %p83 = scmp.ne.s32.totalorder %s71, %s72
    %p84 = scmp.eq.s32.totalorder %s20, 1
    %p85 = por %p83, %p84
    %p87 = scmp.ne.s32.totalorder %s72, %s86
    %p88 = scmp.eq.s32.totalorder %s20, 0
    %p89 = por %p87, %p88
    %s91 = sadd.s32 %s90, 1
    %p94 = scmp.eq.s32.totalorder %s14, 1
    %p95 = scmp.ne.s32.totalorder %s90, %s92
    %p96 = scmp.eq.s32.totalorder %s14, 0
    %p97 = por %p95, %p96
    %p98 = scmp.ne.s32.totalorder %s90, %s92
    %p99 = scmp.eq.s32.totalorder %s19, 1
    %p100 = por %p98, %p99
    %p101 = scmp.ne.s32.totalorder %s92, %s93
    %p102 = scmp.eq.s32.totalorder %s19, 0
    %p103 = por %p101, %p102
    %p104 = scmp.ne.s32.totalorder %s92, %s93
    %p105 = scmp.eq.s32.totalorder %s20, 1
    %p106 = por %p104, %p105
    %p108 = scmp.ne.s32.totalorder %s93, %s107
    %p109 = scmp.eq.s32.totalorder %s20, 0
    %p110 = por %p108, %p109
    %s111 = ssub.s32 %s14, %s21
    %p112 = scmp.eq.s32.totalorder %s111, 0
    %s114 = sadd.s32 %s113, 1
    %s115 = scalar_select %p112, %s113, %s114
    %p118 = pneg %p112
    %p119 = scmp.eq.s32.totalorder %s14, 1
    %p120 = por %p118, %p119
    %p121 = scmp.ne.s32.totalorder %s113, %s116
    %p122 = scmp.eq.s32.totalorder %s14, 0
    %p123 = por %p121, %p122
    %p124 = scmp.ne.s32.totalorder %s113, %s116
    %p125 = scmp.eq.s32.totalorder %s19, 1
    %p126 = por %p124, %p125
    %p127 = scmp.ne.s32.totalorder %s116, %s117
    %p128 = scmp.eq.s32.totalorder %s19, 0
    %p129 = por %p127, %p128
    %p130 = scmp.ne.s32.totalorder %s116, %s117
    %p131 = scmp.eq.s32.totalorder %s20, 1
    %p132 = por %p130, %p131
    %p134 = scmp.ne.s32.totalorder %s117, %s133
    %p135 = scmp.eq.s32.totalorder %s20, 0
    %p136 = por %p134, %p135
    %s137 = ssub.s32 %s14, %s21
    %p138 = scmp.eq.s32.totalorder %s137, 0
    %s140 = sadd.s32 %s139, 1
    %s141 = scalar_select %p138, %s139, %s140
    %p144 = pneg %p138
    %p145 = scmp.eq.s32.totalorder %s14, 1
    %p146 = por %p144, %p145
    %p147 = scmp.ne.s32.totalorder %s139, %s142
    %p148 = scmp.eq.s32.totalorder %s14, 0
    %p149 = por %p147, %p148
    %p150 = scmp.ne.s32.totalorder %s139, %s142
    %p151 = scmp.eq.s32.totalorder %s19, 1
    %p152 = por %p150, %p151
    %p153 = scmp.ne.s32.totalorder %s142, %s143
    %p154 = scmp.eq.s32.totalorder %s19, 0
    %p155 = por %p153, %p154
    %p156 = scmp.ne.s32.totalorder %s142, %s143
    %p157 = scmp.eq.s32.totalorder %s20, 1
    %p158 = por %p156, %p157
    %p160 = scmp.ne.s32.totalorder %s143, %s159
    %p161 = scmp.eq.s32.totalorder %s20, 0
    %p162 = por %p160, %p161
    %s163 = ssub.s32 %s14, %s21
    %p164 = scmp.eq.s32.totalorder %s163, 0
    %s166 = sadd.s32 %s165, 1
    %s167 = scalar_select %p164, %s165, %s166
    %p170 = pneg %p164
    %p171 = scmp.eq.s32.totalorder %s14, 1
    %p172 = por %p170, %p171
    %p173 = scmp.ne.s32.totalorder %s165, %s168
    %p174 = scmp.eq.s32.totalorder %s14, 0
    %p175 = por %p173, %p174
    %p176 = scmp.ne.s32.totalorder %s165, %s168
    %p177 = scmp.eq.s32.totalorder %s19, 1
    %p178 = por %p176, %p177
    %p179 = scmp.ne.s32.totalorder %s168, %s169
    %p180 = scmp.eq.s32.totalorder %s19, 0
    %p181 = por %p179, %p180
    %p182 = scmp.ne.s32.totalorder %s168, %s169
    %p183 = scmp.eq.s32.totalorder %s20, 1
    %p184 = por %p182, %p183
    %p186 = scmp.ne.s32.totalorder %s169, %s185
    %p187 = scmp.eq.s32.totalorder %s20, 0
    %p188 = por %p186, %p187
    %s189 = ssub.s32 %s14, %s21
    %p190 = scmp.eq.s32.totalorder %s189, 0
    %s192 = sadd.s32 %s191, 1
    %s193 = scalar_select %p190, %s191, %s192
    %p196 = pneg %p190
    %p197 = scmp.eq.s32.totalorder %s14, 1
    %p198 = por %p196, %p197
    %p199 = scmp.ne.s32.totalorder %s191, %s194
    %p200 = scmp.eq.s32.totalorder %s14, 0
    %p201 = por %p199, %p200
    %p202 = scmp.ne.s32.totalorder %s191, %s194
    %p203 = scmp.eq.s32.totalorder %s19, 1
    %p204 = por %p202, %p203
    %p205 = scmp.ne.s32.totalorder %s194, %s195
    %p206 = scmp.eq.s32.totalorder %s19, 0
    %p207 = por %p205, %p206
    %p208 = scmp.ne.s32.totalorder %s194, %s195
    %p209 = scmp.eq.s32.totalorder %s20, 1
    %p210 = por %p208, %p209
    %p212 = scmp.ne.s32.totalorder %s195, %s211
    %p213 = scmp.eq.s32.totalorder %s20, 0
    %p214 = por %p212, %p213
    %p215 = scmp.le.s32.totalorder 1, %s14
    %p216 = scmp.lt.s32.totalorder %s14, 3
    %p217 = pnand %p215, %p216
    %p218 = pneg %p217
    // Predicated region
    $region9: #{residual_vector_quantize.1} parent=5 // pred_check
      _
    $region10: #{residual_vector_quantize.1} parent=5 // pred_check_branch
      %220 = sbr.rel (%p217) target = $region12
    $region11: #{residual_vector_quantize.1} parent=5 // pred_region
      %s221 = ssub.s32 %s14, 1
      // Predicated region
      $region13: #{residual_vector_quantize.1} parent=11 // pred_check
        %p222 = pneg %p61
      $region14: #{residual_vector_quantize.1} parent=11 // pred_check_branch
        %224 = sbr.rel (%p222) target = $region16
      $region15: #{residual_vector_quantize.1} parent=11 // pred_region
        _
      $region16: #{residual_vector_quantize.1} parent=11 // pred_fallthru
        _
      // Predicated region
      $region17: #{residual_vector_quantize.1} parent=11 // pred_check
        %p225 = pneg %p82
      $region18: #{residual_vector_quantize.1} parent=11 // pred_check_branch
        %227 = sbr.rel (%p225) target = $region20
      $region19: #{residual_vector_quantize.1} parent=11 // pred_region
        _
      $region20: #{residual_vector_quantize.1} parent=11 // pred_fallthru
        _
      // Predicated region
      $region21: #{residual_vector_quantize.1} parent=11 // pred_check
        %p228 = pneg %p103
      $region22: #{residual_vector_quantize.1} parent=11 // pred_check_branch
        %230 = sbr.rel (%p228) target = $region24
      $region23: #{residual_vector_quantize.1} parent=11 // pred_region
        _
      $region24: #{residual_vector_quantize.1} parent=11 // pred_fallthru
        _
    $region12: #{residual_vector_quantize.1} parent=5 // pred_fallthru
      _
    %p231 = scmp.lt.s32.totalorder %s14, 2
    // Predicated region
    $region25: #{residual_vector_quantize.1} parent=5 // pred_check
      %p232 = pneg %p231
    $region26: #{residual_vector_quantize.1} parent=5 // pred_check_branch
      %234 = sbr.rel (%p232) target = $region28
    $region27: #{residual_vector_quantize.1} parent=5 // pred_region
      // Predicated region
      $region29: #{residual_vector_quantize.1} parent=27 // pred_check
        %p235 = pneg %p34
      $region30: #{residual_vector_quantize.1} parent=27 // pred_check_branch
        %237 = sbr.rel (%p235) target = $region32
      $region31: #{residual_vector_quantize.1} parent=27 // pred_region
        %s238 = smul.u32 32, %s14
        %p239 = scmp.lt.s32.totalorder %s238, 63
        %s240 = scalar_select %p239, %s238, 63
        %s241 = smul.addr %s240, 8
        %s242 = scalar_lea.vmem %s0, %s241
        %s243 = smul.u32 32, %s14
      $region32: #{residual_vector_quantize.1} parent=27 // pred_fallthru
        _
    $region28: #{residual_vector_quantize.1} parent=5 // pred_fallthru
      _
    %p244 = scmp.le.s32.totalorder 1, %s14
    %p245 = scmp.lt.s32.totalorder %s14, 3
    %p246 = pnand %p244, %p245
    %p247 = pneg %p246
    // Predicated region
    $region33: #{residual_vector_quantize.1} parent=5 // pred_check
      _
    $region34: #{residual_vector_quantize.1} parent=5 // pred_check_branch
      %249 = sbr.rel (%p246) target = $region36
    $region35: #{residual_vector_quantize.1} parent=5 // pred_region
      %s250 = ssub.s32 %s14, 1
      %s251 = smul.u32 32, %s19
      %p252 = scmp.lt.s32.totalorder %s251, 63
      %s253 = scalar_select %p252, %s251, 63
      %s254 = smul.addr %s253, 8
      %s255 = scalar_lea.vmem %s0, %s254
      %p256 = pneg %p40
      %p257 = pneg %p37
      %p258 = pneg %p61
      %p259 = pneg %p58
      %p260 = pneg %p82
      %p261 = pneg %p79
      %p262 = pneg %p103
      %p263 = pneg %p100
      %p264 = pneg %p129
      %p265 = pneg %p126
      %s266 = smul.u32 32, %s19
      %p267 = scmp.lt.s32.totalorder %s266, 63
      %s268 = scalar_select %p267, %s266, 63
      %s269 = smul.addr %s268, 8
      %s270 = scalar_lea.vmem %s4, %s269
      %p271 = pneg %p155
      %p272 = pneg %p152
      %s273 = smul.u32 32, %s19
      %p274 = scmp.lt.s32.totalorder %s273, 63
      %s275 = scalar_select %p274, %s273, 63
      %s276 = smul.addr %s275, 4
      %s277 = smul.addr %s276, 8
      %s278 = scalar_lea.vmem %s5, %s277
      %p279 = pneg %p181
      %p280 = pneg %p178
      %s281 = smul.u32 32, %s19
      %p282 = scmp.lt.s32.totalorder %s281, 63
      %s283 = scalar_select %p282, %s281, 63
      %s284 = smul.addr %s283, 8
      %s285 = scalar_lea.vmem %s6, %s284
      %p286 = pneg %p207
      %p287 = pneg %p204
      %p288 = scmp.lt.s32.totalorder %s19, 1
      %s289 = scalar_select %p288, %s19, 1
      %s290 = scalar_lea.vmem %s7, %s289
      %s291 = smul.u32 32, %s19
      %p292 = scmp.lt.s32.totalorder %s291, 63
      %s293 = scalar_select %p292, %s291, 63
      %s294 = smul.addr %s293, 8
      %s295 = scalar_lea.vmem %s0, %s294
      %s296 = smul.u32 32, %s19
      %s297 = smul.u32 32, %s19
      %p298 = scmp.lt.s32.totalorder %s297, 63
      %s299 = scalar_select %p298, %s297, 63
      %s300 = smul.addr %s299, 8
      %s301 = scalar_lea.vmem %s4, %s300
      %s302 = smul.u32 32, %s19
      %s303 = smul.u32 32, %s19
      %p304 = scmp.lt.s32.totalorder %s303, 63
      %s305 = scalar_select %p304, %s303, 63
      %s306 = smul.addr %s305, 4
      %s307 = smul.addr %s306, 8
      %s308 = scalar_lea.vmem %s5, %s307
      %s309 = smul.u32 32, %s19
      %s310 = smul.u32 32, %s19
      %p311 = scmp.lt.s32.totalorder %s310, 63
      %s312 = scalar_select %p311, %s310, 63
      %s313 = smul.addr %s312, 8
      %s314 = scalar_lea.vmem %s6, %s313
      %s315 = smul.u32 32, %s19
      %p316 = scmp.lt.s32.totalorder %s19, 1
      %s317 = scalar_select %p316, %s19, 1
      %s318 = scalar_lea.vmem %s7, %s317
      %v320 = vld [vmem:[%s295] sm:$0xff]
      %v321 = vld [vmem:[%s295 + $0x8] sm:$0xff]
      %v322 = vld [vmem:[%s295 + $0x10] sm:$0xff]
      %v323 = vld [vmem:[%s295 + $0x18] sm:$0xff]
      %v324 = vld [vmem:[%s295 + $0x20] sm:$0xff]
      %v325 = vld [vmem:[%s295 + $0x28] sm:$0xff]
      %v326 = vld [vmem:[%s295 + $0x30] sm:$0xff]
      %v327 = vld [vmem:[%s295 + $0x38] sm:$0xff]
      %v328 = vld [vmem:[%s295 + $0x40] sm:$0xff]
      %v329 = vld [vmem:[%s295 + $0x48] sm:$0xff]
      %v330 = vld [vmem:[%s295 + $0x50] sm:$0xff]
      %v331 = vld [vmem:[%s295 + $0x58] sm:$0xff]
      %v332 = vld [vmem:[%s295 + $0x60] sm:$0xff]
      %v333 = vld [vmem:[%s295 + $0x68] sm:$0xff]
      %v334 = vld [vmem:[%s295 + $0x70] sm:$0xff]
      %v335 = vld [vmem:[%s295 + $0x78] sm:$0xff]
      %v336 = vld [vmem:[%s295 + $0x80] sm:$0xff]
      %v337 = vld [vmem:[%s295 + $0x88] sm:$0xff]
      %v338 = vld [vmem:[%s295 + $0x90] sm:$0xff]
      %v339 = vld [vmem:[%s295 + $0x98] sm:$0xff]
      %v340 = vld [vmem:[%s295 + $0xa0] sm:$0xff]
      %v341 = vld [vmem:[%s295 + $0xa8] sm:$0xff]
      %v342 = vld [vmem:[%s295 + $0xb0] sm:$0xff]
      %v343 = vld [vmem:[%s295 + $0xb8] sm:$0xff]
      %v344 = vld [vmem:[%s295 + $0xc0] sm:$0xff]
      %v345 = vld [vmem:[%s295 + $0xc8] sm:$0xff]
      %v346 = vld [vmem:[%s295 + $0xd0] sm:$0xff]
      %v347 = vld [vmem:[%s295 + $0xd8] sm:$0xff]
      %v348 = vld [vmem:[%s295 + $0xe0] sm:$0xff]
      %v349 = vld [vmem:[%s295 + $0xe8] sm:$0xff]
      %v350 = vld [vmem:[%s295 + $0xf0] sm:$0xff]
      %v351 = vld [vmem:[%s295 + $0xf8] sm:$0xff]
      %v352 = vmul.f32 %v320, %v320
      %v353 = vmul.f32 %v321, %v321
      %v354 = vmul.f32 %v322, %v322
      %v355 = vmul.f32 %v323, %v323
      %v356 = vmul.f32 %v324, %v324
      %v357 = vmul.f32 %v325, %v325
      %v358 = vmul.f32 %v326, %v326
      %v359 = vmul.f32 %v327, %v327
      %v360 = vmul.f32 %v328, %v328
      %v361 = vmul.f32 %v329, %v329
      %v362 = vmul.f32 %v330, %v330
      %v363 = vmul.f32 %v331, %v331
      %v364 = vmul.f32 %v332, %v332
      %v365 = vmul.f32 %v333, %v333
      %v366 = vmul.f32 %v334, %v334
      %v367 = vmul.f32 %v335, %v335
      %v368 = vmul.f32 %v336, %v336
      %v369 = vmul.f32 %v337, %v337
      %v370 = vmul.f32 %v338, %v338
      %v371 = vmul.f32 %v339, %v339
      %v372 = vmul.f32 %v340, %v340
      %v373 = vmul.f32 %v341, %v341
      %v374 = vmul.f32 %v342, %v342
      %v375 = vmul.f32 %v343, %v343
      %v376 = vmul.f32 %v344, %v344
      %v377 = vmul.f32 %v345, %v345
      %v378 = vmul.f32 %v346, %v346
      %v379 = vmul.f32 %v347, %v347
      %v380 = vmul.f32 %v348, %v348
      %v381 = vmul.f32 %v349, %v349
      %v382 = vmul.f32 %v350, %v350
      %v383 = vmul.f32 %v351, %v351
      %384 = vadd.xlane.f32.xlu0 %v352
      %v385 = vpop.xlane.xlu0 %384
      %386 = vadd.xlane.f32.xlu0 %v353
      %v387 = vpop.xlane.xlu0 %386
      %388 = vadd.xlane.f32.xlu0 %v354
      %v389 = vpop.xlane.xlu0 %388
      %390 = vadd.xlane.f32.xlu0 %v355
      %v391 = vpop.xlane.xlu0 %390
      %392 = vadd.xlane.f32.xlu0 %v356
      %v393 = vpop.xlane.xlu0 %392
      %394 = vadd.xlane.f32.xlu0 %v357
      %v395 = vpop.xlane.xlu0 %394
      %396 = vadd.xlane.f32.xlu0 %v358
      %v397 = vpop.xlane.xlu0 %396
      %398 = vadd.xlane.f32.xlu0 %v359
      %v399 = vpop.xlane.xlu0 %398
      %400 = vadd.xlane.f32.xlu0 %v360
      %v401 = vpop.xlane.xlu0 %400
      %402 = vadd.xlane.f32.xlu0 %v361
      %v403 = vpop.xlane.xlu0 %402
      %404 = vadd.xlane.f32.xlu0 %v362
      %v405 = vpop.xlane.xlu0 %404
      %406 = vadd.xlane.f32.xlu0 %v363
      %v407 = vpop.xlane.xlu0 %406
      %408 = vadd.xlane.f32.xlu0 %v364
      %v409 = vpop.xlane.xlu0 %408
      %410 = vadd.xlane.f32.xlu0 %v365
      %v411 = vpop.xlane.xlu0 %410
      %412 = vadd.xlane.f32.xlu0 %v366
      %v413 = vpop.xlane.xlu0 %412
      %414 = vadd.xlane.f32.xlu0 %v367
      %v415 = vpop.xlane.xlu0 %414
      %416 = vadd.xlane.f32.xlu0 %v368
      %v417 = vpop.xlane.xlu0 %416
      %418 = vadd.xlane.f32.xlu0 %v369
      %v419 = vpop.xlane.xlu0 %418
      %420 = vadd.xlane.f32.xlu0 %v370
      %v421 = vpop.xlane.xlu0 %420
      %422 = vadd.xlane.f32.xlu0 %v371
      %v423 = vpop.xlane.xlu0 %422
      %424 = vadd.xlane.f32.xlu0 %v372
      %v425 = vpop.xlane.xlu0 %424
      %426 = vadd.xlane.f32.xlu0 %v373
      %v427 = vpop.xlane.xlu0 %426
      %428 = vadd.xlane.f32.xlu0 %v374
      %v429 = vpop.xlane.xlu0 %428
      %430 = vadd.xlane.f32.xlu0 %v375
      %v431 = vpop.xlane.xlu0 %430
      %432 = vadd.xlane.f32.xlu0 %v376
      %v433 = vpop.xlane.xlu0 %432
      %434 = vadd.xlane.f32.xlu0 %v377
      %v435 = vpop.xlane.xlu0 %434
      %436 = vadd.xlane.f32.xlu0 %v378
      %v437 = vpop.xlane.xlu0 %436
      %438 = vadd.xlane.f32.xlu0 %v379
      %v439 = vpop.xlane.xlu0 %438
      %440 = vadd.xlane.f32.xlu0 %v380
      %v441 = vpop.xlane.xlu0 %440
      %442 = vadd.xlane.f32.xlu0 %v381
      %v443 = vpop.xlane.xlu0 %442
      %444 = vadd.xlane.f32.xlu0 %v382
      %v445 = vpop.xlane.xlu0 %444
      %446 = vadd.xlane.f32.xlu0 %v383
      %v447 = vpop.xlane.xlu0 %446
      %v448 = vlaneseq
      %v449 = vand.u32 %v448, 127
      %v450 = vlaneseq
      %v451 = vshrl.u32 %v450, 7
      %v452 = vadd.s32 %v451, 8
      %v453 = vadd.s32 %v451, 16
      %v454 = vadd.s32 %v451, 24
      %v455 = vadd.s32 %v451, 32
      %v456 = vadd.s32 %v451, 40
      %v457 = vadd.s32 %v451, 48
      %v458 = vadd.s32 %v451, 56
      %v459 = vadd.s32 %v451, 64
      %v460 = vadd.s32 %v451, 72
      %v461 = vadd.s32 %v451, 80
      %v462 = vadd.s32 %v451, 88
      %v463 = vadd.s32 %v451, 96
      %v464 = vadd.s32 %v451, 104
      %v465 = vadd.s32 %v451, 112
      %v466 = vadd.s32 %v451, 120
      %v467 = vadd.s32 %v451, 128
      %v468 = vadd.s32 %v451, 136
      %v469 = vadd.s32 %v451, 144
      %v470 = vadd.s32 %v451, 152
      %v471 = vadd.s32 %v451, 160
      %v472 = vadd.s32 %v451, 168
      %v473 = vadd.s32 %v451, 176
      %v474 = vadd.s32 %v451, 184
      %v475 = vadd.s32 %v451, 192
      %v476 = vadd.s32 %v451, 200
      %v477 = vadd.s32 %v451, 208
      %v478 = vadd.s32 %v451, 216
      %v479 = vadd.s32 %v451, 224
      %v480 = vadd.s32 %v451, 232
      %v481 = vadd.s32 %v451, 240
      %v482 = vadd.s32 %v451, 248
      %s483 = smul.u32 %s19, 256
      %v484 = vstv %s483
      %v485 = vadd.s32 %v451, %v484
      %v486 = vadd.s32 %v452, %v484
      %v487 = vadd.s32 %v453, %v484
      %v488 = vadd.s32 %v454, %v484
      %v489 = vadd.s32 %v455, %v484
      %v490 = vadd.s32 %v456, %v484
      %v491 = vadd.s32 %v457, %v484
      %v492 = vadd.s32 %v458, %v484
      %v493 = vadd.s32 %v459, %v484
      %v494 = vadd.s32 %v460, %v484
      %v495 = vadd.s32 %v461, %v484
      %v496 = vadd.s32 %v462, %v484
      %v497 = vadd.s32 %v463, %v484
      %v498 = vadd.s32 %v464, %v484
      %v499 = vadd.s32 %v465, %v484
      %v500 = vadd.s32 %v466, %v484
      %v501 = vadd.s32 %v467, %v484
      %v502 = vadd.s32 %v468, %v484
      %v503 = vadd.s32 %v469, %v484
      %v504 = vadd.s32 %v470, %v484
      %v505 = vadd.s32 %v471, %v484
      %v506 = vadd.s32 %v472, %v484
      %v507 = vadd.s32 %v473, %v484
      %v508 = vadd.s32 %v474, %v484
      %v509 = vadd.s32 %v475, %v484
      %v510 = vadd.s32 %v476, %v484
      %v511 = vadd.s32 %v477, %v484
      %v512 = vadd.s32 %v478, %v484
      %v513 = vadd.s32 %v479, %v484
      %v514 = vadd.s32 %v480, %v484
      %v515 = vadd.s32 %v481, %v484
      %v516 = vadd.s32 %v482, %v484
      %vm517 = vcmp.lt.s32.totalorder %v485, 400
      %vm518 = vcmp.lt.s32.totalorder %v486, 400
      %vm519 = vcmp.lt.s32.totalorder %v487, 400
      %vm520 = vcmp.lt.s32.totalorder %v488, 400
      %vm521 = vcmp.lt.s32.totalorder %v489, 400
      %vm522 = vcmp.lt.s32.totalorder %v490, 400
      %vm523 = vcmp.lt.s32.totalorder %v491, 400
      %vm524 = vcmp.lt.s32.totalorder %v492, 400
      %vm525 = vcmp.lt.s32.totalorder %v493, 400
      %vm526 = vcmp.lt.s32.totalorder %v494, 400
      %vm527 = vcmp.lt.s32.totalorder %v495, 400
      %vm528 = vcmp.lt.s32.totalorder %v496, 400
      %vm529 = vcmp.lt.s32.totalorder %v497, 400
      %vm530 = vcmp.lt.s32.totalorder %v498, 400
      %vm531 = vcmp.lt.s32.totalorder %v499, 400
      %vm532 = vcmp.lt.s32.totalorder %v500, 400
      %vm533 = vcmp.lt.s32.totalorder %v501, 400
      %vm534 = vcmp.lt.s32.totalorder %v502, 400
      %vm535 = vcmp.lt.s32.totalorder %v503, 400
      %vm536 = vcmp.lt.s32.totalorder %v504, 400
      %vm537 = vcmp.lt.s32.totalorder %v505, 400
      %vm538 = vcmp.lt.s32.totalorder %v506, 400
      %vm539 = vcmp.lt.s32.totalorder %v507, 400
      %vm540 = vcmp.lt.s32.totalorder %v508, 400
      %vm541 = vcmp.lt.s32.totalorder %v509, 400
      %vm542 = vcmp.lt.s32.totalorder %v510, 400
      %vm543 = vcmp.lt.s32.totalorder %v511, 400
      %vm544 = vcmp.lt.s32.totalorder %v512, 400
      %vm545 = vcmp.lt.s32.totalorder %v513, 400
      %vm546 = vcmp.lt.s32.totalorder %v514, 400
      %vm547 = vcmp.lt.s32.totalorder %v515, 400
      %vm548 = vcmp.lt.s32.totalorder %v516, 400
      %v549 = vld [vmem:[%s1] sm:$0xff]
      %v550 = vld [vmem:[%s1 + $0x8] sm:$0xff]
      %v551 = vld [vmem:[%s1 + $0x10] sm:$0xff]
      %v552 = vld [vmem:[%s1 + $0x18] sm:$0xff]
      %v553 = vld [vmem:[%s1 + $0x20] sm:$0xff]
      %v554 = vld [vmem:[%s1 + $0x28] sm:$0xff]
      %v555 = vld [vmem:[%s1 + $0x30] sm:$0xff]
      %v556 = vld [vmem:[%s1 + $0x38] sm:$0xff]
      %v557 = vld [vmem:[%s1 + $0x40] sm:$0xff]
      %v558 = vld [vmem:[%s1 + $0x48] sm:$0xff]
      %v559 = vld [vmem:[%s1 + $0x50] sm:$0xff]
      %v560 = vld [vmem:[%s1 + $0x58] sm:$0xff]
      %v561 = vld [vmem:[%s1 + $0x60] sm:$0xff]
      %v562 = vld [vmem:[%s1 + $0x68] sm:$0xff]
      %v563 = vld [vmem:[%s1 + $0x70] sm:$0xff]
      %v564 = vld [vmem:[%s1 + $0x78] sm:$0xff]
      %v565 = vld [vmem:[%s2] sm:$0xf]
      %v566 = vld [vmem:[%s2 + $0x4] sm:$0xf]
      %v567 = vld [vmem:[%s2 + $0x8] sm:$0xf]
      %v568 = vld [vmem:[%s2 + $0xc] sm:$0xf]
      %v569 = vld [vmem:[%s2 + $0x10] sm:$0xf]
      %v570 = vld [vmem:[%s2 + $0x14] sm:$0xf]
      %v571 = vld [vmem:[%s2 + $0x18] sm:$0xf]
      %v572 = vld [vmem:[%s2 + $0x1c] sm:$0xf]
      %v573 = vld [vmem:[%s2 + $0x20] sm:$0xf]
      %v574 = vld [vmem:[%s2 + $0x24] sm:$0xf]
      %v575 = vld [vmem:[%s2 + $0x28] sm:$0xf]
      %v576 = vld [vmem:[%s2 + $0x2c] sm:$0xf]
      %v577 = vld [vmem:[%s2 + $0x30] sm:$0xf]
      %v578 = vld [vmem:[%s2 + $0x34] sm:$0xf]
      %v579 = vld [vmem:[%s2 + $0x38] sm:$0xf]
      %v580 = vld [vmem:[%s2 + $0x3c] sm:$0xf]
      %v581 = vld [vmem:[%s3] sm:$0x1]
      %v582 = vpack.c.bf16 %v321, %v320
      %v583 = vpack.c.bf16 %v323, %v322
      %v584 = vpack.c.bf16 %v325, %v324
      %v585 = vpack.c.bf16 %v327, %v326
      %v586 = vpack.c.bf16 %v329, %v328
      %v587 = vpack.c.bf16 %v331, %v330
      %v588 = vpack.c.bf16 %v333, %v332
      %v589 = vpack.c.bf16 %v335, %v334
      %v590 = vpack.c.bf16 %v337, %v336
      %v591 = vpack.c.bf16 %v339, %v338
      %v592 = vpack.c.bf16 %v341, %v340
      %v593 = vpack.c.bf16 %v343, %v342
      %v594 = vpack.c.bf16 %v345, %v344
      %v595 = vpack.c.bf16 %v347, %v346
      %v596 = vpack.c.bf16 %v349, %v348
      %v597 = vpack.c.bf16 %v351, %v350
      %v614 = vunpack.c.l.b16 %v565
      %v615 = vunpack.c.l.b16 %v566
      %v616 = vunpack.c.l.b16 %v567
      %v617 = vunpack.c.l.b16 %v568
      %v618 = vunpack.c.l.b16 %v569
      %v619 = vunpack.c.l.b16 %v570
      %v620 = vunpack.c.l.b16 %v571
      %v621 = vunpack.c.l.b16 %v572
      %v622 = vunpack.c.l.b16 %v573
      %v623 = vunpack.c.l.b16 %v574
      %v624 = vunpack.c.l.b16 %v575
      %v625 = vunpack.c.l.b16 %v576
      %v626 = vunpack.c.l.b16 %v577
      %v627 = vunpack.c.l.b16 %v578
      %v628 = vunpack.c.l.b16 %v579
      %v629 = vunpack.c.l.b16 %v580
      %v630 = vpack.c.b16 %v615, %v614
      %v631 = vpack.c.b16 %v617, %v616
      %v632 = vpack.c.b16 %v619, %v618
      %v633 = vpack.c.b16 %v621, %v620
      %v634 = vpack.c.b16 %v623, %v622
      %v635 = vpack.c.b16 %v625, %v624
      %v636 = vpack.c.b16 %v627, %v626
      %v637 = vpack.c.b16 %v629, %v628
      %646 = vmatprep.subr.bf16.mxu0 0
      %647 = vmatpush1.bf16.msra.mxu0 %v637
      %648 = vmatprep.subr.bf16.mxu0 0
      %649 = vmatpush1.bf16.msra.mxu0 %v636
      %650 = vmatprep.subr.bf16.mxu0 0
      %651 = vmatpush1.bf16.msra.mxu0 %v635
      %652 = vmatprep.subr.bf16.mxu0 0
      %653 = vmatpush1.bf16.msra.mxu0 %v634
      %654 = vmatprep.subr.bf16.mxu0 0
      %655 = vmatpush1.bf16.msra.mxu0 %v633
      %656 = vmatprep.subr.bf16.mxu0 0
      %657 = vmatpush1.bf16.msra.mxu0 %v632
      %658 = vmatprep.subr.bf16.mxu0 0
      %659 = vmatpush1.bf16.msra.mxu0 %v631
      %660 = vmatprep.subr.bf16.mxu0 0
      %661 = vmatpush1.bf16.msra.mxu0 %v630
      %662 = vmatprep.subr.bf16.mxu0 0
      %663 = vmatpush2.bf16.msra.mxu0 0
      %664 = vmatprep.subr.bf16.mxu0 0
      %665 = vmatpush2.bf16.msra.mxu0 0
      %666 = vmatprep.subr.bf16.mxu0 0
      %667 = vmatpush2.bf16.msra.mxu0 0
      %668 = vmatprep.subr.bf16.mxu0 0
      %669 = vmatpush2.bf16.msra.mxu0 0
      %670 = vmatprep.subr.bf16.mxu0 0
      %671 = vmatpush2.bf16.msra.mxu0 0
      %672 = vmatprep.subr.bf16.mxu0 0
      %673 = vmatpush2.bf16.msra.mxu0 0
      %674 = vmatprep.subr.bf16.mxu0 0
      %675 = vmatpush2.bf16.msra.mxu0 0
      %676 = vmatprep.subr.bf16.mxu0 0
      %677 = vmatpush2.bf16.msra.mxu0 0
      %678 = vmatprep.mubr.bf16.mxu0 0
      %679 = vmatmul.mubr.bf16.gmra.mxu0 %v582
      %v680 = vpop.f32.mrf.mxu0
      %v681 = vadd.f32 0.0, %v680
      %v682 = vpop.f32.mrf.mxu0
      %v683 = vpop.f32.mrf.mxu0
      %v684 = vadd.f32 0.0, %v683
      %v685 = vpop.f32.mrf.mxu0
      %686 = vmatprep.mubr.bf16.mxu0 0
      %687 = vmatmul.mubr.bf16.gmra.mxu0 %v583
      %v688 = vpop.f32.mrf.mxu0
      %v689 = vadd.f32 0.0, %v688
      %v690 = vpop.f32.mrf.mxu0
      %v691 = vpop.f32.mrf.mxu0
      %v692 = vadd.f32 0.0, %v691
      %v693 = vpop.f32.mrf.mxu0
      %694 = vmatprep.mubr.bf16.mxu0 0
      %695 = vmatmul.mubr.bf16.gmra.mxu0 %v584
      %v696 = vpop.f32.mrf.mxu0
      %v697 = vadd.f32 0.0, %v696
      %v698 = vpop.f32.mrf.mxu0
      %v699 = vpop.f32.mrf.mxu0
      %v700 = vadd.f32 0.0, %v699
      %v701 = vpop.f32.mrf.mxu0
      %702 = vmatprep.mubr.bf16.mxu0 0
      %703 = vmatmul.mubr.bf16.gmra.mxu0 %v585
      %v704 = vpop.f32.mrf.mxu0
      %v705 = vadd.f32 0.0, %v704
      %v706 = vpop.f32.mrf.mxu0
      %v707 = vpop.f32.mrf.mxu0
      %v708 = vadd.f32 0.0, %v707
      %v709 = vpop.f32.mrf.mxu0
      %710 = vmatprep.mubr.bf16.mxu0 0
      %711 = vmatmul.mubr.bf16.gmra.mxu0 %v586
      %v712 = vpop.f32.mrf.mxu0
      %v713 = vadd.f32 0.0, %v712
      %v714 = vpop.f32.mrf.mxu0
      %v715 = vpop.f32.mrf.mxu0
      %v716 = vadd.f32 0.0, %v715
      %v717 = vpop.f32.mrf.mxu0
      %718 = vmatprep.mubr.bf16.mxu0 0
      %719 = vmatmul.mubr.bf16.gmra.mxu0 %v587
      %v720 = vpop.f32.mrf.mxu0
      %v721 = vadd.f32 0.0, %v720
      %v722 = vpop.f32.mrf.mxu0
      %v723 = vpop.f32.mrf.mxu0
      %v724 = vadd.f32 0.0, %v723
      %v725 = vpop.f32.mrf.mxu0
      %726 = vmatprep.mubr.bf16.mxu0 0
      %727 = vmatmul.mubr.bf16.gmra.mxu0 %v588
      %v728 = vpop.f32.mrf.mxu0
      %v729 = vadd.f32 0.0, %v728
      %v730 = vpop.f32.mrf.mxu0
      %v731 = vpop.f32.mrf.mxu0
      %v732 = vadd.f32 0.0, %v731
      %v733 = vpop.f32.mrf.mxu0
      %734 = vmatprep.mubr.bf16.mxu0 0
      %735 = vmatmul.mubr.bf16.gmra.mxu0 %v589
      %v736 = vpop.f32.mrf.mxu0
      %v737 = vadd.f32 0.0, %v736
      %v738 = vpop.f32.mrf.mxu0
      %v739 = vpop.f32.mrf.mxu0
      %v740 = vadd.f32 0.0, %v739
      %v741 = vpop.f32.mrf.mxu0
      %742 = vmatprep.mubr.bf16.mxu0 0
      %743 = vmatmul.mubr.bf16.gmra.mxu0 %v590
      %v744 = vpop.f32.mrf.mxu0
      %v745 = vadd.f32 0.0, %v744
      %v746 = vpop.f32.mrf.mxu0
      %v747 = vpop.f32.mrf.mxu0
      %v748 = vadd.f32 0.0, %v747
      %v749 = vpop.f32.mrf.mxu0
      %750 = vmatprep.mubr.bf16.mxu0 0
      %751 = vmatmul.mubr.bf16.gmra.mxu0 %v591
      %v752 = vpop.f32.mrf.mxu0
      %v753 = vadd.f32 0.0, %v752
      %v754 = vpop.f32.mrf.mxu0
      %v755 = vpop.f32.mrf.mxu0
      %v756 = vadd.f32 0.0, %v755
      %v757 = vpop.f32.mrf.mxu0
      %758 = vmatprep.mubr.bf16.mxu0 0
      %759 = vmatmul.mubr.bf16.gmra.mxu0 %v592
      %v760 = vpop.f32.mrf.mxu0
      %v761 = vadd.f32 0.0, %v760
      %v762 = vpop.f32.mrf.mxu0
      %v763 = vpop.f32.mrf.mxu0
      %v764 = vadd.f32 0.0, %v763
      %v765 = vpop.f32.mrf.mxu0
      %766 = vmatprep.mubr.bf16.mxu0 0
      %767 = vmatmul.mubr.bf16.gmra.mxu0 %v593
      %v768 = vpop.f32.mrf.mxu0
      %v769 = vadd.f32 0.0, %v768
      %v770 = vpop.f32.mrf.mxu0
      %v771 = vpop.f32.mrf.mxu0
      %v772 = vadd.f32 0.0, %v771
      %v773 = vpop.f32.mrf.mxu0
      %774 = vmatprep.mubr.bf16.mxu0 0
      %775 = vmatmul.mubr.bf16.gmra.mxu0 %v594
      %v776 = vpop.f32.mrf.mxu0
      %v777 = vadd.f32 0.0, %v776
      %v778 = vpop.f32.mrf.mxu0
      %v779 = vpop.f32.mrf.mxu0
      %v780 = vadd.f32 0.0, %v779
      %v781 = vpop.f32.mrf.mxu0
      %782 = vmatprep.mubr.bf16.mxu0 0
      %783 = vmatmul.mubr.bf16.gmra.mxu0 %v595
      %v784 = vpop.f32.mrf.mxu0
      %v785 = vadd.f32 0.0, %v784
      %v786 = vpop.f32.mrf.mxu0
      %v787 = vpop.f32.mrf.mxu0
      %v788 = vadd.f32 0.0, %v787
      %v789 = vpop.f32.mrf.mxu0
      %790 = vmatprep.mubr.bf16.mxu0 0
      %791 = vmatmul.mubr.bf16.gmra.mxu0 %v596
      %v792 = vpop.f32.mrf.mxu0
      %v793 = vadd.f32 0.0, %v792
      %v794 = vpop.f32.mrf.mxu0
      %v795 = vpop.f32.mrf.mxu0
      %v796 = vadd.f32 0.0, %v795
      %v797 = vpop.f32.mrf.mxu0
      %798 = vmatprep.mubr.bf16.mxu0 0
      %799 = vmatmul.mubr.bf16.gmra.mxu0 %v597
      %v800 = vpop.f32.mrf.mxu0
      %v801 = vadd.f32 0.0, %v800
      %v802 = vpop.f32.mrf.mxu0
      %v803 = vpop.f32.mrf.mxu0
      %v804 = vadd.f32 0.0, %v803
      %v805 = vpop.f32.mrf.mxu0
      %806 = vdwg.mxu0
      %v807 = vmul.f32 %v681, 2.0
      %v808 = vmul.f32 %v684, 2.0
      %v809 = vmul.f32 %v689, 2.0
      %v810 = vmul.f32 %v692, 2.0
      %v811 = vmul.f32 %v697, 2.0
      %v812 = vmul.f32 %v700, 2.0
      %v813 = vmul.f32 %v705, 2.0
      %v814 = vmul.f32 %v708, 2.0
      %v815 = vmul.f32 %v713, 2.0
      %v816 = vmul.f32 %v716, 2.0
      %v817 = vmul.f32 %v721, 2.0
      %v818 = vmul.f32 %v724, 2.0
      %v819 = vmul.f32 %v729, 2.0
      %v820 = vmul.f32 %v732, 2.0
      %v821 = vmul.f32 %v737, 2.0
      %v822 = vmul.f32 %v740, 2.0
      %v823 = vmul.f32 %v745, 2.0
      %v824 = vmul.f32 %v748, 2.0
      %v825 = vmul.f32 %v753, 2.0
      %v826 = vmul.f32 %v756, 2.0
      %v827 = vmul.f32 %v761, 2.0
      %v828 = vmul.f32 %v764, 2.0
      %v829 = vmul.f32 %v769, 2.0
      %v830 = vmul.f32 %v772, 2.0
      %v831 = vmul.f32 %v777, 2.0
      %v832 = vmul.f32 %v780, 2.0
      %v833 = vmul.f32 %v785, 2.0
      %v834 = vmul.f32 %v788, 2.0
      %v835 = vmul.f32 %v793, 2.0
      %v836 = vmul.f32 %v796, 2.0
      %v837 = vmul.f32 %v801, 2.0
      %v838 = vmul.f32 %v804, 2.0
      %v839 = vlaneseq
      %v840 = vshrl.u32 %v839, 7
      %v841 = vsub.s32 0, %v840
      %v842 = vrot.slane %v581, %v841
      %v843 = vsub.f32 %v842, %v807
      %v844 = vsub.f32 %v842, %v808
      %v845 = vsub.f32 %v842, %v809
      %v846 = vsub.f32 %v842, %v810
      %v847 = vsub.f32 %v842, %v811
      %v848 = vsub.f32 %v842, %v812
      %v849 = vsub.f32 %v842, %v813
      %v850 = vsub.f32 %v842, %v814
      %v851 = vsub.f32 %v842, %v815
      %v852 = vsub.f32 %v842, %v816
      %v853 = vsub.f32 %v842, %v817
      %v854 = vsub.f32 %v842, %v818
      %v855 = vsub.f32 %v842, %v819
      %v856 = vsub.f32 %v842, %v820
      %v857 = vsub.f32 %v842, %v821
      %v858 = vsub.f32 %v842, %v822
      %v859 = vsub.f32 %v842, %v823
      %v860 = vsub.f32 %v842, %v824
      %v861 = vsub.f32 %v842, %v825
      %v862 = vsub.f32 %v842, %v826
      %v863 = vsub.f32 %v842, %v827
      %v864 = vsub.f32 %v842, %v828
      %v865 = vsub.f32 %v842, %v829
      %v866 = vsub.f32 %v842, %v830
      %v867 = vsub.f32 %v842, %v831
      %v868 = vsub.f32 %v842, %v832
      %v869 = vsub.f32 %v842, %v833
      %v870 = vsub.f32 %v842, %v834
      %v871 = vsub.f32 %v842, %v835
      %v872 = vsub.f32 %v842, %v836
      %v873 = vsub.f32 %v842, %v837
      %v874 = vsub.f32 %v842, %v838
      %875 = vmin.xlane.f32.xlu0 %v843
      %v876 = vpop.xlane.xlu0 %875
      %877 = vmin.xlane.f32.xlu0 %v844
      %v878 = vpop.xlane.xlu0 %877
      %879 = vmin.xlane.f32.xlu0 %v845
      %v880 = vpop.xlane.xlu0 %879
      %881 = vmin.xlane.f32.xlu0 %v846
      %v882 = vpop.xlane.xlu0 %881
      %883 = vmin.xlane.f32.xlu0 %v847
      %v884 = vpop.xlane.xlu0 %883
      %885 = vmin.xlane.f32.xlu0 %v848
      %v886 = vpop.xlane.xlu0 %885
      %887 = vmin.xlane.f32.xlu0 %v849
      %v888 = vpop.xlane.xlu0 %887
      %889 = vmin.xlane.f32.xlu0 %v850
      %v890 = vpop.xlane.xlu0 %889
      %891 = vmin.xlane.f32.xlu0 %v851
      %v892 = vpop.xlane.xlu0 %891
      %893 = vmin.xlane.f32.xlu0 %v852
      %v894 = vpop.xlane.xlu0 %893
      %895 = vmin.xlane.f32.xlu0 %v853
      %v896 = vpop.xlane.xlu0 %895
      %897 = vmin.xlane.f32.xlu0 %v854
      %v898 = vpop.xlane.xlu0 %897
      %899 = vmin.xlane.f32.xlu0 %v855
      %v900 = vpop.xlane.xlu0 %899
      %901 = vmin.xlane.f32.xlu0 %v856
      %v902 = vpop.xlane.xlu0 %901
      %903 = vmin.xlane.f32.xlu0 %v857
      %v904 = vpop.xlane.xlu0 %903
      %905 = vmin.xlane.f32.xlu0 %v858
      %v906 = vpop.xlane.xlu0 %905
      %907 = vmin.xlane.f32.xlu0 %v859
      %v908 = vpop.xlane.xlu0 %907
      %909 = vmin.xlane.f32.xlu0 %v860
      %v910 = vpop.xlane.xlu0 %909
      %911 = vmin.xlane.f32.xlu0 %v861
      %v912 = vpop.xlane.xlu0 %911
      %913 = vmin.xlane.f32.xlu0 %v862
      %v914 = vpop.xlane.xlu0 %913
      %915 = vmin.xlane.f32.xlu0 %v863
      %v916 = vpop.xlane.xlu0 %915
      %917 = vmin.xlane.f32.xlu0 %v864
      %v918 = vpop.xlane.xlu0 %917
      %919 = vmin.xlane.f32.xlu0 %v865
      %v920 = vpop.xlane.xlu0 %919
      %921 = vmin.xlane.f32.xlu0 %v866
      %v922 = vpop.xlane.xlu0 %921
      %923 = vmin.xlane.f32.xlu0 %v867
      %v924 = vpop.xlane.xlu0 %923
      %925 = vmin.xlane.f32.xlu0 %v868
      %v926 = vpop.xlane.xlu0 %925
      %927 = vmin.xlane.f32.xlu0 %v869
      %v928 = vpop.xlane.xlu0 %927
      %929 = vmin.xlane.f32.xlu0 %v870
      %v930 = vpop.xlane.xlu0 %929
      %931 = vmin.xlane.f32.xlu0 %v871
      %v932 = vpop.xlane.xlu0 %931
      %933 = vmin.xlane.f32.xlu0 %v872
      %v934 = vpop.xlane.xlu0 %933
      %935 = vmin.xlane.f32.xlu0 %v873
      %v936 = vpop.xlane.xlu0 %935
      %937 = vmin.xlane.f32.xlu0 %v874
      %v938 = vpop.xlane.xlu0 %937
      %vm939 = vcmp.eq.f32.partialorder %v843, %v876
      %vm940 = vcmp.eq.f32.partialorder %v844, %v878
      %vm941 = vcmp.eq.f32.partialorder %v845, %v880
      %vm942 = vcmp.eq.f32.partialorder %v846, %v882
      %vm943 = vcmp.eq.f32.partialorder %v847, %v884
      %vm944 = vcmp.eq.f32.partialorder %v848, %v886
      %vm945 = vcmp.eq.f32.partialorder %v849, %v888
      %vm946 = vcmp.eq.f32.partialorder %v850, %v890
      %vm947 = vcmp.eq.f32.partialorder %v851, %v892
      %vm948 = vcmp.eq.f32.partialorder %v852, %v894
      %vm949 = vcmp.eq.f32.partialorder %v853, %v896
      %vm950 = vcmp.eq.f32.partialorder %v854, %v898
      %vm951 = vcmp.eq.f32.partialorder %v855, %v900
      %vm952 = vcmp.eq.f32.partialorder %v856, %v902
      %vm953 = vcmp.eq.f32.partialorder %v857, %v904
      %vm954 = vcmp.eq.f32.partialorder %v858, %v906
      %vm955 = vcmp.eq.f32.partialorder %v859, %v908
      %vm956 = vcmp.eq.f32.partialorder %v860, %v910
      %vm957 = vcmp.eq.f32.partialorder %v861, %v912
      %vm958 = vcmp.eq.f32.partialorder %v862, %v914
      %vm959 = vcmp.eq.f32.partialorder %v863, %v916
      %vm960 = vcmp.eq.f32.partialorder %v864, %v918
      %vm961 = vcmp.eq.f32.partialorder %v865, %v920
      %vm962 = vcmp.eq.f32.partialorder %v866, %v922
      %vm963 = vcmp.eq.f32.partialorder %v867, %v924
      %vm964 = vcmp.eq.f32.partialorder %v868, %v926
      %vm965 = vcmp.eq.f32.partialorder %v869, %v928
      %vm966 = vcmp.eq.f32.partialorder %v870, %v930
      %vm967 = vcmp.eq.f32.partialorder %v871, %v932
      %vm968 = vcmp.eq.f32.partialorder %v872, %v934
      %vm969 = vcmp.eq.f32.partialorder %v873, %v936
      %vm970 = vcmp.eq.f32.partialorder %v874, %v938
      %v971 = vsel %vm939, %v449, 128
      %v972 = vsel %vm940, %v449, 128
      %v973 = vsel %vm941, %v449, 128
      %v974 = vsel %vm942, %v449, 128
      %v975 = vsel %vm943, %v449, 128
      %v976 = vsel %vm944, %v449, 128
      %v977 = vsel %vm945, %v449, 128
      %v978 = vsel %vm946, %v449, 128
      %v979 = vsel %vm947, %v449, 128
      %v980 = vsel %vm948, %v449, 128
      %v981 = vsel %vm949, %v449, 128
      %v982 = vsel %vm950, %v449, 128
      %v983 = vsel %vm951, %v449, 128
      %v984 = vsel %vm952, %v449, 128
      %v985 = vsel %vm953, %v449, 128
      %v986 = vsel %vm954, %v449, 128
      %v987 = vsel %vm955, %v449, 128
      %v988 = vsel %vm956, %v449, 128
      %v989 = vsel %vm957, %v449, 128
      %v990 = vsel %vm958, %v449, 128
      %v991 = vsel %vm959, %v449, 128
      %v992 = vsel %vm960, %v449, 128
      %v993 = vsel %vm961, %v449, 128
      %v994 = vsel %vm962, %v449, 128
      %v995 = vsel %vm963, %v449, 128
      %v996 = vsel %vm964, %v449, 128
      %v997 = vsel %vm965, %v449, 128
      %v998 = vsel %vm966, %v449, 128
      %v999 = vsel %vm967, %v449, 128
      %v1000 = vsel %vm968, %v449, 128
      %v1001 = vsel %vm969, %v449, 128
      %v1002 = vsel %vm970, %v449, 128
      %v1003 = vand.u32 %v971, 65535
      %v1004 = vshra.s32 %v971, 16
      %v1005 = vcvt.s32.f32 %v1003
      %v1006 = vcvt.s32.f32 %v1004
      %1007 = vmin.xlane.f32.xlu0 %v1006
      %v1008 = vpop.xlane.xlu0 %1007
      %vm1009 = vcmp.eq.f32.partialorder %v1006, %v1008
      %v1010 = vsel %vm1009, %v1005, inf
      %1011 = vmin.xlane.f32.xlu0 %v1010
      %v1012 = vpop.xlane.xlu0 %1011
      %v1013 = vcvt.f32.s32 %v1012
      %v1014 = vcvt.f32.s32 %v1008
      %v1015 = vshll.u32 %v1014, 16
      %v1016 = vadd.s32 %v1015, %v1013
      %v1017 = vand.u32 %v972, 65535
      %v1018 = vshra.s32 %v972, 16
      %v1019 = vcvt.s32.f32 %v1017
      %v1020 = vcvt.s32.f32 %v1018
      %1021 = vmin.xlane.f32.xlu0 %v1020
      %v1022 = vpop.xlane.xlu0 %1021
      %vm1023 = vcmp.eq.f32.partialorder %v1020, %v1022
      %v1024 = vsel %vm1023, %v1019, inf
      %1025 = vmin.xlane.f32.xlu0 %v1024
      %v1026 = vpop.xlane.xlu0 %1025
      %v1027 = vcvt.f32.s32 %v1026
      %v1028 = vcvt.f32.s32 %v1022
      %v1029 = vshll.u32 %v1028, 16
      %v1030 = vadd.s32 %v1029, %v1027
      %v1031 = vand.u32 %v973, 65535
      %v1032 = vshra.s32 %v973, 16
      %v1033 = vcvt.s32.f32 %v1031
      %v1034 = vcvt.s32.f32 %v1032
      %1035 = vmin.xlane.f32.xlu0 %v1034
      %v1036 = vpop.xlane.xlu0 %1035
      %vm1037 = vcmp.eq.f32.partialorder %v1034, %v1036
      %v1038 = vsel %vm1037, %v1033, inf
      %1039 = vmin.xlane.f32.xlu0 %v1038
      %v1040 = vpop.xlane.xlu0 %1039
      %v1041 = vcvt.f32.s32 %v1040
      %v1042 = vcvt.f32.s32 %v1036
      %v1043 = vshll.u32 %v1042, 16
      %v1044 = vadd.s32 %v1043, %v1041
      %v1045 = vand.u32 %v974, 65535
      %v1046 = vshra.s32 %v974, 16
      %v1047 = vcvt.s32.f32 %v1045
      %v1048 = vcvt.s32.f32 %v1046
      %1049 = vmin.xlane.f32.xlu0 %v1048
      %v1050 = vpop.xlane.xlu0 %1049
      %vm1051 = vcmp.eq.f32.partialorder %v1048, %v1050
      %v1052 = vsel %vm1051, %v1047, inf
      %1053 = vmin.xlane.f32.xlu0 %v1052
      %v1054 = vpop.xlane.xlu0 %1053
      %v1055 = vcvt.f32.s32 %v1054
      %v1056 = vcvt.f32.s32 %v1050
      %v1057 = vshll.u32 %v1056, 16
      %v1058 = vadd.s32 %v1057, %v1055
      %v1059 = vand.u32 %v975, 65535
      %v1060 = vshra.s32 %v975, 16
      %v1061 = vcvt.s32.f32 %v1059
      %v1062 = vcvt.s32.f32 %v1060
      %1063 = vmin.xlane.f32.xlu0 %v1062
      %v1064 = vpop.xlane.xlu0 %1063
      %vm1065 = vcmp.eq.f32.partialorder %v1062, %v1064
      %v1066 = vsel %vm1065, %v1061, inf
      %1067 = vmin.xlane.f32.xlu0 %v1066
      %v1068 = vpop.xlane.xlu0 %1067
      %v1069 = vcvt.f32.s32 %v1068
      %v1070 = vcvt.f32.s32 %v1064
      %v1071 = vshll.u32 %v1070, 16
      %v1072 = vadd.s32 %v1071, %v1069
      %v1073 = vand.u32 %v976, 65535
      %v1074 = vshra.s32 %v976, 16
      %v1075 = vcvt.s32.f32 %v1073
      %v1076 = vcvt.s32.f32 %v1074
      %1077 = vmin.xlane.f32.xlu0 %v1076
      %v1078 = vpop.xlane.xlu0 %1077
      %vm1079 = vcmp.eq.f32.partialorder %v1076, %v1078
      %v1080 = vsel %vm1079, %v1075, inf
      %1081 = vmin.xlane.f32.xlu0 %v1080
      %v1082 = vpop.xlane.xlu0 %1081
      %v1083 = vcvt.f32.s32 %v1082
      %v1084 = vcvt.f32.s32 %v1078
      %v1085 = vshll.u32 %v1084, 16
      %v1086 = vadd.s32 %v1085, %v1083
      %v1087 = vand.u32 %v977, 65535
      %v1088 = vshra.s32 %v977, 16
      %v1089 = vcvt.s32.f32 %v1087
      %v1090 = vcvt.s32.f32 %v1088
      %1091 = vmin.xlane.f32.xlu0 %v1090
      %v1092 = vpop.xlane.xlu0 %1091
      %vm1093 = vcmp.eq.f32.partialorder %v1090, %v1092
      %v1094 = vsel %vm1093, %v1089, inf
      %1095 = vmin.xlane.f32.xlu0 %v1094
      %v1096 = vpop.xlane.xlu0 %1095
      %v1097 = vcvt.f32.s32 %v1096
      %v1098 = vcvt.f32.s32 %v1092
      %v1099 = vshll.u32 %v1098, 16
      %v1100 = vadd.s32 %v1099, %v1097
      %v1101 = vand.u32 %v978, 65535
      %v1102 = vshra.s32 %v978, 16
      %v1103 = vcvt.s32.f32 %v1101
      %v1104 = vcvt.s32.f32 %v1102
      %1105 = vmin.xlane.f32.xlu0 %v1104
      %v1106 = vpop.xlane.xlu0 %1105
      %vm1107 = vcmp.eq.f32.partialorder %v1104, %v1106
      %v1108 = vsel %vm1107, %v1103, inf
      %1109 = vmin.xlane.f32.xlu0 %v1108
      %v1110 = vpop.xlane.xlu0 %1109
      %v1111 = vcvt.f32.s32 %v1110
      %v1112 = vcvt.f32.s32 %v1106
      %v1113 = vshll.u32 %v1112, 16
      %v1114 = vadd.s32 %v1113, %v1111
      %v1115 = vand.u32 %v979, 65535
      %v1116 = vshra.s32 %v979, 16
      %v1117 = vcvt.s32.f32 %v1115
      %v1118 = vcvt.s32.f32 %v1116
      %1119 = vmin.xlane.f32.xlu0 %v1118
      %v1120 = vpop.xlane.xlu0 %1119
      %vm1121 = vcmp.eq.f32.partialorder %v1118, %v1120
      %v1122 = vsel %vm1121, %v1117, inf
      %1123 = vmin.xlane.f32.xlu0 %v1122
      %v1124 = vpop.xlane.xlu0 %1123
      %v1125 = vcvt.f32.s32 %v1124
      %v1126 = vcvt.f32.s32 %v1120
      %v1127 = vshll.u32 %v1126, 16
      %v1128 = vadd.s32 %v1127, %v1125
      %v1129 = vand.u32 %v980, 65535
      %v1130 = vshra.s32 %v980, 16
      %v1131 = vcvt.s32.f32 %v1129
      %v1132 = vcvt.s32.f32 %v1130
      %1133 = vmin.xlane.f32.xlu0 %v1132
      %v1134 = vpop.xlane.xlu0 %1133
      %vm1135 = vcmp.eq.f32.partialorder %v1132, %v1134
      %v1136 = vsel %vm1135, %v1131, inf
      %1137 = vmin.xlane.f32.xlu0 %v1136
      %v1138 = vpop.xlane.xlu0 %1137
      %v1139 = vcvt.f32.s32 %v1138
      %v1140 = vcvt.f32.s32 %v1134
      %v1141 = vshll.u32 %v1140, 16
      %v1142 = vadd.s32 %v1141, %v1139
      %v1143 = vand.u32 %v981, 65535
      %v1144 = vshra.s32 %v981, 16
      %v1145 = vcvt.s32.f32 %v1143
      %v1146 = vcvt.s32.f32 %v1144
      %1147 = vmin.xlane.f32.xlu0 %v1146
      %v1148 = vpop.xlane.xlu0 %1147
      %vm1149 = vcmp.eq.f32.partialorder %v1146, %v1148
      %v1150 = vsel %vm1149, %v1145, inf
      %1151 = vmin.xlane.f32.xlu0 %v1150
      %v1152 = vpop.xlane.xlu0 %1151
      %v1153 = vcvt.f32.s32 %v1152
      %v1154 = vcvt.f32.s32 %v1148
      %v1155 = vshll.u32 %v1154, 16
      %v1156 = vadd.s32 %v1155, %v1153
      %v1157 = vand.u32 %v982, 65535
      %v1158 = vshra.s32 %v982, 16
      %v1159 = vcvt.s32.f32 %v1157
      %v1160 = vcvt.s32.f32 %v1158
      %1161 = vmin.xlane.f32.xlu0 %v1160
      %v1162 = vpop.xlane.xlu0 %1161
      %vm1163 = vcmp.eq.f32.partialorder %v1160, %v1162
      %v1164 = vsel %vm1163, %v1159, inf
      %1165 = vmin.xlane.f32.xlu0 %v1164
      %v1166 = vpop.xlane.xlu0 %1165
      %v1167 = vcvt.f32.s32 %v1166
      %v1168 = vcvt.f32.s32 %v1162
      %v1169 = vshll.u32 %v1168, 16
      %v1170 = vadd.s32 %v1169, %v1167
      %v1171 = vand.u32 %v983, 65535
      %v1172 = vshra.s32 %v983, 16
      %v1173 = vcvt.s32.f32 %v1171
      %v1174 = vcvt.s32.f32 %v1172
      %1175 = vmin.xlane.f32.xlu0 %v1174
      %v1176 = vpop.xlane.xlu0 %1175
      %vm1177 = vcmp.eq.f32.partialorder %v1174, %v1176
      %v1178 = vsel %vm1177, %v1173, inf
      %1179 = vmin.xlane.f32.xlu0 %v1178
      %v1180 = vpop.xlane.xlu0 %1179
      %v1181 = vcvt.f32.s32 %v1180
      %v1182 = vcvt.f32.s32 %v1176
      %v1183 = vshll.u32 %v1182, 16
      %v1184 = vadd.s32 %v1183, %v1181
      %v1185 = vand.u32 %v984, 65535
      %v1186 = vshra.s32 %v984, 16
      %v1187 = vcvt.s32.f32 %v1185
      %v1188 = vcvt.s32.f32 %v1186
      %1189 = vmin.xlane.f32.xlu0 %v1188
      %v1190 = vpop.xlane.xlu0 %1189
      %vm1191 = vcmp.eq.f32.partialorder %v1188, %v1190
      %v1192 = vsel %vm1191, %v1187, inf
      %1193 = vmin.xlane.f32.xlu0 %v1192
      %v1194 = vpop.xlane.xlu0 %1193
      %v1195 = vcvt.f32.s32 %v1194
      %v1196 = vcvt.f32.s32 %v1190
      %v1197 = vshll.u32 %v1196, 16
      %v1198 = vadd.s32 %v1197, %v1195
      %v1199 = vand.u32 %v985, 65535
      %v1200 = vshra.s32 %v985, 16
      %v1201 = vcvt.s32.f32 %v1199
      %v1202 = vcvt.s32.f32 %v1200
      %1203 = vmin.xlane.f32.xlu0 %v1202
      %v1204 = vpop.xlane.xlu0 %1203
      %vm1205 = vcmp.eq.f32.partialorder %v1202, %v1204
      %v1206 = vsel %vm1205, %v1201, inf
      %1207 = vmin.xlane.f32.xlu0 %v1206
      %v1208 = vpop.xlane.xlu0 %1207
      %v1209 = vcvt.f32.s32 %v1208
      %v1210 = vcvt.f32.s32 %v1204
      %v1211 = vshll.u32 %v1210, 16
      %v1212 = vadd.s32 %v1211, %v1209
      %v1213 = vand.u32 %v986, 65535
      %v1214 = vshra.s32 %v986, 16
      %v1215 = vcvt.s32.f32 %v1213
      %v1216 = vcvt.s32.f32 %v1214
      %1217 = vmin.xlane.f32.xlu0 %v1216
      %v1218 = vpop.xlane.xlu0 %1217
      %vm1219 = vcmp.eq.f32.partialorder %v1216, %v1218
      %v1220 = vsel %vm1219, %v1215, inf
      %1221 = vmin.xlane.f32.xlu0 %v1220
      %v1222 = vpop.xlane.xlu0 %1221
      %v1223 = vcvt.f32.s32 %v1222
      %v1224 = vcvt.f32.s32 %v1218
      %v1225 = vshll.u32 %v1224, 16
      %v1226 = vadd.s32 %v1225, %v1223
      %v1227 = vand.u32 %v987, 65535
      %v1228 = vshra.s32 %v987, 16
      %v1229 = vcvt.s32.f32 %v1227
      %v1230 = vcvt.s32.f32 %v1228
      %1231 = vmin.xlane.f32.xlu0 %v1230
      %v1232 = vpop.xlane.xlu0 %1231
      %vm1233 = vcmp.eq.f32.partialorder %v1230, %v1232
      %v1234 = vsel %vm1233, %v1229, inf
      %1235 = vmin.xlane.f32.xlu0 %v1234
      %v1236 = vpop.xlane.xlu0 %1235
      %v1237 = vcvt.f32.s32 %v1236
      %v1238 = vcvt.f32.s32 %v1232
      %v1239 = vshll.u32 %v1238, 16
      %v1240 = vadd.s32 %v1239, %v1237
      %v1241 = vand.u32 %v988, 65535
      %v1242 = vshra.s32 %v988, 16
      %v1243 = vcvt.s32.f32 %v1241
      %v1244 = vcvt.s32.f32 %v1242
      %1245 = vmin.xlane.f32.xlu0 %v1244
      %v1246 = vpop.xlane.xlu0 %1245
      %vm1247 = vcmp.eq.f32.partialorder %v1244, %v1246
      %v1248 = vsel %vm1247, %v1243, inf
      %1249 = vmin.xlane.f32.xlu0 %v1248
      %v1250 = vpop.xlane.xlu0 %1249
      %v1251 = vcvt.f32.s32 %v1250
      %v1252 = vcvt.f32.s32 %v1246
      %v1253 = vshll.u32 %v1252, 16
      %v1254 = vadd.s32 %v1253, %v1251
      %v1255 = vand.u32 %v989, 65535
      %v1256 = vshra.s32 %v989, 16
      %v1257 = vcvt.s32.f32 %v1255
      %v1258 = vcvt.s32.f32 %v1256
      %1259 = vmin.xlane.f32.xlu0 %v1258
      %v1260 = vpop.xlane.xlu0 %1259
      %vm1261 = vcmp.eq.f32.partialorder %v1258, %v1260
      %v1262 = vsel %vm1261, %v1257, inf
      %1263 = vmin.xlane.f32.xlu0 %v1262
      %v1264 = vpop.xlane.xlu0 %1263
      %v1265 = vcvt.f32.s32 %v1264
      %v1266 = vcvt.f32.s32 %v1260
      %v1267 = vshll.u32 %v1266, 16
      %v1268 = vadd.s32 %v1267, %v1265
      %v1269 = vand.u32 %v990, 65535
      %v1270 = vshra.s32 %v990, 16
      %v1271 = vcvt.s32.f32 %v1269
      %v1272 = vcvt.s32.f32 %v1270
      %1273 = vmin.xlane.f32.xlu0 %v1272
      %v1274 = vpop.xlane.xlu0 %1273
      %vm1275 = vcmp.eq.f32.partialorder %v1272, %v1274
      %v1276 = vsel %vm1275, %v1271, inf
      %1277 = vmin.xlane.f32.xlu0 %v1276
      %v1278 = vpop.xlane.xlu0 %1277
      %v1279 = vcvt.f32.s32 %v1278
      %v1280 = vcvt.f32.s32 %v1274
      %v1281 = vshll.u32 %v1280, 16
      %v1282 = vadd.s32 %v1281, %v1279
      %v1283 = vand.u32 %v991, 65535
      %v1284 = vshra.s32 %v991, 16
      %v1285 = vcvt.s32.f32 %v1283
      %v1286 = vcvt.s32.f32 %v1284
      %1287 = vmin.xlane.f32.xlu0 %v1286
      %v1288 = vpop.xlane.xlu0 %1287
      %vm1289 = vcmp.eq.f32.partialorder %v1286, %v1288
      %v1290 = vsel %vm1289, %v1285, inf
      %1291 = vmin.xlane.f32.xlu0 %v1290
      %v1292 = vpop.xlane.xlu0 %1291
      %v1293 = vcvt.f32.s32 %v1292
      %v1294 = vcvt.f32.s32 %v1288
      %v1295 = vshll.u32 %v1294, 16
      %v1296 = vadd.s32 %v1295, %v1293
      %v1297 = vand.u32 %v992, 65535
      %v1298 = vshra.s32 %v992, 16
      %v1299 = vcvt.s32.f32 %v1297
      %v1300 = vcvt.s32.f32 %v1298
      %1301 = vmin.xlane.f32.xlu0 %v1300
      %v1302 = vpop.xlane.xlu0 %1301
      %vm1303 = vcmp.eq.f32.partialorder %v1300, %v1302
      %v1304 = vsel %vm1303, %v1299, inf
      %1305 = vmin.xlane.f32.xlu0 %v1304
      %v1306 = vpop.xlane.xlu0 %1305
      %v1307 = vcvt.f32.s32 %v1306
      %v1308 = vcvt.f32.s32 %v1302
      %v1309 = vshll.u32 %v1308, 16
      %v1310 = vadd.s32 %v1309, %v1307
      %v1311 = vand.u32 %v993, 65535
      %v1312 = vshra.s32 %v993, 16
      %v1313 = vcvt.s32.f32 %v1311
      %v1314 = vcvt.s32.f32 %v1312
      %1315 = vmin.xlane.f32.xlu0 %v1314
      %v1316 = vpop.xlane.xlu0 %1315
      %vm1317 = vcmp.eq.f32.partialorder %v1314, %v1316
      %v1318 = vsel %vm1317, %v1313, inf
      %1319 = vmin.xlane.f32.xlu0 %v1318
      %v1320 = vpop.xlane.xlu0 %1319
      %v1321 = vcvt.f32.s32 %v1320
      %v1322 = vcvt.f32.s32 %v1316
      %v1323 = vshll.u32 %v1322, 16
      %v1324 = vadd.s32 %v1323, %v1321
      %v1325 = vand.u32 %v994, 65535
      %v1326 = vshra.s32 %v994, 16
      %v1327 = vcvt.s32.f32 %v1325
      %v1328 = vcvt.s32.f32 %v1326
      %1329 = vmin.xlane.f32.xlu0 %v1328
      %v1330 = vpop.xlane.xlu0 %1329
      %vm1331 = vcmp.eq.f32.partialorder %v1328, %v1330
      %v1332 = vsel %vm1331, %v1327, inf
      %1333 = vmin.xlane.f32.xlu0 %v1332
      %v1334 = vpop.xlane.xlu0 %1333
      %v1335 = vcvt.f32.s32 %v1334
      %v1336 = vcvt.f32.s32 %v1330
      %v1337 = vshll.u32 %v1336, 16
      %v1338 = vadd.s32 %v1337, %v1335
      %v1339 = vand.u32 %v995, 65535
      %v1340 = vshra.s32 %v995, 16
      %v1341 = vcvt.s32.f32 %v1339
      %v1342 = vcvt.s32.f32 %v1340
      %1343 = vmin.xlane.f32.xlu0 %v1342
      %v1344 = vpop.xlane.xlu0 %1343
      %vm1345 = vcmp.eq.f32.partialorder %v1342, %v1344
      %v1346 = vsel %vm1345, %v1341, inf
      %1347 = vmin.xlane.f32.xlu0 %v1346
      %v1348 = vpop.xlane.xlu0 %1347
      %v1349 = vcvt.f32.s32 %v1348
      %v1350 = vcvt.f32.s32 %v1344
      %v1351 = vshll.u32 %v1350, 16
      %v1352 = vadd.s32 %v1351, %v1349
      %v1353 = vand.u32 %v996, 65535
      %v1354 = vshra.s32 %v996, 16
      %v1355 = vcvt.s32.f32 %v1353
      %v1356 = vcvt.s32.f32 %v1354
      %1357 = vmin.xlane.f32.xlu0 %v1356
      %v1358 = vpop.xlane.xlu0 %1357
      %vm1359 = vcmp.eq.f32.partialorder %v1356, %v1358
      %v1360 = vsel %vm1359, %v1355, inf
      %1361 = vmin.xlane.f32.xlu0 %v1360
      %v1362 = vpop.xlane.xlu0 %1361
      %v1363 = vcvt.f32.s32 %v1362
      %v1364 = vcvt.f32.s32 %v1358
      %v1365 = vshll.u32 %v1364, 16
      %v1366 = vadd.s32 %v1365, %v1363
      %v1367 = vand.u32 %v997, 65535
      %v1368 = vshra.s32 %v997, 16
      %v1369 = vcvt.s32.f32 %v1367
      %v1370 = vcvt.s32.f32 %v1368
      %1371 = vmin.xlane.f32.xlu0 %v1370
      %v1372 = vpop.xlane.xlu0 %1371
      %vm1373 = vcmp.eq.f32.partialorder %v1370, %v1372
      %v1374 = vsel %vm1373, %v1369, inf
      %1375 = vmin.xlane.f32.xlu0 %v1374
      %v1376 = vpop.xlane.xlu0 %1375
      %v1377 = vcvt.f32.s32 %v1376
      %v1378 = vcvt.f32.s32 %v1372
      %v1379 = vshll.u32 %v1378, 16
      %v1380 = vadd.s32 %v1379, %v1377
      %v1381 = vand.u32 %v998, 65535
      %v1382 = vshra.s32 %v998, 16
      %v1383 = vcvt.s32.f32 %v1381
      %v1384 = vcvt.s32.f32 %v1382
      %1385 = vmin.xlane.f32.xlu0 %v1384
      %v1386 = vpop.xlane.xlu0 %1385
      %vm1387 = vcmp.eq.f32.partialorder %v1384, %v1386
      %v1388 = vsel %vm1387, %v1383, inf
      %1389 = vmin.xlane.f32.xlu0 %v1388
      %v1390 = vpop.xlane.xlu0 %1389
      %v1391 = vcvt.f32.s32 %v1390
      %v1392 = vcvt.f32.s32 %v1386
      %v1393 = vshll.u32 %v1392, 16
      %v1394 = vadd.s32 %v1393, %v1391
      %v1395 = vand.u32 %v999, 65535
      %v1396 = vshra.s32 %v999, 16
      %v1397 = vcvt.s32.f32 %v1395
      %v1398 = vcvt.s32.f32 %v1396
      %1399 = vmin.xlane.f32.xlu0 %v1398
      %v1400 = vpop.xlane.xlu0 %1399
      %vm1401 = vcmp.eq.f32.partialorder %v1398, %v1400
      %v1402 = vsel %vm1401, %v1397, inf
      %1403 = vmin.xlane.f32.xlu0 %v1402
      %v1404 = vpop.xlane.xlu0 %1403
      %v1405 = vcvt.f32.s32 %v1404
      %v1406 = vcvt.f32.s32 %v1400
      %v1407 = vshll.u32 %v1406, 16
      %v1408 = vadd.s32 %v1407, %v1405
      %v1409 = vand.u32 %v1000, 65535
      %v1410 = vshra.s32 %v1000, 16
      %v1411 = vcvt.s32.f32 %v1409
      %v1412 = vcvt.s32.f32 %v1410
      %1413 = vmin.xlane.f32.xlu0 %v1412
      %v1414 = vpop.xlane.xlu0 %1413
      %vm1415 = vcmp.eq.f32.partialorder %v1412, %v1414
      %v1416 = vsel %vm1415, %v1411, inf
      %1417 = vmin.xlane.f32.xlu0 %v1416
      %v1418 = vpop.xlane.xlu0 %1417
      %v1419 = vcvt.f32.s32 %v1418
      %v1420 = vcvt.f32.s32 %v1414
      %v1421 = vshll.u32 %v1420, 16
      %v1422 = vadd.s32 %v1421, %v1419
      %v1423 = vand.u32 %v1001, 65535
      %v1424 = vshra.s32 %v1001, 16
      %v1425 = vcvt.s32.f32 %v1423
      %v1426 = vcvt.s32.f32 %v1424
      %1427 = vmin.xlane.f32.xlu0 %v1426
      %v1428 = vpop.xlane.xlu0 %1427
      %vm1429 = vcmp.eq.f32.partialorder %v1426, %v1428
      %v1430 = vsel %vm1429, %v1425, inf
      %1431 = vmin.xlane.f32.xlu0 %v1430
      %v1432 = vpop.xlane.xlu0 %1431
      %v1433 = vcvt.f32.s32 %v1432
      %v1434 = vcvt.f32.s32 %v1428
      %v1435 = vshll.u32 %v1434, 16
      %v1436 = vadd.s32 %v1435, %v1433
      %v1437 = vand.u32 %v1002, 65535
      %v1438 = vshra.s32 %v1002, 16
      %v1439 = vcvt.s32.f32 %v1437
      %v1440 = vcvt.s32.f32 %v1438
      %1441 = vmin.xlane.f32.xlu0 %v1440
      %v1442 = vpop.xlane.xlu0 %1441
      %vm1443 = vcmp.eq.f32.partialorder %v1440, %v1442
      %v1444 = vsel %vm1443, %v1439, inf
      %1445 = vmin.xlane.f32.xlu0 %v1444
      %v1446 = vpop.xlane.xlu0 %1445
      %v1447 = vcvt.f32.s32 %v1446
      %v1448 = vcvt.f32.s32 %v1442
      %v1449 = vshll.u32 %v1448, 16
      %v1450 = vadd.s32 %v1449, %v1447
      %vm1451 = vcmp.eq.s32.totalorder %v449, %v1016
      %vm1452 = vcmp.eq.s32.totalorder %v449, %v1030
      %vm1453 = vcmp.eq.s32.totalorder %v449, %v1044
      %vm1454 = vcmp.eq.s32.totalorder %v449, %v1058
      %vm1455 = vcmp.eq.s32.totalorder %v449, %v1072
      %vm1456 = vcmp.eq.s32.totalorder %v449, %v1086
      %vm1457 = vcmp.eq.s32.totalorder %v449, %v1100
      %vm1458 = vcmp.eq.s32.totalorder %v449, %v1114
      %vm1459 = vcmp.eq.s32.totalorder %v449, %v1128
      %vm1460 = vcmp.eq.s32.totalorder %v449, %v1142
      %vm1461 = vcmp.eq.s32.totalorder %v449, %v1156
      %vm1462 = vcmp.eq.s32.totalorder %v449, %v1170
      %vm1463 = vcmp.eq.s32.totalorder %v449, %v1184
      %vm1464 = vcmp.eq.s32.totalorder %v449, %v1198
      %vm1465 = vcmp.eq.s32.totalorder %v449, %v1212
      %vm1466 = vcmp.eq.s32.totalorder %v449, %v1226
      %vm1467 = vcmp.eq.s32.totalorder %v449, %v1240
      %vm1468 = vcmp.eq.s32.totalorder %v449, %v1254
      %vm1469 = vcmp.eq.s32.totalorder %v449, %v1268
      %vm1470 = vcmp.eq.s32.totalorder %v449, %v1282
      %vm1471 = vcmp.eq.s32.totalorder %v449, %v1296
      %vm1472 = vcmp.eq.s32.totalorder %v449, %v1310
      %vm1473 = vcmp.eq.s32.totalorder %v449, %v1324
      %vm1474 = vcmp.eq.s32.totalorder %v449, %v1338
      %vm1475 = vcmp.eq.s32.totalorder %v449, %v1352
      %vm1476 = vcmp.eq.s32.totalorder %v449, %v1366
      %vm1477 = vcmp.eq.s32.totalorder %v449, %v1380
      %vm1478 = vcmp.eq.s32.totalorder %v449, %v1394
      %vm1479 = vcmp.eq.s32.totalorder %v449, %v1408
      %vm1480 = vcmp.eq.s32.totalorder %v449, %v1422
      %vm1481 = vcmp.eq.s32.totalorder %v449, %v1436
      %vm1482 = vcmp.eq.s32.totalorder %v449, %v1450
      %v1483 = vsel %vm1451, 1, 0
      %v1484 = vsel %vm1452, 1, 0
      %v1485 = vsel %vm1453, 1, 0
      %v1486 = vsel %vm1454, 1, 0
      %v1487 = vsel %vm1455, 1, 0
      %v1488 = vsel %vm1456, 1, 0
      %v1489 = vsel %vm1457, 1, 0
      %v1490 = vsel %vm1458, 1, 0
      %v1491 = vsel %vm1459, 1, 0
      %v1492 = vsel %vm1460, 1, 0
      %v1493 = vsel %vm1461, 1, 0
      %v1494 = vsel %vm1462, 1, 0
      %v1495 = vsel %vm1463, 1, 0
      %v1496 = vsel %vm1464, 1, 0
      %v1497 = vsel %vm1465, 1, 0
      %v1498 = vsel %vm1466, 1, 0
      %v1499 = vsel %vm1467, 1, 0
      %v1500 = vsel %vm1468, 1, 0
      %v1501 = vsel %vm1469, 1, 0
      %v1502 = vsel %vm1470, 1, 0
      %v1503 = vsel %vm1471, 1, 0
      %v1504 = vsel %vm1472, 1, 0
      %v1505 = vsel %vm1473, 1, 0
      %v1506 = vsel %vm1474, 1, 0
      %v1507 = vsel %vm1475, 1, 0
      %v1508 = vsel %vm1476, 1, 0
      %v1509 = vsel %vm1477, 1, 0
      %v1510 = vsel %vm1478, 1, 0
      %v1511 = vsel %vm1479, 1, 0
      %v1512 = vsel %vm1480, 1, 0
      %v1513 = vsel %vm1481, 1, 0
      %v1514 = vsel %vm1482, 1, 0
      %v1515 = vcvt.s32.f32 %v1483
      %v1516 = vcvt.s32.f32 %v1484
      %v1517 = vcvt.s32.f32 %v1485
      %v1518 = vcvt.s32.f32 %v1486
      %v1519 = vcvt.s32.f32 %v1487
      %v1520 = vcvt.s32.f32 %v1488
      %v1521 = vcvt.s32.f32 %v1489
      %v1522 = vcvt.s32.f32 %v1490
      %v1523 = vcvt.s32.f32 %v1491
      %v1524 = vcvt.s32.f32 %v1492
      %v1525 = vcvt.s32.f32 %v1493
      %v1526 = vcvt.s32.f32 %v1494
      %v1527 = vcvt.s32.f32 %v1495
      %v1528 = vcvt.s32.f32 %v1496
      %v1529 = vcvt.s32.f32 %v1497
      %v1530 = vcvt.s32.f32 %v1498
      %v1531 = vcvt.s32.f32 %v1499
      %v1532 = vcvt.s32.f32 %v1500
      %v1533 = vcvt.s32.f32 %v1501
      %v1534 = vcvt.s32.f32 %v1502
      %v1535 = vcvt.s32.f32 %v1503
      %v1536 = vcvt.s32.f32 %v1504
      %v1537 = vcvt.s32.f32 %v1505
      %v1538 = vcvt.s32.f32 %v1506
      %v1539 = vcvt.s32.f32 %v1507
      %v1540 = vcvt.s32.f32 %v1508
      %v1541 = vcvt.s32.f32 %v1509
      %v1542 = vcvt.s32.f32 %v1510
      %v1543 = vcvt.s32.f32 %v1511
      %v1544 = vcvt.s32.f32 %v1512
      %v1545 = vcvt.s32.f32 %v1513
      %v1546 = vcvt.s32.f32 %v1514
      %1547 = vmatprep.subr.mxu0 0.0
      %1548 = vmatpush1.msra.mxu0 %v564
      %1549 = vmatprep.subr.mxu0 0.0
      %1550 = vmatpush1.msra.mxu0 %v563
      %1551 = vmatprep.subr.mxu0 0.0
      %1552 = vmatpush1.msra.mxu0 %v562
      %1553 = vmatprep.subr.mxu0 0.0
      %1554 = vmatpush1.msra.mxu0 %v561
      %1555 = vmatprep.subr.mxu0 0.0
      %1556 = vmatpush1.msra.mxu0 %v560
      %1557 = vmatprep.subr.mxu0 0.0
      %1558 = vmatpush1.msra.mxu0 %v559
      %1559 = vmatprep.subr.mxu0 0.0
      %1560 = vmatpush1.msra.mxu0 %v558
      %1561 = vmatprep.subr.mxu0 0.0
      %1562 = vmatpush1.msra.mxu0 %v557
      %1563 = vmatprep.subr.mxu0 0.0
      %1564 = vmatpush1.msra.mxu0 %v556
      %1565 = vmatprep.subr.mxu0 0.0
      %1566 = vmatpush1.msra.mxu0 %v555
      %1567 = vmatprep.subr.mxu0 0.0
      %1568 = vmatpush1.msra.mxu0 %v554
      %1569 = vmatprep.subr.mxu0 0.0
      %1570 = vmatpush1.msra.mxu0 %v553
      %1571 = vmatprep.subr.mxu0 0.0
      %1572 = vmatpush1.msra.mxu0 %v552
      %1573 = vmatprep.subr.mxu0 0.0
      %1574 = vmatpush1.msra.mxu0 %v551
      %1575 = vmatprep.subr.mxu0 0.0
      %1576 = vmatpush1.msra.mxu0 %v550
      %1577 = vmatprep.subr.mxu0 0.0
      %1578 = vmatpush1.msra.mxu0 %v549
      %1579 = vmatprep.subr.mxu0 0.0
      %1580 = vmatpush2.msra.mxu0 0.0
      %1581 = vmatprep.subr.mxu0 0.0
      %1582 = vmatpush2.msra.mxu0 0.0
      %1583 = vmatprep.subr.mxu0 0.0
      %1584 = vmatpush2.msra.mxu0 0.0
      %1585 = vmatprep.subr.mxu0 0.0
      %1586 = vmatpush2.msra.mxu0 0.0
      %1587 = vmatprep.subr.mxu0 0.0
      %1588 = vmatpush2.msra.mxu0 0.0
      %1589 = vmatprep.subr.mxu0 0.0
      %1590 = vmatpush2.msra.mxu0 0.0
      %1591 = vmatprep.subr.mxu0 0.0
      %1592 = vmatpush2.msra.mxu0 0.0
      %1593 = vmatprep.subr.mxu0 0.0
      %1594 = vmatpush2.msra.mxu0 0.0
      %1595 = vmatprep.subr.mxu0 0.0
      %1596 = vmatpush2.msra.mxu0 0.0
      %1597 = vmatprep.subr.mxu0 0.0
      %1598 = vmatpush2.msra.mxu0 0.0
      %1599 = vmatprep.subr.mxu0 0.0
      %1600 = vmatpush2.msra.mxu0 0.0
      %1601 = vmatprep.subr.mxu0 0.0
      %1602 = vmatpush2.msra.mxu0 0.0
      %1603 = vmatprep.subr.mxu0 0.0
      %1604 = vmatpush2.msra.mxu0 0.0
      %1605 = vmatprep.subr.mxu0 0.0
      %1606 = vmatpush2.msra.mxu0 0.0
      %1607 = vmatprep.subr.mxu0 0.0
      %1608 = vmatpush2.msra.mxu0 0.0
      %1609 = vmatprep.subr.mxu0 0.0
      %1610 = vmatpush2.msra.mxu0 0.0
      %1611 = vmatprep.mubr.f32.mxu0 0.0
      %1612 = vmatmul.mubr.f32.gmra.mxu0 %v1515
      %v1613 = vpop.f32.mrf.mxu0
      %v1614 = vadd.f32 0.0, %v1613
      %v1615 = vpop.f32.mrf.mxu0
      %1616 = vmatprep.mubr.f32.mxu0 0.0
      %1617 = vmatmul.mubr.f32.gmra.mxu0 %v1516
      %v1618 = vpop.f32.mrf.mxu0
      %v1619 = vadd.f32 0.0, %v1618
      %v1620 = vpop.f32.mrf.mxu0
      %1621 = vmatprep.mubr.f32.mxu0 0.0
      %1622 = vmatmul.mubr.f32.gmra.mxu0 %v1517
      %v1623 = vpop.f32.mrf.mxu0
      %v1624 = vadd.f32 0.0, %v1623
      %v1625 = vpop.f32.mrf.mxu0
      %1626 = vmatprep.mubr.f32.mxu0 0.0
      %1627 = vmatmul.mubr.f32.gmra.mxu0 %v1518
      %v1628 = vpop.f32.mrf.mxu0
      %v1629 = vadd.f32 0.0, %v1628
      %v1630 = vpop.f32.mrf.mxu0
      %1631 = vmatprep.mubr.f32.mxu0 0.0
      %1632 = vmatmul.mubr.f32.gmra.mxu0 %v1519
      %v1633 = vpop.f32.mrf.mxu0
      %v1634 = vadd.f32 0.0, %v1633
      %v1635 = vpop.f32.mrf.mxu0
      %1636 = vmatprep.mubr.f32.mxu0 0.0
      %1637 = vmatmul.mubr.f32.gmra.mxu0 %v1520
      %v1638 = vpop.f32.mrf.mxu0
      %v1639 = vadd.f32 0.0, %v1638
      %v1640 = vpop.f32.mrf.mxu0
      %1641 = vmatprep.mubr.f32.mxu0 0.0
      %1642 = vmatmul.mubr.f32.gmra.mxu0 %v1521
      %v1643 = vpop.f32.mrf.mxu0
      %v1644 = vadd.f32 0.0, %v1643
      %v1645 = vpop.f32.mrf.mxu0
      %1646 = vmatprep.mubr.f32.mxu0 0.0
      %1647 = vmatmul.mubr.f32.gmra.mxu0 %v1522
      %v1648 = vpop.f32.mrf.mxu0
      %v1649 = vadd.f32 0.0, %v1648
      %v1650 = vpop.f32.mrf.mxu0
      %1651 = vmatprep.mubr.f32.mxu0 0.0
      %1652 = vmatmul.mubr.f32.gmra.mxu0 %v1523
      %v1653 = vpop.f32.mrf.mxu0
      %v1654 = vadd.f32 0.0, %v1653
      %v1655 = vpop.f32.mrf.mxu0
      %1656 = vmatprep.mubr.f32.mxu0 0.0
      %1657 = vmatmul.mubr.f32.gmra.mxu0 %v1524
      %v1658 = vpop.f32.mrf.mxu0
      %v1659 = vadd.f32 0.0, %v1658
      %v1660 = vpop.f32.mrf.mxu0
      %1661 = vmatprep.mubr.f32.mxu0 0.0
      %1662 = vmatmul.mubr.f32.gmra.mxu0 %v1525
      %v1663 = vpop.f32.mrf.mxu0
      %v1664 = vadd.f32 0.0, %v1663
      %v1665 = vpop.f32.mrf.mxu0
      %1666 = vmatprep.mubr.f32.mxu0 0.0
      %1667 = vmatmul.mubr.f32.gmra.mxu0 %v1526
      %v1668 = vpop.f32.mrf.mxu0
      %v1669 = vadd.f32 0.0, %v1668
      %v1670 = vpop.f32.mrf.mxu0
      %1671 = vmatprep.mubr.f32.mxu0 0.0
      %1672 = vmatmul.mubr.f32.gmra.mxu0 %v1527
      %v1673 = vpop.f32.mrf.mxu0
      %v1674 = vadd.f32 0.0, %v1673
      %v1675 = vpop.f32.mrf.mxu0
      %1676 = vmatprep.mubr.f32.mxu0 0.0
      %1677 = vmatmul.mubr.f32.gmra.mxu0 %v1528
      %v1678 = vpop.f32.mrf.mxu0
      %v1679 = vadd.f32 0.0, %v1678
      %v1680 = vpop.f32.mrf.mxu0
      %1681 = vmatprep.mubr.f32.mxu0 0.0
      %1682 = vmatmul.mubr.f32.gmra.mxu0 %v1529
      %v1683 = vpop.f32.mrf.mxu0
      %v1684 = vadd.f32 0.0, %v1683
      %v1685 = vpop.f32.mrf.mxu0
      %1686 = vmatprep.mubr.f32.mxu0 0.0
      %1687 = vmatmul.mubr.f32.gmra.mxu0 %v1530
      %v1688 = vpop.f32.mrf.mxu0
      %v1689 = vadd.f32 0.0, %v1688
      %v1690 = vpop.f32.mrf.mxu0
      %1691 = vmatprep.mubr.f32.mxu0 0.0
      %1692 = vmatmul.mubr.f32.gmra.mxu0 %v1531
      %v1693 = vpop.f32.mrf.mxu0
      %v1694 = vadd.f32 0.0, %v1693
      %v1695 = vpop.f32.mrf.mxu0
      %1696 = vmatprep.mubr.f32.mxu0 0.0
      %1697 = vmatmul.mubr.f32.gmra.mxu0 %v1532
      %v1698 = vpop.f32.mrf.mxu0
      %v1699 = vadd.f32 0.0, %v1698
      %v1700 = vpop.f32.mrf.mxu0
      %1701 = vmatprep.mubr.f32.mxu0 0.0
      %1702 = vmatmul.mubr.f32.gmra.mxu0 %v1533
      %v1703 = vpop.f32.mrf.mxu0
      %v1704 = vadd.f32 0.0, %v1703
      %v1705 = vpop.f32.mrf.mxu0
      %1706 = vmatprep.mubr.f32.mxu0 0.0
      %1707 = vmatmul.mubr.f32.gmra.mxu0 %v1534
      %v1708 = vpop.f32.mrf.mxu0
      %v1709 = vadd.f32 0.0, %v1708
      %v1710 = vpop.f32.mrf.mxu0
      %1711 = vmatprep.mubr.f32.mxu0 0.0
      %1712 = vmatmul.mubr.f32.gmra.mxu0 %v1535
      %v1713 = vpop.f32.mrf.mxu0
      %v1714 = vadd.f32 0.0, %v1713
      %v1715 = vpop.f32.mrf.mxu0
      %1716 = vmatprep.mubr.f32.mxu0 0.0
      %1717 = vmatmul.mubr.f32.gmra.mxu0 %v1536
      %v1718 = vpop.f32.mrf.mxu0
      %v1719 = vadd.f32 0.0, %v1718
      %v1720 = vpop.f32.mrf.mxu0
      %1721 = vmatprep.mubr.f32.mxu0 0.0
      %1722 = vmatmul.mubr.f32.gmra.mxu0 %v1537
      %v1723 = vpop.f32.mrf.mxu0
      %v1724 = vadd.f32 0.0, %v1723
      %v1725 = vpop.f32.mrf.mxu0
      %1726 = vmatprep.mubr.f32.mxu0 0.0
      %1727 = vmatmul.mubr.f32.gmra.mxu0 %v1538
      %v1728 = vpop.f32.mrf.mxu0
      %v1729 = vadd.f32 0.0, %v1728
      %v1730 = vpop.f32.mrf.mxu0
      %1731 = vmatprep.mubr.f32.mxu0 0.0
      %1732 = vmatmul.mubr.f32.gmra.mxu0 %v1539
      %v1733 = vpop.f32.mrf.mxu0
      %v1734 = vadd.f32 0.0, %v1733
      %v1735 = vpop.f32.mrf.mxu0
      %1736 = vmatprep.mubr.f32.mxu0 0.0
      %1737 = vmatmul.mubr.f32.gmra.mxu0 %v1540
      %v1738 = vpop.f32.mrf.mxu0
      %v1739 = vadd.f32 0.0, %v1738
      %v1740 = vpop.f32.mrf.mxu0
      %1741 = vmatprep.mubr.f32.mxu0 0.0
      %1742 = vmatmul.mubr.f32.gmra.mxu0 %v1541
      %v1743 = vpop.f32.mrf.mxu0
      %v1744 = vadd.f32 0.0, %v1743
      %v1745 = vpop.f32.mrf.mxu0
      %1746 = vmatprep.mubr.f32.mxu0 0.0
      %1747 = vmatmul.mubr.f32.gmra.mxu0 %v1542
      %v1748 = vpop.f32.mrf.mxu0
      %v1749 = vadd.f32 0.0, %v1748
      %v1750 = vpop.f32.mrf.mxu0
      %1751 = vmatprep.mubr.f32.mxu0 0.0
      %1752 = vmatmul.mubr.f32.gmra.mxu0 %v1543
      %v1753 = vpop.f32.mrf.mxu0
      %v1754 = vadd.f32 0.0, %v1753
      %v1755 = vpop.f32.mrf.mxu0
      %1756 = vmatprep.mubr.f32.mxu0 0.0
      %1757 = vmatmul.mubr.f32.gmra.mxu0 %v1544
      %v1758 = vpop.f32.mrf.mxu0
      %v1759 = vadd.f32 0.0, %v1758
      %v1760 = vpop.f32.mrf.mxu0
      %1761 = vmatprep.mubr.f32.mxu0 0.0
      %1762 = vmatmul.mubr.f32.gmra.mxu0 %v1545
      %v1763 = vpop.f32.mrf.mxu0
      %v1764 = vadd.f32 0.0, %v1763
      %v1765 = vpop.f32.mrf.mxu0
      %1766 = vmatprep.mubr.f32.mxu0 0.0
      %1767 = vmatmul.mubr.f32.gmra.mxu0 %v1546
      %v1768 = vpop.f32.mrf.mxu0
      %v1769 = vadd.f32 0.0, %v1768
      %v1770 = vpop.f32.mrf.mxu0
      %1771 = vdwg.mxu0
      %v1772 = vadd.f32 %v876, %v385
      %v1773 = vadd.f32 %v878, %v387
      %v1774 = vadd.f32 %v880, %v389
      %v1775 = vadd.f32 %v882, %v391
      %v1776 = vadd.f32 %v884, %v393
      %v1777 = vadd.f32 %v886, %v395
      %v1778 = vadd.f32 %v888, %v397
      %v1779 = vadd.f32 %v890, %v399
      %v1780 = vadd.f32 %v892, %v401
      %v1781 = vadd.f32 %v894, %v403
      %v1782 = vadd.f32 %v896, %v405
      %v1783 = vadd.f32 %v898, %v407
      %v1784 = vadd.f32 %v900, %v409
      %v1785 = vadd.f32 %v902, %v411
      %v1786 = vadd.f32 %v904, %v413
      %v1787 = vadd.f32 %v906, %v415
      %v1788 = vadd.f32 %v908, %v417
      %v1789 = vadd.f32 %v910, %v419
      %v1790 = vadd.f32 %v912, %v421
      %v1791 = vadd.f32 %v914, %v423
      %v1792 = vadd.f32 %v916, %v425
      %v1793 = vadd.f32 %v918, %v427
      %v1794 = vadd.f32 %v920, %v429
      %v1795 = vadd.f32 %v922, %v431
      %v1796 = vadd.f32 %v924, %v433
      %v1797 = vadd.f32 %v926, %v435
      %v1798 = vadd.f32 %v928, %v437
      %v1799 = vadd.f32 %v930, %v439
      %v1800 = vadd.f32 %v932, %v441
      %v1801 = vadd.f32 %v934, %v443
      %v1802 = vadd.f32 %v936, %v445
      %v1803 = vadd.f32 %v938, %v447
      %v1804 = vsel %vm517, %v1772, 0.0
      %v1805 = vsel %vm518, %v1773, 0.0
      %v1806 = vsel %vm519, %v1774, 0.0
      %v1807 = vsel %vm520, %v1775, 0.0
      %v1808 = vsel %vm521, %v1776, 0.0
      %v1809 = vsel %vm522, %v1777, 0.0
      %v1810 = vsel %vm523, %v1778, 0.0
      %v1811 = vsel %vm524, %v1779, 0.0
      %v1812 = vsel %vm525, %v1780, 0.0
      %v1813 = vsel %vm526, %v1781, 0.0
      %v1814 = vsel %vm527, %v1782, 0.0
      %v1815 = vsel %vm528, %v1783, 0.0
      %v1816 = vsel %vm529, %v1784, 0.0
      %v1817 = vsel %vm530, %v1785, 0.0
      %v1818 = vsel %vm531, %v1786, 0.0
      %v1819 = vsel %vm532, %v1787, 0.0
      %v1820 = vsel %vm533, %v1788, 0.0
      %v1821 = vsel %vm534, %v1789, 0.0
      %v1822 = vsel %vm535, %v1790, 0.0
      %v1823 = vsel %vm536, %v1791, 0.0
      %v1824 = vsel %vm537, %v1792, 0.0
      %v1825 = vsel %vm538, %v1793, 0.0
      %v1826 = vsel %vm539, %v1794, 0.0
      %v1827 = vsel %vm540, %v1795, 0.0
      %v1828 = vsel %vm541, %v1796, 0.0
      %v1829 = vsel %vm542, %v1797, 0.0
      %v1830 = vsel %vm543, %v1798, 0.0
      %v1831 = vsel %vm544, %v1799, 0.0
      %v1832 = vsel %vm545, %v1800, 0.0
      %v1833 = vsel %vm546, %v1801, 0.0
      %v1834 = vsel %vm547, %v1802, 0.0
      %v1835 = vsel %vm548, %v1803, 0.0
      %vm1836 = vcmask 7168
      %v1837 = vsel %vm1836, %v1804, 0.0
      %v1838 = vsel %vm1836, %v1805, 0.0
      %v1839 = vadd.f32 %v1837, %v1838
      %v1840 = vsel %vm1836, %v1806, 0.0
      %v1841 = vadd.f32 %v1839, %v1840
      %v1842 = vsel %vm1836, %v1807, 0.0
      %v1843 = vadd.f32 %v1841, %v1842
      %v1844 = vsel %vm1836, %v1808, 0.0
      %v1845 = vadd.f32 %v1843, %v1844
      %v1846 = vsel %vm1836, %v1809, 0.0
      %v1847 = vadd.f32 %v1845, %v1846
      %v1848 = vsel %vm1836, %v1810, 0.0
      %v1849 = vadd.f32 %v1847, %v1848
      %v1850 = vsel %vm1836, %v1811, 0.0
      %v1851 = vadd.f32 %v1849, %v1850
      %v1852 = vsel %vm1836, %v1812, 0.0
      %v1853 = vadd.f32 %v1851, %v1852
      %v1854 = vsel %vm1836, %v1813, 0.0
      %v1855 = vadd.f32 %v1853, %v1854
      %v1856 = vsel %vm1836, %v1814, 0.0
      %v1857 = vadd.f32 %v1855, %v1856
      %v1858 = vsel %vm1836, %v1815, 0.0
      %v1859 = vadd.f32 %v1857, %v1858
      %v1860 = vsel %vm1836, %v1816, 0.0
      %v1861 = vadd.f32 %v1859, %v1860
      %v1862 = vsel %vm1836, %v1817, 0.0
      %v1863 = vadd.f32 %v1861, %v1862
      %v1864 = vsel %vm1836, %v1818, 0.0
      %v1865 = vadd.f32 %v1863, %v1864
      %v1866 = vsel %vm1836, %v1819, 0.0
      %v1867 = vadd.f32 %v1865, %v1866
      %v1868 = vsel %vm1836, %v1820, 0.0
      %v1869 = vadd.f32 %v1867, %v1868
      %v1870 = vsel %vm1836, %v1821, 0.0
      %v1871 = vadd.f32 %v1869, %v1870
      %v1872 = vsel %vm1836, %v1822, 0.0
      %v1873 = vadd.f32 %v1871, %v1872
      %v1874 = vsel %vm1836, %v1823, 0.0
      %v1875 = vadd.f32 %v1873, %v1874
      %v1876 = vsel %vm1836, %v1824, 0.0
      %v1877 = vadd.f32 %v1875, %v1876
      %v1878 = vsel %vm1836, %v1825, 0.0
      %v1879 = vadd.f32 %v1877, %v1878
      %v1880 = vsel %vm1836, %v1826, 0.0
      %v1881 = vadd.f32 %v1879, %v1880
      %v1882 = vsel %vm1836, %v1827, 0.0
      %v1883 = vadd.f32 %v1881, %v1882
      %v1884 = vsel %vm1836, %v1828, 0.0
      %v1885 = vadd.f32 %v1883, %v1884
      %v1886 = vsel %vm1836, %v1829, 0.0
      %v1887 = vadd.f32 %v1885, %v1886
      %v1888 = vsel %vm1836, %v1830, 0.0
      %v1889 = vadd.f32 %v1887, %v1888
      %v1890 = vsel %vm1836, %v1831, 0.0
      %v1891 = vadd.f32 %v1889, %v1890
      %v1892 = vsel %vm1836, %v1832, 0.0
      %v1893 = vadd.f32 %v1891, %v1892
      %v1894 = vsel %vm1836, %v1833, 0.0
      %v1895 = vadd.f32 %v1893, %v1894
      %v1896 = vsel %vm1836, %v1834, 0.0
      %v1897 = vadd.f32 %v1895, %v1896
      %v1898 = vsel %vm1836, %v1835, 0.0
      %v1899 = vadd.f32 %v1897, %v1898
      %1900 = vadd.xlane.f32.xlu0 %v1899
      %v1901 = vpop.xlane.xlu0 %1900
      %v1902 = vrot.slane %v1901, 4
      %v1903 = vadd.f32 %v1901, %v1902
      %v1904 = vrot.slane %v1903, 2
      %v1905 = vadd.f32 %v1903, %v1904
      %v1906 = vrot.slane %v1905, 1
      %v1907 = vadd.f32 %v1905, %v1906
      %s1908 = vtos %v1907
      %v1909 = vstv %s1908
      %1910 = vst [vmem:[%s308] sm:$0xff] %v1614
      %1911 = vst [vmem:[%s308 + $0x20] sm:$0xff] %v1619
      %1912 = vst [vmem:[%s308 + $0x40] sm:$0xff] %v1624
      %1913 = vst [vmem:[%s308 + $0x60] sm:$0xff] %v1629
      %1914 = vst [vmem:[%s308 + $0x80] sm:$0xff] %v1634
      %1915 = vst [vmem:[%s308 + $0xa0] sm:$0xff] %v1639
      %1916 = vst [vmem:[%s308 + $0xc0] sm:$0xff] %v1644
      %1917 = vst [vmem:[%s308 + $0xe0] sm:$0xff] %v1649
      %1918 = vst [vmem:[%s308 + $0x100] sm:$0xff] %v1654
      %1919 = vst [vmem:[%s308 + $0x120] sm:$0xff] %v1659
      %1920 = vst [vmem:[%s308 + $0x140] sm:$0xff] %v1664
      %1921 = vst [vmem:[%s308 + $0x160] sm:$0xff] %v1669
      %1922 = vst [vmem:[%s308 + $0x180] sm:$0xff] %v1674
      %1923 = vst [vmem:[%s308 + $0x1a0] sm:$0xff] %v1679
      %1924 = vst [vmem:[%s308 + $0x1c0] sm:$0xff] %v1684
      %1925 = vst [vmem:[%s308 + $0x1e0] sm:$0xff] %v1689
      %1926 = vst [vmem:[%s308 + $0x200] sm:$0xff] %v1694
      %1927 = vst [vmem:[%s308 + $0x220] sm:$0xff] %v1699
      %1928 = vst [vmem:[%s308 + $0x240] sm:$0xff] %v1704
      %1929 = vst [vmem:[%s308 + $0x260] sm:$0xff] %v1709
      %1930 = vst [vmem:[%s308 + $0x280] sm:$0xff] %v1714
      %1931 = vst [vmem:[%s308 + $0x2a0] sm:$0xff] %v1719
      %1932 = vst [vmem:[%s308 + $0x2c0] sm:$0xff] %v1724
      %1933 = vst [vmem:[%s308 + $0x2e0] sm:$0xff] %v1729
      %1934 = vst [vmem:[%s308 + $0x300] sm:$0xff] %v1734
      %1935 = vst [vmem:[%s308 + $0x320] sm:$0xff] %v1739
      %1936 = vst [vmem:[%s308 + $0x340] sm:$0xff] %v1744
      %1937 = vst [vmem:[%s308 + $0x360] sm:$0xff] %v1749
      %1938 = vst [vmem:[%s308 + $0x380] sm:$0xff] %v1754
      %1939 = vst [vmem:[%s308 + $0x3a0] sm:$0xff] %v1759
      %1940 = vst [vmem:[%s308 + $0x3c0] sm:$0xff] %v1764
      %1941 = vst [vmem:[%s308 + $0x3e0] sm:$0xff] %v1769
      %v1942 = vadd.f32 %v1614, 0.0
      %v1943 = vadd.f32 %v1619, 0.0
      %v1944 = vadd.f32 %v1624, 0.0
      %v1945 = vadd.f32 %v1629, 0.0
      %v1946 = vadd.f32 %v1634, 0.0
      %v1947 = vadd.f32 %v1639, 0.0
      %v1948 = vadd.f32 %v1644, 0.0
      %v1949 = vadd.f32 %v1649, 0.0
      %v1950 = vadd.f32 %v1654, 0.0
      %v1951 = vadd.f32 %v1659, 0.0
      %v1952 = vadd.f32 %v1664, 0.0
      %v1953 = vadd.f32 %v1669, 0.0
      %v1954 = vadd.f32 %v1674, 0.0
      %v1955 = vadd.f32 %v1679, 0.0
      %v1956 = vadd.f32 %v1684, 0.0
      %v1957 = vadd.f32 %v1689, 0.0
      %v1958 = vadd.f32 %v1694, 0.0
      %v1959 = vadd.f32 %v1699, 0.0
      %v1960 = vadd.f32 %v1704, 0.0
      %v1961 = vadd.f32 %v1709, 0.0
      %v1962 = vadd.f32 %v1714, 0.0
      %v1963 = vadd.f32 %v1719, 0.0
      %v1964 = vadd.f32 %v1724, 0.0
      %v1965 = vadd.f32 %v1729, 0.0
      %v1966 = vadd.f32 %v1734, 0.0
      %v1967 = vadd.f32 %v1739, 0.0
      %v1968 = vadd.f32 %v1744, 0.0
      %v1969 = vadd.f32 %v1749, 0.0
      %v1970 = vadd.f32 %v1754, 0.0
      %v1971 = vadd.f32 %v1759, 0.0
      %v1972 = vadd.f32 %v1764, 0.0
      %v1973 = vadd.f32 %v1769, 0.0
      %v1974 = vsub.f32 %v320, %v1614
      %v1975 = vsub.f32 %v321, %v1619
      %v1976 = vsub.f32 %v322, %v1624
      %v1977 = vsub.f32 %v323, %v1629
      %v1978 = vsub.f32 %v324, %v1634
      %v1979 = vsub.f32 %v325, %v1639
      %v1980 = vsub.f32 %v326, %v1644
      %v1981 = vsub.f32 %v327, %v1649
      %v1982 = vsub.f32 %v328, %v1654
      %v1983 = vsub.f32 %v329, %v1659
      %v1984 = vsub.f32 %v330, %v1664
      %v1985 = vsub.f32 %v331, %v1669
      %v1986 = vsub.f32 %v332, %v1674
      %v1987 = vsub.f32 %v333, %v1679
      %v1988 = vsub.f32 %v334, %v1684
      %v1989 = vsub.f32 %v335, %v1689
      %v1990 = vsub.f32 %v336, %v1694
      %v1991 = vsub.f32 %v337, %v1699
      %v1992 = vsub.f32 %v338, %v1704
      %v1993 = vsub.f32 %v339, %v1709
      %v1994 = vsub.f32 %v340, %v1714
      %v1995 = vsub.f32 %v341, %v1719
      %v1996 = vsub.f32 %v342, %v1724
      %v1997 = vsub.f32 %v343, %v1729
      %v1998 = vsub.f32 %v344, %v1734
      %v1999 = vsub.f32 %v345, %v1739
      %v2000 = vsub.f32 %v346, %v1744
      %v2001 = vsub.f32 %v347, %v1749
      %v2002 = vsub.f32 %v348, %v1754
      %v2003 = vsub.f32 %v349, %v1759
      %v2004 = vsub.f32 %v350, %v1764
      %v2005 = vsub.f32 %v351, %v1769
      %s2006 = scalar_lea.vmem %s1, 128
      %v2007 = vld [vmem:[%s2006] sm:$0xff]
      %v2008 = vld [vmem:[%s2006 + $0x8] sm:$0xff]
      %v2009 = vld [vmem:[%s2006 + $0x10] sm:$0xff]
      %v2010 = vld [vmem:[%s2006 + $0x18] sm:$0xff]
      %v2011 = vld [vmem:[%s2006 + $0x20] sm:$0xff]
      %v2012 = vld [vmem:[%s2006 + $0x28] sm:$0xff]
      %v2013 = vld [vmem:[%s2006 + $0x30] sm:$0xff]
      %v2014 = vld [vmem:[%s2006 + $0x38] sm:$0xff]
      %v2015 = vld [vmem:[%s2006 + $0x40] sm:$0xff]
      %v2016 = vld [vmem:[%s2006 + $0x48] sm:$0xff]
      %v2017 = vld [vmem:[%s2006 + $0x50] sm:$0xff]
      %v2018 = vld [vmem:[%s2006 + $0x58] sm:$0xff]
      %v2019 = vld [vmem:[%s2006 + $0x60] sm:$0xff]
      %v2020 = vld [vmem:[%s2006 + $0x68] sm:$0xff]
      %v2021 = vld [vmem:[%s2006 + $0x70] sm:$0xff]
      %v2022 = vld [vmem:[%s2006 + $0x78] sm:$0xff]
      %s2023 = scalar_lea.vmem %s2, 64
      %v2024 = vld [vmem:[%s2023] sm:$0xf]
      %v2025 = vld [vmem:[%s2023 + $0x4] sm:$0xf]
      %v2026 = vld [vmem:[%s2023 + $0x8] sm:$0xf]
      %v2027 = vld [vmem:[%s2023 + $0xc] sm:$0xf]
      %v2028 = vld [vmem:[%s2023 + $0x10] sm:$0xf]
      %v2029 = vld [vmem:[%s2023 + $0x14] sm:$0xf]
      %v2030 = vld [vmem:[%s2023 + $0x18] sm:$0xf]
      %v2031 = vld [vmem:[%s2023 + $0x1c] sm:$0xf]
      %v2032 = vld [vmem:[%s2023 + $0x20] sm:$0xf]
      %v2033 = vld [vmem:[%s2023 + $0x24] sm:$0xf]
      %v2034 = vld [vmem:[%s2023 + $0x28] sm:$0xf]
      %v2035 = vld [vmem:[%s2023 + $0x2c] sm:$0xf]
      %v2036 = vld [vmem:[%s2023 + $0x30] sm:$0xf]
      %v2037 = vld [vmem:[%s2023 + $0x34] sm:$0xf]
      %v2038 = vld [vmem:[%s2023 + $0x38] sm:$0xf]
      %v2039 = vld [vmem:[%s2023 + $0x3c] sm:$0xf]
      %v2040 = vld [vmem:[%s3 + $0x1] sm:$0x1]
      %v2041 = vpack.c.bf16 %v1975, %v1974
      %v2042 = vpack.c.bf16 %v1977, %v1976
      %v2043 = vpack.c.bf16 %v1979, %v1978
      %v2044 = vpack.c.bf16 %v1981, %v1980
      %v2045 = vpack.c.bf16 %v1983, %v1982
      %v2046 = vpack.c.bf16 %v1985, %v1984
      %v2047 = vpack.c.bf16 %v1987, %v1986
      %v2048 = vpack.c.bf16 %v1989, %v1988
      %v2049 = vpack.c.bf16 %v1991, %v1990
      %v2050 = vpack.c.bf16 %v1993, %v1992
      %v2051 = vpack.c.bf16 %v1995, %v1994
      %v2052 = vpack.c.bf16 %v1997, %v1996
      %v2053 = vpack.c.bf16 %v1999, %v1998
      %v2054 = vpack.c.bf16 %v2001, %v2000
      %v2055 = vpack.c.bf16 %v2003, %v2002
      %v2056 = vpack.c.bf16 %v2005, %v2004
      %v2073 = vunpack.c.l.b16 %v2024
      %v2074 = vunpack.c.l.b16 %v2025
      %v2075 = vunpack.c.l.b16 %v2026
      %v2076 = vunpack.c.l.b16 %v2027
      %v2077 = vunpack.c.l.b16 %v2028
      %v2078 = vunpack.c.l.b16 %v2029
      %v2079 = vunpack.c.l.b16 %v2030
      %v2080 = vunpack.c.l.b16 %v2031
      %v2081 = vunpack.c.l.b16 %v2032
      %v2082 = vunpack.c.l.b16 %v2033
      %v2083 = vunpack.c.l.b16 %v2034
      %v2084 = vunpack.c.l.b16 %v2035
      %v2085 = vunpack.c.l.b16 %v2036
      %v2086 = vunpack.c.l.b16 %v2037
      %v2087 = vunpack.c.l.b16 %v2038
      %v2088 = vunpack.c.l.b16 %v2039
      %v2089 = vpack.c.b16 %v2074, %v2073
      %v2090 = vpack.c.b16 %v2076, %v2075
      %v2091 = vpack.c.b16 %v2078, %v2077
      %v2092 = vpack.c.b16 %v2080, %v2079
      %v2093 = vpack.c.b16 %v2082, %v2081
      %v2094 = vpack.c.b16 %v2084, %v2083
      %v2095 = vpack.c.b16 %v2086, %v2085
      %v2096 = vpack.c.b16 %v2088, %v2087
      %2105 = vmatprep.subr.bf16.mxu0 0
      %2106 = vmatpush1.bf16.msra.mxu0 %v2096
      %2107 = vmatprep.subr.bf16.mxu0 0
      %2108 = vmatpush1.bf16.msra.mxu0 %v2095
      %2109 = vmatprep.subr.bf16.mxu0 0
      %2110 = vmatpush1.bf16.msra.mxu0 %v2094
      %2111 = vmatprep.subr.bf16.mxu0 0
      %2112 = vmatpush1.bf16.msra.mxu0 %v2093
      %2113 = vmatprep.subr.bf16.mxu0 0
      %2114 = vmatpush1.bf16.msra.mxu0 %v2092
      %2115 = vmatprep.subr.bf16.mxu0 0
      %2116 = vmatpush1.bf16.msra.mxu0 %v2091
      %2117 = vmatprep.subr.bf16.mxu0 0
      %2118 = vmatpush1.bf16.msra.mxu0 %v2090
      %2119 = vmatprep.subr.bf16.mxu0 0
      %2120 = vmatpush1.bf16.msra.mxu0 %v2089
      %2121 = vmatprep.subr.bf16.mxu0 0
      %2122 = vmatpush2.bf16.msra.mxu0 0
      %2123 = vmatprep.subr.bf16.mxu0 0
      %2124 = vmatpush2.bf16.msra.mxu0 0
      %2125 = vmatprep.subr.bf16.mxu0 0
      %2126 = vmatpush2.bf16.msra.mxu0 0
      %2127 = vmatprep.subr.bf16.mxu0 0
      %2128 = vmatpush2.bf16.msra.mxu0 0
      %2129 = vmatprep.subr.bf16.mxu0 0
      %2130 = vmatpush2.bf16.msra.mxu0 0
      %2131 = vmatprep.subr.bf16.mxu0 0
      %2132 = vmatpush2.bf16.msra.mxu0 0
      %2133 = vmatprep.subr.bf16.mxu0 0
      %2134 = vmatpush2.bf16.msra.mxu0 0
      %2135 = vmatprep.subr.bf16.mxu0 0
      %2136 = vmatpush2.bf16.msra.mxu0 0
      %2137 = vmatprep.mubr.bf16.mxu0 0
      %2138 = vmatmul.mubr.bf16.gmra.mxu0 %v2041
      %v2139 = vpop.f32.mrf.mxu0
      %v2140 = vadd.f32 0.0, %v2139
      %v2141 = vpop.f32.mrf.mxu0
      %v2142 = vpop.f32.mrf.mxu0
      %v2143 = vadd.f32 0.0, %v2142
      %v2144 = vpop.f32.mrf.mxu0
      %2145 = vmatprep.mubr.bf16.mxu0 0
      %2146 = vmatmul.mubr.bf16.gmra.mxu0 %v2042
      %v2147 = vpop.f32.mrf.mxu0
      %v2148 = vadd.f32 0.0, %v2147
      %v2149 = vpop.f32.mrf.mxu0
      %v2150 = vpop.f32.mrf.mxu0
      %v2151 = vadd.f32 0.0, %v2150
      %v2152 = vpop.f32.mrf.mxu0
      %2153 = vmatprep.mubr.bf16.mxu0 0
      %2154 = vmatmul.mubr.bf16.gmra.mxu0 %v2043
      %v2155 = vpop.f32.mrf.mxu0
      %v2156 = vadd.f32 0.0, %v2155
      %v2157 = vpop.f32.mrf.mxu0
      %v2158 = vpop.f32.mrf.mxu0
      %v2159 = vadd.f32 0.0, %v2158
      %v2160 = vpop.f32.mrf.mxu0
      %2161 = vmatprep.mubr.bf16.mxu0 0
      %2162 = vmatmul.mubr.bf16.gmra.mxu0 %v2044
      %v2163 = vpop.f32.mrf.mxu0
      %v2164 = vadd.f32 0.0, %v2163
      %v2165 = vpop.f32.mrf.mxu0
      %v2166 = vpop.f32.mrf.mxu0
      %v2167 = vadd.f32 0.0, %v2166
      %v2168 = vpop.f32.mrf.mxu0
      %2169 = vmatprep.mubr.bf16.mxu0 0
      %2170 = vmatmul.mubr.bf16.gmra.mxu0 %v2045
      %v2171 = vpop.f32.mrf.mxu0
      %v2172 = vadd.f32 0.0, %v2171
      %v2173 = vpop.f32.mrf.mxu0
      %v2174 = vpop.f32.mrf.mxu0
      %v2175 = vadd.f32 0.0, %v2174
      %v2176 = vpop.f32.mrf.mxu0
      %2177 = vmatprep.mubr.bf16.mxu0 0
      %2178 = vmatmul.mubr.bf16.gmra.mxu0 %v2046
      %v2179 = vpop.f32.mrf.mxu0
      %v2180 = vadd.f32 0.0, %v2179
      %v2181 = vpop.f32.mrf.mxu0
      %v2182 = vpop.f32.mrf.mxu0
      %v2183 = vadd.f32 0.0, %v2182
      %v2184 = vpop.f32.mrf.mxu0
      %2185 = vmatprep.mubr.bf16.mxu0 0
      %2186 = vmatmul.mubr.bf16.gmra.mxu0 %v2047
      %v2187 = vpop.f32.mrf.mxu0
      %v2188 = vadd.f32 0.0, %v2187
      %v2189 = vpop.f32.mrf.mxu0
      %v2190 = vpop.f32.mrf.mxu0
      %v2191 = vadd.f32 0.0, %v2190
      %v2192 = vpop.f32.mrf.mxu0
      %2193 = vmatprep.mubr.bf16.mxu0 0
      %2194 = vmatmul.mubr.bf16.gmra.mxu0 %v2048
      %v2195 = vpop.f32.mrf.mxu0
      %v2196 = vadd.f32 0.0, %v2195
      %v2197 = vpop.f32.mrf.mxu0
      %v2198 = vpop.f32.mrf.mxu0
      %v2199 = vadd.f32 0.0, %v2198
      %v2200 = vpop.f32.mrf.mxu0
      %2201 = vmatprep.mubr.bf16.mxu0 0
      %2202 = vmatmul.mubr.bf16.gmra.mxu0 %v2049
      %v2203 = vpop.f32.mrf.mxu0
      %v2204 = vadd.f32 0.0, %v2203
      %v2205 = vpop.f32.mrf.mxu0
      %v2206 = vpop.f32.mrf.mxu0
      %v2207 = vadd.f32 0.0, %v2206
      %v2208 = vpop.f32.mrf.mxu0
      %2209 = vmatprep.mubr.bf16.mxu0 0
      %2210 = vmatmul.mubr.bf16.gmra.mxu0 %v2050
      %v2211 = vpop.f32.mrf.mxu0
      %v2212 = vadd.f32 0.0, %v2211
      %v2213 = vpop.f32.mrf.mxu0
      %v2214 = vpop.f32.mrf.mxu0
      %v2215 = vadd.f32 0.0, %v2214
      %v2216 = vpop.f32.mrf.mxu0
      %2217 = vmatprep.mubr.bf16.mxu0 0
      %2218 = vmatmul.mubr.bf16.gmra.mxu0 %v2051
      %v2219 = vpop.f32.mrf.mxu0
      %v2220 = vadd.f32 0.0, %v2219
      %v2221 = vpop.f32.mrf.mxu0
      %v2222 = vpop.f32.mrf.mxu0
      %v2223 = vadd.f32 0.0, %v2222
      %v2224 = vpop.f32.mrf.mxu0
      %2225 = vmatprep.mubr.bf16.mxu0 0
      %2226 = vmatmul.mubr.bf16.gmra.mxu0 %v2052
      %v2227 = vpop.f32.mrf.mxu0
      %v2228 = vadd.f32 0.0, %v2227
      %v2229 = vpop.f32.mrf.mxu0
      %v2230 = vpop.f32.mrf.mxu0
      %v2231 = vadd.f32 0.0, %v2230
      %v2232 = vpop.f32.mrf.mxu0
      %2233 = vmatprep.mubr.bf16.mxu0 0
      %2234 = vmatmul.mubr.bf16.gmra.mxu0 %v2053
      %v2235 = vpop.f32.mrf.mxu0
      %v2236 = vadd.f32 0.0, %v2235
      %v2237 = vpop.f32.mrf.mxu0
      %v2238 = vpop.f32.mrf.mxu0
      %v2239 = vadd.f32 0.0, %v2238
      %v2240 = vpop.f32.mrf.mxu0
      %2241 = vmatprep.mubr.bf16.mxu0 0
      %2242 = vmatmul.mubr.bf16.gmra.mxu0 %v2054
      %v2243 = vpop.f32.mrf.mxu0
      %v2244 = vadd.f32 0.0, %v2243
      %v2245 = vpop.f32.mrf.mxu0
      %v2246 = vpop.f32.mrf.mxu0
      %v2247 = vadd.f32 0.0, %v2246
      %v2248 = vpop.f32.mrf.mxu0
      %2249 = vmatprep.mubr.bf16.mxu0 0
      %2250 = vmatmul.mubr.bf16.gmra.mxu0 %v2055
      %v2251 = vpop.f32.mrf.mxu0
      %v2252 = vadd.f32 0.0, %v2251
      %v2253 = vpop.f32.mrf.mxu0
      %v2254 = vpop.f32.mrf.mxu0
      %v2255 = vadd.f32 0.0, %v2254
      %v2256 = vpop.f32.mrf.mxu0
      %2257 = vmatprep.mubr.bf16.mxu0 0
      %2258 = vmatmul.mubr.bf16.gmra.mxu0 %v2056
      %v2259 = vpop.f32.mrf.mxu0
      %v2260 = vadd.f32 0.0, %v2259
      %v2261 = vpop.f32.mrf.mxu0
      %v2262 = vpop.f32.mrf.mxu0
      %v2263 = vadd.f32 0.0, %v2262
      %v2264 = vpop.f32.mrf.mxu0
      %2265 = vdwg.mxu0
      %v2266 = vmul.f32 %v2140, 2.0
      %v2267 = vmul.f32 %v2143, 2.0
      %v2268 = vmul.f32 %v2148, 2.0
      %v2269 = vmul.f32 %v2151, 2.0
      %v2270 = vmul.f32 %v2156, 2.0
      %v2271 = vmul.f32 %v2159, 2.0
      %v2272 = vmul.f32 %v2164, 2.0
      %v2273 = vmul.f32 %v2167, 2.0
      %v2274 = vmul.f32 %v2172, 2.0
      %v2275 = vmul.f32 %v2175, 2.0
      %v2276 = vmul.f32 %v2180, 2.0
      %v2277 = vmul.f32 %v2183, 2.0
      %v2278 = vmul.f32 %v2188, 2.0
      %v2279 = vmul.f32 %v2191, 2.0
      %v2280 = vmul.f32 %v2196, 2.0
      %v2281 = vmul.f32 %v2199, 2.0
      %v2282 = vmul.f32 %v2204, 2.0
      %v2283 = vmul.f32 %v2207, 2.0
      %v2284 = vmul.f32 %v2212, 2.0
      %v2285 = vmul.f32 %v2215, 2.0
      %v2286 = vmul.f32 %v2220, 2.0
      %v2287 = vmul.f32 %v2223, 2.0
      %v2288 = vmul.f32 %v2228, 2.0
      %v2289 = vmul.f32 %v2231, 2.0
      %v2290 = vmul.f32 %v2236, 2.0
      %v2291 = vmul.f32 %v2239, 2.0
      %v2292 = vmul.f32 %v2244, 2.0
      %v2293 = vmul.f32 %v2247, 2.0
      %v2294 = vmul.f32 %v2252, 2.0
      %v2295 = vmul.f32 %v2255, 2.0
      %v2296 = vmul.f32 %v2260, 2.0
      %v2297 = vmul.f32 %v2263, 2.0
      %v2298 = vlaneseq
      %v2299 = vshrl.u32 %v2298, 7
      %v2300 = vsub.s32 0, %v2299
      %v2301 = vrot.slane %v2040, %v2300
      %v2302 = vsub.f32 %v2301, %v2266
      %v2303 = vsub.f32 %v2301, %v2267
      %v2304 = vsub.f32 %v2301, %v2268
      %v2305 = vsub.f32 %v2301, %v2269
      %v2306 = vsub.f32 %v2301, %v2270
      %v2307 = vsub.f32 %v2301, %v2271
      %v2308 = vsub.f32 %v2301, %v2272
      %v2309 = vsub.f32 %v2301, %v2273
      %v2310 = vsub.f32 %v2301, %v2274
      %v2311 = vsub.f32 %v2301, %v2275
      %v2312 = vsub.f32 %v2301, %v2276
      %v2313 = vsub.f32 %v2301, %v2277
      %v2314 = vsub.f32 %v2301, %v2278
      %v2315 = vsub.f32 %v2301, %v2279
      %v2316 = vsub.f32 %v2301, %v2280
      %v2317 = vsub.f32 %v2301, %v2281
      %v2318 = vsub.f32 %v2301, %v2282
      %v2319 = vsub.f32 %v2301, %v2283
      %v2320 = vsub.f32 %v2301, %v2284
      %v2321 = vsub.f32 %v2301, %v2285
      %v2322 = vsub.f32 %v2301, %v2286
      %v2323 = vsub.f32 %v2301, %v2287
      %v2324 = vsub.f32 %v2301, %v2288
      %v2325 = vsub.f32 %v2301, %v2289
      %v2326 = vsub.f32 %v2301, %v2290
      %v2327 = vsub.f32 %v2301, %v2291
      %v2328 = vsub.f32 %v2301, %v2292
      %v2329 = vsub.f32 %v2301, %v2293
      %v2330 = vsub.f32 %v2301, %v2294
      %v2331 = vsub.f32 %v2301, %v2295
      %v2332 = vsub.f32 %v2301, %v2296
      %v2333 = vsub.f32 %v2301, %v2297
      %2334 = vmin.xlane.f32.xlu0 %v2302
      %v2335 = vpop.xlane.xlu0 %2334
      %2336 = vmin.xlane.f32.xlu0 %v2303
      %v2337 = vpop.xlane.xlu0 %2336
      %2338 = vmin.xlane.f32.xlu0 %v2304
      %v2339 = vpop.xlane.xlu0 %2338
      %2340 = vmin.xlane.f32.xlu0 %v2305
      %v2341 = vpop.xlane.xlu0 %2340
      %2342 = vmin.xlane.f32.xlu0 %v2306
      %v2343 = vpop.xlane.xlu0 %2342
      %2344 = vmin.xlane.f32.xlu0 %v2307
      %v2345 = vpop.xlane.xlu0 %2344
      %2346 = vmin.xlane.f32.xlu0 %v2308
      %v2347 = vpop.xlane.xlu0 %2346
      %2348 = vmin.xlane.f32.xlu0 %v2309
      %v2349 = vpop.xlane.xlu0 %2348
      %2350 = vmin.xlane.f32.xlu0 %v2310
      %v2351 = vpop.xlane.xlu0 %2350
      %2352 = vmin.xlane.f32.xlu0 %v2311
      %v2353 = vpop.xlane.xlu0 %2352
      %2354 = vmin.xlane.f32.xlu0 %v2312
      %v2355 = vpop.xlane.xlu0 %2354
      %2356 = vmin.xlane.f32.xlu0 %v2313
      %v2357 = vpop.xlane.xlu0 %2356
      %2358 = vmin.xlane.f32.xlu0 %v2314
      %v2359 = vpop.xlane.xlu0 %2358
      %2360 = vmin.xlane.f32.xlu0 %v2315
      %v2361 = vpop.xlane.xlu0 %2360
      %2362 = vmin.xlane.f32.xlu0 %v2316
      %v2363 = vpop.xlane.xlu0 %2362
      %2364 = vmin.xlane.f32.xlu0 %v2317
      %v2365 = vpop.xlane.xlu0 %2364
      %2366 = vmin.xlane.f32.xlu0 %v2318
      %v2367 = vpop.xlane.xlu0 %2366
      %2368 = vmin.xlane.f32.xlu0 %v2319
      %v2369 = vpop.xlane.xlu0 %2368
      %2370 = vmin.xlane.f32.xlu0 %v2320
      %v2371 = vpop.xlane.xlu0 %2370
      %2372 = vmin.xlane.f32.xlu0 %v2321
      %v2373 = vpop.xlane.xlu0 %2372
      %2374 = vmin.xlane.f32.xlu0 %v2322
      %v2375 = vpop.xlane.xlu0 %2374
      %2376 = vmin.xlane.f32.xlu0 %v2323
      %v2377 = vpop.xlane.xlu0 %2376
      %2378 = vmin.xlane.f32.xlu0 %v2324
      %v2379 = vpop.xlane.xlu0 %2378
      %2380 = vmin.xlane.f32.xlu0 %v2325
      %v2381 = vpop.xlane.xlu0 %2380
      %2382 = vmin.xlane.f32.xlu0 %v2326
      %v2383 = vpop.xlane.xlu0 %2382
      %2384 = vmin.xlane.f32.xlu0 %v2327
      %v2385 = vpop.xlane.xlu0 %2384
      %2386 = vmin.xlane.f32.xlu0 %v2328
      %v2387 = vpop.xlane.xlu0 %2386
      %2388 = vmin.xlane.f32.xlu0 %v2329
      %v2389 = vpop.xlane.xlu0 %2388
      %2390 = vmin.xlane.f32.xlu0 %v2330
      %v2391 = vpop.xlane.xlu0 %2390
      %2392 = vmin.xlane.f32.xlu0 %v2331
      %v2393 = vpop.xlane.xlu0 %2392
      %2394 = vmin.xlane.f32.xlu0 %v2332
      %v2395 = vpop.xlane.xlu0 %2394
      %2396 = vmin.xlane.f32.xlu0 %v2333
      %v2397 = vpop.xlane.xlu0 %2396
      %vm2398 = vcmp.eq.f32.partialorder %v2302, %v2335
      %vm2399 = vcmp.eq.f32.partialorder %v2303, %v2337
      %vm2400 = vcmp.eq.f32.partialorder %v2304, %v2339
      %vm2401 = vcmp.eq.f32.partialorder %v2305, %v2341
      %vm2402 = vcmp.eq.f32.partialorder %v2306, %v2343
      %vm2403 = vcmp.eq.f32.partialorder %v2307, %v2345
      %vm2404 = vcmp.eq.f32.partialorder %v2308, %v2347
      %vm2405 = vcmp.eq.f32.partialorder %v2309, %v2349
      %vm2406 = vcmp.eq.f32.partialorder %v2310, %v2351
      %vm2407 = vcmp.eq.f32.partialorder %v2311, %v2353
      %vm2408 = vcmp.eq.f32.partialorder %v2312, %v2355
      %vm2409 = vcmp.eq.f32.partialorder %v2313, %v2357
      %vm2410 = vcmp.eq.f32.partialorder %v2314, %v2359
      %vm2411 = vcmp.eq.f32.partialorder %v2315, %v2361
      %vm2412 = vcmp.eq.f32.partialorder %v2316, %v2363
      %vm2413 = vcmp.eq.f32.partialorder %v2317, %v2365
      %vm2414 = vcmp.eq.f32.partialorder %v2318, %v2367
      %vm2415 = vcmp.eq.f32.partialorder %v2319, %v2369
      %vm2416 = vcmp.eq.f32.partialorder %v2320, %v2371
      %vm2417 = vcmp.eq.f32.partialorder %v2321, %v2373
      %vm2418 = vcmp.eq.f32.partialorder %v2322, %v2375
      %vm2419 = vcmp.eq.f32.partialorder %v2323, %v2377
      %vm2420 = vcmp.eq.f32.partialorder %v2324, %v2379
      %vm2421 = vcmp.eq.f32.partialorder %v2325, %v2381
      %vm2422 = vcmp.eq.f32.partialorder %v2326, %v2383
      %vm2423 = vcmp.eq.f32.partialorder %v2327, %v2385
      %vm2424 = vcmp.eq.f32.partialorder %v2328, %v2387
      %vm2425 = vcmp.eq.f32.partialorder %v2329, %v2389
      %vm2426 = vcmp.eq.f32.partialorder %v2330, %v2391
      %vm2427 = vcmp.eq.f32.partialorder %v2331, %v2393
      %vm2428 = vcmp.eq.f32.partialorder %v2332, %v2395
      %vm2429 = vcmp.eq.f32.partialorder %v2333, %v2397
      %v2430 = vsel %vm2398, %v449, 128
      %v2431 = vsel %vm2399, %v449, 128
      %v2432 = vsel %vm2400, %v449, 128
      %v2433 = vsel %vm2401, %v449, 128
      %v2434 = vsel %vm2402, %v449, 128
      %v2435 = vsel %vm2403, %v449, 128
      %v2436 = vsel %vm2404, %v449, 128
      %v2437 = vsel %vm2405, %v449, 128
      %v2438 = vsel %vm2406, %v449, 128
      %v2439 = vsel %vm2407, %v449, 128
      %v2440 = vsel %vm2408, %v449, 128
      %v2441 = vsel %vm2409, %v449, 128
      %v2442 = vsel %vm2410, %v449, 128
      %v2443 = vsel %vm2411, %v449, 128
      %v2444 = vsel %vm2412, %v449, 128
      %v2445 = vsel %vm2413, %v449, 128
      %v2446 = vsel %vm2414, %v449, 128
      %v2447 = vsel %vm2415, %v449, 128
      %v2448 = vsel %vm2416, %v449, 128
      %v2449 = vsel %vm2417, %v449, 128
      %v2450 = vsel %vm2418, %v449, 128
      %v2451 = vsel %vm2419, %v449, 128
      %v2452 = vsel %vm2420, %v449, 128
      %v2453 = vsel %vm2421, %v449, 128
      %v2454 = vsel %vm2422, %v449, 128
      %v2455 = vsel %vm2423, %v449, 128
      %v2456 = vsel %vm2424, %v449, 128
      %v2457 = vsel %vm2425, %v449, 128
      %v2458 = vsel %vm2426, %v449, 128
      %v2459 = vsel %vm2427, %v449, 128
      %v2460 = vsel %vm2428, %v449, 128
      %v2461 = vsel %vm2429, %v449, 128
      %v2462 = vand.u32 %v2430, 65535
      %v2463 = vshra.s32 %v2430, 16
      %v2464 = vcvt.s32.f32 %v2462
      %v2465 = vcvt.s32.f32 %v2463
      %2466 = vmin.xlane.f32.xlu0 %v2465
      %v2467 = vpop.xlane.xlu0 %2466
      %vm2468 = vcmp.eq.f32.partialorder %v2465, %v2467
      %v2469 = vsel %vm2468, %v2464, inf
      %2470 = vmin.xlane.f32.xlu0 %v2469
      %v2471 = vpop.xlane.xlu0 %2470
      %v2472 = vcvt.f32.s32 %v2471
      %v2473 = vcvt.f32.s32 %v2467
      %v2474 = vshll.u32 %v2473, 16
      %v2475 = vadd.s32 %v2474, %v2472
      %v2476 = vand.u32 %v2431, 65535
      %v2477 = vshra.s32 %v2431, 16
      %v2478 = vcvt.s32.f32 %v2476
      %v2479 = vcvt.s32.f32 %v2477
      %2480 = vmin.xlane.f32.xlu0 %v2479
      %v2481 = vpop.xlane.xlu0 %2480
      %vm2482 = vcmp.eq.f32.partialorder %v2479, %v2481
      %v2483 = vsel %vm2482, %v2478, inf
      %2484 = vmin.xlane.f32.xlu0 %v2483
      %v2485 = vpop.xlane.xlu0 %2484
      %v2486 = vcvt.f32.s32 %v2485
      %v2487 = vcvt.f32.s32 %v2481
      %v2488 = vshll.u32 %v2487, 16
      %v2489 = vadd.s32 %v2488, %v2486
      %v2490 = vand.u32 %v2432, 65535
      %v2491 = vshra.s32 %v2432, 16
      %v2492 = vcvt.s32.f32 %v2490
      %v2493 = vcvt.s32.f32 %v2491
      %2494 = vmin.xlane.f32.xlu0 %v2493
      %v2495 = vpop.xlane.xlu0 %2494
      %vm2496 = vcmp.eq.f32.partialorder %v2493, %v2495
      %v2497 = vsel %vm2496, %v2492, inf
      %2498 = vmin.xlane.f32.xlu0 %v2497
      %v2499 = vpop.xlane.xlu0 %2498
      %v2500 = vcvt.f32.s32 %v2499
      %v2501 = vcvt.f32.s32 %v2495
      %v2502 = vshll.u32 %v2501, 16
      %v2503 = vadd.s32 %v2502, %v2500
      %v2504 = vand.u32 %v2433, 65535
      %v2505 = vshra.s32 %v2433, 16
      %v2506 = vcvt.s32.f32 %v2504
      %v2507 = vcvt.s32.f32 %v2505
      %2508 = vmin.xlane.f32.xlu0 %v2507
      %v2509 = vpop.xlane.xlu0 %2508
      %vm2510 = vcmp.eq.f32.partialorder %v2507, %v2509
      %v2511 = vsel %vm2510, %v2506, inf
      %2512 = vmin.xlane.f32.xlu0 %v2511
      %v2513 = vpop.xlane.xlu0 %2512
      %v2514 = vcvt.f32.s32 %v2513
      %v2515 = vcvt.f32.s32 %v2509
      %v2516 = vshll.u32 %v2515, 16
      %v2517 = vadd.s32 %v2516, %v2514
      %v2518 = vand.u32 %v2434, 65535
      %v2519 = vshra.s32 %v2434, 16
      %v2520 = vcvt.s32.f32 %v2518
      %v2521 = vcvt.s32.f32 %v2519
      %2522 = vmin.xlane.f32.xlu0 %v2521
      %v2523 = vpop.xlane.xlu0 %2522
      %vm2524 = vcmp.eq.f32.partialorder %v2521, %v2523
      %v2525 = vsel %vm2524, %v2520, inf
      %2526 = vmin.xlane.f32.xlu0 %v2525
      %v2527 = vpop.xlane.xlu0 %2526
      %v2528 = vcvt.f32.s32 %v2527
      %v2529 = vcvt.f32.s32 %v2523
      %v2530 = vshll.u32 %v2529, 16
      %v2531 = vadd.s32 %v2530, %v2528
      %v2532 = vand.u32 %v2435, 65535
      %v2533 = vshra.s32 %v2435, 16
      %v2534 = vcvt.s32.f32 %v2532
      %v2535 = vcvt.s32.f32 %v2533
      %2536 = vmin.xlane.f32.xlu0 %v2535
      %v2537 = vpop.xlane.xlu0 %2536
      %vm2538 = vcmp.eq.f32.partialorder %v2535, %v2537
      %v2539 = vsel %vm2538, %v2534, inf
      %2540 = vmin.xlane.f32.xlu0 %v2539
      %v2541 = vpop.xlane.xlu0 %2540
      %v2542 = vcvt.f32.s32 %v2541
      %v2543 = vcvt.f32.s32 %v2537
      %v2544 = vshll.u32 %v2543, 16
      %v2545 = vadd.s32 %v2544, %v2542
      %v2546 = vand.u32 %v2436, 65535
      %v2547 = vshra.s32 %v2436, 16
      %v2548 = vcvt.s32.f32 %v2546
      %v2549 = vcvt.s32.f32 %v2547
      %2550 = vmin.xlane.f32.xlu0 %v2549
      %v2551 = vpop.xlane.xlu0 %2550
      %vm2552 = vcmp.eq.f32.partialorder %v2549, %v2551
      %v2553 = vsel %vm2552, %v2548, inf
      %2554 = vmin.xlane.f32.xlu0 %v2553
      %v2555 = vpop.xlane.xlu0 %2554
      %v2556 = vcvt.f32.s32 %v2555
      %v2557 = vcvt.f32.s32 %v2551
      %v2558 = vshll.u32 %v2557, 16
      %v2559 = vadd.s32 %v2558, %v2556
      %v2560 = vand.u32 %v2437, 65535
      %v2561 = vshra.s32 %v2437, 16
      %v2562 = vcvt.s32.f32 %v2560
      %v2563 = vcvt.s32.f32 %v2561
      %2564 = vmin.xlane.f32.xlu0 %v2563
      %v2565 = vpop.xlane.xlu0 %2564
      %vm2566 = vcmp.eq.f32.partialorder %v2563, %v2565
      %v2567 = vsel %vm2566, %v2562, inf
      %2568 = vmin.xlane.f32.xlu0 %v2567
      %v2569 = vpop.xlane.xlu0 %2568
      %v2570 = vcvt.f32.s32 %v2569
      %v2571 = vcvt.f32.s32 %v2565
      %v2572 = vshll.u32 %v2571, 16
      %v2573 = vadd.s32 %v2572, %v2570
      %v2574 = vand.u32 %v2438, 65535
      %v2575 = vshra.s32 %v2438, 16
      %v2576 = vcvt.s32.f32 %v2574
      %v2577 = vcvt.s32.f32 %v2575
      %2578 = vmin.xlane.f32.xlu0 %v2577
      %v2579 = vpop.xlane.xlu0 %2578
      %vm2580 = vcmp.eq.f32.partialorder %v2577, %v2579
      %v2581 = vsel %vm2580, %v2576, inf
      %2582 = vmin.xlane.f32.xlu0 %v2581
      %v2583 = vpop.xlane.xlu0 %2582
      %v2584 = vcvt.f32.s32 %v2583
      %v2585 = vcvt.f32.s32 %v2579
      %v2586 = vshll.u32 %v2585, 16
      %v2587 = vadd.s32 %v2586, %v2584
      %v2588 = vand.u32 %v2439, 65535
      %v2589 = vshra.s32 %v2439, 16
      %v2590 = vcvt.s32.f32 %v2588
      %v2591 = vcvt.s32.f32 %v2589
      %2592 = vmin.xlane.f32.xlu0 %v2591
      %v2593 = vpop.xlane.xlu0 %2592
      %vm2594 = vcmp.eq.f32.partialorder %v2591, %v2593
      %v2595 = vsel %vm2594, %v2590, inf
      %2596 = vmin.xlane.f32.xlu0 %v2595
      %v2597 = vpop.xlane.xlu0 %2596
      %v2598 = vcvt.f32.s32 %v2597
      %v2599 = vcvt.f32.s32 %v2593
      %v2600 = vshll.u32 %v2599, 16
      %v2601 = vadd.s32 %v2600, %v2598
      %v2602 = vand.u32 %v2440, 65535
      %v2603 = vshra.s32 %v2440, 16
      %v2604 = vcvt.s32.f32 %v2602
      %v2605 = vcvt.s32.f32 %v2603
      %2606 = vmin.xlane.f32.xlu0 %v2605
      %v2607 = vpop.xlane.xlu0 %2606
      %vm2608 = vcmp.eq.f32.partialorder %v2605, %v2607
      %v2609 = vsel %vm2608, %v2604, inf
      %2610 = vmin.xlane.f32.xlu0 %v2609
      %v2611 = vpop.xlane.xlu0 %2610
      %v2612 = vcvt.f32.s32 %v2611
      %v2613 = vcvt.f32.s32 %v2607
      %v2614 = vshll.u32 %v2613, 16
      %v2615 = vadd.s32 %v2614, %v2612
      %v2616 = vand.u32 %v2441, 65535
      %v2617 = vshra.s32 %v2441, 16
      %v2618 = vcvt.s32.f32 %v2616
      %v2619 = vcvt.s32.f32 %v2617
      %2620 = vmin.xlane.f32.xlu0 %v2619
      %v2621 = vpop.xlane.xlu0 %2620
      %vm2622 = vcmp.eq.f32.partialorder %v2619, %v2621
      %v2623 = vsel %vm2622, %v2618, inf
      %2624 = vmin.xlane.f32.xlu0 %v2623
      %v2625 = vpop.xlane.xlu0 %2624
      %v2626 = vcvt.f32.s32 %v2625
      %v2627 = vcvt.f32.s32 %v2621
      %v2628 = vshll.u32 %v2627, 16
      %v2629 = vadd.s32 %v2628, %v2626
      %v2630 = vand.u32 %v2442, 65535
      %v2631 = vshra.s32 %v2442, 16
      %v2632 = vcvt.s32.f32 %v2630
      %v2633 = vcvt.s32.f32 %v2631
      %2634 = vmin.xlane.f32.xlu0 %v2633
      %v2635 = vpop.xlane.xlu0 %2634
      %vm2636 = vcmp.eq.f32.partialorder %v2633, %v2635
      %v2637 = vsel %vm2636, %v2632, inf
      %2638 = vmin.xlane.f32.xlu0 %v2637
      %v2639 = vpop.xlane.xlu0 %2638
      %v2640 = vcvt.f32.s32 %v2639
      %v2641 = vcvt.f32.s32 %v2635
      %v2642 = vshll.u32 %v2641, 16
      %v2643 = vadd.s32 %v2642, %v2640
      %v2644 = vand.u32 %v2443, 65535
      %v2645 = vshra.s32 %v2443, 16
      %v2646 = vcvt.s32.f32 %v2644
      %v2647 = vcvt.s32.f32 %v2645
      %2648 = vmin.xlane.f32.xlu0 %v2647
      %v2649 = vpop.xlane.xlu0 %2648
      %vm2650 = vcmp.eq.f32.partialorder %v2647, %v2649
      %v2651 = vsel %vm2650, %v2646, inf
      %2652 = vmin.xlane.f32.xlu0 %v2651
      %v2653 = vpop.xlane.xlu0 %2652
      %v2654 = vcvt.f32.s32 %v2653
      %v2655 = vcvt.f32.s32 %v2649
      %v2656 = vshll.u32 %v2655, 16
      %v2657 = vadd.s32 %v2656, %v2654
      %v2658 = vand.u32 %v2444, 65535
      %v2659 = vshra.s32 %v2444, 16
      %v2660 = vcvt.s32.f32 %v2658
      %v2661 = vcvt.s32.f32 %v2659
      %2662 = vmin.xlane.f32.xlu0 %v2661
      %v2663 = vpop.xlane.xlu0 %2662
      %vm2664 = vcmp.eq.f32.partialorder %v2661, %v2663
      %v2665 = vsel %vm2664, %v2660, inf
      %2666 = vmin.xlane.f32.xlu0 %v2665
      %v2667 = vpop.xlane.xlu0 %2666
      %v2668 = vcvt.f32.s32 %v2667
      %v2669 = vcvt.f32.s32 %v2663
      %v2670 = vshll.u32 %v2669, 16
      %v2671 = vadd.s32 %v2670, %v2668
      %v2672 = vand.u32 %v2445, 65535
      %v2673 = vshra.s32 %v2445, 16
      %v2674 = vcvt.s32.f32 %v2672
      %v2675 = vcvt.s32.f32 %v2673
      %2676 = vmin.xlane.f32.xlu0 %v2675
      %v2677 = vpop.xlane.xlu0 %2676
      %vm2678 = vcmp.eq.f32.partialorder %v2675, %v2677
      %v2679 = vsel %vm2678, %v2674, inf
      %2680 = vmin.xlane.f32.xlu0 %v2679
      %v2681 = vpop.xlane.xlu0 %2680
      %v2682 = vcvt.f32.s32 %v2681
      %v2683 = vcvt.f32.s32 %v2677
      %v2684 = vshll.u32 %v2683, 16
      %v2685 = vadd.s32 %v2684, %v2682
      %v2686 = vand.u32 %v2446, 65535
      %v2687 = vshra.s32 %v2446, 16
      %v2688 = vcvt.s32.f32 %v2686
      %v2689 = vcvt.s32.f32 %v2687
      %2690 = vmin.xlane.f32.xlu0 %v2689
      %v2691 = vpop.xlane.xlu0 %2690
      %vm2692 = vcmp.eq.f32.partialorder %v2689, %v2691
      %v2693 = vsel %vm2692, %v2688, inf
      %2694 = vmin.xlane.f32.xlu0 %v2693
      %v2695 = vpop.xlane.xlu0 %2694
      %v2696 = vcvt.f32.s32 %v2695
      %v2697 = vcvt.f32.s32 %v2691
      %v2698 = vshll.u32 %v2697, 16
      %v2699 = vadd.s32 %v2698, %v2696
      %v2700 = vand.u32 %v2447, 65535
      %v2701 = vshra.s32 %v2447, 16
      %v2702 = vcvt.s32.f32 %v2700
      %v2703 = vcvt.s32.f32 %v2701
      %2704 = vmin.xlane.f32.xlu0 %v2703
      %v2705 = vpop.xlane.xlu0 %2704
      %vm2706 = vcmp.eq.f32.partialorder %v2703, %v2705
      %v2707 = vsel %vm2706, %v2702, inf
      %2708 = vmin.xlane.f32.xlu0 %v2707
      %v2709 = vpop.xlane.xlu0 %2708
      %v2710 = vcvt.f32.s32 %v2709
      %v2711 = vcvt.f32.s32 %v2705
      %v2712 = vshll.u32 %v2711, 16
      %v2713 = vadd.s32 %v2712, %v2710
      %v2714 = vand.u32 %v2448, 65535
      %v2715 = vshra.s32 %v2448, 16
      %v2716 = vcvt.s32.f32 %v2714
      %v2717 = vcvt.s32.f32 %v2715
      %2718 = vmin.xlane.f32.xlu0 %v2717
      %v2719 = vpop.xlane.xlu0 %2718
      %vm2720 = vcmp.eq.f32.partialorder %v2717, %v2719
      %v2721 = vsel %vm2720, %v2716, inf
      %2722 = vmin.xlane.f32.xlu0 %v2721
      %v2723 = vpop.xlane.xlu0 %2722
      %v2724 = vcvt.f32.s32 %v2723
      %v2725 = vcvt.f32.s32 %v2719
      %v2726 = vshll.u32 %v2725, 16
      %v2727 = vadd.s32 %v2726, %v2724
      %v2728 = vand.u32 %v2449, 65535
      %v2729 = vshra.s32 %v2449, 16
      %v2730 = vcvt.s32.f32 %v2728
      %v2731 = vcvt.s32.f32 %v2729
      %2732 = vmin.xlane.f32.xlu0 %v2731
      %v2733 = vpop.xlane.xlu0 %2732
      %vm2734 = vcmp.eq.f32.partialorder %v2731, %v2733
      %v2735 = vsel %vm2734, %v2730, inf
      %2736 = vmin.xlane.f32.xlu0 %v2735
      %v2737 = vpop.xlane.xlu0 %2736
      %v2738 = vcvt.f32.s32 %v2737
      %v2739 = vcvt.f32.s32 %v2733
      %v2740 = vshll.u32 %v2739, 16
      %v2741 = vadd.s32 %v2740, %v2738
      %v2742 = vand.u32 %v2450, 65535
      %v2743 = vshra.s32 %v2450, 16
      %v2744 = vcvt.s32.f32 %v2742
      %v2745 = vcvt.s32.f32 %v2743
      %2746 = vmin.xlane.f32.xlu0 %v2745
      %v2747 = vpop.xlane.xlu0 %2746
      %vm2748 = vcmp.eq.f32.partialorder %v2745, %v2747
      %v2749 = vsel %vm2748, %v2744, inf
      %2750 = vmin.xlane.f32.xlu0 %v2749
      %v2751 = vpop.xlane.xlu0 %2750
      %v2752 = vcvt.f32.s32 %v2751
      %v2753 = vcvt.f32.s32 %v2747
      %v2754 = vshll.u32 %v2753, 16
      %v2755 = vadd.s32 %v2754, %v2752
      %v2756 = vand.u32 %v2451, 65535
      %v2757 = vshra.s32 %v2451, 16
      %v2758 = vcvt.s32.f32 %v2756
      %v2759 = vcvt.s32.f32 %v2757
      %2760 = vmin.xlane.f32.xlu0 %v2759
      %v2761 = vpop.xlane.xlu0 %2760
      %vm2762 = vcmp.eq.f32.partialorder %v2759, %v2761
      %v2763 = vsel %vm2762, %v2758, inf
      %2764 = vmin.xlane.f32.xlu0 %v2763
      %v2765 = vpop.xlane.xlu0 %2764
      %v2766 = vcvt.f32.s32 %v2765
      %v2767 = vcvt.f32.s32 %v2761
      %v2768 = vshll.u32 %v2767, 16
      %v2769 = vadd.s32 %v2768, %v2766
      %v2770 = vand.u32 %v2452, 65535
      %v2771 = vshra.s32 %v2452, 16
      %v2772 = vcvt.s32.f32 %v2770
      %v2773 = vcvt.s32.f32 %v2771
      %2774 = vmin.xlane.f32.xlu0 %v2773
      %v2775 = vpop.xlane.xlu0 %2774
      %vm2776 = vcmp.eq.f32.partialorder %v2773, %v2775
      %v2777 = vsel %vm2776, %v2772, inf
      %2778 = vmin.xlane.f32.xlu0 %v2777
      %v2779 = vpop.xlane.xlu0 %2778
      %v2780 = vcvt.f32.s32 %v2779
      %v2781 = vcvt.f32.s32 %v2775
      %v2782 = vshll.u32 %v2781, 16
      %v2783 = vadd.s32 %v2782, %v2780
      %v2784 = vand.u32 %v2453, 65535
      %v2785 = vshra.s32 %v2453, 16
      %v2786 = vcvt.s32.f32 %v2784
      %v2787 = vcvt.s32.f32 %v2785
      %2788 = vmin.xlane.f32.xlu0 %v2787
      %v2789 = vpop.xlane.xlu0 %2788
      %vm2790 = vcmp.eq.f32.partialorder %v2787, %v2789
      %v2791 = vsel %vm2790, %v2786, inf
      %2792 = vmin.xlane.f32.xlu0 %v2791
      %v2793 = vpop.xlane.xlu0 %2792
      %v2794 = vcvt.f32.s32 %v2793
      %v2795 = vcvt.f32.s32 %v2789
      %v2796 = vshll.u32 %v2795, 16
      %v2797 = vadd.s32 %v2796, %v2794
      %v2798 = vand.u32 %v2454, 65535
      %v2799 = vshra.s32 %v2454, 16
      %v2800 = vcvt.s32.f32 %v2798
      %v2801 = vcvt.s32.f32 %v2799
      %2802 = vmin.xlane.f32.xlu0 %v2801
      %v2803 = vpop.xlane.xlu0 %2802
      %vm2804 = vcmp.eq.f32.partialorder %v2801, %v2803
      %v2805 = vsel %vm2804, %v2800, inf
      %2806 = vmin.xlane.f32.xlu0 %v2805
      %v2807 = vpop.xlane.xlu0 %2806
      %v2808 = vcvt.f32.s32 %v2807
      %v2809 = vcvt.f32.s32 %v2803
      %v2810 = vshll.u32 %v2809, 16
      %v2811 = vadd.s32 %v2810, %v2808
      %v2812 = vand.u32 %v2455, 65535
      %v2813 = vshra.s32 %v2455, 16
      %v2814 = vcvt.s32.f32 %v2812
      %v2815 = vcvt.s32.f32 %v2813
      %2816 = vmin.xlane.f32.xlu0 %v2815
      %v2817 = vpop.xlane.xlu0 %2816
      %vm2818 = vcmp.eq.f32.partialorder %v2815, %v2817
      %v2819 = vsel %vm2818, %v2814, inf
      %2820 = vmin.xlane.f32.xlu0 %v2819
      %v2821 = vpop.xlane.xlu0 %2820
      %v2822 = vcvt.f32.s32 %v2821
      %v2823 = vcvt.f32.s32 %v2817
      %v2824 = vshll.u32 %v2823, 16
      %v2825 = vadd.s32 %v2824, %v2822
      %v2826 = vand.u32 %v2456, 65535
      %v2827 = vshra.s32 %v2456, 16
      %v2828 = vcvt.s32.f32 %v2826
      %v2829 = vcvt.s32.f32 %v2827
      %2830 = vmin.xlane.f32.xlu0 %v2829
      %v2831 = vpop.xlane.xlu0 %2830
      %vm2832 = vcmp.eq.f32.partialorder %v2829, %v2831
      %v2833 = vsel %vm2832, %v2828, inf
      %2834 = vmin.xlane.f32.xlu0 %v2833
      %v2835 = vpop.xlane.xlu0 %2834
      %v2836 = vcvt.f32.s32 %v2835
      %v2837 = vcvt.f32.s32 %v2831
      %v2838 = vshll.u32 %v2837, 16
      %v2839 = vadd.s32 %v2838, %v2836
      %v2840 = vand.u32 %v2457, 65535
      %v2841 = vshra.s32 %v2457, 16
      %v2842 = vcvt.s32.f32 %v2840
      %v2843 = vcvt.s32.f32 %v2841
      %2844 = vmin.xlane.f32.xlu0 %v2843
      %v2845 = vpop.xlane.xlu0 %2844
      %vm2846 = vcmp.eq.f32.partialorder %v2843, %v2845
      %v2847 = vsel %vm2846, %v2842, inf
      %2848 = vmin.xlane.f32.xlu0 %v2847
      %v2849 = vpop.xlane.xlu0 %2848
      %v2850 = vcvt.f32.s32 %v2849
      %v2851 = vcvt.f32.s32 %v2845
      %v2852 = vshll.u32 %v2851, 16
      %v2853 = vadd.s32 %v2852, %v2850
      %v2854 = vand.u32 %v2458, 65535
      %v2855 = vshra.s32 %v2458, 16
      %v2856 = vcvt.s32.f32 %v2854
      %v2857 = vcvt.s32.f32 %v2855
      %2858 = vmin.xlane.f32.xlu0 %v2857
      %v2859 = vpop.xlane.xlu0 %2858
      %vm2860 = vcmp.eq.f32.partialorder %v2857, %v2859
      %v2861 = vsel %vm2860, %v2856, inf
      %2862 = vmin.xlane.f32.xlu0 %v2861
      %v2863 = vpop.xlane.xlu0 %2862
      %v2864 = vcvt.f32.s32 %v2863
      %v2865 = vcvt.f32.s32 %v2859
      %v2866 = vshll.u32 %v2865, 16
      %v2867 = vadd.s32 %v2866, %v2864
      %v2868 = vand.u32 %v2459, 65535
      %v2869 = vshra.s32 %v2459, 16
      %v2870 = vcvt.s32.f32 %v2868
      %v2871 = vcvt.s32.f32 %v2869
      %2872 = vmin.xlane.f32.xlu0 %v2871
      %v2873 = vpop.xlane.xlu0 %2872
      %vm2874 = vcmp.eq.f32.partialorder %v2871, %v2873
      %v2875 = vsel %vm2874, %v2870, inf
      %2876 = vmin.xlane.f32.xlu0 %v2875
      %v2877 = vpop.xlane.xlu0 %2876
      %v2878 = vcvt.f32.s32 %v2877
      %v2879 = vcvt.f32.s32 %v2873
      %v2880 = vshll.u32 %v2879, 16
      %v2881 = vadd.s32 %v2880, %v2878
      %v2882 = vand.u32 %v2460, 65535
      %v2883 = vshra.s32 %v2460, 16
      %v2884 = vcvt.s32.f32 %v2882
      %v2885 = vcvt.s32.f32 %v2883
      %2886 = vmin.xlane.f32.xlu0 %v2885
      %v2887 = vpop.xlane.xlu0 %2886
      %vm2888 = vcmp.eq.f32.partialorder %v2885, %v2887
      %v2889 = vsel %vm2888, %v2884, inf
      %2890 = vmin.xlane.f32.xlu0 %v2889
      %v2891 = vpop.xlane.xlu0 %2890
      %v2892 = vcvt.f32.s32 %v2891
      %v2893 = vcvt.f32.s32 %v2887
      %v2894 = vshll.u32 %v2893, 16
      %v2895 = vadd.s32 %v2894, %v2892
      %v2896 = vand.u32 %v2461, 65535
      %v2897 = vshra.s32 %v2461, 16
      %v2898 = vcvt.s32.f32 %v2896
      %v2899 = vcvt.s32.f32 %v2897
      %2900 = vmin.xlane.f32.xlu0 %v2899
      %v2901 = vpop.xlane.xlu0 %2900
      %vm2902 = vcmp.eq.f32.partialorder %v2899, %v2901
      %v2903 = vsel %vm2902, %v2898, inf
      %2904 = vmin.xlane.f32.xlu0 %v2903
      %v2905 = vpop.xlane.xlu0 %2904
      %v2906 = vcvt.f32.s32 %v2905
      %v2907 = vcvt.f32.s32 %v2901
      %v2908 = vshll.u32 %v2907, 16
      %v2909 = vadd.s32 %v2908, %v2906
      %vm2910 = vcmp.eq.s32.totalorder %v449, %v2475
      %vm2911 = vcmp.eq.s32.totalorder %v449, %v2489
      %vm2912 = vcmp.eq.s32.totalorder %v449, %v2503
      %vm2913 = vcmp.eq.s32.totalorder %v449, %v2517
      %vm2914 = vcmp.eq.s32.totalorder %v449, %v2531
      %vm2915 = vcmp.eq.s32.totalorder %v449, %v2545
      %vm2916 = vcmp.eq.s32.totalorder %v449, %v2559
      %vm2917 = vcmp.eq.s32.totalorder %v449, %v2573
      %vm2918 = vcmp.eq.s32.totalorder %v449, %v2587
      %vm2919 = vcmp.eq.s32.totalorder %v449, %v2601
      %vm2920 = vcmp.eq.s32.totalorder %v449, %v2615
      %vm2921 = vcmp.eq.s32.totalorder %v449, %v2629
      %vm2922 = vcmp.eq.s32.totalorder %v449, %v2643
      %vm2923 = vcmp.eq.s32.totalorder %v449, %v2657
      %vm2924 = vcmp.eq.s32.totalorder %v449, %v2671
      %vm2925 = vcmp.eq.s32.totalorder %v449, %v2685
      %vm2926 = vcmp.eq.s32.totalorder %v449, %v2699
      %vm2927 = vcmp.eq.s32.totalorder %v449, %v2713
      %vm2928 = vcmp.eq.s32.totalorder %v449, %v2727
      %vm2929 = vcmp.eq.s32.totalorder %v449, %v2741
      %vm2930 = vcmp.eq.s32.totalorder %v449, %v2755
      %vm2931 = vcmp.eq.s32.totalorder %v449, %v2769
      %vm2932 = vcmp.eq.s32.totalorder %v449, %v2783
      %vm2933 = vcmp.eq.s32.totalorder %v449, %v2797
      %vm2934 = vcmp.eq.s32.totalorder %v449, %v2811
      %vm2935 = vcmp.eq.s32.totalorder %v449, %v2825
      %vm2936 = vcmp.eq.s32.totalorder %v449, %v2839
      %vm2937 = vcmp.eq.s32.totalorder %v449, %v2853
      %vm2938 = vcmp.eq.s32.totalorder %v449, %v2867
      %vm2939 = vcmp.eq.s32.totalorder %v449, %v2881
      %vm2940 = vcmp.eq.s32.totalorder %v449, %v2895
      %vm2941 = vcmp.eq.s32.totalorder %v449, %v2909
      %v2942 = vsel %vm2910, 1, 0
      %v2943 = vsel %vm2911, 1, 0
      %v2944 = vsel %vm2912, 1, 0
      %v2945 = vsel %vm2913, 1, 0
      %v2946 = vsel %vm2914, 1, 0
      %v2947 = vsel %vm2915, 1, 0
      %v2948 = vsel %vm2916, 1, 0
      %v2949 = vsel %vm2917, 1, 0
      %v2950 = vsel %vm2918, 1, 0
      %v2951 = vsel %vm2919, 1, 0
      %v2952 = vsel %vm2920, 1, 0
      %v2953 = vsel %vm2921, 1, 0
      %v2954 = vsel %vm2922, 1, 0
      %v2955 = vsel %vm2923, 1, 0
      %v2956 = vsel %vm2924, 1, 0
      %v2957 = vsel %vm2925, 1, 0
      %v2958 = vsel %vm2926, 1, 0
      %v2959 = vsel %vm2927, 1, 0
      %v2960 = vsel %vm2928, 1, 0
      %v2961 = vsel %vm2929, 1, 0
      %v2962 = vsel %vm2930, 1, 0
      %v2963 = vsel %vm2931, 1, 0
      %v2964 = vsel %vm2932, 1, 0
      %v2965 = vsel %vm2933, 1, 0
      %v2966 = vsel %vm2934, 1, 0
      %v2967 = vsel %vm2935, 1, 0
      %v2968 = vsel %vm2936, 1, 0
      %v2969 = vsel %vm2937, 1, 0
      %v2970 = vsel %vm2938, 1, 0
      %v2971 = vsel %vm2939, 1, 0
      %v2972 = vsel %vm2940, 1, 0
      %v2973 = vsel %vm2941, 1, 0
      %v2974 = vcvt.s32.f32 %v2942
      %v2975 = vcvt.s32.f32 %v2943
      %v2976 = vcvt.s32.f32 %v2944
      %v2977 = vcvt.s32.f32 %v2945
      %v2978 = vcvt.s32.f32 %v2946
      %v2979 = vcvt.s32.f32 %v2947
      %v2980 = vcvt.s32.f32 %v2948
      %v2981 = vcvt.s32.f32 %v2949
      %v2982 = vcvt.s32.f32 %v2950
      %v2983 = vcvt.s32.f32 %v2951
      %v2984 = vcvt.s32.f32 %v2952
      %v2985 = vcvt.s32.f32 %v2953
      %v2986 = vcvt.s32.f32 %v2954
      %v2987 = vcvt.s32.f32 %v2955
      %v2988 = vcvt.s32.f32 %v2956
      %v2989 = vcvt.s32.f32 %v2957
      %v2990 = vcvt.s32.f32 %v2958
      %v2991 = vcvt.s32.f32 %v2959
      %v2992 = vcvt.s32.f32 %v2960
      %v2993 = vcvt.s32.f32 %v2961
      %v2994 = vcvt.s32.f32 %v2962
      %v2995 = vcvt.s32.f32 %v2963
      %v2996 = vcvt.s32.f32 %v2964
      %v2997 = vcvt.s32.f32 %v2965
      %v2998 = vcvt.s32.f32 %v2966
      %v2999 = vcvt.s32.f32 %v2967
      %v3000 = vcvt.s32.f32 %v2968
      %v3001 = vcvt.s32.f32 %v2969
      %v3002 = vcvt.s32.f32 %v2970
      %v3003 = vcvt.s32.f32 %v2971
      %v3004 = vcvt.s32.f32 %v2972
      %v3005 = vcvt.s32.f32 %v2973
      %3006 = vmatprep.subr.mxu0 0.0
      %3007 = vmatpush1.msra.mxu0 %v2022
      %3008 = vmatprep.subr.mxu0 0.0
      %3009 = vmatpush1.msra.mxu0 %v2021
      %3010 = vmatprep.subr.mxu0 0.0
      %3011 = vmatpush1.msra.mxu0 %v2020
      %3012 = vmatprep.subr.mxu0 0.0
      %3013 = vmatpush1.msra.mxu0 %v2019
      %3014 = vmatprep.subr.mxu0 0.0
      %3015 = vmatpush1.msra.mxu0 %v2018
      %3016 = vmatprep.subr.mxu0 0.0
      %3017 = vmatpush1.msra.mxu0 %v2017
      %3018 = vmatprep.subr.mxu0 0.0
      %3019 = vmatpush1.msra.mxu0 %v2016
      %3020 = vmatprep.subr.mxu0 0.0
      %3021 = vmatpush1.msra.mxu0 %v2015
      %3022 = vmatprep.subr.mxu0 0.0
      %3023 = vmatpush1.msra.mxu0 %v2014
      %3024 = vmatprep.subr.mxu0 0.0
      %3025 = vmatpush1.msra.mxu0 %v2013
      %3026 = vmatprep.subr.mxu0 0.0
      %3027 = vmatpush1.msra.mxu0 %v2012
      %3028 = vmatprep.subr.mxu0 0.0
      %3029 = vmatpush1.msra.mxu0 %v2011
      %3030 = vmatprep.subr.mxu0 0.0
      %3031 = vmatpush1.msra.mxu0 %v2010
      %3032 = vmatprep.subr.mxu0 0.0
      %3033 = vmatpush1.msra.mxu0 %v2009
      %3034 = vmatprep.subr.mxu0 0.0
      %3035 = vmatpush1.msra.mxu0 %v2008
      %3036 = vmatprep.subr.mxu0 0.0
      %3037 = vmatpush1.msra.mxu0 %v2007
      %3038 = vmatprep.subr.mxu0 0.0
      %3039 = vmatpush2.msra.mxu0 0.0
      %3040 = vmatprep.subr.mxu0 0.0
      %3041 = vmatpush2.msra.mxu0 0.0
      %3042 = vmatprep.subr.mxu0 0.0
      %3043 = vmatpush2.msra.mxu0 0.0
      %3044 = vmatprep.subr.mxu0 0.0
      %3045 = vmatpush2.msra.mxu0 0.0
      %3046 = vmatprep.subr.mxu0 0.0
      %3047 = vmatpush2.msra.mxu0 0.0
      %3048 = vmatprep.subr.mxu0 0.0
      %3049 = vmatpush2.msra.mxu0 0.0
      %3050 = vmatprep.subr.mxu0 0.0
      %3051 = vmatpush2.msra.mxu0 0.0
      %3052 = vmatprep.subr.mxu0 0.0
      %3053 = vmatpush2.msra.mxu0 0.0
      %3054 = vmatprep.subr.mxu0 0.0
      %3055 = vmatpush2.msra.mxu0 0.0
      %3056 = vmatprep.subr.mxu0 0.0
      %3057 = vmatpush2.msra.mxu0 0.0
      %3058 = vmatprep.subr.mxu0 0.0
      %3059 = vmatpush2.msra.mxu0 0.0
      %3060 = vmatprep.subr.mxu0 0.0
      %3061 = vmatpush2.msra.mxu0 0.0
      %3062 = vmatprep.subr.mxu0 0.0
      %3063 = vmatpush2.msra.mxu0 0.0
      %3064 = vmatprep.subr.mxu0 0.0
      %3065 = vmatpush2.msra.mxu0 0.0
      %3066 = vmatprep.subr.mxu0 0.0
      %3067 = vmatpush2.msra.mxu0 0.0
      %3068 = vmatprep.subr.mxu0 0.0
      %3069 = vmatpush2.msra.mxu0 0.0
      %3070 = vmatprep.mubr.f32.mxu0 0.0
      %3071 = vmatmul.mubr.f32.gmra.mxu0 %v2974
      %v3072 = vpop.f32.mrf.mxu0
      %v3073 = vadd.f32 0.0, %v3072
      %v3074 = vpop.f32.mrf.mxu0
      %3075 = vmatprep.mubr.f32.mxu0 0.0
      %3076 = vmatmul.mubr.f32.gmra.mxu0 %v2975
      %v3077 = vpop.f32.mrf.mxu0
      %v3078 = vadd.f32 0.0, %v3077
      %v3079 = vpop.f32.mrf.mxu0
      %3080 = vmatprep.mubr.f32.mxu0 0.0
      %3081 = vmatmul.mubr.f32.gmra.mxu0 %v2976
      %v3082 = vpop.f32.mrf.mxu0
      %v3083 = vadd.f32 0.0, %v3082
      %v3084 = vpop.f32.mrf.mxu0
      %3085 = vmatprep.mubr.f32.mxu0 0.0
      %3086 = vmatmul.mubr.f32.gmra.mxu0 %v2977
      %v3087 = vpop.f32.mrf.mxu0
      %v3088 = vadd.f32 0.0, %v3087
      %v3089 = vpop.f32.mrf.mxu0
      %3090 = vmatprep.mubr.f32.mxu0 0.0
      %3091 = vmatmul.mubr.f32.gmra.mxu0 %v2978
      %v3092 = vpop.f32.mrf.mxu0
      %v3093 = vadd.f32 0.0, %v3092
      %v3094 = vpop.f32.mrf.mxu0
      %3095 = vmatprep.mubr.f32.mxu0 0.0
      %3096 = vmatmul.mubr.f32.gmra.mxu0 %v2979
      %v3097 = vpop.f32.mrf.mxu0
      %v3098 = vadd.f32 0.0, %v3097
      %v3099 = vpop.f32.mrf.mxu0
      %3100 = vmatprep.mubr.f32.mxu0 0.0
      %3101 = vmatmul.mubr.f32.gmra.mxu0 %v2980
      %v3102 = vpop.f32.mrf.mxu0
      %v3103 = vadd.f32 0.0, %v3102
      %v3104 = vpop.f32.mrf.mxu0
      %3105 = vmatprep.mubr.f32.mxu0 0.0
      %3106 = vmatmul.mubr.f32.gmra.mxu0 %v2981
      %v3107 = vpop.f32.mrf.mxu0
      %v3108 = vadd.f32 0.0, %v3107
      %v3109 = vpop.f32.mrf.mxu0
      %3110 = vmatprep.mubr.f32.mxu0 0.0
      %3111 = vmatmul.mubr.f32.gmra.mxu0 %v2982
      %v3112 = vpop.f32.mrf.mxu0
      %v3113 = vadd.f32 0.0, %v3112
      %v3114 = vpop.f32.mrf.mxu0
      %3115 = vmatprep.mubr.f32.mxu0 0.0
      %3116 = vmatmul.mubr.f32.gmra.mxu0 %v2983
      %v3117 = vpop.f32.mrf.mxu0
      %v3118 = vadd.f32 0.0, %v3117
      %v3119 = vpop.f32.mrf.mxu0
      %3120 = vmatprep.mubr.f32.mxu0 0.0
      %3121 = vmatmul.mubr.f32.gmra.mxu0 %v2984
      %v3122 = vpop.f32.mrf.mxu0
      %v3123 = vadd.f32 0.0, %v3122
      %v3124 = vpop.f32.mrf.mxu0
      %3125 = vmatprep.mubr.f32.mxu0 0.0
      %3126 = vmatmul.mubr.f32.gmra.mxu0 %v2985
      %v3127 = vpop.f32.mrf.mxu0
      %v3128 = vadd.f32 0.0, %v3127
      %v3129 = vpop.f32.mrf.mxu0
      %3130 = vmatprep.mubr.f32.mxu0 0.0
      %3131 = vmatmul.mubr.f32.gmra.mxu0 %v2986
      %v3132 = vpop.f32.mrf.mxu0
      %v3133 = vadd.f32 0.0, %v3132
      %v3134 = vpop.f32.mrf.mxu0
      %3135 = vmatprep.mubr.f32.mxu0 0.0
      %3136 = vmatmul.mubr.f32.gmra.mxu0 %v2987
      %v3137 = vpop.f32.mrf.mxu0
      %v3138 = vadd.f32 0.0, %v3137
      %v3139 = vpop.f32.mrf.mxu0
      %3140 = vmatprep.mubr.f32.mxu0 0.0
      %3141 = vmatmul.mubr.f32.gmra.mxu0 %v2988
      %v3142 = vpop.f32.mrf.mxu0
      %v3143 = vadd.f32 0.0, %v3142
      %v3144 = vpop.f32.mrf.mxu0
      %3145 = vmatprep.mubr.f32.mxu0 0.0
      %3146 = vmatmul.mubr.f32.gmra.mxu0 %v2989
      %v3147 = vpop.f32.mrf.mxu0
      %v3148 = vadd.f32 0.0, %v3147
      %v3149 = vpop.f32.mrf.mxu0
      %3150 = vmatprep.mubr.f32.mxu0 0.0
      %3151 = vmatmul.mubr.f32.gmra.mxu0 %v2990
      %v3152 = vpop.f32.mrf.mxu0
      %v3153 = vadd.f32 0.0, %v3152
      %v3154 = vpop.f32.mrf.mxu0
      %3155 = vmatprep.mubr.f32.mxu0 0.0
      %3156 = vmatmul.mubr.f32.gmra.mxu0 %v2991
      %v3157 = vpop.f32.mrf.mxu0
      %v3158 = vadd.f32 0.0, %v3157
      %v3159 = vpop.f32.mrf.mxu0
      %3160 = vmatprep.mubr.f32.mxu0 0.0
      %3161 = vmatmul.mubr.f32.gmra.mxu0 %v2992
      %v3162 = vpop.f32.mrf.mxu0
      %v3163 = vadd.f32 0.0, %v3162
      %v3164 = vpop.f32.mrf.mxu0
      %3165 = vmatprep.mubr.f32.mxu0 0.0
      %3166 = vmatmul.mubr.f32.gmra.mxu0 %v2993
      %v3167 = vpop.f32.mrf.mxu0
      %v3168 = vadd.f32 0.0, %v3167
      %v3169 = vpop.f32.mrf.mxu0
      %3170 = vmatprep.mubr.f32.mxu0 0.0
      %3171 = vmatmul.mubr.f32.gmra.mxu0 %v2994
      %v3172 = vpop.f32.mrf.mxu0
      %v3173 = vadd.f32 0.0, %v3172
      %v3174 = vpop.f32.mrf.mxu0
      %3175 = vmatprep.mubr.f32.mxu0 0.0
      %3176 = vmatmul.mubr.f32.gmra.mxu0 %v2995
      %v3177 = vpop.f32.mrf.mxu0
      %v3178 = vadd.f32 0.0, %v3177
      %v3179 = vpop.f32.mrf.mxu0
      %3180 = vmatprep.mubr.f32.mxu0 0.0
      %3181 = vmatmul.mubr.f32.gmra.mxu0 %v2996
      %v3182 = vpop.f32.mrf.mxu0
      %v3183 = vadd.f32 0.0, %v3182
      %v3184 = vpop.f32.mrf.mxu0
      %3185 = vmatprep.mubr.f32.mxu0 0.0
      %3186 = vmatmul.mubr.f32.gmra.mxu0 %v2997
      %v3187 = vpop.f32.mrf.mxu0
      %v3188 = vadd.f32 0.0, %v3187
      %v3189 = vpop.f32.mrf.mxu0
      %3190 = vmatprep.mubr.f32.mxu0 0.0
      %3191 = vmatmul.mubr.f32.gmra.mxu0 %v2998
      %v3192 = vpop.f32.mrf.mxu0
      %v3193 = vadd.f32 0.0, %v3192
      %v3194 = vpop.f32.mrf.mxu0
      %3195 = vmatprep.mubr.f32.mxu0 0.0
      %3196 = vmatmul.mubr.f32.gmra.mxu0 %v2999
      %v3197 = vpop.f32.mrf.mxu0
      %v3198 = vadd.f32 0.0, %v3197
      %v3199 = vpop.f32.mrf.mxu0
      %3200 = vmatprep.mubr.f32.mxu0 0.0
      %3201 = vmatmul.mubr.f32.gmra.mxu0 %v3000
      %v3202 = vpop.f32.mrf.mxu0
      %v3203 = vadd.f32 0.0, %v3202
      %v3204 = vpop.f32.mrf.mxu0
      %3205 = vmatprep.mubr.f32.mxu0 0.0
      %3206 = vmatmul.mubr.f32.gmra.mxu0 %v3001
      %v3207 = vpop.f32.mrf.mxu0
      %v3208 = vadd.f32 0.0, %v3207
      %v3209 = vpop.f32.mrf.mxu0
      %3210 = vmatprep.mubr.f32.mxu0 0.0
      %3211 = vmatmul.mubr.f32.gmra.mxu0 %v3002
      %v3212 = vpop.f32.mrf.mxu0
      %v3213 = vadd.f32 0.0, %v3212
      %v3214 = vpop.f32.mrf.mxu0
      %3215 = vmatprep.mubr.f32.mxu0 0.0
      %3216 = vmatmul.mubr.f32.gmra.mxu0 %v3003
      %v3217 = vpop.f32.mrf.mxu0
      %v3218 = vadd.f32 0.0, %v3217
      %v3219 = vpop.f32.mrf.mxu0
      %3220 = vmatprep.mubr.f32.mxu0 0.0
      %3221 = vmatmul.mubr.f32.gmra.mxu0 %v3004
      %v3222 = vpop.f32.mrf.mxu0
      %v3223 = vadd.f32 0.0, %v3222
      %v3224 = vpop.f32.mrf.mxu0
      %3225 = vmatprep.mubr.f32.mxu0 0.0
      %3226 = vmatmul.mubr.f32.gmra.mxu0 %v3005
      %v3227 = vpop.f32.mrf.mxu0
      %v3228 = vadd.f32 0.0, %v3227
      %v3229 = vpop.f32.mrf.mxu0
      %3230 = vdwg.mxu0
      %v3231 = vadd.f32 %v2335, %v1772
      %v3232 = vadd.f32 %v2337, %v1773
      %v3233 = vadd.f32 %v2339, %v1774
      %v3234 = vadd.f32 %v2341, %v1775
      %v3235 = vadd.f32 %v2343, %v1776
      %v3236 = vadd.f32 %v2345, %v1777
      %v3237 = vadd.f32 %v2347, %v1778
      %v3238 = vadd.f32 %v2349, %v1779
      %v3239 = vadd.f32 %v2351, %v1780
      %v3240 = vadd.f32 %v2353, %v1781
      %v3241 = vadd.f32 %v2355, %v1782
      %v3242 = vadd.f32 %v2357, %v1783
      %v3243 = vadd.f32 %v2359, %v1784
      %v3244 = vadd.f32 %v2361, %v1785
      %v3245 = vadd.f32 %v2363, %v1786
      %v3246 = vadd.f32 %v2365, %v1787
      %v3247 = vadd.f32 %v2367, %v1788
      %v3248 = vadd.f32 %v2369, %v1789
      %v3249 = vadd.f32 %v2371, %v1790
      %v3250 = vadd.f32 %v2373, %v1791
      %v3251 = vadd.f32 %v2375, %v1792
      %v3252 = vadd.f32 %v2377, %v1793
      %v3253 = vadd.f32 %v2379, %v1794
      %v3254 = vadd.f32 %v2381, %v1795
      %v3255 = vadd.f32 %v2383, %v1796
      %v3256 = vadd.f32 %v2385, %v1797
      %v3257 = vadd.f32 %v2387, %v1798
      %v3258 = vadd.f32 %v2389, %v1799
      %v3259 = vadd.f32 %v2391, %v1800
      %v3260 = vadd.f32 %v2393, %v1801
      %v3261 = vadd.f32 %v2395, %v1802
      %v3262 = vadd.f32 %v2397, %v1803
      %v3263 = vsel %vm517, %v3231, 0.0
      %v3264 = vsel %vm518, %v3232, 0.0
      %v3265 = vsel %vm519, %v3233, 0.0
      %v3266 = vsel %vm520, %v3234, 0.0
      %v3267 = vsel %vm521, %v3235, 0.0
      %v3268 = vsel %vm522, %v3236, 0.0
      %v3269 = vsel %vm523, %v3237, 0.0
      %v3270 = vsel %vm524, %v3238, 0.0
      %v3271 = vsel %vm525, %v3239, 0.0
      %v3272 = vsel %vm526, %v3240, 0.0
      %v3273 = vsel %vm527, %v3241, 0.0
      %v3274 = vsel %vm528, %v3242, 0.0
      %v3275 = vsel %vm529, %v3243, 0.0
      %v3276 = vsel %vm530, %v3244, 0.0
      %v3277 = vsel %vm531, %v3245, 0.0
      %v3278 = vsel %vm532, %v3246, 0.0
      %v3279 = vsel %vm533, %v3247, 0.0
      %v3280 = vsel %vm534, %v3248, 0.0
      %v3281 = vsel %vm535, %v3249, 0.0
      %v3282 = vsel %vm536, %v3250, 0.0
      %v3283 = vsel %vm537, %v3251, 0.0
      %v3284 = vsel %vm538, %v3252, 0.0
      %v3285 = vsel %vm539, %v3253, 0.0
      %v3286 = vsel %vm540, %v3254, 0.0
      %v3287 = vsel %vm541, %v3255, 0.0
      %v3288 = vsel %vm542, %v3256, 0.0
      %v3289 = vsel %vm543, %v3257, 0.0
      %v3290 = vsel %vm544, %v3258, 0.0
      %v3291 = vsel %vm545, %v3259, 0.0
      %v3292 = vsel %vm546, %v3260, 0.0
      %v3293 = vsel %vm547, %v3261, 0.0
      %v3294 = vsel %vm548, %v3262, 0.0
      %v3295 = vsel %vm1836, %v3263, 0.0
      %v3296 = vsel %vm1836, %v3264, 0.0
      %v3297 = vadd.f32 %v3295, %v3296
      %v3298 = vsel %vm1836, %v3265, 0.0
      %v3299 = vadd.f32 %v3297, %v3298
      %v3300 = vsel %vm1836, %v3266, 0.0
      %v3301 = vadd.f32 %v3299, %v3300
      %v3302 = vsel %vm1836, %v3267, 0.0
      %v3303 = vadd.f32 %v3301, %v3302
      %v3304 = vsel %vm1836, %v3268, 0.0
      %v3305 = vadd.f32 %v3303, %v3304
      %v3306 = vsel %vm1836, %v3269, 0.0
      %v3307 = vadd.f32 %v3305, %v3306
      %v3308 = vsel %vm1836, %v3270, 0.0
      %v3309 = vadd.f32 %v3307, %v3308
      %v3310 = vsel %vm1836, %v3271, 0.0
      %v3311 = vadd.f32 %v3309, %v3310
      %v3312 = vsel %vm1836, %v3272, 0.0
      %v3313 = vadd.f32 %v3311, %v3312
      %v3314 = vsel %vm1836, %v3273, 0.0
      %v3315 = vadd.f32 %v3313, %v3314
      %v3316 = vsel %vm1836, %v3274, 0.0
      %v3317 = vadd.f32 %v3315, %v3316
      %v3318 = vsel %vm1836, %v3275, 0.0
      %v3319 = vadd.f32 %v3317, %v3318
      %v3320 = vsel %vm1836, %v3276, 0.0
      %v3321 = vadd.f32 %v3319, %v3320
      %v3322 = vsel %vm1836, %v3277, 0.0
      %v3323 = vadd.f32 %v3321, %v3322
      %v3324 = vsel %vm1836, %v3278, 0.0
      %v3325 = vadd.f32 %v3323, %v3324
      %v3326 = vsel %vm1836, %v3279, 0.0
      %v3327 = vadd.f32 %v3325, %v3326
      %v3328 = vsel %vm1836, %v3280, 0.0
      %v3329 = vadd.f32 %v3327, %v3328
      %v3330 = vsel %vm1836, %v3281, 0.0
      %v3331 = vadd.f32 %v3329, %v3330
      %v3332 = vsel %vm1836, %v3282, 0.0
      %v3333 = vadd.f32 %v3331, %v3332
      %v3334 = vsel %vm1836, %v3283, 0.0
      %v3335 = vadd.f32 %v3333, %v3334
      %v3336 = vsel %vm1836, %v3284, 0.0
      %v3337 = vadd.f32 %v3335, %v3336
      %v3338 = vsel %vm1836, %v3285, 0.0
      %v3339 = vadd.f32 %v3337, %v3338
      %v3340 = vsel %vm1836, %v3286, 0.0
      %v3341 = vadd.f32 %v3339, %v3340
      %v3342 = vsel %vm1836, %v3287, 0.0
      %v3343 = vadd.f32 %v3341, %v3342
      %v3344 = vsel %vm1836, %v3288, 0.0
      %v3345 = vadd.f32 %v3343, %v3344
      %v3346 = vsel %vm1836, %v3289, 0.0
      %v3347 = vadd.f32 %v3345, %v3346
      %v3348 = vsel %vm1836, %v3290, 0.0
      %v3349 = vadd.f32 %v3347, %v3348
      %v3350 = vsel %vm1836, %v3291, 0.0
      %v3351 = vadd.f32 %v3349, %v3350
      %v3352 = vsel %vm1836, %v3292, 0.0
      %v3353 = vadd.f32 %v3351, %v3352
      %v3354 = vsel %vm1836, %v3293, 0.0
      %v3355 = vadd.f32 %v3353, %v3354
      %v3356 = vsel %vm1836, %v3294, 0.0
      %v3357 = vadd.f32 %v3355, %v3356
      %3358 = vadd.xlane.f32.xlu0 %v3357
      %v3359 = vpop.xlane.xlu0 %3358
      %v3360 = vrot.slane %v3359, 4
      %v3361 = vadd.f32 %v3359, %v3360
      %v3362 = vrot.slane %v3361, 2
      %v3363 = vadd.f32 %v3361, %v3362
      %v3364 = vrot.slane %v3363, 1
      %v3365 = vadd.f32 %v3363, %v3364
      %s3366 = vtos %v3365
      %v3367 = vstv %s3366
      %3368 = vst [vmem:[%s308 + $0x8] sm:$0xff] %v3073
      %3369 = vst [vmem:[%s308 + $0x28] sm:$0xff] %v3078
      %3370 = vst [vmem:[%s308 + $0x48] sm:$0xff] %v3083
      %3371 = vst [vmem:[%s308 + $0x68] sm:$0xff] %v3088
      %3372 = vst [vmem:[%s308 + $0x88] sm:$0xff] %v3093
      %3373 = vst [vmem:[%s308 + $0xa8] sm:$0xff] %v3098
      %3374 = vst [vmem:[%s308 + $0xc8] sm:$0xff] %v3103
      %3375 = vst [vmem:[%s308 + $0xe8] sm:$0xff] %v3108
      %3376 = vst [vmem:[%s308 + $0x108] sm:$0xff] %v3113
      %3377 = vst [vmem:[%s308 + $0x128] sm:$0xff] %v3118
      %3378 = vst [vmem:[%s308 + $0x148] sm:$0xff] %v3123
      %3379 = vst [vmem:[%s308 + $0x168] sm:$0xff] %v3128
      %3380 = vst [vmem:[%s308 + $0x188] sm:$0xff] %v3133
      %3381 = vst [vmem:[%s308 + $0x1a8] sm:$0xff] %v3138
      %3382 = vst [vmem:[%s308 + $0x1c8] sm:$0xff] %v3143
      %3383 = vst [vmem:[%s308 + $0x1e8] sm:$0xff] %v3148
      %3384 = vst [vmem:[%s308 + $0x208] sm:$0xff] %v3153
      %3385 = vst [vmem:[%s308 + $0x228] sm:$0xff] %v3158
      %3386 = vst [vmem:[%s308 + $0x248] sm:$0xff] %v3163
      %3387 = vst [vmem:[%s308 + $0x268] sm:$0xff] %v3168
      %3388 = vst [vmem:[%s308 + $0x288] sm:$0xff] %v3173
      %3389 = vst [vmem:[%s308 + $0x2a8] sm:$0xff] %v3178
      %3390 = vst [vmem:[%s308 + $0x2c8] sm:$0xff] %v3183
      %3391 = vst [vmem:[%s308 + $0x2e8] sm:$0xff] %v3188
      %3392 = vst [vmem:[%s308 + $0x308] sm:$0xff] %v3193
      %3393 = vst [vmem:[%s308 + $0x328] sm:$0xff] %v3198
      %3394 = vst [vmem:[%s308 + $0x348] sm:$0xff] %v3203
      %3395 = vst [vmem:[%s308 + $0x368] sm:$0xff] %v3208
      %3396 = vst [vmem:[%s308 + $0x388] sm:$0xff] %v3213
      %3397 = vst [vmem:[%s308 + $0x3a8] sm:$0xff] %v3218
      %3398 = vst [vmem:[%s308 + $0x3c8] sm:$0xff] %v3223
      %3399 = vst [vmem:[%s308 + $0x3e8] sm:$0xff] %v3228
      %v3400 = vadd.f32 %v1942, %v3073
      %v3401 = vadd.f32 %v1943, %v3078
      %v3402 = vadd.f32 %v1944, %v3083
      %v3403 = vadd.f32 %v1945, %v3088
      %v3404 = vadd.f32 %v1946, %v3093
      %v3405 = vadd.f32 %v1947, %v3098
      %v3406 = vadd.f32 %v1948, %v3103
      %v3407 = vadd.f32 %v1949, %v3108
      %v3408 = vadd.f32 %v1950, %v3113
      %v3409 = vadd.f32 %v1951, %v3118
      %v3410 = vadd.f32 %v1952, %v3123
      %v3411 = vadd.f32 %v1953, %v3128
      %v3412 = vadd.f32 %v1954, %v3133
      %v3413 = vadd.f32 %v1955, %v3138
      %v3414 = vadd.f32 %v1956, %v3143
      %v3415 = vadd.f32 %v1957, %v3148
      %v3416 = vadd.f32 %v1958, %v3153
      %v3417 = vadd.f32 %v1959, %v3158
      %v3418 = vadd.f32 %v1960, %v3163
      %v3419 = vadd.f32 %v1961, %v3168
      %v3420 = vadd.f32 %v1962, %v3173
      %v3421 = vadd.f32 %v1963, %v3178
      %v3422 = vadd.f32 %v1964, %v3183
      %v3423 = vadd.f32 %v1965, %v3188
      %v3424 = vadd.f32 %v1966, %v3193
      %v3425 = vadd.f32 %v1967, %v3198
      %v3426 = vadd.f32 %v1968, %v3203
      %v3427 = vadd.f32 %v1969, %v3208
      %v3428 = vadd.f32 %v1970, %v3213
      %v3429 = vadd.f32 %v1971, %v3218
      %v3430 = vadd.f32 %v1972, %v3223
      %v3431 = vadd.f32 %v1973, %v3228
      %v3432 = vsub.f32 %v1974, %v3073
      %v3433 = vsub.f32 %v1975, %v3078
      %v3434 = vsub.f32 %v1976, %v3083
      %v3435 = vsub.f32 %v1977, %v3088
      %v3436 = vsub.f32 %v1978, %v3093
      %v3437 = vsub.f32 %v1979, %v3098
      %v3438 = vsub.f32 %v1980, %v3103
      %v3439 = vsub.f32 %v1981, %v3108
      %v3440 = vsub.f32 %v1982, %v3113
      %v3441 = vsub.f32 %v1983, %v3118
      %v3442 = vsub.f32 %v1984, %v3123
      %v3443 = vsub.f32 %v1985, %v3128
      %v3444 = vsub.f32 %v1986, %v3133
      %v3445 = vsub.f32 %v1987, %v3138
      %v3446 = vsub.f32 %v1988, %v3143
      %v3447 = vsub.f32 %v1989, %v3148
      %v3448 = vsub.f32 %v1990, %v3153
      %v3449 = vsub.f32 %v1991, %v3158
      %v3450 = vsub.f32 %v1992, %v3163
      %v3451 = vsub.f32 %v1993, %v3168
      %v3452 = vsub.f32 %v1994, %v3173
      %v3453 = vsub.f32 %v1995, %v3178
      %v3454 = vsub.f32 %v1996, %v3183
      %v3455 = vsub.f32 %v1997, %v3188
      %v3456 = vsub.f32 %v1998, %v3193
      %v3457 = vsub.f32 %v1999, %v3198
      %v3458 = vsub.f32 %v2000, %v3203
      %v3459 = vsub.f32 %v2001, %v3208
      %v3460 = vsub.f32 %v2002, %v3213
      %v3461 = vsub.f32 %v2003, %v3218
      %v3462 = vsub.f32 %v2004, %v3223
      %v3463 = vsub.f32 %v2005, %v3228
      %s3464 = scalar_lea.vmem %s1, 256
      %v3465 = vld [vmem:[%s3464] sm:$0xff]
      %v3466 = vld [vmem:[%s3464 + $0x8] sm:$0xff]
      %v3467 = vld [vmem:[%s3464 + $0x10] sm:$0xff]
      %v3468 = vld [vmem:[%s3464 + $0x18] sm:$0xff]
      %v3469 = vld [vmem:[%s3464 + $0x20] sm:$0xff]
      %v3470 = vld [vmem:[%s3464 + $0x28] sm:$0xff]
      %v3471 = vld [vmem:[%s3464 + $0x30] sm:$0xff]
      %v3472 = vld [vmem:[%s3464 + $0x38] sm:$0xff]
      %v3473 = vld [vmem:[%s3464 + $0x40] sm:$0xff]
      %v3474 = vld [vmem:[%s3464 + $0x48] sm:$0xff]
      %v3475 = vld [vmem:[%s3464 + $0x50] sm:$0xff]
      %v3476 = vld [vmem:[%s3464 + $0x58] sm:$0xff]
      %v3477 = vld [vmem:[%s3464 + $0x60] sm:$0xff]
      %v3478 = vld [vmem:[%s3464 + $0x68] sm:$0xff]
      %v3479 = vld [vmem:[%s3464 + $0x70] sm:$0xff]
      %v3480 = vld [vmem:[%s3464 + $0x78] sm:$0xff]
      %s3481 = scalar_lea.vmem %s2, 128
      %v3482 = vld [vmem:[%s3481] sm:$0xf]
      %v3483 = vld [vmem:[%s3481 + $0x4] sm:$0xf]
      %v3484 = vld [vmem:[%s3481 + $0x8] sm:$0xf]
      %v3485 = vld [vmem:[%s3481 + $0xc] sm:$0xf]
      %v3486 = vld [vmem:[%s3481 + $0x10] sm:$0xf]
      %v3487 = vld [vmem:[%s3481 + $0x14] sm:$0xf]
      %v3488 = vld [vmem:[%s3481 + $0x18] sm:$0xf]
      %v3489 = vld [vmem:[%s3481 + $0x1c] sm:$0xf]
      %v3490 = vld [vmem:[%s3481 + $0x20] sm:$0xf]
      %v3491 = vld [vmem:[%s3481 + $0x24] sm:$0xf]
      %v3492 = vld [vmem:[%s3481 + $0x28] sm:$0xf]
      %v3493 = vld [vmem:[%s3481 + $0x2c] sm:$0xf]
      %v3494 = vld [vmem:[%s3481 + $0x30] sm:$0xf]
      %v3495 = vld [vmem:[%s3481 + $0x34] sm:$0xf]
      %v3496 = vld [vmem:[%s3481 + $0x38] sm:$0xf]
      %v3497 = vld [vmem:[%s3481 + $0x3c] sm:$0xf]
      %v3498 = vld [vmem:[%s3 + $0x2] sm:$0x1]
      %v3499 = vpack.c.bf16 %v3433, %v3432
      %v3500 = vpack.c.bf16 %v3435, %v3434
      %v3501 = vpack.c.bf16 %v3437, %v3436
      %v3502 = vpack.c.bf16 %v3439, %v3438
      %v3503 = vpack.c.bf16 %v3441, %v3440
      %v3504 = vpack.c.bf16 %v3443, %v3442
      %v3505 = vpack.c.bf16 %v3445, %v3444
      %v3506 = vpack.c.bf16 %v3447, %v3446
      %v3507 = vpack.c.bf16 %v3449, %v3448
      %v3508 = vpack.c.bf16 %v3451, %v3450
      %v3509 = vpack.c.bf16 %v3453, %v3452
      %v3510 = vpack.c.bf16 %v3455, %v3454
      %v3511 = vpack.c.bf16 %v3457, %v3456
      %v3512 = vpack.c.bf16 %v3459, %v3458
      %v3513 = vpack.c.bf16 %v3461, %v3460
      %v3514 = vpack.c.bf16 %v3463, %v3462
      %v3531 = vunpack.c.l.b16 %v3482
      %v3532 = vunpack.c.l.b16 %v3483
      %v3533 = vunpack.c.l.b16 %v3484
      %v3534 = vunpack.c.l.b16 %v3485
      %v3535 = vunpack.c.l.b16 %v3486
      %v3536 = vunpack.c.l.b16 %v3487
      %v3537 = vunpack.c.l.b16 %v3488
      %v3538 = vunpack.c.l.b16 %v3489
      %v3539 = vunpack.c.l.b16 %v3490
      %v3540 = vunpack.c.l.b16 %v3491
      %v3541 = vunpack.c.l.b16 %v3492
      %v3542 = vunpack.c.l.b16 %v3493
      %v3543 = vunpack.c.l.b16 %v3494
      %v3544 = vunpack.c.l.b16 %v3495
      %v3545 = vunpack.c.l.b16 %v3496
      %v3546 = vunpack.c.l.b16 %v3497
      %v3547 = vpack.c.b16 %v3532, %v3531
      %v3548 = vpack.c.b16 %v3534, %v3533
      %v3549 = vpack.c.b16 %v3536, %v3535
      %v3550 = vpack.c.b16 %v3538, %v3537
      %v3551 = vpack.c.b16 %v3540, %v3539
      %v3552 = vpack.c.b16 %v3542, %v3541
      %v3553 = vpack.c.b16 %v3544, %v3543
      %v3554 = vpack.c.b16 %v3546, %v3545
      %3563 = vmatprep.subr.bf16.mxu0 0
      %3564 = vmatpush1.bf16.msra.mxu0 %v3554
      %3565 = vmatprep.subr.bf16.mxu0 0
      %3566 = vmatpush1.bf16.msra.mxu0 %v3553
      %3567 = vmatprep.subr.bf16.mxu0 0
      %3568 = vmatpush1.bf16.msra.mxu0 %v3552
      %3569 = vmatprep.subr.bf16.mxu0 0
      %3570 = vmatpush1.bf16.msra.mxu0 %v3551
      %3571 = vmatprep.subr.bf16.mxu0 0
      %3572 = vmatpush1.bf16.msra.mxu0 %v3550
      %3573 = vmatprep.subr.bf16.mxu0 0
      %3574 = vmatpush1.bf16.msra.mxu0 %v3549
      %3575 = vmatprep.subr.bf16.mxu0 0
      %3576 = vmatpush1.bf16.msra.mxu0 %v3548
      %3577 = vmatprep.subr.bf16.mxu0 0
      %3578 = vmatpush1.bf16.msra.mxu0 %v3547
      %3579 = vmatprep.subr.bf16.mxu0 0
      %3580 = vmatpush2.bf16.msra.mxu0 0
      %3581 = vmatprep.subr.bf16.mxu0 0
      %3582 = vmatpush2.bf16.msra.mxu0 0
      %3583 = vmatprep.subr.bf16.mxu0 0
      %3584 = vmatpush2.bf16.msra.mxu0 0
      %3585 = vmatprep.subr.bf16.mxu0 0
      %3586 = vmatpush2.bf16.msra.mxu0 0
      %3587 = vmatprep.subr.bf16.mxu0 0
      %3588 = vmatpush2.bf16.msra.mxu0 0
      %3589 = vmatprep.subr.bf16.mxu0 0
      %3590 = vmatpush2.bf16.msra.mxu0 0
      %3591 = vmatprep.subr.bf16.mxu0 0
      %3592 = vmatpush2.bf16.msra.mxu0 0
      %3593 = vmatprep.subr.bf16.mxu0 0
      %3594 = vmatpush2.bf16.msra.mxu0 0
      %3595 = vmatprep.mubr.bf16.mxu0 0
      %3596 = vmatmul.mubr.bf16.gmra.mxu0 %v3499
      %v3597 = vpop.f32.mrf.mxu0
      %v3598 = vadd.f32 0.0, %v3597
      %v3599 = vpop.f32.mrf.mxu0
      %v3600 = vpop.f32.mrf.mxu0
      %v3601 = vadd.f32 0.0, %v3600
      %v3602 = vpop.f32.mrf.mxu0
      %3603 = vmatprep.mubr.bf16.mxu0 0
      %3604 = vmatmul.mubr.bf16.gmra.mxu0 %v3500
      %v3605 = vpop.f32.mrf.mxu0
      %v3606 = vadd.f32 0.0, %v3605
      %v3607 = vpop.f32.mrf.mxu0
      %v3608 = vpop.f32.mrf.mxu0
      %v3609 = vadd.f32 0.0, %v3608
      %v3610 = vpop.f32.mrf.mxu0
      %3611 = vmatprep.mubr.bf16.mxu0 0
      %3612 = vmatmul.mubr.bf16.gmra.mxu0 %v3501
      %v3613 = vpop.f32.mrf.mxu0
      %v3614 = vadd.f32 0.0, %v3613
      %v3615 = vpop.f32.mrf.mxu0
      %v3616 = vpop.f32.mrf.mxu0
      %v3617 = vadd.f32 0.0, %v3616
      %v3618 = vpop.f32.mrf.mxu0
      %3619 = vmatprep.mubr.bf16.mxu0 0
      %3620 = vmatmul.mubr.bf16.gmra.mxu0 %v3502
      %v3621 = vpop.f32.mrf.mxu0
      %v3622 = vadd.f32 0.0, %v3621
      %v3623 = vpop.f32.mrf.mxu0
      %v3624 = vpop.f32.mrf.mxu0
      %v3625 = vadd.f32 0.0, %v3624
      %v3626 = vpop.f32.mrf.mxu0
      %3627 = vmatprep.mubr.bf16.mxu0 0
      %3628 = vmatmul.mubr.bf16.gmra.mxu0 %v3503
      %v3629 = vpop.f32.mrf.mxu0
      %v3630 = vadd.f32 0.0, %v3629
      %v3631 = vpop.f32.mrf.mxu0
      %v3632 = vpop.f32.mrf.mxu0
      %v3633 = vadd.f32 0.0, %v3632
      %v3634 = vpop.f32.mrf.mxu0
      %3635 = vmatprep.mubr.bf16.mxu0 0
      %3636 = vmatmul.mubr.bf16.gmra.mxu0 %v3504
      %v3637 = vpop.f32.mrf.mxu0
      %v3638 = vadd.f32 0.0, %v3637
      %v3639 = vpop.f32.mrf.mxu0
      %v3640 = vpop.f32.mrf.mxu0
      %v3641 = vadd.f32 0.0, %v3640
      %v3642 = vpop.f32.mrf.mxu0
      %3643 = vmatprep.mubr.bf16.mxu0 0
      %3644 = vmatmul.mubr.bf16.gmra.mxu0 %v3505
      %v3645 = vpop.f32.mrf.mxu0
      %v3646 = vadd.f32 0.0, %v3645
      %v3647 = vpop.f32.mrf.mxu0
      %v3648 = vpop.f32.mrf.mxu0
      %v3649 = vadd.f32 0.0, %v3648
      %v3650 = vpop.f32.mrf.mxu0
      %3651 = vmatprep.mubr.bf16.mxu0 0
      %3652 = vmatmul.mubr.bf16.gmra.mxu0 %v3506
      %v3653 = vpop.f32.mrf.mxu0
      %v3654 = vadd.f32 0.0, %v3653
      %v3655 = vpop.f32.mrf.mxu0
      %v3656 = vpop.f32.mrf.mxu0
      %v3657 = vadd.f32 0.0, %v3656
      %v3658 = vpop.f32.mrf.mxu0
      %3659 = vmatprep.mubr.bf16.mxu0 0
      %3660 = vmatmul.mubr.bf16.gmra.mxu0 %v3507
      %v3661 = vpop.f32.mrf.mxu0
      %v3662 = vadd.f32 0.0, %v3661
      %v3663 = vpop.f32.mrf.mxu0
      %v3664 = vpop.f32.mrf.mxu0
      %v3665 = vadd.f32 0.0, %v3664
      %v3666 = vpop.f32.mrf.mxu0
      %3667 = vmatprep.mubr.bf16.mxu0 0
      %3668 = vmatmul.mubr.bf16.gmra.mxu0 %v3508
      %v3669 = vpop.f32.mrf.mxu0
      %v3670 = vadd.f32 0.0, %v3669
      %v3671 = vpop.f32.mrf.mxu0
      %v3672 = vpop.f32.mrf.mxu0
      %v3673 = vadd.f32 0.0, %v3672
      %v3674 = vpop.f32.mrf.mxu0
      %3675 = vmatprep.mubr.bf16.mxu0 0
      %3676 = vmatmul.mubr.bf16.gmra.mxu0 %v3509
      %v3677 = vpop.f32.mrf.mxu0
      %v3678 = vadd.f32 0.0, %v3677
      %v3679 = vpop.f32.mrf.mxu0
      %v3680 = vpop.f32.mrf.mxu0
      %v3681 = vadd.f32 0.0, %v3680
      %v3682 = vpop.f32.mrf.mxu0
      %3683 = vmatprep.mubr.bf16.mxu0 0
      %3684 = vmatmul.mubr.bf16.gmra.mxu0 %v3510
      %v3685 = vpop.f32.mrf.mxu0
      %v3686 = vadd.f32 0.0, %v3685
      %v3687 = vpop.f32.mrf.mxu0
      %v3688 = vpop.f32.mrf.mxu0
      %v3689 = vadd.f32 0.0, %v3688
      %v3690 = vpop.f32.mrf.mxu0
      %3691 = vmatprep.mubr.bf16.mxu0 0
      %3692 = vmatmul.mubr.bf16.gmra.mxu0 %v3511
      %v3693 = vpop.f32.mrf.mxu0
      %v3694 = vadd.f32 0.0, %v3693
      %v3695 = vpop.f32.mrf.mxu0
      %v3696 = vpop.f32.mrf.mxu0
      %v3697 = vadd.f32 0.0, %v3696
      %v3698 = vpop.f32.mrf.mxu0
      %3699 = vmatprep.mubr.bf16.mxu0 0
      %3700 = vmatmul.mubr.bf16.gmra.mxu0 %v3512
      %v3701 = vpop.f32.mrf.mxu0
      %v3702 = vadd.f32 0.0, %v3701
      %v3703 = vpop.f32.mrf.mxu0
      %v3704 = vpop.f32.mrf.mxu0
      %v3705 = vadd.f32 0.0, %v3704
      %v3706 = vpop.f32.mrf.mxu0
      %3707 = vmatprep.mubr.bf16.mxu0 0
      %3708 = vmatmul.mubr.bf16.gmra.mxu0 %v3513
      %v3709 = vpop.f32.mrf.mxu0
      %v3710 = vadd.f32 0.0, %v3709
      %v3711 = vpop.f32.mrf.mxu0
      %v3712 = vpop.f32.mrf.mxu0
      %v3713 = vadd.f32 0.0, %v3712
      %v3714 = vpop.f32.mrf.mxu0
      %3715 = vmatprep.mubr.bf16.mxu0 0
      %3716 = vmatmul.mubr.bf16.gmra.mxu0 %v3514
      %v3717 = vpop.f32.mrf.mxu0
      %v3718 = vadd.f32 0.0, %v3717
      %v3719 = vpop.f32.mrf.mxu0
      %v3720 = vpop.f32.mrf.mxu0
      %v3721 = vadd.f32 0.0, %v3720
      %v3722 = vpop.f32.mrf.mxu0
      %3723 = vdwg.mxu0
      %v3724 = vmul.f32 %v3598, 2.0
      %v3725 = vmul.f32 %v3601, 2.0
      %v3726 = vmul.f32 %v3606, 2.0
      %v3727 = vmul.f32 %v3609, 2.0
      %v3728 = vmul.f32 %v3614, 2.0
      %v3729 = vmul.f32 %v3617, 2.0
      %v3730 = vmul.f32 %v3622, 2.0
      %v3731 = vmul.f32 %v3625, 2.0
      %v3732 = vmul.f32 %v3630, 2.0
      %v3733 = vmul.f32 %v3633, 2.0
      %v3734 = vmul.f32 %v3638, 2.0
      %v3735 = vmul.f32 %v3641, 2.0
      %v3736 = vmul.f32 %v3646, 2.0
      %v3737 = vmul.f32 %v3649, 2.0
      %v3738 = vmul.f32 %v3654, 2.0
      %v3739 = vmul.f32 %v3657, 2.0
      %v3740 = vmul.f32 %v3662, 2.0
      %v3741 = vmul.f32 %v3665, 2.0
      %v3742 = vmul.f32 %v3670, 2.0
      %v3743 = vmul.f32 %v3673, 2.0
      %v3744 = vmul.f32 %v3678, 2.0
      %v3745 = vmul.f32 %v3681, 2.0
      %v3746 = vmul.f32 %v3686, 2.0
      %v3747 = vmul.f32 %v3689, 2.0
      %v3748 = vmul.f32 %v3694, 2.0
      %v3749 = vmul.f32 %v3697, 2.0
      %v3750 = vmul.f32 %v3702, 2.0
      %v3751 = vmul.f32 %v3705, 2.0
      %v3752 = vmul.f32 %v3710, 2.0
      %v3753 = vmul.f32 %v3713, 2.0
      %v3754 = vmul.f32 %v3718, 2.0
      %v3755 = vmul.f32 %v3721, 2.0
      %v3756 = vlaneseq
      %v3757 = vshrl.u32 %v3756, 7
      %v3758 = vsub.s32 0, %v3757
      %v3759 = vrot.slane %v3498, %v3758
      %v3760 = vsub.f32 %v3759, %v3724
      %v3761 = vsub.f32 %v3759, %v3725
      %v3762 = vsub.f32 %v3759, %v3726
      %v3763 = vsub.f32 %v3759, %v3727
      %v3764 = vsub.f32 %v3759, %v3728
      %v3765 = vsub.f32 %v3759, %v3729
      %v3766 = vsub.f32 %v3759, %v3730
      %v3767 = vsub.f32 %v3759, %v3731
      %v3768 = vsub.f32 %v3759, %v3732
      %v3769 = vsub.f32 %v3759, %v3733
      %v3770 = vsub.f32 %v3759, %v3734
      %v3771 = vsub.f32 %v3759, %v3735
      %v3772 = vsub.f32 %v3759, %v3736
      %v3773 = vsub.f32 %v3759, %v3737
      %v3774 = vsub.f32 %v3759, %v3738
      %v3775 = vsub.f32 %v3759, %v3739
      %v3776 = vsub.f32 %v3759, %v3740
      %v3777 = vsub.f32 %v3759, %v3741
      %v3778 = vsub.f32 %v3759, %v3742
      %v3779 = vsub.f32 %v3759, %v3743
      %v3780 = vsub.f32 %v3759, %v3744
      %v3781 = vsub.f32 %v3759, %v3745
      %v3782 = vsub.f32 %v3759, %v3746
      %v3783 = vsub.f32 %v3759, %v3747
      %v3784 = vsub.f32 %v3759, %v3748
      %v3785 = vsub.f32 %v3759, %v3749
      %v3786 = vsub.f32 %v3759, %v3750
      %v3787 = vsub.f32 %v3759, %v3751
      %v3788 = vsub.f32 %v3759, %v3752
      %v3789 = vsub.f32 %v3759, %v3753
      %v3790 = vsub.f32 %v3759, %v3754
      %v3791 = vsub.f32 %v3759, %v3755
      %3792 = vmin.xlane.f32.xlu0 %v3760
      %v3793 = vpop.xlane.xlu0 %3792
      %3794 = vmin.xlane.f32.xlu0 %v3761
      %v3795 = vpop.xlane.xlu0 %3794
      %3796 = vmin.xlane.f32.xlu0 %v3762
      %v3797 = vpop.xlane.xlu0 %3796
      %3798 = vmin.xlane.f32.xlu0 %v3763
      %v3799 = vpop.xlane.xlu0 %3798
      %3800 = vmin.xlane.f32.xlu0 %v3764
      %v3801 = vpop.xlane.xlu0 %3800
      %3802 = vmin.xlane.f32.xlu0 %v3765
      %v3803 = vpop.xlane.xlu0 %3802
      %3804 = vmin.xlane.f32.xlu0 %v3766
      %v3805 = vpop.xlane.xlu0 %3804
      %3806 = vmin.xlane.f32.xlu0 %v3767
      %v3807 = vpop.xlane.xlu0 %3806
      %3808 = vmin.xlane.f32.xlu0 %v3768
      %v3809 = vpop.xlane.xlu0 %3808
      %3810 = vmin.xlane.f32.xlu0 %v3769
      %v3811 = vpop.xlane.xlu0 %3810
      %3812 = vmin.xlane.f32.xlu0 %v3770
      %v3813 = vpop.xlane.xlu0 %3812
      %3814 = vmin.xlane.f32.xlu0 %v3771
      %v3815 = vpop.xlane.xlu0 %3814
      %3816 = vmin.xlane.f32.xlu0 %v3772
      %v3817 = vpop.xlane.xlu0 %3816
      %3818 = vmin.xlane.f32.xlu0 %v3773
      %v3819 = vpop.xlane.xlu0 %3818
      %3820 = vmin.xlane.f32.xlu0 %v3774
      %v3821 = vpop.xlane.xlu0 %3820
      %3822 = vmin.xlane.f32.xlu0 %v3775
      %v3823 = vpop.xlane.xlu0 %3822
      %3824 = vmin.xlane.f32.xlu0 %v3776
      %v3825 = vpop.xlane.xlu0 %3824
      %3826 = vmin.xlane.f32.xlu0 %v3777
      %v3827 = vpop.xlane.xlu0 %3826
      %3828 = vmin.xlane.f32.xlu0 %v3778
      %v3829 = vpop.xlane.xlu0 %3828
      %3830 = vmin.xlane.f32.xlu0 %v3779
      %v3831 = vpop.xlane.xlu0 %3830
      %3832 = vmin.xlane.f32.xlu0 %v3780
      %v3833 = vpop.xlane.xlu0 %3832
      %3834 = vmin.xlane.f32.xlu0 %v3781
      %v3835 = vpop.xlane.xlu0 %3834
      %3836 = vmin.xlane.f32.xlu0 %v3782
      %v3837 = vpop.xlane.xlu0 %3836
      %3838 = vmin.xlane.f32.xlu0 %v3783
      %v3839 = vpop.xlane.xlu0 %3838
      %3840 = vmin.xlane.f32.xlu0 %v3784
      %v3841 = vpop.xlane.xlu0 %3840
      %3842 = vmin.xlane.f32.xlu0 %v3785
      %v3843 = vpop.xlane.xlu0 %3842
      %3844 = vmin.xlane.f32.xlu0 %v3786
      %v3845 = vpop.xlane.xlu0 %3844
      %3846 = vmin.xlane.f32.xlu0 %v3787
      %v3847 = vpop.xlane.xlu0 %3846
      %3848 = vmin.xlane.f32.xlu0 %v3788
      %v3849 = vpop.xlane.xlu0 %3848
      %3850 = vmin.xlane.f32.xlu0 %v3789
      %v3851 = vpop.xlane.xlu0 %3850
      %3852 = vmin.xlane.f32.xlu0 %v3790
      %v3853 = vpop.xlane.xlu0 %3852
      %3854 = vmin.xlane.f32.xlu0 %v3791
      %v3855 = vpop.xlane.xlu0 %3854
      %vm3856 = vcmp.eq.f32.partialorder %v3760, %v3793
      %vm3857 = vcmp.eq.f32.partialorder %v3761, %v3795
      %vm3858 = vcmp.eq.f32.partialorder %v3762, %v3797
      %vm3859 = vcmp.eq.f32.partialorder %v3763, %v3799
      %vm3860 = vcmp.eq.f32.partialorder %v3764, %v3801
      %vm3861 = vcmp.eq.f32.partialorder %v3765, %v3803
      %vm3862 = vcmp.eq.f32.partialorder %v3766, %v3805
      %vm3863 = vcmp.eq.f32.partialorder %v3767, %v3807
      %vm3864 = vcmp.eq.f32.partialorder %v3768, %v3809
      %vm3865 = vcmp.eq.f32.partialorder %v3769, %v3811
      %vm3866 = vcmp.eq.f32.partialorder %v3770, %v3813
      %vm3867 = vcmp.eq.f32.partialorder %v3771, %v3815
      %vm3868 = vcmp.eq.f32.partialorder %v3772, %v3817
      %vm3869 = vcmp.eq.f32.partialorder %v3773, %v3819
      %vm3870 = vcmp.eq.f32.partialorder %v3774, %v3821
      %vm3871 = vcmp.eq.f32.partialorder %v3775, %v3823
      %vm3872 = vcmp.eq.f32.partialorder %v3776, %v3825
      %vm3873 = vcmp.eq.f32.partialorder %v3777, %v3827
      %vm3874 = vcmp.eq.f32.partialorder %v3778, %v3829
      %vm3875 = vcmp.eq.f32.partialorder %v3779, %v3831
      %vm3876 = vcmp.eq.f32.partialorder %v3780, %v3833
      %vm3877 = vcmp.eq.f32.partialorder %v3781, %v3835
      %vm3878 = vcmp.eq.f32.partialorder %v3782, %v3837
      %vm3879 = vcmp.eq.f32.partialorder %v3783, %v3839
      %vm3880 = vcmp.eq.f32.partialorder %v3784, %v3841
      %vm3881 = vcmp.eq.f32.partialorder %v3785, %v3843
      %vm3882 = vcmp.eq.f32.partialorder %v3786, %v3845
      %vm3883 = vcmp.eq.f32.partialorder %v3787, %v3847
      %vm3884 = vcmp.eq.f32.partialorder %v3788, %v3849
      %vm3885 = vcmp.eq.f32.partialorder %v3789, %v3851
      %vm3886 = vcmp.eq.f32.partialorder %v3790, %v3853
      %vm3887 = vcmp.eq.f32.partialorder %v3791, %v3855
      %v3888 = vsel %vm3856, %v449, 128
      %v3889 = vsel %vm3857, %v449, 128
      %v3890 = vsel %vm3858, %v449, 128
      %v3891 = vsel %vm3859, %v449, 128
      %v3892 = vsel %vm3860, %v449, 128
      %v3893 = vsel %vm3861, %v449, 128
      %v3894 = vsel %vm3862, %v449, 128
      %v3895 = vsel %vm3863, %v449, 128
      %v3896 = vsel %vm3864, %v449, 128
      %v3897 = vsel %vm3865, %v449, 128
      %v3898 = vsel %vm3866, %v449, 128
      %v3899 = vsel %vm3867, %v449, 128
      %v3900 = vsel %vm3868, %v449, 128
      %v3901 = vsel %vm3869, %v449, 128
      %v3902 = vsel %vm3870, %v449, 128
      %v3903 = vsel %vm3871, %v449, 128
      %v3904 = vsel %vm3872, %v449, 128
      %v3905 = vsel %vm3873, %v449, 128
      %v3906 = vsel %vm3874, %v449, 128
      %v3907 = vsel %vm3875, %v449, 128
      %v3908 = vsel %vm3876, %v449, 128
      %v3909 = vsel %vm3877, %v449, 128
      %v3910 = vsel %vm3878, %v449, 128
      %v3911 = vsel %vm3879, %v449, 128
      %v3912 = vsel %vm3880, %v449, 128
      %v3913 = vsel %vm3881, %v449, 128
      %v3914 = vsel %vm3882, %v449, 128
      %v3915 = vsel %vm3883, %v449, 128
      %v3916 = vsel %vm3884, %v449, 128
      %v3917 = vsel %vm3885, %v449, 128
      %v3918 = vsel %vm3886, %v449, 128
      %v3919 = vsel %vm3887, %v449, 128
      %v3920 = vand.u32 %v3888, 65535
      %v3921 = vshra.s32 %v3888, 16
      %v3922 = vcvt.s32.f32 %v3920
      %v3923 = vcvt.s32.f32 %v3921
      %3924 = vmin.xlane.f32.xlu0 %v3923
      %v3925 = vpop.xlane.xlu0 %3924
      %vm3926 = vcmp.eq.f32.partialorder %v3923, %v3925
      %v3927 = vsel %vm3926, %v3922, inf
      %3928 = vmin.xlane.f32.xlu0 %v3927
      %v3929 = vpop.xlane.xlu0 %3928
      %v3930 = vcvt.f32.s32 %v3929
      %v3931 = vcvt.f32.s32 %v3925
      %v3932 = vshll.u32 %v3931, 16
      %v3933 = vadd.s32 %v3932, %v3930
      %v3934 = vand.u32 %v3889, 65535
      %v3935 = vshra.s32 %v3889, 16
      %v3936 = vcvt.s32.f32 %v3934
      %v3937 = vcvt.s32.f32 %v3935
      %3938 = vmin.xlane.f32.xlu0 %v3937
      %v3939 = vpop.xlane.xlu0 %3938
      %vm3940 = vcmp.eq.f32.partialorder %v3937, %v3939
      %v3941 = vsel %vm3940, %v3936, inf
      %3942 = vmin.xlane.f32.xlu0 %v3941
      %v3943 = vpop.xlane.xlu0 %3942
      %v3944 = vcvt.f32.s32 %v3943
      %v3945 = vcvt.f32.s32 %v3939
      %v3946 = vshll.u32 %v3945, 16
      %v3947 = vadd.s32 %v3946, %v3944
      %v3948 = vand.u32 %v3890, 65535
      %v3949 = vshra.s32 %v3890, 16
      %v3950 = vcvt.s32.f32 %v3948
      %v3951 = vcvt.s32.f32 %v3949
      %3952 = vmin.xlane.f32.xlu0 %v3951
      %v3953 = vpop.xlane.xlu0 %3952
      %vm3954 = vcmp.eq.f32.partialorder %v3951, %v3953
      %v3955 = vsel %vm3954, %v3950, inf
      %3956 = vmin.xlane.f32.xlu0 %v3955
      %v3957 = vpop.xlane.xlu0 %3956
      %v3958 = vcvt.f32.s32 %v3957
      %v3959 = vcvt.f32.s32 %v3953
      %v3960 = vshll.u32 %v3959, 16
      %v3961 = vadd.s32 %v3960, %v3958
      %v3962 = vand.u32 %v3891, 65535
      %v3963 = vshra.s32 %v3891, 16
      %v3964 = vcvt.s32.f32 %v3962
      %v3965 = vcvt.s32.f32 %v3963
      %3966 = vmin.xlane.f32.xlu0 %v3965
      %v3967 = vpop.xlane.xlu0 %3966
      %vm3968 = vcmp.eq.f32.partialorder %v3965, %v3967
      %v3969 = vsel %vm3968, %v3964, inf
      %3970 = vmin.xlane.f32.xlu0 %v3969
      %v3971 = vpop.xlane.xlu0 %3970
      %v3972 = vcvt.f32.s32 %v3971
      %v3973 = vcvt.f32.s32 %v3967
      %v3974 = vshll.u32 %v3973, 16
      %v3975 = vadd.s32 %v3974, %v3972
      %v3976 = vand.u32 %v3892, 65535
      %v3977 = vshra.s32 %v3892, 16
      %v3978 = vcvt.s32.f32 %v3976
      %v3979 = vcvt.s32.f32 %v3977
      %3980 = vmin.xlane.f32.xlu0 %v3979
      %v3981 = vpop.xlane.xlu0 %3980
      %vm3982 = vcmp.eq.f32.partialorder %v3979, %v3981
      %v3983 = vsel %vm3982, %v3978, inf
      %3984 = vmin.xlane.f32.xlu0 %v3983
      %v3985 = vpop.xlane.xlu0 %3984
      %v3986 = vcvt.f32.s32 %v3985
      %v3987 = vcvt.f32.s32 %v3981
      %v3988 = vshll.u32 %v3987, 16
      %v3989 = vadd.s32 %v3988, %v3986
      %v3990 = vand.u32 %v3893, 65535
      %v3991 = vshra.s32 %v3893, 16
      %v3992 = vcvt.s32.f32 %v3990
      %v3993 = vcvt.s32.f32 %v3991
      %3994 = vmin.xlane.f32.xlu0 %v3993
      %v3995 = vpop.xlane.xlu0 %3994
      %vm3996 = vcmp.eq.f32.partialorder %v3993, %v3995
      %v3997 = vsel %vm3996, %v3992, inf
      %3998 = vmin.xlane.f32.xlu0 %v3997
      %v3999 = vpop.xlane.xlu0 %3998
      %v4000 = vcvt.f32.s32 %v3999
      %v4001 = vcvt.f32.s32 %v3995
      %v4002 = vshll.u32 %v4001, 16
      %v4003 = vadd.s32 %v4002, %v4000
      %v4004 = vand.u32 %v3894, 65535
      %v4005 = vshra.s32 %v3894, 16
      %v4006 = vcvt.s32.f32 %v4004
      %v4007 = vcvt.s32.f32 %v4005
      %4008 = vmin.xlane.f32.xlu0 %v4007
      %v4009 = vpop.xlane.xlu0 %4008
      %vm4010 = vcmp.eq.f32.partialorder %v4007, %v4009
      %v4011 = vsel %vm4010, %v4006, inf
      %4012 = vmin.xlane.f32.xlu0 %v4011
      %v4013 = vpop.xlane.xlu0 %4012
      %v4014 = vcvt.f32.s32 %v4013
      %v4015 = vcvt.f32.s32 %v4009
      %v4016 = vshll.u32 %v4015, 16
      %v4017 = vadd.s32 %v4016, %v4014
      %v4018 = vand.u32 %v3895, 65535
      %v4019 = vshra.s32 %v3895, 16
      %v4020 = vcvt.s32.f32 %v4018
      %v4021 = vcvt.s32.f32 %v4019
      %4022 = vmin.xlane.f32.xlu0 %v4021
      %v4023 = vpop.xlane.xlu0 %4022
      %vm4024 = vcmp.eq.f32.partialorder %v4021, %v4023
      %v4025 = vsel %vm4024, %v4020, inf
      %4026 = vmin.xlane.f32.xlu0 %v4025
      %v4027 = vpop.xlane.xlu0 %4026
      %v4028 = vcvt.f32.s32 %v4027
      %v4029 = vcvt.f32.s32 %v4023
      %v4030 = vshll.u32 %v4029, 16
      %v4031 = vadd.s32 %v4030, %v4028
      %v4032 = vand.u32 %v3896, 65535
      %v4033 = vshra.s32 %v3896, 16
      %v4034 = vcvt.s32.f32 %v4032
      %v4035 = vcvt.s32.f32 %v4033
      %4036 = vmin.xlane.f32.xlu0 %v4035
      %v4037 = vpop.xlane.xlu0 %4036
      %vm4038 = vcmp.eq.f32.partialorder %v4035, %v4037
      %v4039 = vsel %vm4038, %v4034, inf
      %4040 = vmin.xlane.f32.xlu0 %v4039
      %v4041 = vpop.xlane.xlu0 %4040
      %v4042 = vcvt.f32.s32 %v4041
      %v4043 = vcvt.f32.s32 %v4037
      %v4044 = vshll.u32 %v4043, 16
      %v4045 = vadd.s32 %v4044, %v4042
      %v4046 = vand.u32 %v3897, 65535
      %v4047 = vshra.s32 %v3897, 16
      %v4048 = vcvt.s32.f32 %v4046
      %v4049 = vcvt.s32.f32 %v4047
      %4050 = vmin.xlane.f32.xlu0 %v4049
      %v4051 = vpop.xlane.xlu0 %4050
      %vm4052 = vcmp.eq.f32.partialorder %v4049, %v4051
      %v4053 = vsel %vm4052, %v4048, inf
      %4054 = vmin.xlane.f32.xlu0 %v4053
      %v4055 = vpop.xlane.xlu0 %4054
      %v4056 = vcvt.f32.s32 %v4055
      %v4057 = vcvt.f32.s32 %v4051
      %v4058 = vshll.u32 %v4057, 16
      %v4059 = vadd.s32 %v4058, %v4056
      %v4060 = vand.u32 %v3898, 65535
      %v4061 = vshra.s32 %v3898, 16
      %v4062 = vcvt.s32.f32 %v4060
      %v4063 = vcvt.s32.f32 %v4061
      %4064 = vmin.xlane.f32.xlu0 %v4063
      %v4065 = vpop.xlane.xlu0 %4064
      %vm4066 = vcmp.eq.f32.partialorder %v4063, %v4065
      %v4067 = vsel %vm4066, %v4062, inf
      %4068 = vmin.xlane.f32.xlu0 %v4067
      %v4069 = vpop.xlane.xlu0 %4068
      %v4070 = vcvt.f32.s32 %v4069
      %v4071 = vcvt.f32.s32 %v4065
      %v4072 = vshll.u32 %v4071, 16
      %v4073 = vadd.s32 %v4072, %v4070
      %v4074 = vand.u32 %v3899, 65535
      %v4075 = vshra.s32 %v3899, 16
      %v4076 = vcvt.s32.f32 %v4074
      %v4077 = vcvt.s32.f32 %v4075
      %4078 = vmin.xlane.f32.xlu0 %v4077
      %v4079 = vpop.xlane.xlu0 %4078
      %vm4080 = vcmp.eq.f32.partialorder %v4077, %v4079
      %v4081 = vsel %vm4080, %v4076, inf
      %4082 = vmin.xlane.f32.xlu0 %v4081
      %v4083 = vpop.xlane.xlu0 %4082
      %v4084 = vcvt.f32.s32 %v4083
      %v4085 = vcvt.f32.s32 %v4079
      %v4086 = vshll.u32 %v4085, 16
      %v4087 = vadd.s32 %v4086, %v4084
      %v4088 = vand.u32 %v3900, 65535
      %v4089 = vshra.s32 %v3900, 16
      %v4090 = vcvt.s32.f32 %v4088
      %v4091 = vcvt.s32.f32 %v4089
      %4092 = vmin.xlane.f32.xlu0 %v4091
      %v4093 = vpop.xlane.xlu0 %4092
      %vm4094 = vcmp.eq.f32.partialorder %v4091, %v4093
      %v4095 = vsel %vm4094, %v4090, inf
      %4096 = vmin.xlane.f32.xlu0 %v4095
      %v4097 = vpop.xlane.xlu0 %4096
      %v4098 = vcvt.f32.s32 %v4097
      %v4099 = vcvt.f32.s32 %v4093
      %v4100 = vshll.u32 %v4099, 16
      %v4101 = vadd.s32 %v4100, %v4098
      %v4102 = vand.u32 %v3901, 65535
      %v4103 = vshra.s32 %v3901, 16
      %v4104 = vcvt.s32.f32 %v4102
      %v4105 = vcvt.s32.f32 %v4103
      %4106 = vmin.xlane.f32.xlu0 %v4105
      %v4107 = vpop.xlane.xlu0 %4106
      %vm4108 = vcmp.eq.f32.partialorder %v4105, %v4107
      %v4109 = vsel %vm4108, %v4104, inf
      %4110 = vmin.xlane.f32.xlu0 %v4109
      %v4111 = vpop.xlane.xlu0 %4110
      %v4112 = vcvt.f32.s32 %v4111
      %v4113 = vcvt.f32.s32 %v4107
      %v4114 = vshll.u32 %v4113, 16
      %v4115 = vadd.s32 %v4114, %v4112
      %v4116 = vand.u32 %v3902, 65535
      %v4117 = vshra.s32 %v3902, 16
      %v4118 = vcvt.s32.f32 %v4116
      %v4119 = vcvt.s32.f32 %v4117
      %4120 = vmin.xlane.f32.xlu0 %v4119
      %v4121 = vpop.xlane.xlu0 %4120
      %vm4122 = vcmp.eq.f32.partialorder %v4119, %v4121
      %v4123 = vsel %vm4122, %v4118, inf
      %4124 = vmin.xlane.f32.xlu0 %v4123
      %v4125 = vpop.xlane.xlu0 %4124
      %v4126 = vcvt.f32.s32 %v4125
      %v4127 = vcvt.f32.s32 %v4121
      %v4128 = vshll.u32 %v4127, 16
      %v4129 = vadd.s32 %v4128, %v4126
      %v4130 = vand.u32 %v3903, 65535
      %v4131 = vshra.s32 %v3903, 16
      %v4132 = vcvt.s32.f32 %v4130
      %v4133 = vcvt.s32.f32 %v4131
      %4134 = vmin.xlane.f32.xlu0 %v4133
      %v4135 = vpop.xlane.xlu0 %4134
      %vm4136 = vcmp.eq.f32.partialorder %v4133, %v4135
      %v4137 = vsel %vm4136, %v4132, inf
      %4138 = vmin.xlane.f32.xlu0 %v4137
      %v4139 = vpop.xlane.xlu0 %4138
      %v4140 = vcvt.f32.s32 %v4139
      %v4141 = vcvt.f32.s32 %v4135
      %v4142 = vshll.u32 %v4141, 16
      %v4143 = vadd.s32 %v4142, %v4140
      %v4144 = vand.u32 %v3904, 65535
      %v4145 = vshra.s32 %v3904, 16
      %v4146 = vcvt.s32.f32 %v4144
      %v4147 = vcvt.s32.f32 %v4145
      %4148 = vmin.xlane.f32.xlu0 %v4147
      %v4149 = vpop.xlane.xlu0 %4148
      %vm4150 = vcmp.eq.f32.partialorder %v4147, %v4149
      %v4151 = vsel %vm4150, %v4146, inf
      %4152 = vmin.xlane.f32.xlu0 %v4151
      %v4153 = vpop.xlane.xlu0 %4152
      %v4154 = vcvt.f32.s32 %v4153
      %v4155 = vcvt.f32.s32 %v4149
      %v4156 = vshll.u32 %v4155, 16
      %v4157 = vadd.s32 %v4156, %v4154
      %v4158 = vand.u32 %v3905, 65535
      %v4159 = vshra.s32 %v3905, 16
      %v4160 = vcvt.s32.f32 %v4158
      %v4161 = vcvt.s32.f32 %v4159
      %4162 = vmin.xlane.f32.xlu0 %v4161
      %v4163 = vpop.xlane.xlu0 %4162
      %vm4164 = vcmp.eq.f32.partialorder %v4161, %v4163
      %v4165 = vsel %vm4164, %v4160, inf
      %4166 = vmin.xlane.f32.xlu0 %v4165
      %v4167 = vpop.xlane.xlu0 %4166
      %v4168 = vcvt.f32.s32 %v4167
      %v4169 = vcvt.f32.s32 %v4163
      %v4170 = vshll.u32 %v4169, 16
      %v4171 = vadd.s32 %v4170, %v4168
      %v4172 = vand.u32 %v3906, 65535
      %v4173 = vshra.s32 %v3906, 16
      %v4174 = vcvt.s32.f32 %v4172
      %v4175 = vcvt.s32.f32 %v4173
      %4176 = vmin.xlane.f32.xlu0 %v4175
      %v4177 = vpop.xlane.xlu0 %4176
      %vm4178 = vcmp.eq.f32.partialorder %v4175, %v4177
      %v4179 = vsel %vm4178, %v4174, inf
      %4180 = vmin.xlane.f32.xlu0 %v4179
      %v4181 = vpop.xlane.xlu0 %4180
      %v4182 = vcvt.f32.s32 %v4181
      %v4183 = vcvt.f32.s32 %v4177
      %v4184 = vshll.u32 %v4183, 16
      %v4185 = vadd.s32 %v4184, %v4182
      %v4186 = vand.u32 %v3907, 65535
      %v4187 = vshra.s32 %v3907, 16
      %v4188 = vcvt.s32.f32 %v4186
      %v4189 = vcvt.s32.f32 %v4187
      %4190 = vmin.xlane.f32.xlu0 %v4189
      %v4191 = vpop.xlane.xlu0 %4190
      %vm4192 = vcmp.eq.f32.partialorder %v4189, %v4191
      %v4193 = vsel %vm4192, %v4188, inf
      %4194 = vmin.xlane.f32.xlu0 %v4193
      %v4195 = vpop.xlane.xlu0 %4194
      %v4196 = vcvt.f32.s32 %v4195
      %v4197 = vcvt.f32.s32 %v4191
      %v4198 = vshll.u32 %v4197, 16
      %v4199 = vadd.s32 %v4198, %v4196
      %v4200 = vand.u32 %v3908, 65535
      %v4201 = vshra.s32 %v3908, 16
      %v4202 = vcvt.s32.f32 %v4200
      %v4203 = vcvt.s32.f32 %v4201
      %4204 = vmin.xlane.f32.xlu0 %v4203
      %v4205 = vpop.xlane.xlu0 %4204
      %vm4206 = vcmp.eq.f32.partialorder %v4203, %v4205
      %v4207 = vsel %vm4206, %v4202, inf
      %4208 = vmin.xlane.f32.xlu0 %v4207
      %v4209 = vpop.xlane.xlu0 %4208
      %v4210 = vcvt.f32.s32 %v4209
      %v4211 = vcvt.f32.s32 %v4205
      %v4212 = vshll.u32 %v4211, 16
      %v4213 = vadd.s32 %v4212, %v4210
      %v4214 = vand.u32 %v3909, 65535
      %v4215 = vshra.s32 %v3909, 16
      %v4216 = vcvt.s32.f32 %v4214
      %v4217 = vcvt.s32.f32 %v4215
      %4218 = vmin.xlane.f32.xlu0 %v4217
      %v4219 = vpop.xlane.xlu0 %4218
      %vm4220 = vcmp.eq.f32.partialorder %v4217, %v4219
      %v4221 = vsel %vm4220, %v4216, inf
      %4222 = vmin.xlane.f32.xlu0 %v4221
      %v4223 = vpop.xlane.xlu0 %4222
      %v4224 = vcvt.f32.s32 %v4223
      %v4225 = vcvt.f32.s32 %v4219
      %v4226 = vshll.u32 %v4225, 16
      %v4227 = vadd.s32 %v4226, %v4224
      %v4228 = vand.u32 %v3910, 65535
      %v4229 = vshra.s32 %v3910, 16
      %v4230 = vcvt.s32.f32 %v4228
      %v4231 = vcvt.s32.f32 %v4229
      %4232 = vmin.xlane.f32.xlu0 %v4231
      %v4233 = vpop.xlane.xlu0 %4232
      %vm4234 = vcmp.eq.f32.partialorder %v4231, %v4233
      %v4235 = vsel %vm4234, %v4230, inf
      %4236 = vmin.xlane.f32.xlu0 %v4235
      %v4237 = vpop.xlane.xlu0 %4236
      %v4238 = vcvt.f32.s32 %v4237
      %v4239 = vcvt.f32.s32 %v4233
      %v4240 = vshll.u32 %v4239, 16
      %v4241 = vadd.s32 %v4240, %v4238
      %v4242 = vand.u32 %v3911, 65535
      %v4243 = vshra.s32 %v3911, 16
      %v4244 = vcvt.s32.f32 %v4242
      %v4245 = vcvt.s32.f32 %v4243
      %4246 = vmin.xlane.f32.xlu0 %v4245
      %v4247 = vpop.xlane.xlu0 %4246
      %vm4248 = vcmp.eq.f32.partialorder %v4245, %v4247
      %v4249 = vsel %vm4248, %v4244, inf
      %4250 = vmin.xlane.f32.xlu0 %v4249
      %v4251 = vpop.xlane.xlu0 %4250
      %v4252 = vcvt.f32.s32 %v4251
      %v4253 = vcvt.f32.s32 %v4247
      %v4254 = vshll.u32 %v4253, 16
      %v4255 = vadd.s32 %v4254, %v4252
      %v4256 = vand.u32 %v3912, 65535
      %v4257 = vshra.s32 %v3912, 16
      %v4258 = vcvt.s32.f32 %v4256
      %v4259 = vcvt.s32.f32 %v4257
      %4260 = vmin.xlane.f32.xlu0 %v4259
      %v4261 = vpop.xlane.xlu0 %4260
      %vm4262 = vcmp.eq.f32.partialorder %v4259, %v4261
      %v4263 = vsel %vm4262, %v4258, inf
      %4264 = vmin.xlane.f32.xlu0 %v4263
      %v4265 = vpop.xlane.xlu0 %4264
      %v4266 = vcvt.f32.s32 %v4265
      %v4267 = vcvt.f32.s32 %v4261
      %v4268 = vshll.u32 %v4267, 16
      %v4269 = vadd.s32 %v4268, %v4266
      %v4270 = vand.u32 %v3913, 65535
      %v4271 = vshra.s32 %v3913, 16
      %v4272 = vcvt.s32.f32 %v4270
      %v4273 = vcvt.s32.f32 %v4271
      %4274 = vmin.xlane.f32.xlu0 %v4273
      %v4275 = vpop.xlane.xlu0 %4274
      %vm4276 = vcmp.eq.f32.partialorder %v4273, %v4275
      %v4277 = vsel %vm4276, %v4272, inf
      %4278 = vmin.xlane.f32.xlu0 %v4277
      %v4279 = vpop.xlane.xlu0 %4278
      %v4280 = vcvt.f32.s32 %v4279
      %v4281 = vcvt.f32.s32 %v4275
      %v4282 = vshll.u32 %v4281, 16
      %v4283 = vadd.s32 %v4282, %v4280
      %v4284 = vand.u32 %v3914, 65535
      %v4285 = vshra.s32 %v3914, 16
      %v4286 = vcvt.s32.f32 %v4284
      %v4287 = vcvt.s32.f32 %v4285
      %4288 = vmin.xlane.f32.xlu0 %v4287
      %v4289 = vpop.xlane.xlu0 %4288
      %vm4290 = vcmp.eq.f32.partialorder %v4287, %v4289
      %v4291 = vsel %vm4290, %v4286, inf
      %4292 = vmin.xlane.f32.xlu0 %v4291
      %v4293 = vpop.xlane.xlu0 %4292
      %v4294 = vcvt.f32.s32 %v4293
      %v4295 = vcvt.f32.s32 %v4289
      %v4296 = vshll.u32 %v4295, 16
      %v4297 = vadd.s32 %v4296, %v4294
      %v4298 = vand.u32 %v3915, 65535
      %v4299 = vshra.s32 %v3915, 16
      %v4300 = vcvt.s32.f32 %v4298
      %v4301 = vcvt.s32.f32 %v4299
      %4302 = vmin.xlane.f32.xlu0 %v4301
      %v4303 = vpop.xlane.xlu0 %4302
      %vm4304 = vcmp.eq.f32.partialorder %v4301, %v4303
      %v4305 = vsel %vm4304, %v4300, inf
      %4306 = vmin.xlane.f32.xlu0 %v4305
      %v4307 = vpop.xlane.xlu0 %4306
      %v4308 = vcvt.f32.s32 %v4307
      %v4309 = vcvt.f32.s32 %v4303
      %v4310 = vshll.u32 %v4309, 16
      %v4311 = vadd.s32 %v4310, %v4308
      %v4312 = vand.u32 %v3916, 65535
      %v4313 = vshra.s32 %v3916, 16
      %v4314 = vcvt.s32.f32 %v4312
      %v4315 = vcvt.s32.f32 %v4313
      %4316 = vmin.xlane.f32.xlu0 %v4315
      %v4317 = vpop.xlane.xlu0 %4316
      %vm4318 = vcmp.eq.f32.partialorder %v4315, %v4317
      %v4319 = vsel %vm4318, %v4314, inf
      %4320 = vmin.xlane.f32.xlu0 %v4319
      %v4321 = vpop.xlane.xlu0 %4320
      %v4322 = vcvt.f32.s32 %v4321
      %v4323 = vcvt.f32.s32 %v4317
      %v4324 = vshll.u32 %v4323, 16
      %v4325 = vadd.s32 %v4324, %v4322
      %v4326 = vand.u32 %v3917, 65535
      %v4327 = vshra.s32 %v3917, 16
      %v4328 = vcvt.s32.f32 %v4326
      %v4329 = vcvt.s32.f32 %v4327
      %4330 = vmin.xlane.f32.xlu0 %v4329
      %v4331 = vpop.xlane.xlu0 %4330
      %vm4332 = vcmp.eq.f32.partialorder %v4329, %v4331
      %v4333 = vsel %vm4332, %v4328, inf
      %4334 = vmin.xlane.f32.xlu0 %v4333
      %v4335 = vpop.xlane.xlu0 %4334
      %v4336 = vcvt.f32.s32 %v4335
      %v4337 = vcvt.f32.s32 %v4331
      %v4338 = vshll.u32 %v4337, 16
      %v4339 = vadd.s32 %v4338, %v4336
      %v4340 = vand.u32 %v3918, 65535
      %v4341 = vshra.s32 %v3918, 16
      %v4342 = vcvt.s32.f32 %v4340
      %v4343 = vcvt.s32.f32 %v4341
      %4344 = vmin.xlane.f32.xlu0 %v4343
      %v4345 = vpop.xlane.xlu0 %4344
      %vm4346 = vcmp.eq.f32.partialorder %v4343, %v4345
      %v4347 = vsel %vm4346, %v4342, inf
      %4348 = vmin.xlane.f32.xlu0 %v4347
      %v4349 = vpop.xlane.xlu0 %4348
      %v4350 = vcvt.f32.s32 %v4349
      %v4351 = vcvt.f32.s32 %v4345
      %v4352 = vshll.u32 %v4351, 16
      %v4353 = vadd.s32 %v4352, %v4350
      %v4354 = vand.u32 %v3919, 65535
      %v4355 = vshra.s32 %v3919, 16
      %v4356 = vcvt.s32.f32 %v4354
      %v4357 = vcvt.s32.f32 %v4355
      %4358 = vmin.xlane.f32.xlu0 %v4357
      %v4359 = vpop.xlane.xlu0 %4358
      %vm4360 = vcmp.eq.f32.partialorder %v4357, %v4359
      %v4361 = vsel %vm4360, %v4356, inf
      %4362 = vmin.xlane.f32.xlu0 %v4361
      %v4363 = vpop.xlane.xlu0 %4362
      %v4364 = vcvt.f32.s32 %v4363
      %v4365 = vcvt.f32.s32 %v4359
      %v4366 = vshll.u32 %v4365, 16
      %v4367 = vadd.s32 %v4366, %v4364
      %vm4368 = vcmp.eq.s32.totalorder %v449, %v3933
      %vm4369 = vcmp.eq.s32.totalorder %v449, %v3947
      %vm4370 = vcmp.eq.s32.totalorder %v449, %v3961
      %vm4371 = vcmp.eq.s32.totalorder %v449, %v3975
      %vm4372 = vcmp.eq.s32.totalorder %v449, %v3989
      %vm4373 = vcmp.eq.s32.totalorder %v449, %v4003
      %vm4374 = vcmp.eq.s32.totalorder %v449, %v4017
      %vm4375 = vcmp.eq.s32.totalorder %v449, %v4031
      %vm4376 = vcmp.eq.s32.totalorder %v449, %v4045
      %vm4377 = vcmp.eq.s32.totalorder %v449, %v4059
      %vm4378 = vcmp.eq.s32.totalorder %v449, %v4073
      %vm4379 = vcmp.eq.s32.totalorder %v449, %v4087
      %vm4380 = vcmp.eq.s32.totalorder %v449, %v4101
      %vm4381 = vcmp.eq.s32.totalorder %v449, %v4115
      %vm4382 = vcmp.eq.s32.totalorder %v449, %v4129
      %vm4383 = vcmp.eq.s32.totalorder %v449, %v4143
      %vm4384 = vcmp.eq.s32.totalorder %v449, %v4157
      %vm4385 = vcmp.eq.s32.totalorder %v449, %v4171
      %vm4386 = vcmp.eq.s32.totalorder %v449, %v4185
      %vm4387 = vcmp.eq.s32.totalorder %v449, %v4199
      %vm4388 = vcmp.eq.s32.totalorder %v449, %v4213
      %vm4389 = vcmp.eq.s32.totalorder %v449, %v4227
      %vm4390 = vcmp.eq.s32.totalorder %v449, %v4241
      %vm4391 = vcmp.eq.s32.totalorder %v449, %v4255
      %vm4392 = vcmp.eq.s32.totalorder %v449, %v4269
      %vm4393 = vcmp.eq.s32.totalorder %v449, %v4283
      %vm4394 = vcmp.eq.s32.totalorder %v449, %v4297
      %vm4395 = vcmp.eq.s32.totalorder %v449, %v4311
      %vm4396 = vcmp.eq.s32.totalorder %v449, %v4325
      %vm4397 = vcmp.eq.s32.totalorder %v449, %v4339
      %vm4398 = vcmp.eq.s32.totalorder %v449, %v4353
      %vm4399 = vcmp.eq.s32.totalorder %v449, %v4367
      %v4400 = vsel %vm4368, 1, 0
      %v4401 = vsel %vm4369, 1, 0
      %v4402 = vsel %vm4370, 1, 0
      %v4403 = vsel %vm4371, 1, 0
      %v4404 = vsel %vm4372, 1, 0
      %v4405 = vsel %vm4373, 1, 0
      %v4406 = vsel %vm4374, 1, 0
      %v4407 = vsel %vm4375, 1, 0
      %v4408 = vsel %vm4376, 1, 0
      %v4409 = vsel %vm4377, 1, 0
      %v4410 = vsel %vm4378, 1, 0
      %v4411 = vsel %vm4379, 1, 0
      %v4412 = vsel %vm4380, 1, 0
      %v4413 = vsel %vm4381, 1, 0
      %v4414 = vsel %vm4382, 1, 0
      %v4415 = vsel %vm4383, 1, 0
      %v4416 = vsel %vm4384, 1, 0
      %v4417 = vsel %vm4385, 1, 0
      %v4418 = vsel %vm4386, 1, 0
      %v4419 = vsel %vm4387, 1, 0
      %v4420 = vsel %vm4388, 1, 0
      %v4421 = vsel %vm4389, 1, 0
      %v4422 = vsel %vm4390, 1, 0
      %v4423 = vsel %vm4391, 1, 0
      %v4424 = vsel %vm4392, 1, 0
      %v4425 = vsel %vm4393, 1, 0
      %v4426 = vsel %vm4394, 1, 0
      %v4427 = vsel %vm4395, 1, 0
      %v4428 = vsel %vm4396, 1, 0
      %v4429 = vsel %vm4397, 1, 0
      %v4430 = vsel %vm4398, 1, 0
      %v4431 = vsel %vm4399, 1, 0
      %v4432 = vcvt.s32.f32 %v4400
      %v4433 = vcvt.s32.f32 %v4401
      %v4434 = vcvt.s32.f32 %v4402
      %v4435 = vcvt.s32.f32 %v4403
      %v4436 = vcvt.s32.f32 %v4404
      %v4437 = vcvt.s32.f32 %v4405
      %v4438 = vcvt.s32.f32 %v4406
      %v4439 = vcvt.s32.f32 %v4407
      %v4440 = vcvt.s32.f32 %v4408
      %v4441 = vcvt.s32.f32 %v4409
      %v4442 = vcvt.s32.f32 %v4410
      %v4443 = vcvt.s32.f32 %v4411
      %v4444 = vcvt.s32.f32 %v4412
      %v4445 = vcvt.s32.f32 %v4413
      %v4446 = vcvt.s32.f32 %v4414
      %v4447 = vcvt.s32.f32 %v4415
      %v4448 = vcvt.s32.f32 %v4416
      %v4449 = vcvt.s32.f32 %v4417
      %v4450 = vcvt.s32.f32 %v4418
      %v4451 = vcvt.s32.f32 %v4419
      %v4452 = vcvt.s32.f32 %v4420
      %v4453 = vcvt.s32.f32 %v4421
      %v4454 = vcvt.s32.f32 %v4422
      %v4455 = vcvt.s32.f32 %v4423
      %v4456 = vcvt.s32.f32 %v4424
      %v4457 = vcvt.s32.f32 %v4425
      %v4458 = vcvt.s32.f32 %v4426
      %v4459 = vcvt.s32.f32 %v4427
      %v4460 = vcvt.s32.f32 %v4428
      %v4461 = vcvt.s32.f32 %v4429
      %v4462 = vcvt.s32.f32 %v4430
      %v4463 = vcvt.s32.f32 %v4431
      %4464 = vmatprep.subr.mxu0 0.0
      %4465 = vmatpush1.msra.mxu0 %v3480
      %4466 = vmatprep.subr.mxu0 0.0
      %4467 = vmatpush1.msra.mxu0 %v3479
      %4468 = vmatprep.subr.mxu0 0.0
      %4469 = vmatpush1.msra.mxu0 %v3478
      %4470 = vmatprep.subr.mxu0 0.0
      %4471 = vmatpush1.msra.mxu0 %v3477
      %4472 = vmatprep.subr.mxu0 0.0
      %4473 = vmatpush1.msra.mxu0 %v3476
      %4474 = vmatprep.subr.mxu0 0.0
      %4475 = vmatpush1.msra.mxu0 %v3475
      %4476 = vmatprep.subr.mxu0 0.0
      %4477 = vmatpush1.msra.mxu0 %v3474
      %4478 = vmatprep.subr.mxu0 0.0
      %4479 = vmatpush1.msra.mxu0 %v3473
      %4480 = vmatprep.subr.mxu0 0.0
      %4481 = vmatpush1.msra.mxu0 %v3472
      %4482 = vmatprep.subr.mxu0 0.0
      %4483 = vmatpush1.msra.mxu0 %v3471
      %4484 = vmatprep.subr.mxu0 0.0
      %4485 = vmatpush1.msra.mxu0 %v3470
      %4486 = vmatprep.subr.mxu0 0.0
      %4487 = vmatpush1.msra.mxu0 %v3469
      %4488 = vmatprep.subr.mxu0 0.0
      %4489 = vmatpush1.msra.mxu0 %v3468
      %4490 = vmatprep.subr.mxu0 0.0
      %4491 = vmatpush1.msra.mxu0 %v3467
      %4492 = vmatprep.subr.mxu0 0.0
      %4493 = vmatpush1.msra.mxu0 %v3466
      %4494 = vmatprep.subr.mxu0 0.0
      %4495 = vmatpush1.msra.mxu0 %v3465
      %4496 = vmatprep.subr.mxu0 0.0
      %4497 = vmatpush2.msra.mxu0 0.0
      %4498 = vmatprep.subr.mxu0 0.0
      %4499 = vmatpush2.msra.mxu0 0.0
      %4500 = vmatprep.subr.mxu0 0.0
      %4501 = vmatpush2.msra.mxu0 0.0
      %4502 = vmatprep.subr.mxu0 0.0
      %4503 = vmatpush2.msra.mxu0 0.0
      %4504 = vmatprep.subr.mxu0 0.0
      %4505 = vmatpush2.msra.mxu0 0.0
      %4506 = vmatprep.subr.mxu0 0.0
      %4507 = vmatpush2.msra.mxu0 0.0
      %4508 = vmatprep.subr.mxu0 0.0
      %4509 = vmatpush2.msra.mxu0 0.0
      %4510 = vmatprep.subr.mxu0 0.0
      %4511 = vmatpush2.msra.mxu0 0.0
      %4512 = vmatprep.subr.mxu0 0.0
      %4513 = vmatpush2.msra.mxu0 0.0
      %4514 = vmatprep.subr.mxu0 0.0
      %4515 = vmatpush2.msra.mxu0 0.0
      %4516 = vmatprep.subr.mxu0 0.0
      %4517 = vmatpush2.msra.mxu0 0.0
      %4518 = vmatprep.subr.mxu0 0.0
      %4519 = vmatpush2.msra.mxu0 0.0
      %4520 = vmatprep.subr.mxu0 0.0
      %4521 = vmatpush2.msra.mxu0 0.0
      %4522 = vmatprep.subr.mxu0 0.0
      %4523 = vmatpush2.msra.mxu0 0.0
      %4524 = vmatprep.subr.mxu0 0.0
      %4525 = vmatpush2.msra.mxu0 0.0
      %4526 = vmatprep.subr.mxu0 0.0
      %4527 = vmatpush2.msra.mxu0 0.0
      %4528 = vmatprep.mubr.f32.mxu0 0.0
      %4529 = vmatmul.mubr.f32.gmra.mxu0 %v4432
      %v4530 = vpop.f32.mrf.mxu0
      %v4531 = vadd.f32 0.0, %v4530
      %v4532 = vpop.f32.mrf.mxu0
      %4533 = vmatprep.mubr.f32.mxu0 0.0
      %4534 = vmatmul.mubr.f32.gmra.mxu0 %v4433
      %v4535 = vpop.f32.mrf.mxu0
      %v4536 = vadd.f32 0.0, %v4535
      %v4537 = vpop.f32.mrf.mxu0
      %4538 = vmatprep.mubr.f32.mxu0 0.0
      %4539 = vmatmul.mubr.f32.gmra.mxu0 %v4434
      %v4540 = vpop.f32.mrf.mxu0
      %v4541 = vadd.f32 0.0, %v4540
      %v4542 = vpop.f32.mrf.mxu0
      %4543 = vmatprep.mubr.f32.mxu0 0.0
      %4544 = vmatmul.mubr.f32.gmra.mxu0 %v4435
      %v4545 = vpop.f32.mrf.mxu0
      %v4546 = vadd.f32 0.0, %v4545
      %v4547 = vpop.f32.mrf.mxu0
      %4548 = vmatprep.mubr.f32.mxu0 0.0
      %4549 = vmatmul.mubr.f32.gmra.mxu0 %v4436
      %v4550 = vpop.f32.mrf.mxu0
      %v4551 = vadd.f32 0.0, %v4550
      %v4552 = vpop.f32.mrf.mxu0
      %4553 = vmatprep.mubr.f32.mxu0 0.0
      %4554 = vmatmul.mubr.f32.gmra.mxu0 %v4437
      %v4555 = vpop.f32.mrf.mxu0
      %v4556 = vadd.f32 0.0, %v4555
      %v4557 = vpop.f32.mrf.mxu0
      %4558 = vmatprep.mubr.f32.mxu0 0.0
      %4559 = vmatmul.mubr.f32.gmra.mxu0 %v4438
      %v4560 = vpop.f32.mrf.mxu0
      %v4561 = vadd.f32 0.0, %v4560
      %v4562 = vpop.f32.mrf.mxu0
      %4563 = vmatprep.mubr.f32.mxu0 0.0
      %4564 = vmatmul.mubr.f32.gmra.mxu0 %v4439
      %v4565 = vpop.f32.mrf.mxu0
      %v4566 = vadd.f32 0.0, %v4565
      %v4567 = vpop.f32.mrf.mxu0
      %4568 = vmatprep.mubr.f32.mxu0 0.0
      %4569 = vmatmul.mubr.f32.gmra.mxu0 %v4440
      %v4570 = vpop.f32.mrf.mxu0
      %v4571 = vadd.f32 0.0, %v4570
      %v4572 = vpop.f32.mrf.mxu0
      %4573 = vmatprep.mubr.f32.mxu0 0.0
      %4574 = vmatmul.mubr.f32.gmra.mxu0 %v4441
      %v4575 = vpop.f32.mrf.mxu0
      %v4576 = vadd.f32 0.0, %v4575
      %v4577 = vpop.f32.mrf.mxu0
      %4578 = vmatprep.mubr.f32.mxu0 0.0
      %4579 = vmatmul.mubr.f32.gmra.mxu0 %v4442
      %v4580 = vpop.f32.mrf.mxu0
      %v4581 = vadd.f32 0.0, %v4580
      %v4582 = vpop.f32.mrf.mxu0
      %4583 = vmatprep.mubr.f32.mxu0 0.0
      %4584 = vmatmul.mubr.f32.gmra.mxu0 %v4443
      %v4585 = vpop.f32.mrf.mxu0
      %v4586 = vadd.f32 0.0, %v4585
      %v4587 = vpop.f32.mrf.mxu0
      %4588 = vmatprep.mubr.f32.mxu0 0.0
      %4589 = vmatmul.mubr.f32.gmra.mxu0 %v4444
      %v4590 = vpop.f32.mrf.mxu0
      %v4591 = vadd.f32 0.0, %v4590
      %v4592 = vpop.f32.mrf.mxu0
      %4593 = vmatprep.mubr.f32.mxu0 0.0
      %4594 = vmatmul.mubr.f32.gmra.mxu0 %v4445
      %v4595 = vpop.f32.mrf.mxu0
      %v4596 = vadd.f32 0.0, %v4595
      %v4597 = vpop.f32.mrf.mxu0
      %4598 = vmatprep.mubr.f32.mxu0 0.0
      %4599 = vmatmul.mubr.f32.gmra.mxu0 %v4446
      %v4600 = vpop.f32.mrf.mxu0
      %v4601 = vadd.f32 0.0, %v4600
      %v4602 = vpop.f32.mrf.mxu0
      %4603 = vmatprep.mubr.f32.mxu0 0.0
      %4604 = vmatmul.mubr.f32.gmra.mxu0 %v4447
      %v4605 = vpop.f32.mrf.mxu0
      %v4606 = vadd.f32 0.0, %v4605
      %v4607 = vpop.f32.mrf.mxu0
      %4608 = vmatprep.mubr.f32.mxu0 0.0
      %4609 = vmatmul.mubr.f32.gmra.mxu0 %v4448
      %v4610 = vpop.f32.mrf.mxu0
      %v4611 = vadd.f32 0.0, %v4610
      %v4612 = vpop.f32.mrf.mxu0
      %4613 = vmatprep.mubr.f32.mxu0 0.0
      %4614 = vmatmul.mubr.f32.gmra.mxu0 %v4449
      %v4615 = vpop.f32.mrf.mxu0
      %v4616 = vadd.f32 0.0, %v4615
      %v4617 = vpop.f32.mrf.mxu0
      %4618 = vmatprep.mubr.f32.mxu0 0.0
      %4619 = vmatmul.mubr.f32.gmra.mxu0 %v4450
      %v4620 = vpop.f32.mrf.mxu0
      %v4621 = vadd.f32 0.0, %v4620
      %v4622 = vpop.f32.mrf.mxu0
      %4623 = vmatprep.mubr.f32.mxu0 0.0
      %4624 = vmatmul.mubr.f32.gmra.mxu0 %v4451
      %v4625 = vpop.f32.mrf.mxu0
      %v4626 = vadd.f32 0.0, %v4625
      %v4627 = vpop.f32.mrf.mxu0
      %4628 = vmatprep.mubr.f32.mxu0 0.0
      %4629 = vmatmul.mubr.f32.gmra.mxu0 %v4452
      %v4630 = vpop.f32.mrf.mxu0
      %v4631 = vadd.f32 0.0, %v4630
      %v4632 = vpop.f32.mrf.mxu0
      %4633 = vmatprep.mubr.f32.mxu0 0.0
      %4634 = vmatmul.mubr.f32.gmra.mxu0 %v4453
      %v4635 = vpop.f32.mrf.mxu0
      %v4636 = vadd.f32 0.0, %v4635
      %v4637 = vpop.f32.mrf.mxu0
      %4638 = vmatprep.mubr.f32.mxu0 0.0
      %4639 = vmatmul.mubr.f32.gmra.mxu0 %v4454
      %v4640 = vpop.f32.mrf.mxu0
      %v4641 = vadd.f32 0.0, %v4640
      %v4642 = vpop.f32.mrf.mxu0
      %4643 = vmatprep.mubr.f32.mxu0 0.0
      %4644 = vmatmul.mubr.f32.gmra.mxu0 %v4455
      %v4645 = vpop.f32.mrf.mxu0
      %v4646 = vadd.f32 0.0, %v4645
      %v4647 = vpop.f32.mrf.mxu0
      %4648 = vmatprep.mubr.f32.mxu0 0.0
      %4649 = vmatmul.mubr.f32.gmra.mxu0 %v4456
      %v4650 = vpop.f32.mrf.mxu0
      %v4651 = vadd.f32 0.0, %v4650
      %v4652 = vpop.f32.mrf.mxu0
      %4653 = vmatprep.mubr.f32.mxu0 0.0
      %4654 = vmatmul.mubr.f32.gmra.mxu0 %v4457
      %v4655 = vpop.f32.mrf.mxu0
      %v4656 = vadd.f32 0.0, %v4655
      %v4657 = vpop.f32.mrf.mxu0
      %4658 = vmatprep.mubr.f32.mxu0 0.0
      %4659 = vmatmul.mubr.f32.gmra.mxu0 %v4458
      %v4660 = vpop.f32.mrf.mxu0
      %v4661 = vadd.f32 0.0, %v4660
      %v4662 = vpop.f32.mrf.mxu0
      %4663 = vmatprep.mubr.f32.mxu0 0.0
      %4664 = vmatmul.mubr.f32.gmra.mxu0 %v4459
      %v4665 = vpop.f32.mrf.mxu0
      %v4666 = vadd.f32 0.0, %v4665
      %v4667 = vpop.f32.mrf.mxu0
      %4668 = vmatprep.mubr.f32.mxu0 0.0
      %4669 = vmatmul.mubr.f32.gmra.mxu0 %v4460
      %v4670 = vpop.f32.mrf.mxu0
      %v4671 = vadd.f32 0.0, %v4670
      %v4672 = vpop.f32.mrf.mxu0
      %4673 = vmatprep.mubr.f32.mxu0 0.0
      %4674 = vmatmul.mubr.f32.gmra.mxu0 %v4461
      %v4675 = vpop.f32.mrf.mxu0
      %v4676 = vadd.f32 0.0, %v4675
      %v4677 = vpop.f32.mrf.mxu0
      %4678 = vmatprep.mubr.f32.mxu0 0.0
      %4679 = vmatmul.mubr.f32.gmra.mxu0 %v4462
      %v4680 = vpop.f32.mrf.mxu0
      %v4681 = vadd.f32 0.0, %v4680
      %v4682 = vpop.f32.mrf.mxu0
      %4683 = vmatprep.mubr.f32.mxu0 0.0
      %4684 = vmatmul.mubr.f32.gmra.mxu0 %v4463
      %v4685 = vpop.f32.mrf.mxu0
      %v4686 = vadd.f32 0.0, %v4685
      %v4687 = vpop.f32.mrf.mxu0
      %4688 = vdwg.mxu0
      %v4689 = vadd.f32 %v3793, %v3231
      %v4690 = vadd.f32 %v3795, %v3232
      %v4691 = vadd.f32 %v3797, %v3233
      %v4692 = vadd.f32 %v3799, %v3234
      %v4693 = vadd.f32 %v3801, %v3235
      %v4694 = vadd.f32 %v3803, %v3236
      %v4695 = vadd.f32 %v3805, %v3237
      %v4696 = vadd.f32 %v3807, %v3238
      %v4697 = vadd.f32 %v3809, %v3239
      %v4698 = vadd.f32 %v3811, %v3240
      %v4699 = vadd.f32 %v3813, %v3241
      %v4700 = vadd.f32 %v3815, %v3242
      %v4701 = vadd.f32 %v3817, %v3243
      %v4702 = vadd.f32 %v3819, %v3244
      %v4703 = vadd.f32 %v3821, %v3245
      %v4704 = vadd.f32 %v3823, %v3246
      %v4705 = vadd.f32 %v3825, %v3247
      %v4706 = vadd.f32 %v3827, %v3248
      %v4707 = vadd.f32 %v3829, %v3249
      %v4708 = vadd.f32 %v3831, %v3250
      %v4709 = vadd.f32 %v3833, %v3251
      %v4710 = vadd.f32 %v3835, %v3252
      %v4711 = vadd.f32 %v3837, %v3253
      %v4712 = vadd.f32 %v3839, %v3254
      %v4713 = vadd.f32 %v3841, %v3255
      %v4714 = vadd.f32 %v3843, %v3256
      %v4715 = vadd.f32 %v3845, %v3257
      %v4716 = vadd.f32 %v3847, %v3258
      %v4717 = vadd.f32 %v3849, %v3259
      %v4718 = vadd.f32 %v3851, %v3260
      %v4719 = vadd.f32 %v3853, %v3261
      %v4720 = vadd.f32 %v3855, %v3262
      %v4721 = vsel %vm517, %v4689, 0.0
      %v4722 = vsel %vm518, %v4690, 0.0
      %v4723 = vsel %vm519, %v4691, 0.0
      %v4724 = vsel %vm520, %v4692, 0.0
      %v4725 = vsel %vm521, %v4693, 0.0
      %v4726 = vsel %vm522, %v4694, 0.0
      %v4727 = vsel %vm523, %v4695, 0.0
      %v4728 = vsel %vm524, %v4696, 0.0
      %v4729 = vsel %vm525, %v4697, 0.0
      %v4730 = vsel %vm526, %v4698, 0.0
      %v4731 = vsel %vm527, %v4699, 0.0
      %v4732 = vsel %vm528, %v4700, 0.0
      %v4733 = vsel %vm529, %v4701, 0.0
      %v4734 = vsel %vm530, %v4702, 0.0
      %v4735 = vsel %vm531, %v4703, 0.0
      %v4736 = vsel %vm532, %v4704, 0.0
      %v4737 = vsel %vm533, %v4705, 0.0
      %v4738 = vsel %vm534, %v4706, 0.0
      %v4739 = vsel %vm535, %v4707, 0.0
      %v4740 = vsel %vm536, %v4708, 0.0
      %v4741 = vsel %vm537, %v4709, 0.0
      %v4742 = vsel %vm538, %v4710, 0.0
      %v4743 = vsel %vm539, %v4711, 0.0
      %v4744 = vsel %vm540, %v4712, 0.0
      %v4745 = vsel %vm541, %v4713, 0.0
      %v4746 = vsel %vm542, %v4714, 0.0
      %v4747 = vsel %vm543, %v4715, 0.0
      %v4748 = vsel %vm544, %v4716, 0.0
      %v4749 = vsel %vm545, %v4717, 0.0
      %v4750 = vsel %vm546, %v4718, 0.0
      %v4751 = vsel %vm547, %v4719, 0.0
      %v4752 = vsel %vm548, %v4720, 0.0
      %v4753 = vsel %vm1836, %v4721, 0.0
      %v4754 = vsel %vm1836, %v4722, 0.0
      %v4755 = vadd.f32 %v4753, %v4754
      %v4756 = vsel %vm1836, %v4723, 0.0
      %v4757 = vadd.f32 %v4755, %v4756
      %v4758 = vsel %vm1836, %v4724, 0.0
      %v4759 = vadd.f32 %v4757, %v4758
      %v4760 = vsel %vm1836, %v4725, 0.0
      %v4761 = vadd.f32 %v4759, %v4760
      %v4762 = vsel %vm1836, %v4726, 0.0
      %v4763 = vadd.f32 %v4761, %v4762
      %v4764 = vsel %vm1836, %v4727, 0.0
      %v4765 = vadd.f32 %v4763, %v4764
      %v4766 = vsel %vm1836, %v4728, 0.0
      %v4767 = vadd.f32 %v4765, %v4766
      %v4768 = vsel %vm1836, %v4729, 0.0
      %v4769 = vadd.f32 %v4767, %v4768
      %v4770 = vsel %vm1836, %v4730, 0.0
      %v4771 = vadd.f32 %v4769, %v4770
      %v4772 = vsel %vm1836, %v4731, 0.0
      %v4773 = vadd.f32 %v4771, %v4772
      %v4774 = vsel %vm1836, %v4732, 0.0
      %v4775 = vadd.f32 %v4773, %v4774
      %v4776 = vsel %vm1836, %v4733, 0.0
      %v4777 = vadd.f32 %v4775, %v4776
      %v4778 = vsel %vm1836, %v4734, 0.0
      %v4779 = vadd.f32 %v4777, %v4778
      %v4780 = vsel %vm1836, %v4735, 0.0
      %v4781 = vadd.f32 %v4779, %v4780
      %v4782 = vsel %vm1836, %v4736, 0.0
      %v4783 = vadd.f32 %v4781, %v4782
      %v4784 = vsel %vm1836, %v4737, 0.0
      %v4785 = vadd.f32 %v4783, %v4784
      %v4786 = vsel %vm1836, %v4738, 0.0
      %v4787 = vadd.f32 %v4785, %v4786
      %v4788 = vsel %vm1836, %v4739, 0.0
      %v4789 = vadd.f32 %v4787, %v4788
      %v4790 = vsel %vm1836, %v4740, 0.0
      %v4791 = vadd.f32 %v4789, %v4790
      %v4792 = vsel %vm1836, %v4741, 0.0
      %v4793 = vadd.f32 %v4791, %v4792
      %v4794 = vsel %vm1836, %v4742, 0.0
      %v4795 = vadd.f32 %v4793, %v4794
      %v4796 = vsel %vm1836, %v4743, 0.0
      %v4797 = vadd.f32 %v4795, %v4796
      %v4798 = vsel %vm1836, %v4744, 0.0
      %v4799 = vadd.f32 %v4797, %v4798
      %v4800 = vsel %vm1836, %v4745, 0.0
      %v4801 = vadd.f32 %v4799, %v4800
      %v4802 = vsel %vm1836, %v4746, 0.0
      %v4803 = vadd.f32 %v4801, %v4802
      %v4804 = vsel %vm1836, %v4747, 0.0
      %v4805 = vadd.f32 %v4803, %v4804
      %v4806 = vsel %vm1836, %v4748, 0.0
      %v4807 = vadd.f32 %v4805, %v4806
      %v4808 = vsel %vm1836, %v4749, 0.0
      %v4809 = vadd.f32 %v4807, %v4808
      %v4810 = vsel %vm1836, %v4750, 0.0
      %v4811 = vadd.f32 %v4809, %v4810
      %v4812 = vsel %vm1836, %v4751, 0.0
      %v4813 = vadd.f32 %v4811, %v4812
      %v4814 = vsel %vm1836, %v4752, 0.0
      %v4815 = vadd.f32 %v4813, %v4814
      %4816 = vadd.xlane.f32.xlu0 %v4815
      %v4817 = vpop.xlane.xlu0 %4816
      %v4818 = vrot.slane %v4817, 4
      %v4819 = vadd.f32 %v4817, %v4818
      %v4820 = vrot.slane %v4819, 2
      %v4821 = vadd.f32 %v4819, %v4820
      %v4822 = vrot.slane %v4821, 1
      %v4823 = vadd.f32 %v4821, %v4822
      %s4824 = vtos %v4823
      %v4825 = vstv %s4824
      %4826 = vst [vmem:[%s308 + $0x10] sm:$0xff] %v4531
      %4827 = vst [vmem:[%s308 + $0x30] sm:$0xff] %v4536
      %4828 = vst [vmem:[%s308 + $0x50] sm:$0xff] %v4541
      %4829 = vst [vmem:[%s308 + $0x70] sm:$0xff] %v4546
      %4830 = vst [vmem:[%s308 + $0x90] sm:$0xff] %v4551
      %4831 = vst [vmem:[%s308 + $0xb0] sm:$0xff] %v4556
      %4832 = vst [vmem:[%s308 + $0xd0] sm:$0xff] %v4561
      %4833 = vst [vmem:[%s308 + $0xf0] sm:$0xff] %v4566
      %4834 = vst [vmem:[%s308 + $0x110] sm:$0xff] %v4571
      %4835 = vst [vmem:[%s308 + $0x130] sm:$0xff] %v4576
      %4836 = vst [vmem:[%s308 + $0x150] sm:$0xff] %v4581
      %4837 = vst [vmem:[%s308 + $0x170] sm:$0xff] %v4586
      %4838 = vst [vmem:[%s308 + $0x190] sm:$0xff] %v4591
      %4839 = vst [vmem:[%s308 + $0x1b0] sm:$0xff] %v4596
      %4840 = vst [vmem:[%s308 + $0x1d0] sm:$0xff] %v4601
      %4841 = vst [vmem:[%s308 + $0x1f0] sm:$0xff] %v4606
      %4842 = vst [vmem:[%s308 + $0x210] sm:$0xff] %v4611
      %4843 = vst [vmem:[%s308 + $0x230] sm:$0xff] %v4616
      %4844 = vst [vmem:[%s308 + $0x250] sm:$0xff] %v4621
      %4845 = vst [vmem:[%s308 + $0x270] sm:$0xff] %v4626
      %4846 = vst [vmem:[%s308 + $0x290] sm:$0xff] %v4631
      %4847 = vst [vmem:[%s308 + $0x2b0] sm:$0xff] %v4636
      %4848 = vst [vmem:[%s308 + $0x2d0] sm:$0xff] %v4641
      %4849 = vst [vmem:[%s308 + $0x2f0] sm:$0xff] %v4646
      %4850 = vst [vmem:[%s308 + $0x310] sm:$0xff] %v4651
      %4851 = vst [vmem:[%s308 + $0x330] sm:$0xff] %v4656
      %4852 = vst [vmem:[%s308 + $0x350] sm:$0xff] %v4661
      %4853 = vst [vmem:[%s308 + $0x370] sm:$0xff] %v4666
      %4854 = vst [vmem:[%s308 + $0x390] sm:$0xff] %v4671
      %4855 = vst [vmem:[%s308 + $0x3b0] sm:$0xff] %v4676
      %4856 = vst [vmem:[%s308 + $0x3d0] sm:$0xff] %v4681
      %4857 = vst [vmem:[%s308 + $0x3f0] sm:$0xff] %v4686
      %v4858 = vadd.f32 %v3400, %v4531
      %v4859 = vadd.f32 %v3401, %v4536
      %v4860 = vadd.f32 %v3402, %v4541
      %v4861 = vadd.f32 %v3403, %v4546
      %v4862 = vadd.f32 %v3404, %v4551
      %v4863 = vadd.f32 %v3405, %v4556
      %v4864 = vadd.f32 %v3406, %v4561
      %v4865 = vadd.f32 %v3407, %v4566
      %v4866 = vadd.f32 %v3408, %v4571
      %v4867 = vadd.f32 %v3409, %v4576
      %v4868 = vadd.f32 %v3410, %v4581
      %v4869 = vadd.f32 %v3411, %v4586
      %v4870 = vadd.f32 %v3412, %v4591
      %v4871 = vadd.f32 %v3413, %v4596
      %v4872 = vadd.f32 %v3414, %v4601
      %v4873 = vadd.f32 %v3415, %v4606
      %v4874 = vadd.f32 %v3416, %v4611
      %v4875 = vadd.f32 %v3417, %v4616
      %v4876 = vadd.f32 %v3418, %v4621
      %v4877 = vadd.f32 %v3419, %v4626
      %v4878 = vadd.f32 %v3420, %v4631
      %v4879 = vadd.f32 %v3421, %v4636
      %v4880 = vadd.f32 %v3422, %v4641
      %v4881 = vadd.f32 %v3423, %v4646
      %v4882 = vadd.f32 %v3424, %v4651
      %v4883 = vadd.f32 %v3425, %v4656
      %v4884 = vadd.f32 %v3426, %v4661
      %v4885 = vadd.f32 %v3427, %v4666
      %v4886 = vadd.f32 %v3428, %v4671
      %v4887 = vadd.f32 %v3429, %v4676
      %v4888 = vadd.f32 %v3430, %v4681
      %v4889 = vadd.f32 %v3431, %v4686
      %v4890 = vsub.f32 %v3432, %v4531
      %v4891 = vsub.f32 %v3433, %v4536
      %v4892 = vsub.f32 %v3434, %v4541
      %v4893 = vsub.f32 %v3435, %v4546
      %v4894 = vsub.f32 %v3436, %v4551
      %v4895 = vsub.f32 %v3437, %v4556
      %v4896 = vsub.f32 %v3438, %v4561
      %v4897 = vsub.f32 %v3439, %v4566
      %v4898 = vsub.f32 %v3440, %v4571
      %v4899 = vsub.f32 %v3441, %v4576
      %v4900 = vsub.f32 %v3442, %v4581
      %v4901 = vsub.f32 %v3443, %v4586
      %v4902 = vsub.f32 %v3444, %v4591
      %v4903 = vsub.f32 %v3445, %v4596
      %v4904 = vsub.f32 %v3446, %v4601
      %v4905 = vsub.f32 %v3447, %v4606
      %v4906 = vsub.f32 %v3448, %v4611
      %v4907 = vsub.f32 %v3449, %v4616
      %v4908 = vsub.f32 %v3450, %v4621
      %v4909 = vsub.f32 %v3451, %v4626
      %v4910 = vsub.f32 %v3452, %v4631
      %v4911 = vsub.f32 %v3453, %v4636
      %v4912 = vsub.f32 %v3454, %v4641
      %v4913 = vsub.f32 %v3455, %v4646
      %v4914 = vsub.f32 %v3456, %v4651
      %v4915 = vsub.f32 %v3457, %v4656
      %v4916 = vsub.f32 %v3458, %v4661
      %v4917 = vsub.f32 %v3459, %v4666
      %v4918 = vsub.f32 %v3460, %v4671
      %v4919 = vsub.f32 %v3461, %v4676
      %v4920 = vsub.f32 %v3462, %v4681
      %v4921 = vsub.f32 %v3463, %v4686
      %s4922 = scalar_lea.vmem %s1, 384
      %v4923 = vld [vmem:[%s4922] sm:$0xff]
      %v4924 = vld [vmem:[%s4922 + $0x8] sm:$0xff]
      %v4925 = vld [vmem:[%s4922 + $0x10] sm:$0xff]
      %v4926 = vld [vmem:[%s4922 + $0x18] sm:$0xff]
      %v4927 = vld [vmem:[%s4922 + $0x20] sm:$0xff]
      %v4928 = vld [vmem:[%s4922 + $0x28] sm:$0xff]
      %v4929 = vld [vmem:[%s4922 + $0x30] sm:$0xff]
      %v4930 = vld [vmem:[%s4922 + $0x38] sm:$0xff]
      %v4931 = vld [vmem:[%s4922 + $0x40] sm:$0xff]
      %v4932 = vld [vmem:[%s4922 + $0x48] sm:$0xff]
      %v4933 = vld [vmem:[%s4922 + $0x50] sm:$0xff]
      %v4934 = vld [vmem:[%s4922 + $0x58] sm:$0xff]
      %v4935 = vld [vmem:[%s4922 + $0x60] sm:$0xff]
      %v4936 = vld [vmem:[%s4922 + $0x68] sm:$0xff]
      %v4937 = vld [vmem:[%s4922 + $0x70] sm:$0xff]
      %v4938 = vld [vmem:[%s4922 + $0x78] sm:$0xff]
      %s4939 = scalar_lea.vmem %s2, 192
      %v4940 = vld [vmem:[%s4939] sm:$0xf]
      %v4941 = vld [vmem:[%s4939 + $0x4] sm:$0xf]
      %v4942 = vld [vmem:[%s4939 + $0x8] sm:$0xf]
      %v4943 = vld [vmem:[%s4939 + $0xc] sm:$0xf]
      %v4944 = vld [vmem:[%s4939 + $0x10] sm:$0xf]
      %v4945 = vld [vmem:[%s4939 + $0x14] sm:$0xf]
      %v4946 = vld [vmem:[%s4939 + $0x18] sm:$0xf]
      %v4947 = vld [vmem:[%s4939 + $0x1c] sm:$0xf]
      %v4948 = vld [vmem:[%s4939 + $0x20] sm:$0xf]
      %v4949 = vld [vmem:[%s4939 + $0x24] sm:$0xf]
      %v4950 = vld [vmem:[%s4939 + $0x28] sm:$0xf]
      %v4951 = vld [vmem:[%s4939 + $0x2c] sm:$0xf]
      %v4952 = vld [vmem:[%s4939 + $0x30] sm:$0xf]
      %v4953 = vld [vmem:[%s4939 + $0x34] sm:$0xf]
      %v4954 = vld [vmem:[%s4939 + $0x38] sm:$0xf]
      %v4955 = vld [vmem:[%s4939 + $0x3c] sm:$0xf]
      %v4956 = vld [vmem:[%s3 + $0x3] sm:$0x1]
      %v4957 = vpack.c.bf16 %v4891, %v4890
      %v4958 = vpack.c.bf16 %v4893, %v4892
      %v4959 = vpack.c.bf16 %v4895, %v4894
      %v4960 = vpack.c.bf16 %v4897, %v4896
      %v4961 = vpack.c.bf16 %v4899, %v4898
      %v4962 = vpack.c.bf16 %v4901, %v4900
      %v4963 = vpack.c.bf16 %v4903, %v4902
      %v4964 = vpack.c.bf16 %v4905, %v4904
      %v4965 = vpack.c.bf16 %v4907, %v4906
      %v4966 = vpack.c.bf16 %v4909, %v4908
      %v4967 = vpack.c.bf16 %v4911, %v4910
      %v4968 = vpack.c.bf16 %v4913, %v4912
      %v4969 = vpack.c.bf16 %v4915, %v4914
      %v4970 = vpack.c.bf16 %v4917, %v4916
      %v4971 = vpack.c.bf16 %v4919, %v4918
      %v4972 = vpack.c.bf16 %v4921, %v4920
      %v4989 = vunpack.c.l.b16 %v4940
      %v4990 = vunpack.c.l.b16 %v4941
      %v4991 = vunpack.c.l.b16 %v4942
      %v4992 = vunpack.c.l.b16 %v4943
      %v4993 = vunpack.c.l.b16 %v4944
      %v4994 = vunpack.c.l.b16 %v4945
      %v4995 = vunpack.c.l.b16 %v4946
      %v4996 = vunpack.c.l.b16 %v4947
      %v4997 = vunpack.c.l.b16 %v4948
      %v4998 = vunpack.c.l.b16 %v4949
      %v4999 = vunpack.c.l.b16 %v4950
      %v5000 = vunpack.c.l.b16 %v4951
      %v5001 = vunpack.c.l.b16 %v4952
      %v5002 = vunpack.c.l.b16 %v4953
      %v5003 = vunpack.c.l.b16 %v4954
      %v5004 = vunpack.c.l.b16 %v4955
      %v5005 = vpack.c.b16 %v4990, %v4989
      %v5006 = vpack.c.b16 %v4992, %v4991
      %v5007 = vpack.c.b16 %v4994, %v4993
      %v5008 = vpack.c.b16 %v4996, %v4995
      %v5009 = vpack.c.b16 %v4998, %v4997
      %v5010 = vpack.c.b16 %v5000, %v4999
      %v5011 = vpack.c.b16 %v5002, %v5001
      %v5012 = vpack.c.b16 %v5004, %v5003
      %5021 = vmatprep.subr.bf16.mxu0 0
      %5022 = vmatpush1.bf16.msra.mxu0 %v5012
      %5023 = vmatprep.subr.bf16.mxu0 0
      %5024 = vmatpush1.bf16.msra.mxu0 %v5011
      %5025 = vmatprep.subr.bf16.mxu0 0
      %5026 = vmatpush1.bf16.msra.mxu0 %v5010
      %5027 = vmatprep.subr.bf16.mxu0 0
      %5028 = vmatpush1.bf16.msra.mxu0 %v5009
      %5029 = vmatprep.subr.bf16.mxu0 0
      %5030 = vmatpush1.bf16.msra.mxu0 %v5008
      %5031 = vmatprep.subr.bf16.mxu0 0
      %5032 = vmatpush1.bf16.msra.mxu0 %v5007
      %5033 = vmatprep.subr.bf16.mxu0 0
      %5034 = vmatpush1.bf16.msra.mxu0 %v5006
      %5035 = vmatprep.subr.bf16.mxu0 0
      %5036 = vmatpush1.bf16.msra.mxu0 %v5005
      %5037 = vmatprep.subr.bf16.mxu0 0
      %5038 = vmatpush2.bf16.msra.mxu0 0
      %5039 = vmatprep.subr.bf16.mxu0 0
      %5040 = vmatpush2.bf16.msra.mxu0 0
      %5041 = vmatprep.subr.bf16.mxu0 0
      %5042 = vmatpush2.bf16.msra.mxu0 0
      %5043 = vmatprep.subr.bf16.mxu0 0
      %5044 = vmatpush2.bf16.msra.mxu0 0
      %5045 = vmatprep.subr.bf16.mxu0 0
      %5046 = vmatpush2.bf16.msra.mxu0 0
      %5047 = vmatprep.subr.bf16.mxu0 0
      %5048 = vmatpush2.bf16.msra.mxu0 0
      %5049 = vmatprep.subr.bf16.mxu0 0
      %5050 = vmatpush2.bf16.msra.mxu0 0
      %5051 = vmatprep.subr.bf16.mxu0 0
      %5052 = vmatpush2.bf16.msra.mxu0 0
      %5053 = vmatprep.mubr.bf16.mxu0 0
      %5054 = vmatmul.mubr.bf16.gmra.mxu0 %v4957
      %v5055 = vpop.f32.mrf.mxu0
      %v5056 = vadd.f32 0.0, %v5055
      %v5057 = vpop.f32.mrf.mxu0
      %v5058 = vpop.f32.mrf.mxu0
      %v5059 = vadd.f32 0.0, %v5058
      %v5060 = vpop.f32.mrf.mxu0
      %5061 = vmatprep.mubr.bf16.mxu0 0
      %5062 = vmatmul.mubr.bf16.gmra.mxu0 %v4958
      %v5063 = vpop.f32.mrf.mxu0
      %v5064 = vadd.f32 0.0, %v5063
      %v5065 = vpop.f32.mrf.mxu0
      %v5066 = vpop.f32.mrf.mxu0
      %v5067 = vadd.f32 0.0, %v5066
      %v5068 = vpop.f32.mrf.mxu0
      %5069 = vmatprep.mubr.bf16.mxu0 0
      %5070 = vmatmul.mubr.bf16.gmra.mxu0 %v4959
      %v5071 = vpop.f32.mrf.mxu0
      %v5072 = vadd.f32 0.0, %v5071
      %v5073 = vpop.f32.mrf.mxu0
      %v5074 = vpop.f32.mrf.mxu0
      %v5075 = vadd.f32 0.0, %v5074
      %v5076 = vpop.f32.mrf.mxu0
      %5077 = vmatprep.mubr.bf16.mxu0 0
      %5078 = vmatmul.mubr.bf16.gmra.mxu0 %v4960
      %v5079 = vpop.f32.mrf.mxu0
      %v5080 = vadd.f32 0.0, %v5079
      %v5081 = vpop.f32.mrf.mxu0
      %v5082 = vpop.f32.mrf.mxu0
      %v5083 = vadd.f32 0.0, %v5082
      %v5084 = vpop.f32.mrf.mxu0
      %5085 = vmatprep.mubr.bf16.mxu0 0
      %5086 = vmatmul.mubr.bf16.gmra.mxu0 %v4961
      %v5087 = vpop.f32.mrf.mxu0
      %v5088 = vadd.f32 0.0, %v5087
      %v5089 = vpop.f32.mrf.mxu0
      %v5090 = vpop.f32.mrf.mxu0
      %v5091 = vadd.f32 0.0, %v5090
      %v5092 = vpop.f32.mrf.mxu0
      %5093 = vmatprep.mubr.bf16.mxu0 0
      %5094 = vmatmul.mubr.bf16.gmra.mxu0 %v4962
      %v5095 = vpop.f32.mrf.mxu0
      %v5096 = vadd.f32 0.0, %v5095
      %v5097 = vpop.f32.mrf.mxu0
      %v5098 = vpop.f32.mrf.mxu0
      %v5099 = vadd.f32 0.0, %v5098
      %v5100 = vpop.f32.mrf.mxu0
      %5101 = vmatprep.mubr.bf16.mxu0 0
      %5102 = vmatmul.mubr.bf16.gmra.mxu0 %v4963
      %v5103 = vpop.f32.mrf.mxu0
      %v5104 = vadd.f32 0.0, %v5103
      %v5105 = vpop.f32.mrf.mxu0
      %v5106 = vpop.f32.mrf.mxu0
      %v5107 = vadd.f32 0.0, %v5106
      %v5108 = vpop.f32.mrf.mxu0
      %5109 = vmatprep.mubr.bf16.mxu0 0
      %5110 = vmatmul.mubr.bf16.gmra.mxu0 %v4964
      %v5111 = vpop.f32.mrf.mxu0
      %v5112 = vadd.f32 0.0, %v5111
      %v5113 = vpop.f32.mrf.mxu0
      %v5114 = vpop.f32.mrf.mxu0
      %v5115 = vadd.f32 0.0, %v5114
      %v5116 = vpop.f32.mrf.mxu0
      %5117 = vmatprep.mubr.bf16.mxu0 0
      %5118 = vmatmul.mubr.bf16.gmra.mxu0 %v4965
      %v5119 = vpop.f32.mrf.mxu0
      %v5120 = vadd.f32 0.0, %v5119
      %v5121 = vpop.f32.mrf.mxu0
      %v5122 = vpop.f32.mrf.mxu0
      %v5123 = vadd.f32 0.0, %v5122
      %v5124 = vpop.f32.mrf.mxu0
      %5125 = vmatprep.mubr.bf16.mxu0 0
      %5126 = vmatmul.mubr.bf16.gmra.mxu0 %v4966
      %v5127 = vpop.f32.mrf.mxu0
      %v5128 = vadd.f32 0.0, %v5127
      %v5129 = vpop.f32.mrf.mxu0
      %v5130 = vpop.f32.mrf.mxu0
      %v5131 = vadd.f32 0.0, %v5130
      %v5132 = vpop.f32.mrf.mxu0
      %5133 = vmatprep.mubr.bf16.mxu0 0
      %5134 = vmatmul.mubr.bf16.gmra.mxu0 %v4967
      %v5135 = vpop.f32.mrf.mxu0
      %v5136 = vadd.f32 0.0, %v5135
      %v5137 = vpop.f32.mrf.mxu0
      %v5138 = vpop.f32.mrf.mxu0
      %v5139 = vadd.f32 0.0, %v5138
      %v5140 = vpop.f32.mrf.mxu0
      %5141 = vmatprep.mubr.bf16.mxu0 0
      %5142 = vmatmul.mubr.bf16.gmra.mxu0 %v4968
      %v5143 = vpop.f32.mrf.mxu0
      %v5144 = vadd.f32 0.0, %v5143
      %v5145 = vpop.f32.mrf.mxu0
      %v5146 = vpop.f32.mrf.mxu0
      %v5147 = vadd.f32 0.0, %v5146
      %v5148 = vpop.f32.mrf.mxu0
      %5149 = vmatprep.mubr.bf16.mxu0 0
      %5150 = vmatmul.mubr.bf16.gmra.mxu0 %v4969
      %v5151 = vpop.f32.mrf.mxu0
      %v5152 = vadd.f32 0.0, %v5151
      %v5153 = vpop.f32.mrf.mxu0
      %v5154 = vpop.f32.mrf.mxu0
      %v5155 = vadd.f32 0.0, %v5154
      %v5156 = vpop.f32.mrf.mxu0
      %5157 = vmatprep.mubr.bf16.mxu0 0
      %5158 = vmatmul.mubr.bf16.gmra.mxu0 %v4970
      %v5159 = vpop.f32.mrf.mxu0
      %v5160 = vadd.f32 0.0, %v5159
      %v5161 = vpop.f32.mrf.mxu0
      %v5162 = vpop.f32.mrf.mxu0
      %v5163 = vadd.f32 0.0, %v5162
      %v5164 = vpop.f32.mrf.mxu0
      %5165 = vmatprep.mubr.bf16.mxu0 0
      %5166 = vmatmul.mubr.bf16.gmra.mxu0 %v4971
      %v5167 = vpop.f32.mrf.mxu0
      %v5168 = vadd.f32 0.0, %v5167
      %v5169 = vpop.f32.mrf.mxu0
      %v5170 = vpop.f32.mrf.mxu0
      %v5171 = vadd.f32 0.0, %v5170
      %v5172 = vpop.f32.mrf.mxu0
      %5173 = vmatprep.mubr.bf16.mxu0 0
      %5174 = vmatmul.mubr.bf16.gmra.mxu0 %v4972
      %v5175 = vpop.f32.mrf.mxu0
      %v5176 = vadd.f32 0.0, %v5175
      %v5177 = vpop.f32.mrf.mxu0
      %v5178 = vpop.f32.mrf.mxu0
      %v5179 = vadd.f32 0.0, %v5178
      %v5180 = vpop.f32.mrf.mxu0
      %5181 = vdwg.mxu0
      %v5182 = vmul.f32 %v5056, 2.0
      %v5183 = vmul.f32 %v5059, 2.0
      %v5184 = vmul.f32 %v5064, 2.0
      %v5185 = vmul.f32 %v5067, 2.0
      %v5186 = vmul.f32 %v5072, 2.0
      %v5187 = vmul.f32 %v5075, 2.0
      %v5188 = vmul.f32 %v5080, 2.0
      %v5189 = vmul.f32 %v5083, 2.0
      %v5190 = vmul.f32 %v5088, 2.0
      %v5191 = vmul.f32 %v5091, 2.0
      %v5192 = vmul.f32 %v5096, 2.0
      %v5193 = vmul.f32 %v5099, 2.0
      %v5194 = vmul.f32 %v5104, 2.0
      %v5195 = vmul.f32 %v5107, 2.0
      %v5196 = vmul.f32 %v5112, 2.0
      %v5197 = vmul.f32 %v5115, 2.0
      %v5198 = vmul.f32 %v5120, 2.0
      %v5199 = vmul.f32 %v5123, 2.0
      %v5200 = vmul.f32 %v5128, 2.0
      %v5201 = vmul.f32 %v5131, 2.0
      %v5202 = vmul.f32 %v5136, 2.0
      %v5203 = vmul.f32 %v5139, 2.0
      %v5204 = vmul.f32 %v5144, 2.0
      %v5205 = vmul.f32 %v5147, 2.0
      %v5206 = vmul.f32 %v5152, 2.0
      %v5207 = vmul.f32 %v5155, 2.0
      %v5208 = vmul.f32 %v5160, 2.0
      %v5209 = vmul.f32 %v5163, 2.0
      %v5210 = vmul.f32 %v5168, 2.0
      %v5211 = vmul.f32 %v5171, 2.0
      %v5212 = vmul.f32 %v5176, 2.0
      %v5213 = vmul.f32 %v5179, 2.0
      %v5214 = vlaneseq
      %v5215 = vshrl.u32 %v5214, 7
      %v5216 = vsub.s32 0, %v5215
      %v5217 = vrot.slane %v4956, %v5216
      %v5218 = vsub.f32 %v5217, %v5182
      %v5219 = vsub.f32 %v5217, %v5183
      %v5220 = vsub.f32 %v5217, %v5184
      %v5221 = vsub.f32 %v5217, %v5185
      %v5222 = vsub.f32 %v5217, %v5186
      %v5223 = vsub.f32 %v5217, %v5187
      %v5224 = vsub.f32 %v5217, %v5188
      %v5225 = vsub.f32 %v5217, %v5189
      %v5226 = vsub.f32 %v5217, %v5190
      %v5227 = vsub.f32 %v5217, %v5191
      %v5228 = vsub.f32 %v5217, %v5192
      %v5229 = vsub.f32 %v5217, %v5193
      %v5230 = vsub.f32 %v5217, %v5194
      %v5231 = vsub.f32 %v5217, %v5195
      %v5232 = vsub.f32 %v5217, %v5196
      %v5233 = vsub.f32 %v5217, %v5197
      %v5234 = vsub.f32 %v5217, %v5198
      %v5235 = vsub.f32 %v5217, %v5199
      %v5236 = vsub.f32 %v5217, %v5200
      %v5237 = vsub.f32 %v5217, %v5201
      %v5238 = vsub.f32 %v5217, %v5202
      %v5239 = vsub.f32 %v5217, %v5203
      %v5240 = vsub.f32 %v5217, %v5204
      %v5241 = vsub.f32 %v5217, %v5205
      %v5242 = vsub.f32 %v5217, %v5206
      %v5243 = vsub.f32 %v5217, %v5207
      %v5244 = vsub.f32 %v5217, %v5208
      %v5245 = vsub.f32 %v5217, %v5209
      %v5246 = vsub.f32 %v5217, %v5210
      %v5247 = vsub.f32 %v5217, %v5211
      %v5248 = vsub.f32 %v5217, %v5212
      %v5249 = vsub.f32 %v5217, %v5213
      %5250 = vmin.xlane.f32.xlu0 %v5218
      %v5251 = vpop.xlane.xlu0 %5250
      %5252 = vmin.xlane.f32.xlu0 %v5219
      %v5253 = vpop.xlane.xlu0 %5252
      %5254 = vmin.xlane.f32.xlu0 %v5220
      %v5255 = vpop.xlane.xlu0 %5254
      %5256 = vmin.xlane.f32.xlu0 %v5221
      %v5257 = vpop.xlane.xlu0 %5256
      %5258 = vmin.xlane.f32.xlu0 %v5222
      %v5259 = vpop.xlane.xlu0 %5258
      %5260 = vmin.xlane.f32.xlu0 %v5223
      %v5261 = vpop.xlane.xlu0 %5260
      %5262 = vmin.xlane.f32.xlu0 %v5224
      %v5263 = vpop.xlane.xlu0 %5262
      %5264 = vmin.xlane.f32.xlu0 %v5225
      %v5265 = vpop.xlane.xlu0 %5264
      %5266 = vmin.xlane.f32.xlu0 %v5226
      %v5267 = vpop.xlane.xlu0 %5266
      %5268 = vmin.xlane.f32.xlu0 %v5227
      %v5269 = vpop.xlane.xlu0 %5268
      %5270 = vmin.xlane.f32.xlu0 %v5228
      %v5271 = vpop.xlane.xlu0 %5270
      %5272 = vmin.xlane.f32.xlu0 %v5229
      %v5273 = vpop.xlane.xlu0 %5272
      %5274 = vmin.xlane.f32.xlu0 %v5230
      %v5275 = vpop.xlane.xlu0 %5274
      %5276 = vmin.xlane.f32.xlu0 %v5231
      %v5277 = vpop.xlane.xlu0 %5276
      %5278 = vmin.xlane.f32.xlu0 %v5232
      %v5279 = vpop.xlane.xlu0 %5278
      %5280 = vmin.xlane.f32.xlu0 %v5233
      %v5281 = vpop.xlane.xlu0 %5280
      %5282 = vmin.xlane.f32.xlu0 %v5234
      %v5283 = vpop.xlane.xlu0 %5282
      %5284 = vmin.xlane.f32.xlu0 %v5235
      %v5285 = vpop.xlane.xlu0 %5284
      %5286 = vmin.xlane.f32.xlu0 %v5236
      %v5287 = vpop.xlane.xlu0 %5286
      %5288 = vmin.xlane.f32.xlu0 %v5237
      %v5289 = vpop.xlane.xlu0 %5288
      %5290 = vmin.xlane.f32.xlu0 %v5238
      %v5291 = vpop.xlane.xlu0 %5290
      %5292 = vmin.xlane.f32.xlu0 %v5239
      %v5293 = vpop.xlane.xlu0 %5292
      %5294 = vmin.xlane.f32.xlu0 %v5240
      %v5295 = vpop.xlane.xlu0 %5294
      %5296 = vmin.xlane.f32.xlu0 %v5241
      %v5297 = vpop.xlane.xlu0 %5296
      %5298 = vmin.xlane.f32.xlu0 %v5242
      %v5299 = vpop.xlane.xlu0 %5298
      %5300 = vmin.xlane.f32.xlu0 %v5243
      %v5301 = vpop.xlane.xlu0 %5300
      %5302 = vmin.xlane.f32.xlu0 %v5244
      %v5303 = vpop.xlane.xlu0 %5302
      %5304 = vmin.xlane.f32.xlu0 %v5245
      %v5305 = vpop.xlane.xlu0 %5304
      %5306 = vmin.xlane.f32.xlu0 %v5246
      %v5307 = vpop.xlane.xlu0 %5306
      %5308 = vmin.xlane.f32.xlu0 %v5247
      %v5309 = vpop.xlane.xlu0 %5308
      %5310 = vmin.xlane.f32.xlu0 %v5248
      %v5311 = vpop.xlane.xlu0 %5310
      %5312 = vmin.xlane.f32.xlu0 %v5249
      %v5313 = vpop.xlane.xlu0 %5312
      %vm5314 = vcmp.eq.f32.partialorder %v5218, %v5251
      %vm5315 = vcmp.eq.f32.partialorder %v5219, %v5253
      %vm5316 = vcmp.eq.f32.partialorder %v5220, %v5255
      %vm5317 = vcmp.eq.f32.partialorder %v5221, %v5257
      %vm5318 = vcmp.eq.f32.partialorder %v5222, %v5259
      %vm5319 = vcmp.eq.f32.partialorder %v5223, %v5261
      %vm5320 = vcmp.eq.f32.partialorder %v5224, %v5263
      %vm5321 = vcmp.eq.f32.partialorder %v5225, %v5265
      %vm5322 = vcmp.eq.f32.partialorder %v5226, %v5267
      %vm5323 = vcmp.eq.f32.partialorder %v5227, %v5269
      %vm5324 = vcmp.eq.f32.partialorder %v5228, %v5271
      %vm5325 = vcmp.eq.f32.partialorder %v5229, %v5273
      %vm5326 = vcmp.eq.f32.partialorder %v5230, %v5275
      %vm5327 = vcmp.eq.f32.partialorder %v5231, %v5277
      %vm5328 = vcmp.eq.f32.partialorder %v5232, %v5279
      %vm5329 = vcmp.eq.f32.partialorder %v5233, %v5281
      %vm5330 = vcmp.eq.f32.partialorder %v5234, %v5283
      %vm5331 = vcmp.eq.f32.partialorder %v5235, %v5285
      %vm5332 = vcmp.eq.f32.partialorder %v5236, %v5287
      %vm5333 = vcmp.eq.f32.partialorder %v5237, %v5289
      %vm5334 = vcmp.eq.f32.partialorder %v5238, %v5291
      %vm5335 = vcmp.eq.f32.partialorder %v5239, %v5293
      %vm5336 = vcmp.eq.f32.partialorder %v5240, %v5295
      %vm5337 = vcmp.eq.f32.partialorder %v5241, %v5297
      %vm5338 = vcmp.eq.f32.partialorder %v5242, %v5299
      %vm5339 = vcmp.eq.f32.partialorder %v5243, %v5301
      %vm5340 = vcmp.eq.f32.partialorder %v5244, %v5303
      %vm5341 = vcmp.eq.f32.partialorder %v5245, %v5305
      %vm5342 = vcmp.eq.f32.partialorder %v5246, %v5307
      %vm5343 = vcmp.eq.f32.partialorder %v5247, %v5309
      %vm5344 = vcmp.eq.f32.partialorder %v5248, %v5311
      %vm5345 = vcmp.eq.f32.partialorder %v5249, %v5313
      %v5346 = vsel %vm5314, %v449, 128
      %v5347 = vsel %vm5315, %v449, 128
      %v5348 = vsel %vm5316, %v449, 128
      %v5349 = vsel %vm5317, %v449, 128
      %v5350 = vsel %vm5318, %v449, 128
      %v5351 = vsel %vm5319, %v449, 128
      %v5352 = vsel %vm5320, %v449, 128
      %v5353 = vsel %vm5321, %v449, 128
      %v5354 = vsel %vm5322, %v449, 128
      %v5355 = vsel %vm5323, %v449, 128
      %v5356 = vsel %vm5324, %v449, 128
      %v5357 = vsel %vm5325, %v449, 128
      %v5358 = vsel %vm5326, %v449, 128
      %v5359 = vsel %vm5327, %v449, 128
      %v5360 = vsel %vm5328, %v449, 128
      %v5361 = vsel %vm5329, %v449, 128
      %v5362 = vsel %vm5330, %v449, 128
      %v5363 = vsel %vm5331, %v449, 128
      %v5364 = vsel %vm5332, %v449, 128
      %v5365 = vsel %vm5333, %v449, 128
      %v5366 = vsel %vm5334, %v449, 128
      %v5367 = vsel %vm5335, %v449, 128
      %v5368 = vsel %vm5336, %v449, 128
      %v5369 = vsel %vm5337, %v449, 128
      %v5370 = vsel %vm5338, %v449, 128
      %v5371 = vsel %vm5339, %v449, 128
      %v5372 = vsel %vm5340, %v449, 128
      %v5373 = vsel %vm5341, %v449, 128
      %v5374 = vsel %vm5342, %v449, 128
      %v5375 = vsel %vm5343, %v449, 128
      %v5376 = vsel %vm5344, %v449, 128
      %v5377 = vsel %vm5345, %v449, 128
      %v5378 = vand.u32 %v5346, 65535
      %v5379 = vshra.s32 %v5346, 16
      %v5380 = vcvt.s32.f32 %v5378
      %v5381 = vcvt.s32.f32 %v5379
      %5382 = vmin.xlane.f32.xlu0 %v5381
      %v5383 = vpop.xlane.xlu0 %5382
      %vm5384 = vcmp.eq.f32.partialorder %v5381, %v5383
      %v5385 = vsel %vm5384, %v5380, inf
      %5386 = vmin.xlane.f32.xlu0 %v5385
      %v5387 = vpop.xlane.xlu0 %5386
      %v5388 = vcvt.f32.s32 %v5387
      %v5389 = vcvt.f32.s32 %v5383
      %v5390 = vshll.u32 %v5389, 16
      %v5391 = vadd.s32 %v5390, %v5388
      %v5392 = vand.u32 %v5347, 65535
      %v5393 = vshra.s32 %v5347, 16
      %v5394 = vcvt.s32.f32 %v5392
      %v5395 = vcvt.s32.f32 %v5393
      %5396 = vmin.xlane.f32.xlu0 %v5395
      %v5397 = vpop.xlane.xlu0 %5396
      %vm5398 = vcmp.eq.f32.partialorder %v5395, %v5397
      %v5399 = vsel %vm5398, %v5394, inf
      %5400 = vmin.xlane.f32.xlu0 %v5399
      %v5401 = vpop.xlane.xlu0 %5400
      %v5402 = vcvt.f32.s32 %v5401
      %v5403 = vcvt.f32.s32 %v5397
      %v5404 = vshll.u32 %v5403, 16
      %v5405 = vadd.s32 %v5404, %v5402
      %v5406 = vand.u32 %v5348, 65535
      %v5407 = vshra.s32 %v5348, 16
      %v5408 = vcvt.s32.f32 %v5406
      %v5409 = vcvt.s32.f32 %v5407
      %5410 = vmin.xlane.f32.xlu0 %v5409
      %v5411 = vpop.xlane.xlu0 %5410
      %vm5412 = vcmp.eq.f32.partialorder %v5409, %v5411
      %v5413 = vsel %vm5412, %v5408, inf
      %5414 = vmin.xlane.f32.xlu0 %v5413
      %v5415 = vpop.xlane.xlu0 %5414
      %v5416 = vcvt.f32.s32 %v5415
      %v5417 = vcvt.f32.s32 %v5411
      %v5418 = vshll.u32 %v5417, 16
      %v5419 = vadd.s32 %v5418, %v5416
      %v5420 = vand.u32 %v5349, 65535
      %v5421 = vshra.s32 %v5349, 16
      %v5422 = vcvt.s32.f32 %v5420
      %v5423 = vcvt.s32.f32 %v5421
      %5424 = vmin.xlane.f32.xlu0 %v5423
      %v5425 = vpop.xlane.xlu0 %5424
      %vm5426 = vcmp.eq.f32.partialorder %v5423, %v5425
      %v5427 = vsel %vm5426, %v5422, inf
      %5428 = vmin.xlane.f32.xlu0 %v5427
      %v5429 = vpop.xlane.xlu0 %5428
      %v5430 = vcvt.f32.s32 %v5429
      %v5431 = vcvt.f32.s32 %v5425
      %v5432 = vshll.u32 %v5431, 16
      %v5433 = vadd.s32 %v5432, %v5430
      %v5434 = vand.u32 %v5350, 65535
      %v5435 = vshra.s32 %v5350, 16
      %v5436 = vcvt.s32.f32 %v5434
      %v5437 = vcvt.s32.f32 %v5435
      %5438 = vmin.xlane.f32.xlu0 %v5437
      %v5439 = vpop.xlane.xlu0 %5438
      %vm5440 = vcmp.eq.f32.partialorder %v5437, %v5439
      %v5441 = vsel %vm5440, %v5436, inf
      %5442 = vmin.xlane.f32.xlu0 %v5441
      %v5443 = vpop.xlane.xlu0 %5442
      %v5444 = vcvt.f32.s32 %v5443
      %v5445 = vcvt.f32.s32 %v5439
      %v5446 = vshll.u32 %v5445, 16
      %v5447 = vadd.s32 %v5446, %v5444
      %v5448 = vand.u32 %v5351, 65535
      %v5449 = vshra.s32 %v5351, 16
      %v5450 = vcvt.s32.f32 %v5448
      %v5451 = vcvt.s32.f32 %v5449
      %5452 = vmin.xlane.f32.xlu0 %v5451
      %v5453 = vpop.xlane.xlu0 %5452
      %vm5454 = vcmp.eq.f32.partialorder %v5451, %v5453
      %v5455 = vsel %vm5454, %v5450, inf
      %5456 = vmin.xlane.f32.xlu0 %v5455
      %v5457 = vpop.xlane.xlu0 %5456
      %v5458 = vcvt.f32.s32 %v5457
      %v5459 = vcvt.f32.s32 %v5453
      %v5460 = vshll.u32 %v5459, 16
      %v5461 = vadd.s32 %v5460, %v5458
      %v5462 = vand.u32 %v5352, 65535
      %v5463 = vshra.s32 %v5352, 16
      %v5464 = vcvt.s32.f32 %v5462
      %v5465 = vcvt.s32.f32 %v5463
      %5466 = vmin.xlane.f32.xlu0 %v5465
      %v5467 = vpop.xlane.xlu0 %5466
      %vm5468 = vcmp.eq.f32.partialorder %v5465, %v5467
      %v5469 = vsel %vm5468, %v5464, inf
      %5470 = vmin.xlane.f32.xlu0 %v5469
      %v5471 = vpop.xlane.xlu0 %5470
      %v5472 = vcvt.f32.s32 %v5471
      %v5473 = vcvt.f32.s32 %v5467
      %v5474 = vshll.u32 %v5473, 16
      %v5475 = vadd.s32 %v5474, %v5472
      %v5476 = vand.u32 %v5353, 65535
      %v5477 = vshra.s32 %v5353, 16
      %v5478 = vcvt.s32.f32 %v5476
      %v5479 = vcvt.s32.f32 %v5477
      %5480 = vmin.xlane.f32.xlu0 %v5479
      %v5481 = vpop.xlane.xlu0 %5480
      %vm5482 = vcmp.eq.f32.partialorder %v5479, %v5481
      %v5483 = vsel %vm5482, %v5478, inf
      %5484 = vmin.xlane.f32.xlu0 %v5483
      %v5485 = vpop.xlane.xlu0 %5484
      %v5486 = vcvt.f32.s32 %v5485
      %v5487 = vcvt.f32.s32 %v5481
      %v5488 = vshll.u32 %v5487, 16
      %v5489 = vadd.s32 %v5488, %v5486
      %v5490 = vand.u32 %v5354, 65535
      %v5491 = vshra.s32 %v5354, 16
      %v5492 = vcvt.s32.f32 %v5490
      %v5493 = vcvt.s32.f32 %v5491
      %5494 = vmin.xlane.f32.xlu0 %v5493
      %v5495 = vpop.xlane.xlu0 %5494
      %vm5496 = vcmp.eq.f32.partialorder %v5493, %v5495
      %v5497 = vsel %vm5496, %v5492, inf
      %5498 = vmin.xlane.f32.xlu0 %v5497
      %v5499 = vpop.xlane.xlu0 %5498
      %v5500 = vcvt.f32.s32 %v5499
      %v5501 = vcvt.f32.s32 %v5495
      %v5502 = vshll.u32 %v5501, 16
      %v5503 = vadd.s32 %v5502, %v5500
      %v5504 = vand.u32 %v5355, 65535
      %v5505 = vshra.s32 %v5355, 16
      %v5506 = vcvt.s32.f32 %v5504
      %v5507 = vcvt.s32.f32 %v5505
      %5508 = vmin.xlane.f32.xlu0 %v5507
      %v5509 = vpop.xlane.xlu0 %5508
      %vm5510 = vcmp.eq.f32.partialorder %v5507, %v5509
      %v5511 = vsel %vm5510, %v5506, inf
      %5512 = vmin.xlane.f32.xlu0 %v5511
      %v5513 = vpop.xlane.xlu0 %5512
      %v5514 = vcvt.f32.s32 %v5513
      %v5515 = vcvt.f32.s32 %v5509
      %v5516 = vshll.u32 %v5515, 16
      %v5517 = vadd.s32 %v5516, %v5514
      %v5518 = vand.u32 %v5356, 65535
      %v5519 = vshra.s32 %v5356, 16
      %v5520 = vcvt.s32.f32 %v5518
      %v5521 = vcvt.s32.f32 %v5519
      %5522 = vmin.xlane.f32.xlu0 %v5521
      %v5523 = vpop.xlane.xlu0 %5522
      %vm5524 = vcmp.eq.f32.partialorder %v5521, %v5523
      %v5525 = vsel %vm5524, %v5520, inf
      %5526 = vmin.xlane.f32.xlu0 %v5525
      %v5527 = vpop.xlane.xlu0 %5526
      %v5528 = vcvt.f32.s32 %v5527
      %v5529 = vcvt.f32.s32 %v5523
      %v5530 = vshll.u32 %v5529, 16
      %v5531 = vadd.s32 %v5530, %v5528
      %v5532 = vand.u32 %v5357, 65535
      %v5533 = vshra.s32 %v5357, 16
      %v5534 = vcvt.s32.f32 %v5532
      %v5535 = vcvt.s32.f32 %v5533
      %5536 = vmin.xlane.f32.xlu0 %v5535
      %v5537 = vpop.xlane.xlu0 %5536
      %vm5538 = vcmp.eq.f32.partialorder %v5535, %v5537
      %v5539 = vsel %vm5538, %v5534, inf
      %5540 = vmin.xlane.f32.xlu0 %v5539
      %v5541 = vpop.xlane.xlu0 %5540
      %v5542 = vcvt.f32.s32 %v5541
      %v5543 = vcvt.f32.s32 %v5537
      %v5544 = vshll.u32 %v5543, 16
      %v5545 = vadd.s32 %v5544, %v5542
      %v5546 = vand.u32 %v5358, 65535
      %v5547 = vshra.s32 %v5358, 16
      %v5548 = vcvt.s32.f32 %v5546
      %v5549 = vcvt.s32.f32 %v5547
      %5550 = vmin.xlane.f32.xlu0 %v5549
      %v5551 = vpop.xlane.xlu0 %5550
      %vm5552 = vcmp.eq.f32.partialorder %v5549, %v5551
      %v5553 = vsel %vm5552, %v5548, inf
      %5554 = vmin.xlane.f32.xlu0 %v5553
      %v5555 = vpop.xlane.xlu0 %5554
      %v5556 = vcvt.f32.s32 %v5555
      %v5557 = vcvt.f32.s32 %v5551
      %v5558 = vshll.u32 %v5557, 16
      %v5559 = vadd.s32 %v5558, %v5556
      %v5560 = vand.u32 %v5359, 65535
      %v5561 = vshra.s32 %v5359, 16
      %v5562 = vcvt.s32.f32 %v5560
      %v5563 = vcvt.s32.f32 %v5561
      %5564 = vmin.xlane.f32.xlu0 %v5563
      %v5565 = vpop.xlane.xlu0 %5564
      %vm5566 = vcmp.eq.f32.partialorder %v5563, %v5565
      %v5567 = vsel %vm5566, %v5562, inf
      %5568 = vmin.xlane.f32.xlu0 %v5567
      %v5569 = vpop.xlane.xlu0 %5568
      %v5570 = vcvt.f32.s32 %v5569
      %v5571 = vcvt.f32.s32 %v5565
      %v5572 = vshll.u32 %v5571, 16
      %v5573 = vadd.s32 %v5572, %v5570
      %v5574 = vand.u32 %v5360, 65535
      %v5575 = vshra.s32 %v5360, 16
      %v5576 = vcvt.s32.f32 %v5574
      %v5577 = vcvt.s32.f32 %v5575
      %5578 = vmin.xlane.f32.xlu0 %v5577
      %v5579 = vpop.xlane.xlu0 %5578
      %vm5580 = vcmp.eq.f32.partialorder %v5577, %v5579
      %v5581 = vsel %vm5580, %v5576, inf
      %5582 = vmin.xlane.f32.xlu0 %v5581
      %v5583 = vpop.xlane.xlu0 %5582
      %v5584 = vcvt.f32.s32 %v5583
      %v5585 = vcvt.f32.s32 %v5579
      %v5586 = vshll.u32 %v5585, 16
      %v5587 = vadd.s32 %v5586, %v5584
      %v5588 = vand.u32 %v5361, 65535
      %v5589 = vshra.s32 %v5361, 16
      %v5590 = vcvt.s32.f32 %v5588
      %v5591 = vcvt.s32.f32 %v5589
      %5592 = vmin.xlane.f32.xlu0 %v5591
      %v5593 = vpop.xlane.xlu0 %5592
      %vm5594 = vcmp.eq.f32.partialorder %v5591, %v5593
      %v5595 = vsel %vm5594, %v5590, inf
      %5596 = vmin.xlane.f32.xlu0 %v5595
      %v5597 = vpop.xlane.xlu0 %5596
      %v5598 = vcvt.f32.s32 %v5597
      %v5599 = vcvt.f32.s32 %v5593
      %v5600 = vshll.u32 %v5599, 16
      %v5601 = vadd.s32 %v5600, %v5598
      %v5602 = vand.u32 %v5362, 65535
      %v5603 = vshra.s32 %v5362, 16
      %v5604 = vcvt.s32.f32 %v5602
      %v5605 = vcvt.s32.f32 %v5603
      %5606 = vmin.xlane.f32.xlu0 %v5605
      %v5607 = vpop.xlane.xlu0 %5606
      %vm5608 = vcmp.eq.f32.partialorder %v5605, %v5607
      %v5609 = vsel %vm5608, %v5604, inf
      %5610 = vmin.xlane.f32.xlu0 %v5609
      %v5611 = vpop.xlane.xlu0 %5610
      %v5612 = vcvt.f32.s32 %v5611
      %v5613 = vcvt.f32.s32 %v5607
      %v5614 = vshll.u32 %v5613, 16
      %v5615 = vadd.s32 %v5614, %v5612
      %v5616 = vand.u32 %v5363, 65535
      %v5617 = vshra.s32 %v5363, 16
      %v5618 = vcvt.s32.f32 %v5616
      %v5619 = vcvt.s32.f32 %v5617
      %5620 = vmin.xlane.f32.xlu0 %v5619
      %v5621 = vpop.xlane.xlu0 %5620
      %vm5622 = vcmp.eq.f32.partialorder %v5619, %v5621
      %v5623 = vsel %vm5622, %v5618, inf
      %5624 = vmin.xlane.f32.xlu0 %v5623
      %v5625 = vpop.xlane.xlu0 %5624
      %v5626 = vcvt.f32.s32 %v5625
      %v5627 = vcvt.f32.s32 %v5621
      %v5628 = vshll.u32 %v5627, 16
      %v5629 = vadd.s32 %v5628, %v5626
      %v5630 = vand.u32 %v5364, 65535
      %v5631 = vshra.s32 %v5364, 16
      %v5632 = vcvt.s32.f32 %v5630
      %v5633 = vcvt.s32.f32 %v5631
      %5634 = vmin.xlane.f32.xlu0 %v5633
      %v5635 = vpop.xlane.xlu0 %5634
      %vm5636 = vcmp.eq.f32.partialorder %v5633, %v5635
      %v5637 = vsel %vm5636, %v5632, inf
      %5638 = vmin.xlane.f32.xlu0 %v5637
      %v5639 = vpop.xlane.xlu0 %5638
      %v5640 = vcvt.f32.s32 %v5639
      %v5641 = vcvt.f32.s32 %v5635
      %v5642 = vshll.u32 %v5641, 16
      %v5643 = vadd.s32 %v5642, %v5640
      %v5644 = vand.u32 %v5365, 65535
      %v5645 = vshra.s32 %v5365, 16
      %v5646 = vcvt.s32.f32 %v5644
      %v5647 = vcvt.s32.f32 %v5645
      %5648 = vmin.xlane.f32.xlu0 %v5647
      %v5649 = vpop.xlane.xlu0 %5648
      %vm5650 = vcmp.eq.f32.partialorder %v5647, %v5649
      %v5651 = vsel %vm5650, %v5646, inf
      %5652 = vmin.xlane.f32.xlu0 %v5651
      %v5653 = vpop.xlane.xlu0 %5652
      %v5654 = vcvt.f32.s32 %v5653
      %v5655 = vcvt.f32.s32 %v5649
      %v5656 = vshll.u32 %v5655, 16
      %v5657 = vadd.s32 %v5656, %v5654
      %v5658 = vand.u32 %v5366, 65535
      %v5659 = vshra.s32 %v5366, 16
      %v5660 = vcvt.s32.f32 %v5658
      %v5661 = vcvt.s32.f32 %v5659
      %5662 = vmin.xlane.f32.xlu0 %v5661
      %v5663 = vpop.xlane.xlu0 %5662
      %vm5664 = vcmp.eq.f32.partialorder %v5661, %v5663
      %v5665 = vsel %vm5664, %v5660, inf
      %5666 = vmin.xlane.f32.xlu0 %v5665
      %v5667 = vpop.xlane.xlu0 %5666
      %v5668 = vcvt.f32.s32 %v5667
      %v5669 = vcvt.f32.s32 %v5663
      %v5670 = vshll.u32 %v5669, 16
      %v5671 = vadd.s32 %v5670, %v5668
      %v5672 = vand.u32 %v5367, 65535
      %v5673 = vshra.s32 %v5367, 16
      %v5674 = vcvt.s32.f32 %v5672
      %v5675 = vcvt.s32.f32 %v5673
      %5676 = vmin.xlane.f32.xlu0 %v5675
      %v5677 = vpop.xlane.xlu0 %5676
      %vm5678 = vcmp.eq.f32.partialorder %v5675, %v5677
      %v5679 = vsel %vm5678, %v5674, inf
      %5680 = vmin.xlane.f32.xlu0 %v5679
      %v5681 = vpop.xlane.xlu0 %5680
      %v5682 = vcvt.f32.s32 %v5681
      %v5683 = vcvt.f32.s32 %v5677
      %v5684 = vshll.u32 %v5683, 16
      %v5685 = vadd.s32 %v5684, %v5682
      %v5686 = vand.u32 %v5368, 65535
      %v5687 = vshra.s32 %v5368, 16
      %v5688 = vcvt.s32.f32 %v5686
      %v5689 = vcvt.s32.f32 %v5687
      %5690 = vmin.xlane.f32.xlu0 %v5689
      %v5691 = vpop.xlane.xlu0 %5690
      %vm5692 = vcmp.eq.f32.partialorder %v5689, %v5691
      %v5693 = vsel %vm5692, %v5688, inf
      %5694 = vmin.xlane.f32.xlu0 %v5693
      %v5695 = vpop.xlane.xlu0 %5694
      %v5696 = vcvt.f32.s32 %v5695
      %v5697 = vcvt.f32.s32 %v5691
      %v5698 = vshll.u32 %v5697, 16
      %v5699 = vadd.s32 %v5698, %v5696
      %v5700 = vand.u32 %v5369, 65535
      %v5701 = vshra.s32 %v5369, 16
      %v5702 = vcvt.s32.f32 %v5700
      %v5703 = vcvt.s32.f32 %v5701
      %5704 = vmin.xlane.f32.xlu0 %v5703
      %v5705 = vpop.xlane.xlu0 %5704
      %vm5706 = vcmp.eq.f32.partialorder %v5703, %v5705
      %v5707 = vsel %vm5706, %v5702, inf
      %5708 = vmin.xlane.f32.xlu0 %v5707
      %v5709 = vpop.xlane.xlu0 %5708
      %v5710 = vcvt.f32.s32 %v5709
      %v5711 = vcvt.f32.s32 %v5705
      %v5712 = vshll.u32 %v5711, 16
      %v5713 = vadd.s32 %v5712, %v5710
      %v5714 = vand.u32 %v5370, 65535
      %v5715 = vshra.s32 %v5370, 16
      %v5716 = vcvt.s32.f32 %v5714
      %v5717 = vcvt.s32.f32 %v5715
      %5718 = vmin.xlane.f32.xlu0 %v5717
      %v5719 = vpop.xlane.xlu0 %5718
      %vm5720 = vcmp.eq.f32.partialorder %v5717, %v5719
      %v5721 = vsel %vm5720, %v5716, inf
      %5722 = vmin.xlane.f32.xlu0 %v5721
      %v5723 = vpop.xlane.xlu0 %5722
      %v5724 = vcvt.f32.s32 %v5723
      %v5725 = vcvt.f32.s32 %v5719
      %v5726 = vshll.u32 %v5725, 16
      %v5727 = vadd.s32 %v5726, %v5724
      %v5728 = vand.u32 %v5371, 65535
      %v5729 = vshra.s32 %v5371, 16
      %v5730 = vcvt.s32.f32 %v5728
      %v5731 = vcvt.s32.f32 %v5729
      %5732 = vmin.xlane.f32.xlu0 %v5731
      %v5733 = vpop.xlane.xlu0 %5732
      %vm5734 = vcmp.eq.f32.partialorder %v5731, %v5733
      %v5735 = vsel %vm5734, %v5730, inf
      %5736 = vmin.xlane.f32.xlu0 %v5735
      %v5737 = vpop.xlane.xlu0 %5736
      %v5738 = vcvt.f32.s32 %v5737
      %v5739 = vcvt.f32.s32 %v5733
      %v5740 = vshll.u32 %v5739, 16
      %v5741 = vadd.s32 %v5740, %v5738
      %v5742 = vand.u32 %v5372, 65535
      %v5743 = vshra.s32 %v5372, 16
      %v5744 = vcvt.s32.f32 %v5742
      %v5745 = vcvt.s32.f32 %v5743
      %5746 = vmin.xlane.f32.xlu0 %v5745
      %v5747 = vpop.xlane.xlu0 %5746
      %vm5748 = vcmp.eq.f32.partialorder %v5745, %v5747
      %v5749 = vsel %vm5748, %v5744, inf
      %5750 = vmin.xlane.f32.xlu0 %v5749
      %v5751 = vpop.xlane.xlu0 %5750
      %v5752 = vcvt.f32.s32 %v5751
      %v5753 = vcvt.f32.s32 %v5747
      %v5754 = vshll.u32 %v5753, 16
      %v5755 = vadd.s32 %v5754, %v5752
      %v5756 = vand.u32 %v5373, 65535
      %v5757 = vshra.s32 %v5373, 16
      %v5758 = vcvt.s32.f32 %v5756
      %v5759 = vcvt.s32.f32 %v5757
      %5760 = vmin.xlane.f32.xlu0 %v5759
      %v5761 = vpop.xlane.xlu0 %5760
      %vm5762 = vcmp.eq.f32.partialorder %v5759, %v5761
      %v5763 = vsel %vm5762, %v5758, inf
      %5764 = vmin.xlane.f32.xlu0 %v5763
      %v5765 = vpop.xlane.xlu0 %5764
      %v5766 = vcvt.f32.s32 %v5765
      %v5767 = vcvt.f32.s32 %v5761
      %v5768 = vshll.u32 %v5767, 16
      %v5769 = vadd.s32 %v5768, %v5766
      %v5770 = vand.u32 %v5374, 65535
      %v5771 = vshra.s32 %v5374, 16
      %v5772 = vcvt.s32.f32 %v5770
      %v5773 = vcvt.s32.f32 %v5771
      %5774 = vmin.xlane.f32.xlu0 %v5773
      %v5775 = vpop.xlane.xlu0 %5774
      %vm5776 = vcmp.eq.f32.partialorder %v5773, %v5775
      %v5777 = vsel %vm5776, %v5772, inf
      %5778 = vmin.xlane.f32.xlu0 %v5777
      %v5779 = vpop.xlane.xlu0 %5778
      %v5780 = vcvt.f32.s32 %v5779
      %v5781 = vcvt.f32.s32 %v5775
      %v5782 = vshll.u32 %v5781, 16
      %v5783 = vadd.s32 %v5782, %v5780
      %v5784 = vand.u32 %v5375, 65535
      %v5785 = vshra.s32 %v5375, 16
      %v5786 = vcvt.s32.f32 %v5784
      %v5787 = vcvt.s32.f32 %v5785
      %5788 = vmin.xlane.f32.xlu0 %v5787
      %v5789 = vpop.xlane.xlu0 %5788
      %vm5790 = vcmp.eq.f32.partialorder %v5787, %v5789
      %v5791 = vsel %vm5790, %v5786, inf
      %5792 = vmin.xlane.f32.xlu0 %v5791
      %v5793 = vpop.xlane.xlu0 %5792
      %v5794 = vcvt.f32.s32 %v5793
      %v5795 = vcvt.f32.s32 %v5789
      %v5796 = vshll.u32 %v5795, 16
      %v5797 = vadd.s32 %v5796, %v5794
      %v5798 = vand.u32 %v5376, 65535
      %v5799 = vshra.s32 %v5376, 16
      %v5800 = vcvt.s32.f32 %v5798
      %v5801 = vcvt.s32.f32 %v5799
      %5802 = vmin.xlane.f32.xlu0 %v5801
      %v5803 = vpop.xlane.xlu0 %5802
      %vm5804 = vcmp.eq.f32.partialorder %v5801, %v5803
      %v5805 = vsel %vm5804, %v5800, inf
      %5806 = vmin.xlane.f32.xlu0 %v5805
      %v5807 = vpop.xlane.xlu0 %5806
      %v5808 = vcvt.f32.s32 %v5807
      %v5809 = vcvt.f32.s32 %v5803
      %v5810 = vshll.u32 %v5809, 16
      %v5811 = vadd.s32 %v5810, %v5808
      %v5812 = vand.u32 %v5377, 65535
      %v5813 = vshra.s32 %v5377, 16
      %v5814 = vcvt.s32.f32 %v5812
      %v5815 = vcvt.s32.f32 %v5813
      %5816 = vmin.xlane.f32.xlu0 %v5815
      %v5817 = vpop.xlane.xlu0 %5816
      %vm5818 = vcmp.eq.f32.partialorder %v5815, %v5817
      %v5819 = vsel %vm5818, %v5814, inf
      %5820 = vmin.xlane.f32.xlu0 %v5819
      %v5821 = vpop.xlane.xlu0 %5820
      %v5822 = vcvt.f32.s32 %v5821
      %v5823 = vcvt.f32.s32 %v5817
      %v5824 = vshll.u32 %v5823, 16
      %v5825 = vadd.s32 %v5824, %v5822
      %vm5826 = vcmp.eq.s32.totalorder %v449, %v5391
      %vm5827 = vcmp.eq.s32.totalorder %v449, %v5405
      %vm5828 = vcmp.eq.s32.totalorder %v449, %v5419
      %vm5829 = vcmp.eq.s32.totalorder %v449, %v5433
      %vm5830 = vcmp.eq.s32.totalorder %v449, %v5447
      %vm5831 = vcmp.eq.s32.totalorder %v449, %v5461
      %vm5832 = vcmp.eq.s32.totalorder %v449, %v5475
      %vm5833 = vcmp.eq.s32.totalorder %v449, %v5489
      %vm5834 = vcmp.eq.s32.totalorder %v449, %v5503
      %vm5835 = vcmp.eq.s32.totalorder %v449, %v5517
      %vm5836 = vcmp.eq.s32.totalorder %v449, %v5531
      %vm5837 = vcmp.eq.s32.totalorder %v449, %v5545
      %vm5838 = vcmp.eq.s32.totalorder %v449, %v5559
      %vm5839 = vcmp.eq.s32.totalorder %v449, %v5573
      %vm5840 = vcmp.eq.s32.totalorder %v449, %v5587
      %vm5841 = vcmp.eq.s32.totalorder %v449, %v5601
      %vm5842 = vcmp.eq.s32.totalorder %v449, %v5615
      %vm5843 = vcmp.eq.s32.totalorder %v449, %v5629
      %vm5844 = vcmp.eq.s32.totalorder %v449, %v5643
      %vm5845 = vcmp.eq.s32.totalorder %v449, %v5657
      %vm5846 = vcmp.eq.s32.totalorder %v449, %v5671
      %vm5847 = vcmp.eq.s32.totalorder %v449, %v5685
      %vm5848 = vcmp.eq.s32.totalorder %v449, %v5699
      %vm5849 = vcmp.eq.s32.totalorder %v449, %v5713
      %vm5850 = vcmp.eq.s32.totalorder %v449, %v5727
      %vm5851 = vcmp.eq.s32.totalorder %v449, %v5741
      %vm5852 = vcmp.eq.s32.totalorder %v449, %v5755
      %vm5853 = vcmp.eq.s32.totalorder %v449, %v5769
      %vm5854 = vcmp.eq.s32.totalorder %v449, %v5783
      %vm5855 = vcmp.eq.s32.totalorder %v449, %v5797
      %vm5856 = vcmp.eq.s32.totalorder %v449, %v5811
      %vm5857 = vcmp.eq.s32.totalorder %v449, %v5825
      %v5858 = vsel %vm5826, 1, 0
      %v5859 = vsel %vm5827, 1, 0
      %v5860 = vsel %vm5828, 1, 0
      %v5861 = vsel %vm5829, 1, 0
      %v5862 = vsel %vm5830, 1, 0
      %v5863 = vsel %vm5831, 1, 0
      %v5864 = vsel %vm5832, 1, 0
      %v5865 = vsel %vm5833, 1, 0
      %v5866 = vsel %vm5834, 1, 0
      %v5867 = vsel %vm5835, 1, 0
      %v5868 = vsel %vm5836, 1, 0
      %v5869 = vsel %vm5837, 1, 0
      %v5870 = vsel %vm5838, 1, 0
      %v5871 = vsel %vm5839, 1, 0
      %v5872 = vsel %vm5840, 1, 0
      %v5873 = vsel %vm5841, 1, 0
      %v5874 = vsel %vm5842, 1, 0
      %v5875 = vsel %vm5843, 1, 0
      %v5876 = vsel %vm5844, 1, 0
      %v5877 = vsel %vm5845, 1, 0
      %v5878 = vsel %vm5846, 1, 0
      %v5879 = vsel %vm5847, 1, 0
      %v5880 = vsel %vm5848, 1, 0
      %v5881 = vsel %vm5849, 1, 0
      %v5882 = vsel %vm5850, 1, 0
      %v5883 = vsel %vm5851, 1, 0
      %v5884 = vsel %vm5852, 1, 0
      %v5885 = vsel %vm5853, 1, 0
      %v5886 = vsel %vm5854, 1, 0
      %v5887 = vsel %vm5855, 1, 0
      %v5888 = vsel %vm5856, 1, 0
      %v5889 = vsel %vm5857, 1, 0
      %v5890 = vcvt.s32.f32 %v5858
      %v5891 = vcvt.s32.f32 %v5859
      %v5892 = vcvt.s32.f32 %v5860
      %v5893 = vcvt.s32.f32 %v5861
      %v5894 = vcvt.s32.f32 %v5862
      %v5895 = vcvt.s32.f32 %v5863
      %v5896 = vcvt.s32.f32 %v5864
      %v5897 = vcvt.s32.f32 %v5865
      %v5898 = vcvt.s32.f32 %v5866
      %v5899 = vcvt.s32.f32 %v5867
      %v5900 = vcvt.s32.f32 %v5868
      %v5901 = vcvt.s32.f32 %v5869
      %v5902 = vcvt.s32.f32 %v5870
      %v5903 = vcvt.s32.f32 %v5871
      %v5904 = vcvt.s32.f32 %v5872
      %v5905 = vcvt.s32.f32 %v5873
      %v5906 = vcvt.s32.f32 %v5874
      %v5907 = vcvt.s32.f32 %v5875
      %v5908 = vcvt.s32.f32 %v5876
      %v5909 = vcvt.s32.f32 %v5877
      %v5910 = vcvt.s32.f32 %v5878
      %v5911 = vcvt.s32.f32 %v5879
      %v5912 = vcvt.s32.f32 %v5880
      %v5913 = vcvt.s32.f32 %v5881
      %v5914 = vcvt.s32.f32 %v5882
      %v5915 = vcvt.s32.f32 %v5883
      %v5916 = vcvt.s32.f32 %v5884
      %v5917 = vcvt.s32.f32 %v5885
      %v5918 = vcvt.s32.f32 %v5886
      %v5919 = vcvt.s32.f32 %v5887
      %v5920 = vcvt.s32.f32 %v5888
      %v5921 = vcvt.s32.f32 %v5889
      %5922 = vmatprep.subr.mxu0 0.0
      %5923 = vmatpush1.msra.mxu0 %v4938
      %5924 = vmatprep.subr.mxu0 0.0
      %5925 = vmatpush1.msra.mxu0 %v4937
      %5926 = vmatprep.subr.mxu0 0.0
      %5927 = vmatpush1.msra.mxu0 %v4936
      %5928 = vmatprep.subr.mxu0 0.0
      %5929 = vmatpush1.msra.mxu0 %v4935
      %5930 = vmatprep.subr.mxu0 0.0
      %5931 = vmatpush1.msra.mxu0 %v4934
      %5932 = vmatprep.subr.mxu0 0.0
      %5933 = vmatpush1.msra.mxu0 %v4933
      %5934 = vmatprep.subr.mxu0 0.0
      %5935 = vmatpush1.msra.mxu0 %v4932
      %5936 = vmatprep.subr.mxu0 0.0
      %5937 = vmatpush1.msra.mxu0 %v4931
      %5938 = vmatprep.subr.mxu0 0.0
      %5939 = vmatpush1.msra.mxu0 %v4930
      %5940 = vmatprep.subr.mxu0 0.0
      %5941 = vmatpush1.msra.mxu0 %v4929
      %5942 = vmatprep.subr.mxu0 0.0
      %5943 = vmatpush1.msra.mxu0 %v4928
      %5944 = vmatprep.subr.mxu0 0.0
      %5945 = vmatpush1.msra.mxu0 %v4927
      %5946 = vmatprep.subr.mxu0 0.0
      %5947 = vmatpush1.msra.mxu0 %v4926
      %5948 = vmatprep.subr.mxu0 0.0
      %5949 = vmatpush1.msra.mxu0 %v4925
      %5950 = vmatprep.subr.mxu0 0.0
      %5951 = vmatpush1.msra.mxu0 %v4924
      %5952 = vmatprep.subr.mxu0 0.0
      %5953 = vmatpush1.msra.mxu0 %v4923
      %5954 = vmatprep.subr.mxu0 0.0
      %5955 = vmatpush2.msra.mxu0 0.0
      %5956 = vmatprep.subr.mxu0 0.0
      %5957 = vmatpush2.msra.mxu0 0.0
      %5958 = vmatprep.subr.mxu0 0.0
      %5959 = vmatpush2.msra.mxu0 0.0
      %5960 = vmatprep.subr.mxu0 0.0
      %5961 = vmatpush2.msra.mxu0 0.0
      %5962 = vmatprep.subr.mxu0 0.0
      %5963 = vmatpush2.msra.mxu0 0.0
      %5964 = vmatprep.subr.mxu0 0.0
      %5965 = vmatpush2.msra.mxu0 0.0
      %5966 = vmatprep.subr.mxu0 0.0
      %5967 = vmatpush2.msra.mxu0 0.0
      %5968 = vmatprep.subr.mxu0 0.0
      %5969 = vmatpush2.msra.mxu0 0.0
      %5970 = vmatprep.subr.mxu0 0.0
      %5971 = vmatpush2.msra.mxu0 0.0
      %5972 = vmatprep.subr.mxu0 0.0
      %5973 = vmatpush2.msra.mxu0 0.0
      %5974 = vmatprep.subr.mxu0 0.0
      %5975 = vmatpush2.msra.mxu0 0.0
      %5976 = vmatprep.subr.mxu0 0.0
      %5977 = vmatpush2.msra.mxu0 0.0
      %5978 = vmatprep.subr.mxu0 0.0
      %5979 = vmatpush2.msra.mxu0 0.0
      %5980 = vmatprep.subr.mxu0 0.0
      %5981 = vmatpush2.msra.mxu0 0.0
      %5982 = vmatprep.subr.mxu0 0.0
      %5983 = vmatpush2.msra.mxu0 0.0
      %5984 = vmatprep.subr.mxu0 0.0
      %5985 = vmatpush2.msra.mxu0 0.0
      %5986 = vmatprep.mubr.f32.mxu0 0.0
      %5987 = vmatmul.mubr.f32.gmra.mxu0 %v5890
      %v5988 = vpop.f32.mrf.mxu0
      %v5989 = vadd.f32 0.0, %v5988
      %v5990 = vpop.f32.mrf.mxu0
      %5991 = vmatprep.mubr.f32.mxu0 0.0
      %5992 = vmatmul.mubr.f32.gmra.mxu0 %v5891
      %v5993 = vpop.f32.mrf.mxu0
      %v5994 = vadd.f32 0.0, %v5993
      %v5995 = vpop.f32.mrf.mxu0
      %5996 = vmatprep.mubr.f32.mxu0 0.0
      %5997 = vmatmul.mubr.f32.gmra.mxu0 %v5892
      %v5998 = vpop.f32.mrf.mxu0
      %v5999 = vadd.f32 0.0, %v5998
      %v6000 = vpop.f32.mrf.mxu0
      %6001 = vmatprep.mubr.f32.mxu0 0.0
      %6002 = vmatmul.mubr.f32.gmra.mxu0 %v5893
      %v6003 = vpop.f32.mrf.mxu0
      %v6004 = vadd.f32 0.0, %v6003
      %v6005 = vpop.f32.mrf.mxu0
      %6006 = vmatprep.mubr.f32.mxu0 0.0
      %6007 = vmatmul.mubr.f32.gmra.mxu0 %v5894
      %v6008 = vpop.f32.mrf.mxu0
      %v6009 = vadd.f32 0.0, %v6008
      %v6010 = vpop.f32.mrf.mxu0
      %6011 = vmatprep.mubr.f32.mxu0 0.0
      %6012 = vmatmul.mubr.f32.gmra.mxu0 %v5895
      %v6013 = vpop.f32.mrf.mxu0
      %v6014 = vadd.f32 0.0, %v6013
      %v6015 = vpop.f32.mrf.mxu0
      %6016 = vmatprep.mubr.f32.mxu0 0.0
      %6017 = vmatmul.mubr.f32.gmra.mxu0 %v5896
      %v6018 = vpop.f32.mrf.mxu0
      %v6019 = vadd.f32 0.0, %v6018
      %v6020 = vpop.f32.mrf.mxu0
      %6021 = vmatprep.mubr.f32.mxu0 0.0
      %6022 = vmatmul.mubr.f32.gmra.mxu0 %v5897
      %v6023 = vpop.f32.mrf.mxu0
      %v6024 = vadd.f32 0.0, %v6023
      %v6025 = vpop.f32.mrf.mxu0
      %6026 = vmatprep.mubr.f32.mxu0 0.0
      %6027 = vmatmul.mubr.f32.gmra.mxu0 %v5898
      %v6028 = vpop.f32.mrf.mxu0
      %v6029 = vadd.f32 0.0, %v6028
      %v6030 = vpop.f32.mrf.mxu0
      %6031 = vmatprep.mubr.f32.mxu0 0.0
      %6032 = vmatmul.mubr.f32.gmra.mxu0 %v5899
      %v6033 = vpop.f32.mrf.mxu0
      %v6034 = vadd.f32 0.0, %v6033
      %v6035 = vpop.f32.mrf.mxu0
      %6036 = vmatprep.mubr.f32.mxu0 0.0
      %6037 = vmatmul.mubr.f32.gmra.mxu0 %v5900
      %v6038 = vpop.f32.mrf.mxu0
      %v6039 = vadd.f32 0.0, %v6038
      %v6040 = vpop.f32.mrf.mxu0
      %6041 = vmatprep.mubr.f32.mxu0 0.0
      %6042 = vmatmul.mubr.f32.gmra.mxu0 %v5901
      %v6043 = vpop.f32.mrf.mxu0
      %v6044 = vadd.f32 0.0, %v6043
      %v6045 = vpop.f32.mrf.mxu0
      %6046 = vmatprep.mubr.f32.mxu0 0.0
      %6047 = vmatmul.mubr.f32.gmra.mxu0 %v5902
      %v6048 = vpop.f32.mrf.mxu0
      %v6049 = vadd.f32 0.0, %v6048
      %v6050 = vpop.f32.mrf.mxu0
      %6051 = vmatprep.mubr.f32.mxu0 0.0
      %6052 = vmatmul.mubr.f32.gmra.mxu0 %v5903
      %v6053 = vpop.f32.mrf.mxu0
      %v6054 = vadd.f32 0.0, %v6053
      %v6055 = vpop.f32.mrf.mxu0
      %6056 = vmatprep.mubr.f32.mxu0 0.0
      %6057 = vmatmul.mubr.f32.gmra.mxu0 %v5904
      %v6058 = vpop.f32.mrf.mxu0
      %v6059 = vadd.f32 0.0, %v6058
      %v6060 = vpop.f32.mrf.mxu0
      %6061 = vmatprep.mubr.f32.mxu0 0.0
      %6062 = vmatmul.mubr.f32.gmra.mxu0 %v5905
      %v6063 = vpop.f32.mrf.mxu0
      %v6064 = vadd.f32 0.0, %v6063
      %v6065 = vpop.f32.mrf.mxu0
      %6066 = vmatprep.mubr.f32.mxu0 0.0
      %6067 = vmatmul.mubr.f32.gmra.mxu0 %v5906
      %v6068 = vpop.f32.mrf.mxu0
      %v6069 = vadd.f32 0.0, %v6068
      %v6070 = vpop.f32.mrf.mxu0
      %6071 = vmatprep.mubr.f32.mxu0 0.0
      %6072 = vmatmul.mubr.f32.gmra.mxu0 %v5907
      %v6073 = vpop.f32.mrf.mxu0
      %v6074 = vadd.f32 0.0, %v6073
      %v6075 = vpop.f32.mrf.mxu0
      %6076 = vmatprep.mubr.f32.mxu0 0.0
      %6077 = vmatmul.mubr.f32.gmra.mxu0 %v5908
      %v6078 = vpop.f32.mrf.mxu0
      %v6079 = vadd.f32 0.0, %v6078
      %v6080 = vpop.f32.mrf.mxu0
      %6081 = vmatprep.mubr.f32.mxu0 0.0
      %6082 = vmatmul.mubr.f32.gmra.mxu0 %v5909
      %v6083 = vpop.f32.mrf.mxu0
      %v6084 = vadd.f32 0.0, %v6083
      %v6085 = vpop.f32.mrf.mxu0
      %6086 = vmatprep.mubr.f32.mxu0 0.0
      %6087 = vmatmul.mubr.f32.gmra.mxu0 %v5910
      %v6088 = vpop.f32.mrf.mxu0
      %v6089 = vadd.f32 0.0, %v6088
      %v6090 = vpop.f32.mrf.mxu0
      %6091 = vmatprep.mubr.f32.mxu0 0.0
      %6092 = vmatmul.mubr.f32.gmra.mxu0 %v5911
      %v6093 = vpop.f32.mrf.mxu0
      %v6094 = vadd.f32 0.0, %v6093
      %v6095 = vpop.f32.mrf.mxu0
      %6096 = vmatprep.mubr.f32.mxu0 0.0
      %6097 = vmatmul.mubr.f32.gmra.mxu0 %v5912
      %v6098 = vpop.f32.mrf.mxu0
      %v6099 = vadd.f32 0.0, %v6098
      %v6100 = vpop.f32.mrf.mxu0
      %6101 = vmatprep.mubr.f32.mxu0 0.0
      %6102 = vmatmul.mubr.f32.gmra.mxu0 %v5913
      %v6103 = vpop.f32.mrf.mxu0
      %v6104 = vadd.f32 0.0, %v6103
      %v6105 = vpop.f32.mrf.mxu0
      %6106 = vmatprep.mubr.f32.mxu0 0.0
      %6107 = vmatmul.mubr.f32.gmra.mxu0 %v5914
      %v6108 = vpop.f32.mrf.mxu0
      %v6109 = vadd.f32 0.0, %v6108
      %v6110 = vpop.f32.mrf.mxu0
      %6111 = vmatprep.mubr.f32.mxu0 0.0
      %6112 = vmatmul.mubr.f32.gmra.mxu0 %v5915
      %v6113 = vpop.f32.mrf.mxu0
      %v6114 = vadd.f32 0.0, %v6113
      %v6115 = vpop.f32.mrf.mxu0
      %6116 = vmatprep.mubr.f32.mxu0 0.0
      %6117 = vmatmul.mubr.f32.gmra.mxu0 %v5916
      %v6118 = vpop.f32.mrf.mxu0
      %v6119 = vadd.f32 0.0, %v6118
      %v6120 = vpop.f32.mrf.mxu0
      %6121 = vmatprep.mubr.f32.mxu0 0.0
      %6122 = vmatmul.mubr.f32.gmra.mxu0 %v5917
      %v6123 = vpop.f32.mrf.mxu0
      %v6124 = vadd.f32 0.0, %v6123
      %v6125 = vpop.f32.mrf.mxu0
      %6126 = vmatprep.mubr.f32.mxu0 0.0
      %6127 = vmatmul.mubr.f32.gmra.mxu0 %v5918
      %v6128 = vpop.f32.mrf.mxu0
      %v6129 = vadd.f32 0.0, %v6128
      %v6130 = vpop.f32.mrf.mxu0
      %6131 = vmatprep.mubr.f32.mxu0 0.0
      %6132 = vmatmul.mubr.f32.gmra.mxu0 %v5919
      %v6133 = vpop.f32.mrf.mxu0
      %v6134 = vadd.f32 0.0, %v6133
      %v6135 = vpop.f32.mrf.mxu0
      %6136 = vmatprep.mubr.f32.mxu0 0.0
      %6137 = vmatmul.mubr.f32.gmra.mxu0 %v5920
      %v6138 = vpop.f32.mrf.mxu0
      %v6139 = vadd.f32 0.0, %v6138
      %v6140 = vpop.f32.mrf.mxu0
      %6141 = vmatprep.mubr.f32.mxu0 0.0
      %6142 = vmatmul.mubr.f32.gmra.mxu0 %v5921
      %v6143 = vpop.f32.mrf.mxu0
      %v6144 = vadd.f32 0.0, %v6143
      %v6145 = vpop.f32.mrf.mxu0
      %6146 = vdwg.mxu0
      %v6147 = vadd.f32 %v5251, %v4689
      %v6148 = vadd.f32 %v5253, %v4690
      %v6149 = vadd.f32 %v5255, %v4691
      %v6150 = vadd.f32 %v5257, %v4692
      %v6151 = vadd.f32 %v5259, %v4693
      %v6152 = vadd.f32 %v5261, %v4694
      %v6153 = vadd.f32 %v5263, %v4695
      %v6154 = vadd.f32 %v5265, %v4696
      %v6155 = vadd.f32 %v5267, %v4697
      %v6156 = vadd.f32 %v5269, %v4698
      %v6157 = vadd.f32 %v5271, %v4699
      %v6158 = vadd.f32 %v5273, %v4700
      %v6159 = vadd.f32 %v5275, %v4701
      %v6160 = vadd.f32 %v5277, %v4702
      %v6161 = vadd.f32 %v5279, %v4703
      %v6162 = vadd.f32 %v5281, %v4704
      %v6163 = vadd.f32 %v5283, %v4705
      %v6164 = vadd.f32 %v5285, %v4706
      %v6165 = vadd.f32 %v5287, %v4707
      %v6166 = vadd.f32 %v5289, %v4708
      %v6167 = vadd.f32 %v5291, %v4709
      %v6168 = vadd.f32 %v5293, %v4710
      %v6169 = vadd.f32 %v5295, %v4711
      %v6170 = vadd.f32 %v5297, %v4712
      %v6171 = vadd.f32 %v5299, %v4713
      %v6172 = vadd.f32 %v5301, %v4714
      %v6173 = vadd.f32 %v5303, %v4715
      %v6174 = vadd.f32 %v5305, %v4716
      %v6175 = vadd.f32 %v5307, %v4717
      %v6176 = vadd.f32 %v5309, %v4718
      %v6177 = vadd.f32 %v5311, %v4719
      %v6178 = vadd.f32 %v5313, %v4720
      %v6179 = vsel %vm517, %v6147, 0.0
      %v6180 = vsel %vm518, %v6148, 0.0
      %v6181 = vsel %vm519, %v6149, 0.0
      %v6182 = vsel %vm520, %v6150, 0.0
      %v6183 = vsel %vm521, %v6151, 0.0
      %v6184 = vsel %vm522, %v6152, 0.0
      %v6185 = vsel %vm523, %v6153, 0.0
      %v6186 = vsel %vm524, %v6154, 0.0
      %v6187 = vsel %vm525, %v6155, 0.0
      %v6188 = vsel %vm526, %v6156, 0.0
      %v6189 = vsel %vm527, %v6157, 0.0
      %v6190 = vsel %vm528, %v6158, 0.0
      %v6191 = vsel %vm529, %v6159, 0.0
      %v6192 = vsel %vm530, %v6160, 0.0
      %v6193 = vsel %vm531, %v6161, 0.0
      %v6194 = vsel %vm532, %v6162, 0.0
      %v6195 = vsel %vm533, %v6163, 0.0
      %v6196 = vsel %vm534, %v6164, 0.0
      %v6197 = vsel %vm535, %v6165, 0.0
      %v6198 = vsel %vm536, %v6166, 0.0
      %v6199 = vsel %vm537, %v6167, 0.0
      %v6200 = vsel %vm538, %v6168, 0.0
      %v6201 = vsel %vm539, %v6169, 0.0
      %v6202 = vsel %vm540, %v6170, 0.0
      %v6203 = vsel %vm541, %v6171, 0.0
      %v6204 = vsel %vm542, %v6172, 0.0
      %v6205 = vsel %vm543, %v6173, 0.0
      %v6206 = vsel %vm544, %v6174, 0.0
      %v6207 = vsel %vm545, %v6175, 0.0
      %v6208 = vsel %vm546, %v6176, 0.0
      %v6209 = vsel %vm547, %v6177, 0.0
      %v6210 = vsel %vm548, %v6178, 0.0
      %v6211 = vsel %vm1836, %v6179, 0.0
      %v6212 = vsel %vm1836, %v6180, 0.0
      %v6213 = vadd.f32 %v6211, %v6212
      %v6214 = vsel %vm1836, %v6181, 0.0
      %v6215 = vadd.f32 %v6213, %v6214
      %v6216 = vsel %vm1836, %v6182, 0.0
      %v6217 = vadd.f32 %v6215, %v6216
      %v6218 = vsel %vm1836, %v6183, 0.0
      %v6219 = vadd.f32 %v6217, %v6218
      %v6220 = vsel %vm1836, %v6184, 0.0
      %v6221 = vadd.f32 %v6219, %v6220
      %v6222 = vsel %vm1836, %v6185, 0.0
      %v6223 = vadd.f32 %v6221, %v6222
      %v6224 = vsel %vm1836, %v6186, 0.0
      %v6225 = vadd.f32 %v6223, %v6224
      %v6226 = vsel %vm1836, %v6187, 0.0
      %v6227 = vadd.f32 %v6225, %v6226
      %v6228 = vsel %vm1836, %v6188, 0.0
      %v6229 = vadd.f32 %v6227, %v6228
      %v6230 = vsel %vm1836, %v6189, 0.0
      %v6231 = vadd.f32 %v6229, %v6230
      %v6232 = vsel %vm1836, %v6190, 0.0
      %v6233 = vadd.f32 %v6231, %v6232
      %v6234 = vsel %vm1836, %v6191, 0.0
      %v6235 = vadd.f32 %v6233, %v6234
      %v6236 = vsel %vm1836, %v6192, 0.0
      %v6237 = vadd.f32 %v6235, %v6236
      %v6238 = vsel %vm1836, %v6193, 0.0
      %v6239 = vadd.f32 %v6237, %v6238
      %v6240 = vsel %vm1836, %v6194, 0.0
      %v6241 = vadd.f32 %v6239, %v6240
      %v6242 = vsel %vm1836, %v6195, 0.0
      %v6243 = vadd.f32 %v6241, %v6242
      %v6244 = vsel %vm1836, %v6196, 0.0
      %v6245 = vadd.f32 %v6243, %v6244
      %v6246 = vsel %vm1836, %v6197, 0.0
      %v6247 = vadd.f32 %v6245, %v6246
      %v6248 = vsel %vm1836, %v6198, 0.0
      %v6249 = vadd.f32 %v6247, %v6248
      %v6250 = vsel %vm1836, %v6199, 0.0
      %v6251 = vadd.f32 %v6249, %v6250
      %v6252 = vsel %vm1836, %v6200, 0.0
      %v6253 = vadd.f32 %v6251, %v6252
      %v6254 = vsel %vm1836, %v6201, 0.0
      %v6255 = vadd.f32 %v6253, %v6254
      %v6256 = vsel %vm1836, %v6202, 0.0
      %v6257 = vadd.f32 %v6255, %v6256
      %v6258 = vsel %vm1836, %v6203, 0.0
      %v6259 = vadd.f32 %v6257, %v6258
      %v6260 = vsel %vm1836, %v6204, 0.0
      %v6261 = vadd.f32 %v6259, %v6260
      %v6262 = vsel %vm1836, %v6205, 0.0
      %v6263 = vadd.f32 %v6261, %v6262
      %v6264 = vsel %vm1836, %v6206, 0.0
      %v6265 = vadd.f32 %v6263, %v6264
      %v6266 = vsel %vm1836, %v6207, 0.0
      %v6267 = vadd.f32 %v6265, %v6266
      %v6268 = vsel %vm1836, %v6208, 0.0
      %v6269 = vadd.f32 %v6267, %v6268
      %v6270 = vsel %vm1836, %v6209, 0.0
      %v6271 = vadd.f32 %v6269, %v6270
      %v6272 = vsel %vm1836, %v6210, 0.0
      %v6273 = vadd.f32 %v6271, %v6272
      %6274 = vadd.xlane.f32.xlu0 %v6273
      %v6275 = vpop.xlane.xlu0 %6274
      %v6276 = vrot.slane %v6275, 4
      %v6277 = vadd.f32 %v6275, %v6276
      %v6278 = vrot.slane %v6277, 2
      %v6279 = vadd.f32 %v6277, %v6278
      %v6280 = vrot.slane %v6279, 1
      %v6281 = vadd.f32 %v6279, %v6280
      %s6282 = vtos %v6281
      %v6283 = vstv %s6282
      %6284 = vst [vmem:[%s308 + $0x18] sm:$0xff] %v5989
      %6285 = vst [vmem:[%s308 + $0x38] sm:$0xff] %v5994
      %6286 = vst [vmem:[%s308 + $0x58] sm:$0xff] %v5999
      %6287 = vst [vmem:[%s308 + $0x78] sm:$0xff] %v6004
      %6288 = vst [vmem:[%s308 + $0x98] sm:$0xff] %v6009
      %6289 = vst [vmem:[%s308 + $0xb8] sm:$0xff] %v6014
      %6290 = vst [vmem:[%s308 + $0xd8] sm:$0xff] %v6019
      %6291 = vst [vmem:[%s308 + $0xf8] sm:$0xff] %v6024
      %6292 = vst [vmem:[%s308 + $0x118] sm:$0xff] %v6029
      %6293 = vst [vmem:[%s308 + $0x138] sm:$0xff] %v6034
      %6294 = vst [vmem:[%s308 + $0x158] sm:$0xff] %v6039
      %6295 = vst [vmem:[%s308 + $0x178] sm:$0xff] %v6044
      %6296 = vst [vmem:[%s308 + $0x198] sm:$0xff] %v6049
      %6297 = vst [vmem:[%s308 + $0x1b8] sm:$0xff] %v6054
      %6298 = vst [vmem:[%s308 + $0x1d8] sm:$0xff] %v6059
      %6299 = vst [vmem:[%s308 + $0x1f8] sm:$0xff] %v6064
      %6300 = vst [vmem:[%s308 + $0x218] sm:$0xff] %v6069
      %6301 = vst [vmem:[%s308 + $0x238] sm:$0xff] %v6074
      %6302 = vst [vmem:[%s308 + $0x258] sm:$0xff] %v6079
      %6303 = vst [vmem:[%s308 + $0x278] sm:$0xff] %v6084
      %6304 = vst [vmem:[%s308 + $0x298] sm:$0xff] %v6089
      %6305 = vst [vmem:[%s308 + $0x2b8] sm:$0xff] %v6094
      %6306 = vst [vmem:[%s308 + $0x2d8] sm:$0xff] %v6099
      %6307 = vst [vmem:[%s308 + $0x2f8] sm:$0xff] %v6104
      %6308 = vst [vmem:[%s308 + $0x318] sm:$0xff] %v6109
      %6309 = vst [vmem:[%s308 + $0x338] sm:$0xff] %v6114
      %6310 = vst [vmem:[%s308 + $0x358] sm:$0xff] %v6119
      %6311 = vst [vmem:[%s308 + $0x378] sm:$0xff] %v6124
      %6312 = vst [vmem:[%s308 + $0x398] sm:$0xff] %v6129
      %6313 = vst [vmem:[%s308 + $0x3b8] sm:$0xff] %v6134
      %6314 = vst [vmem:[%s308 + $0x3d8] sm:$0xff] %v6139
      %6315 = vst [vmem:[%s308 + $0x3f8] sm:$0xff] %v6144
      %v6316 = vadd.f32 %v4858, %v5989
      %v6317 = vadd.f32 %v4859, %v5994
      %v6318 = vadd.f32 %v4860, %v5999
      %v6319 = vadd.f32 %v4861, %v6004
      %v6320 = vadd.f32 %v4862, %v6009
      %v6321 = vadd.f32 %v4863, %v6014
      %v6322 = vadd.f32 %v4864, %v6019
      %v6323 = vadd.f32 %v4865, %v6024
      %v6324 = vadd.f32 %v4866, %v6029
      %v6325 = vadd.f32 %v4867, %v6034
      %v6326 = vadd.f32 %v4868, %v6039
      %v6327 = vadd.f32 %v4869, %v6044
      %v6328 = vadd.f32 %v4870, %v6049
      %v6329 = vadd.f32 %v4871, %v6054
      %v6330 = vadd.f32 %v4872, %v6059
      %v6331 = vadd.f32 %v4873, %v6064
      %v6332 = vadd.f32 %v4874, %v6069
      %v6333 = vadd.f32 %v4875, %v6074
      %v6334 = vadd.f32 %v4876, %v6079
      %v6335 = vadd.f32 %v4877, %v6084
      %v6336 = vadd.f32 %v4878, %v6089
      %v6337 = vadd.f32 %v4879, %v6094
      %v6338 = vadd.f32 %v4880, %v6099
      %v6339 = vadd.f32 %v4881, %v6104
      %v6340 = vadd.f32 %v4882, %v6109
      %v6341 = vadd.f32 %v4883, %v6114
      %v6342 = vadd.f32 %v4884, %v6119
      %v6343 = vadd.f32 %v4885, %v6124
      %v6344 = vadd.f32 %v4886, %v6129
      %v6345 = vadd.f32 %v4887, %v6134
      %v6346 = vadd.f32 %v4888, %v6139
      %v6347 = vadd.f32 %v4889, %v6144
      %6348 = vst [vmem:[%s301] sm:$0xff] %v6316
      %6349 = vst [vmem:[%s301 + $0x8] sm:$0xff] %v6317
      %6350 = vst [vmem:[%s301 + $0x10] sm:$0xff] %v6318
      %6351 = vst [vmem:[%s301 + $0x18] sm:$0xff] %v6319
      %6352 = vst [vmem:[%s301 + $0x20] sm:$0xff] %v6320
      %6353 = vst [vmem:[%s301 + $0x28] sm:$0xff] %v6321
      %6354 = vst [vmem:[%s301 + $0x30] sm:$0xff] %v6322
      %6355 = vst [vmem:[%s301 + $0x38] sm:$0xff] %v6323
      %6356 = vst [vmem:[%s301 + $0x40] sm:$0xff] %v6324
      %6357 = vst [vmem:[%s301 + $0x48] sm:$0xff] %v6325
      %6358 = vst [vmem:[%s301 + $0x50] sm:$0xff] %v6326
      %6359 = vst [vmem:[%s301 + $0x58] sm:$0xff] %v6327
      %6360 = vst [vmem:[%s301 + $0x60] sm:$0xff] %v6328
      %6361 = vst [vmem:[%s301 + $0x68] sm:$0xff] %v6329
      %6362 = vst [vmem:[%s301 + $0x70] sm:$0xff] %v6330
      %6363 = vst [vmem:[%s301 + $0x78] sm:$0xff] %v6331
      %6364 = vst [vmem:[%s301 + $0x80] sm:$0xff] %v6332
      %6365 = vst [vmem:[%s301 + $0x88] sm:$0xff] %v6333
      %6366 = vst [vmem:[%s301 + $0x90] sm:$0xff] %v6334
      %6367 = vst [vmem:[%s301 + $0x98] sm:$0xff] %v6335
      %6368 = vst [vmem:[%s301 + $0xa0] sm:$0xff] %v6336
      %6369 = vst [vmem:[%s301 + $0xa8] sm:$0xff] %v6337
      %6370 = vst [vmem:[%s301 + $0xb0] sm:$0xff] %v6338
      %6371 = vst [vmem:[%s301 + $0xb8] sm:$0xff] %v6339
      %6372 = vst [vmem:[%s301 + $0xc0] sm:$0xff] %v6340
      %6373 = vst [vmem:[%s301 + $0xc8] sm:$0xff] %v6341
      %6374 = vst [vmem:[%s301 + $0xd0] sm:$0xff] %v6342
      %6375 = vst [vmem:[%s301 + $0xd8] sm:$0xff] %v6343
      %6376 = vst [vmem:[%s301 + $0xe0] sm:$0xff] %v6344
      %6377 = vst [vmem:[%s301 + $0xe8] sm:$0xff] %v6345
      %6378 = vst [vmem:[%s301 + $0xf0] sm:$0xff] %v6346
      %6379 = vst [vmem:[%s301 + $0xf8] sm:$0xff] %v6347
      %v6380 = vsel %vm1836, %v1016, %v2475
      %v6381 = vsel %vm1836, %v1030, %v2489
      %v6382 = vsel %vm1836, %v1044, %v2503
      %v6383 = vsel %vm1836, %v1058, %v2517
      %v6384 = vsel %vm1836, %v1072, %v2531
      %v6385 = vsel %vm1836, %v1086, %v2545
      %v6386 = vsel %vm1836, %v1100, %v2559
      %v6387 = vsel %vm1836, %v1114, %v2573
      %v6388 = vsel %vm1836, %v1128, %v2587
      %v6389 = vsel %vm1836, %v1142, %v2601
      %v6390 = vsel %vm1836, %v1156, %v2615
      %v6391 = vsel %vm1836, %v1170, %v2629
      %v6392 = vsel %vm1836, %v1184, %v2643
      %v6393 = vsel %vm1836, %v1198, %v2657
      %v6394 = vsel %vm1836, %v1212, %v2671
      %v6395 = vsel %vm1836, %v1226, %v2685
      %v6396 = vsel %vm1836, %v1240, %v2699
      %v6397 = vsel %vm1836, %v1254, %v2713
      %v6398 = vsel %vm1836, %v1268, %v2727
      %v6399 = vsel %vm1836, %v1282, %v2741
      %v6400 = vsel %vm1836, %v1296, %v2755
      %v6401 = vsel %vm1836, %v1310, %v2769
      %v6402 = vsel %vm1836, %v1324, %v2783
      %v6403 = vsel %vm1836, %v1338, %v2797
      %v6404 = vsel %vm1836, %v1352, %v2811
      %v6405 = vsel %vm1836, %v1366, %v2825
      %v6406 = vsel %vm1836, %v1380, %v2839
      %v6407 = vsel %vm1836, %v1394, %v2853
      %v6408 = vsel %vm1836, %v1408, %v2867
      %v6409 = vsel %vm1836, %v1422, %v2881
      %v6410 = vsel %vm1836, %v1436, %v2895
      %v6411 = vsel %vm1836, %v1450, %v2909
      %vm6412 = vcmask 15360
      %v6413 = vsel %vm6412, %v6380, %v3933
      %v6414 = vsel %vm6412, %v6381, %v3947
      %v6415 = vsel %vm6412, %v6382, %v3961
      %v6416 = vsel %vm6412, %v6383, %v3975
      %v6417 = vsel %vm6412, %v6384, %v3989
      %v6418 = vsel %vm6412, %v6385, %v4003
      %v6419 = vsel %vm6412, %v6386, %v4017
      %v6420 = vsel %vm6412, %v6387, %v4031
      %v6421 = vsel %vm6412, %v6388, %v4045
      %v6422 = vsel %vm6412, %v6389, %v4059
      %v6423 = vsel %vm6412, %v6390, %v4073
      %v6424 = vsel %vm6412, %v6391, %v4087
      %v6425 = vsel %vm6412, %v6392, %v4101
      %v6426 = vsel %vm6412, %v6393, %v4115
      %v6427 = vsel %vm6412, %v6394, %v4129
      %v6428 = vsel %vm6412, %v6395, %v4143
      %v6429 = vsel %vm6412, %v6396, %v4157
      %v6430 = vsel %vm6412, %v6397, %v4171
      %v6431 = vsel %vm6412, %v6398, %v4185
      %v6432 = vsel %vm6412, %v6399, %v4199
      %v6433 = vsel %vm6412, %v6400, %v4213
      %v6434 = vsel %vm6412, %v6401, %v4227
      %v6435 = vsel %vm6412, %v6402, %v4241
      %v6436 = vsel %vm6412, %v6403, %v4255
      %v6437 = vsel %vm6412, %v6404, %v4269
      %v6438 = vsel %vm6412, %v6405, %v4283
      %v6439 = vsel %vm6412, %v6406, %v4297
      %v6440 = vsel %vm6412, %v6407, %v4311
      %v6441 = vsel %vm6412, %v6408, %v4325
      %v6442 = vsel %vm6412, %v6409, %v4339
      %v6443 = vsel %vm6412, %v6410, %v4353
      %v6444 = vsel %vm6412, %v6411, %v4367
      %vm6445 = vcmask 23552
      %v6446 = vsel %vm6445, %v6413, %v5391
      %v6447 = vsel %vm6445, %v6414, %v5405
      %v6448 = vsel %vm6445, %v6415, %v5419
      %v6449 = vsel %vm6445, %v6416, %v5433
      %v6450 = vsel %vm6445, %v6417, %v5447
      %v6451 = vsel %vm6445, %v6418, %v5461
      %v6452 = vsel %vm6445, %v6419, %v5475
      %v6453 = vsel %vm6445, %v6420, %v5489
      %v6454 = vsel %vm6445, %v6421, %v5503
      %v6455 = vsel %vm6445, %v6422, %v5517
      %v6456 = vsel %vm6445, %v6423, %v5531
      %v6457 = vsel %vm6445, %v6424, %v5545
      %v6458 = vsel %vm6445, %v6425, %v5559
      %v6459 = vsel %vm6445, %v6426, %v5573
      %v6460 = vsel %vm6445, %v6427, %v5587
      %v6461 = vsel %vm6445, %v6428, %v5601
      %v6462 = vsel %vm6445, %v6429, %v5615
      %v6463 = vsel %vm6445, %v6430, %v5629
      %v6464 = vsel %vm6445, %v6431, %v5643
      %v6465 = vsel %vm6445, %v6432, %v5657
      %v6466 = vsel %vm6445, %v6433, %v5671
      %v6467 = vsel %vm6445, %v6434, %v5685
      %v6468 = vsel %vm6445, %v6435, %v5699
      %v6469 = vsel %vm6445, %v6436, %v5713
      %v6470 = vsel %vm6445, %v6437, %v5727
      %v6471 = vsel %vm6445, %v6438, %v5741
      %v6472 = vsel %vm6445, %v6439, %v5755
      %v6473 = vsel %vm6445, %v6440, %v5769
      %v6474 = vsel %vm6445, %v6441, %v5783
      %v6475 = vsel %vm6445, %v6442, %v5797
      %v6476 = vsel %vm6445, %v6443, %v5811
      %v6477 = vsel %vm6445, %v6444, %v5825
      %vm6478 = vcmask 31744
      %6479 = vst.msk [vmem:[%s314] sm:$0xff] %vm6478, %v6446
      %6480 = vst.msk [vmem:[%s314 + $0x8] sm:$0xff] %vm6478, %v6447
      %6481 = vst.msk [vmem:[%s314 + $0x10] sm:$0xff] %vm6478, %v6448
      %6482 = vst.msk [vmem:[%s314 + $0x18] sm:$0xff] %vm6478, %v6449
      %6483 = vst.msk [vmem:[%s314 + $0x20] sm:$0xff] %vm6478, %v6450
      %6484 = vst.msk [vmem:[%s314 + $0x28] sm:$0xff] %vm6478, %v6451
      %6485 = vst.msk [vmem:[%s314 + $0x30] sm:$0xff] %vm6478, %v6452
      %6486 = vst.msk [vmem:[%s314 + $0x38] sm:$0xff] %vm6478, %v6453
      %6487 = vst.msk [vmem:[%s314 + $0x40] sm:$0xff] %vm6478, %v6454
      %6488 = vst.msk [vmem:[%s314 + $0x48] sm:$0xff] %vm6478, %v6455
      %6489 = vst.msk [vmem:[%s314 + $0x50] sm:$0xff] %vm6478, %v6456
      %6490 = vst.msk [vmem:[%s314 + $0x58] sm:$0xff] %vm6478, %v6457
      %6491 = vst.msk [vmem:[%s314 + $0x60] sm:$0xff] %vm6478, %v6458
      %6492 = vst.msk [vmem:[%s314 + $0x68] sm:$0xff] %vm6478, %v6459
      %6493 = vst.msk [vmem:[%s314 + $0x70] sm:$0xff] %vm6478, %v6460
      %6494 = vst.msk [vmem:[%s314 + $0x78] sm:$0xff] %vm6478, %v6461
      %6495 = vst.msk [vmem:[%s314 + $0x80] sm:$0xff] %vm6478, %v6462
      %6496 = vst.msk [vmem:[%s314 + $0x88] sm:$0xff] %vm6478, %v6463
      %6497 = vst.msk [vmem:[%s314 + $0x90] sm:$0xff] %vm6478, %v6464
      %6498 = vst.msk [vmem:[%s314 + $0x98] sm:$0xff] %vm6478, %v6465
      %6499 = vst.msk [vmem:[%s314 + $0xa0] sm:$0xff] %vm6478, %v6466
      %6500 = vst.msk [vmem:[%s314 + $0xa8] sm:$0xff] %vm6478, %v6467
      %6501 = vst.msk [vmem:[%s314 + $0xb0] sm:$0xff] %vm6478, %v6468
      %6502 = vst.msk [vmem:[%s314 + $0xb8] sm:$0xff] %vm6478, %v6469
      %6503 = vst.msk [vmem:[%s314 + $0xc0] sm:$0xff] %vm6478, %v6470
      %6504 = vst.msk [vmem:[%s314 + $0xc8] sm:$0xff] %vm6478, %v6471
      %6505 = vst.msk [vmem:[%s314 + $0xd0] sm:$0xff] %vm6478, %v6472
      %6506 = vst.msk [vmem:[%s314 + $0xd8] sm:$0xff] %vm6478, %v6473
      %6507 = vst.msk [vmem:[%s314 + $0xe0] sm:$0xff] %vm6478, %v6474
      %6508 = vst.msk [vmem:[%s314 + $0xe8] sm:$0xff] %vm6478, %v6475
      %6509 = vst.msk [vmem:[%s314 + $0xf0] sm:$0xff] %vm6478, %v6476
      %6510 = vst.msk [vmem:[%s314 + $0xf8] sm:$0xff] %vm6478, %v6477
      %v6511 = vsel %vm1836, %v1909, %v3367
      %v6512 = vsel %vm6412, %v6511, %v4825
      %v6513 = vsel %vm6445, %v6512, %v6283
      %vm6514 = vcmask 24576
      %6515 = vst.msk [vmem:[%s318] sm:$0x1] %vm6514, %v6513
      %s6516 = smul.u32 32, %s19
      %p6517 = scmp.lt.s32.totalorder %s6516, 63
      %s6518 = scalar_select %p6517, %s6516, 63
      %s6519 = smul.addr %s6518, 8
      %s6520 = scalar_lea.vmem %s4, %s6519
      %s6521 = smul.u32 32, %s19
      %p6522 = scmp.lt.s32.totalorder %s6521, 63
      %s6523 = scalar_select %p6522, %s6521, 63
      %s6524 = smul.addr %s6523, 4
      %s6525 = smul.addr %s6524, 8
      %s6526 = scalar_lea.vmem %s5, %s6525
      %s6527 = smul.u32 32, %s19
      %p6528 = scmp.lt.s32.totalorder %s6527, 63
      %s6529 = scalar_select %p6528, %s6527, 63
      %s6530 = smul.addr %s6529, 8
      %s6531 = scalar_lea.vmem %s6, %s6530
      %p6532 = scmp.lt.s32.totalorder %s19, 1
      %s6533 = scalar_select %p6532, %s19, 1
      %s6534 = scalar_lea.vmem %s7, %s6533
      // Predicated region
      $region37: #{residual_vector_quantize.1} parent=35 // pred_check
        %p6535 = pneg %p126
      $region38: #{residual_vector_quantize.1} parent=35 // pred_check_branch
        %6537 = sbr.rel (%p6535) target = $region40
      $region39: #{residual_vector_quantize.1} parent=35 // pred_region
        %s6538 = smul.u32 32, %s19
      $region40: #{residual_vector_quantize.1} parent=35 // pred_fallthru
        _
      // Predicated region
      $region41: #{residual_vector_quantize.1} parent=35 // pred_check
        %p6539 = pneg %p152
      $region42: #{residual_vector_quantize.1} parent=35 // pred_check_branch
        %6541 = sbr.rel (%p6539) target = $region44
      $region43: #{residual_vector_quantize.1} parent=35 // pred_region
        %s6542 = smul.u32 32, %s19
      $region44: #{residual_vector_quantize.1} parent=35 // pred_fallthru
        _
      // Predicated region
      $region45: #{residual_vector_quantize.1} parent=35 // pred_check
        %p6543 = pneg %p178
      $region46: #{residual_vector_quantize.1} parent=35 // pred_check_branch
        %6545 = sbr.rel (%p6543) target = $region48
      $region47: #{residual_vector_quantize.1} parent=35 // pred_region
        %s6546 = smul.u32 32, %s19
      $region48: #{residual_vector_quantize.1} parent=35 // pred_fallthru
        _
      // Predicated region
      $region49: #{residual_vector_quantize.1} parent=35 // pred_check
        %p6547 = pneg %p204
      $region50: #{residual_vector_quantize.1} parent=35 // pred_check_branch
        %6549 = sbr.rel (%p6547) target = $region52
      $region51: #{residual_vector_quantize.1} parent=35 // pred_region
        _
      $region52: #{residual_vector_quantize.1} parent=35 // pred_fallthru
        _
    $region36: #{residual_vector_quantize.1} parent=5 // pred_fallthru
      _
    %p6550 = scmp.le.s32.totalorder 2, %s14
    // Predicated region
    $region53: #{residual_vector_quantize.1} parent=5 // pred_check
      %p6551 = pneg %p6550
    $region54: #{residual_vector_quantize.1} parent=5 // pred_check_branch
      %6553 = sbr.rel (%p6551) target = $region56
    $region55: #{residual_vector_quantize.1} parent=5 // pred_region
      %s6554 = ssub.s32 %s14, 2
      // Predicated region
      $region57: #{residual_vector_quantize.1} parent=55 // pred_check
        %p6555 = pneg %p132
      $region58: #{residual_vector_quantize.1} parent=55 // pred_check_branch
        %6557 = sbr.rel (%p6555) target = $region60
      $region59: #{residual_vector_quantize.1} parent=55 // pred_region
        %s6558 = smul.u32 32, %s20
        %p6559 = scmp.lt.s32.totalorder %s6558, 63
        %s6560 = scalar_select %p6559, %s6558, 63
        %s6561 = smul.addr %s6560, 8
        %s6562 = scalar_lea.vmem %s4, %s6561
      $region60: #{residual_vector_quantize.1} parent=55 // pred_fallthru
        _
      // Predicated region
      $region61: #{residual_vector_quantize.1} parent=55 // pred_check
        %p6563 = pneg %p158
      $region62: #{residual_vector_quantize.1} parent=55 // pred_check_branch
        %6565 = sbr.rel (%p6563) target = $region64
      $region63: #{residual_vector_quantize.1} parent=55 // pred_region
        %s6566 = smul.u32 32, %s20
        %p6567 = scmp.lt.s32.totalorder %s6566, 63
        %s6568 = scalar_select %p6567, %s6566, 63
        %s6569 = smul.addr %s6568, 4
        %s6570 = smul.addr %s6569, 8
        %s6571 = scalar_lea.vmem %s5, %s6570
      $region64: #{residual_vector_quantize.1} parent=55 // pred_fallthru
        _
      // Predicated region
      $region65: #{residual_vector_quantize.1} parent=55 // pred_check
        %p6572 = pneg %p184
      $region66: #{residual_vector_quantize.1} parent=55 // pred_check_branch
        %6574 = sbr.rel (%p6572) target = $region68
      $region67: #{residual_vector_quantize.1} parent=55 // pred_region
        %s6575 = smul.u32 32, %s20
        %p6576 = scmp.lt.s32.totalorder %s6575, 63
        %s6577 = scalar_select %p6576, %s6575, 63
        %s6578 = smul.addr %s6577, 8
        %s6579 = scalar_lea.vmem %s6, %s6578
      $region68: #{residual_vector_quantize.1} parent=55 // pred_fallthru
        _
      // Predicated region
      $region69: #{residual_vector_quantize.1} parent=55 // pred_check
        %p6580 = pneg %p210
      $region70: #{residual_vector_quantize.1} parent=55 // pred_check_branch
        %6582 = sbr.rel (%p6580) target = $region72
      $region71: #{residual_vector_quantize.1} parent=55 // pred_region
        %p6583 = scmp.lt.s32.totalorder %s20, 1
        %s6584 = scalar_select %p6583, %s20, 1
        %s6585 = scalar_lea.vmem %s7, %s6584
      $region72: #{residual_vector_quantize.1} parent=55 // pred_fallthru
        _
    $region56: #{residual_vector_quantize.1} parent=5 // pred_fallthru
      _
  $region6: #{residual_vector_quantize.1} parent=0 // loop_footer
    %s18 = sadd.s32 1, %s14
  $region7: #{residual_vector_quantize.1} parent=0 // loop_footer_branch
    %13 = sbr.rel target = $region3
  $region8: #{residual_vector_quantize.1} parent=0 // loop_exit
    _

</llo_original>
